<compile_context>
chip_gen: v7x
topology: tpu7x:2x2x1
jax: 0.10.0
libtpu: 0.0.40
codegen_flags: <defaults>
</compile_context>

<pallas_src>
import functools
import math

import jax
import jax.numpy as jnp
from jax.experimental import pallas as pl
from jax.experimental.pallas import tpu as pltpu


# ---------------------------------------------------------------------------
# In-kernel helpers (all elementwise math in f32; only matmul operands bf16)
# ---------------------------------------------------------------------------
def _layernorm(x, gamma, beta, eps=1e-5):
    # Single-pass statistics: var = E[x^2] - E[x]^2 -> one reduction pair,
    # no second (x - mu)^2 sweep over the [rows, E] tile.
    mu = jnp.mean(x, axis=-1, keepdims=True)
    ms = jnp.mean(x * x, axis=-1, keepdims=True)
    var = ms - mu * mu
    return (x - mu) * jax.lax.rsqrt(var + eps) * gamma + beta


def _erf(x):
    # Abramowitz & Stegun 7.1.26 polynomial (|err| < 1.5e-7); exp + approx
    # reciprocal only, so the divide rides the EUP slot.
    a1, a2, a3, a4, a5 = 0.254829592, -0.284496736, 1.421413741, -1.453152027, 1.061405429
    p = 0.3275911
    sgn = jnp.where(x >= 0.0, 1.0, -1.0)
    ax = jnp.abs(x)
    t = pl.reciprocal(1.0 + p * ax, approx=True)
    poly = ((((a5 * t + a4) * t + a3) * t + a2) * t + a1) * t
    return sgn * (1.0 - poly * jnp.exp(-ax * ax))


def _gelu_exact(x):
    # Matches torch.nn.GELU() (erf formulation).
    return 0.5 * x * (1.0 + _erf(x * 0.7071067811865476))


def _bf16(x):
    return x.astype(jnp.bfloat16)


# ---------------------------------------------------------------------------
# Fused AttentionBlock kernel: Bt sequences of [S, E] per grid step.
# ---------------------------------------------------------------------------
def attn_block_kernel(x_ref, g1_ref, be1_ref, wqkv_ref, bqkv_ref, wo_ref, bo_ref,
                      g2_ref, be2_ref, w1_ref, bb1_ref, w2_ref, bb2_ref, o_ref,
                      *, num_heads, embed_dim, seq_len, block_batch):
    E, H, S, Bt = embed_dim, num_heads, seq_len, block_batch
    Dh = E // H
    R = Bt * S                                                    # MXU rows per matmul

    x = x_ref[...].reshape(R, E)                                  # [R, E] f32

    # --- LayerNorm 1 + fused QKV: one [R,E]@[E,3E] bf16 matmul, f32 accum ---
    xn = _layernorm(x, g1_ref[...], be1_ref[...])
    qkv = jnp.dot(_bf16(xn), wqkv_ref[...],
                  preferred_element_type=jnp.float32) + bqkv_ref[...]
    q = qkv[:, 0:E]              # 1/sqrt(Dh) already folded into Q weights/bias
    k = qkv[:, E:2 * E]
    v = qkv[:, 2 * E:3 * E]

    # --- attention: only scores / softmax / PV are per (sequence, head) -----
    seq_outs = []
    for b in range(Bt):
        r0 = b * S
        head_outs = []
        for h in range(H):
            c0 = h * Dh
            qh = _bf16(q[r0:r0 + S, c0:c0 + Dh])                  # [S, Dh]
            kh = _bf16(k[r0:r0 + S, c0:c0 + Dh])
            vh = _bf16(v[r0:r0 + S, c0:c0 + Dh])
            s = jax.lax.dot_general(qh, kh, (((1,), (1,)), ((), ())),
                                    preferred_element_type=jnp.float32)   # [S, S]
            s = s - jnp.max(s, axis=-1, keepdims=True)
            p = jnp.exp(s)
            p = p * pl.reciprocal(jnp.sum(p, axis=-1, keepdims=True), approx=True)
            head_outs.append(jnp.dot(_bf16(p), vh,
                                     preferred_element_type=jnp.float32))  # [S, Dh]
        seq_outs.append(jnp.concatenate(head_outs, axis=-1))               # [S, E]
    attn = jnp.concatenate(seq_outs, axis=0)                               # [R, E]

    # --- out-projection: one [R,E]@[E,E] bf16 matmul + residual -------------
    x1 = x + jnp.dot(_bf16(attn), wo_ref[...],
                     preferred_element_type=jnp.float32) + bo_ref[...]

    # --- LayerNorm 2 + MLP (GELU), all Bt*S rows batched ---------------------
    xn2 = _layernorm(x1, g2_ref[...], be2_ref[...])
    hdn = jnp.dot(_bf16(xn2), w1_ref[...],
                  preferred_element_type=jnp.float32) + bb1_ref[...]
    hdn = _gelu_exact(hdn)
    mlp = jnp.dot(_bf16(hdn), w2_ref[...],
                  preferred_element_type=jnp.float32) + bb2_ref[...]

    # TODO(synk): nn.Dropout is identity at eval / p=0.0; no kernel emitted.
    o_ref[...] = (x1 + mlp).reshape(Bt, S, E)


# ---------------------------------------------------------------------------
# One-time parameter packing (layout prep OUTSIDE the forward pass)
# ---------------------------------------------------------------------------
def pack_params_for_kernel(p, num_heads):
    """Transpose weights to [in, out], fold the 1/sqrt(Dh) attention scale into
    the Q columns of the QKV projection, store matmul weights as bf16, and
    reshape 1-D params to [1, N] rows."""
    E = p['ln1_g'].shape[0]
    Hd = p['w1'].shape[0]
    Dh = E // num_heads
    scale = 1.0 / math.sqrt(Dh)

    wqkv_t = p['wqkv'].T                                  # [E, 3E], cols = Q | K | V
    wqkv_t = wqkv_t.at[:, :E].multiply(scale)             # fold attention scale
    bqkv = p['bqkv'].at[:E].multiply(scale)

    f32, bf16 = jnp.float32, jnp.bfloat16
    return {
        'ln1_g': p['ln1_g'].reshape(1, E).astype(f32),
        'ln1_b': p['ln1_b'].reshape(1, E).astype(f32),
        'wqkv_t': wqkv_t.astype(bf16),
        'bqkv': bqkv.reshape(1, 3 * E).astype(f32),
        'wo_t': p['wo'].T.astype(bf16),
        'bo': p['bo'].reshape(1, E).astype(f32),
        'ln2_g': p['ln2_g'].reshape(1, E).astype(f32),
        'ln2_b': p['ln2_b'].reshape(1, E).astype(f32),
        'w1_t': p['w1'].T.astype(bf16),
        'b1': p['b1'].reshape(1, Hd).astype(f32),
        'w2_t': p['w2'].T.astype(bf16),
        'b2': p['b2'].reshape(1, E).astype(f32),
    }


def _choose_block_batch(B, S, target_rows=128):
    """Largest useful batch block: aim for >= target_rows MXU rows per step,
    but keep >= 2 grid steps when B allows (so both v7x TensorCores get work)."""
    divisors = [d for d in range(1, B + 1) if B % d == 0]
    cand = [d for d in divisors if B // d >= 2] or [B]
    for d in cand:
        if d * S >= target_rows:
            return d
    return cand[-1]


# ---------------------------------------------------------------------------
# Wrapper
# ---------------------------------------------------------------------------
def attention_block_forward(x, kp, num_heads, block_batch=None):
    B, S, E = x.shape
    Bt = block_batch or _choose_block_batch(B, S)
    assert B % Bt == 0, (B, Bt)

    kernel = functools.partial(attn_block_kernel, num_heads=num_heads,
                               embed_dim=E, seq_len=S, block_batch=Bt)

    args = [
        kp['ln1_g'], kp['ln1_b'],
        kp['wqkv_t'], kp['bqkv'],
        kp['wo_t'], kp['bo'],
        kp['ln2_g'], kp['ln2_b'],
        kp['w1_t'], kp['b1'],
        kp['w2_t'], kp['b2'],
    ]

    def _rep_spec(arr):
        zeros = (0,) * arr.ndim
        # Grid-invariant weights (constant block index -> stays resident, only
        # DMA'd once).  Weights are bf16, ~0.26 MiB total at these sizes.
        # TODO(synk): at large E on v7x (64 MiB VMEM), single-buffer these via
        # pipeline_mode=pl.Buffered(1) or K-tile them instead of full residency.
        return pl.BlockSpec(arr.shape, lambda g, _z=zeros: _z)

    x_spec = pl.BlockSpec((Bt, S, E), lambda g: (g, 0, 0))

    return pl.pallas_call(
        kernel,
        out_shape=jax.ShapeDtypeStruct((B, S, E), jnp.float32),
        grid=(B // Bt,),
        in_specs=[x_spec] + [_rep_spec(a) for a in args],
        out_specs=x_spec,
        compiler_params=pltpu.CompilerParams(
            dimension_semantics=("parallel",),   # shards grid across TCs on v7x
            # Working set ~1-2 MiB (bf16 weights + a few [Bt*S, 3E] f32 tiles);
            # 32 MiB leaves headroom everywhere without claiming all of v7x's 64 MiB.
            vmem_limit_bytes=32 * 1024 * 1024,
        ),
    )(x, *args)


# ---------------------------------------------------------------------------
# Deterministic parameter init (PyTorch [out, in] convention)
# ---------------------------------------------------------------------------
def init_params(key, embed_dim, hidden_dim):
    def nrm(k, shape, scale=0.02):
        return scale * jax.random.normal(k, shape, jnp.float32)

    ks = jax.random.split(key, 6)
    return {
        'ln1_g': jnp.ones((embed_dim,), jnp.float32),
        'ln1_b': jnp.zeros((embed_dim,), jnp.float32),
        'wqkv': nrm(ks[0], (3 * embed_dim, embed_dim)),
        'bqkv': nrm(ks[1], (3 * embed_dim,)),
        'wo': nrm(ks[2], (embed_dim, embed_dim)),
        'bo': nrm(ks[3], (embed_dim,)),
        'ln2_g': jnp.ones((embed_dim,), jnp.float32),
        'ln2_b': jnp.zeros((embed_dim,), jnp.float32),
        'w1': nrm(ks[4], (hidden_dim, embed_dim)),
        'b1': nrm(ks[5], (hidden_dim,)),
        'w2': nrm(jax.random.fold_in(ks[5], 1), (embed_dim, hidden_dim)),
        'b2': jnp.zeros((embed_dim,), jnp.float32),
    }


# ---------------------------------------------------------------------------
# Pure-JAX reference (mirrors the PyTorch AttentionBlock) for validation
# ---------------------------------------------------------------------------
def _ref_layernorm(x, g, b, eps=1e-5):
    mu = x.mean(-1, keepdims=True)
    var = ((x - mu) ** 2).mean(-1, keepdims=True)
    return (x - mu) / jnp.sqrt(var + eps) * g + b


def _ref_mha(x, wqkv, bqkv, wo, bo, H):
    B, S, E = x.shape
    Dh = E // H
    qkv = x @ wqkv.T + bqkv
    q, k, v = qkv[..., :E], qkv[..., E:2 * E], qkv[..., 2 * E:]
    heads = lambda t: t.reshape(B, S, H, Dh).transpose(0, 2, 1, 3)
    q, k, v = heads(q), heads(k), heads(v)
    s = jnp.einsum('bhqd,bhkd->bhqk', q, k) / jnp.sqrt(jnp.float32(Dh))
    p = jax.nn.softmax(s, axis=-1)
    o = jnp.einsum('bhqk,bhkd->bhqd', p, v).transpose(0, 2, 1, 3).reshape(B, S, E)
    return o @ wo.T + bo


def reference_block(x, p, H):
    x = x + _ref_mha(_ref_layernorm(x, p['ln1_g'], p['ln1_b']),
                     p['wqkv'], p['bqkv'], p['wo'], p['bo'], H)
    xn = _ref_layernorm(x, p['ln2_g'], p['ln2_b'])
    h = xn @ p['w1'].T + p['b1']
    h = 0.5 * h * (1.0 + jax.scipy.special.erf(h / jnp.sqrt(2.0)))   # exact-erf GELU
    return x + (h @ p['w2'].T + p['b2'])


# ---------------------------------------------------------------------------
if __name__ == "__main__":
    # Small but TPU-aligned shapes: S multiple of 8 (sublane), E/hidden multiples
    # of 128 (lane).  B=8, S=32 -> Bt=4 picked automatically: 128-row MXU matmuls
    # per grid step and a 2-step parallel grid (keeps both v7x TCs busy).
    B, S = 8, 32
    embed_dim, hidden_dim = 128, 256
    num_heads = 4

    key = jax.random.PRNGKey(0)
    kx, kw = jax.random.split(key)
    x = jax.random.normal(kx, (B, S, embed_dim), jnp.float32)
    params = init_params(kw, embed_dim, hidden_dim)
    kernel_params = pack_params_for_kernel(params, num_heads)   # one-time layout prep

    out = attention_block_forward(x, kernel_params, num_heads)
    out = jax.block_until_ready(out)

    ref = reference_block(x, params, num_heads)
    assert out.shape == (B, S, embed_dim), out.shape
    # bf16 matmul operands + approx reciprocals -> loosened tolerance vs f32 ref.
    assert jnp.allclose(out, ref, atol=2e-2, rtol=2e-2), float(jnp.max(jnp.abs(out - ref)))
    print("KERNEL_OK")
</pallas_src>

<mosaic_0001>
module attributes {stable_mosaic.version = 11 : i64} {
  func.func @attn_block_kernel(%arg0: i32, %arg1: memref<4x32x128xf32, #tpu.memory_space<vmem>>, %arg2: memref<1x128xf32, #tpu.memory_space<vmem>>, %arg3: memref<1x128xf32, #tpu.memory_space<vmem>>, %arg4: memref<128x384xbf16, #tpu.memory_space<vmem>>, %arg5: memref<1x384xf32, #tpu.memory_space<vmem>>, %arg6: memref<128x128xbf16, #tpu.memory_space<vmem>>, %arg7: memref<1x128xf32, #tpu.memory_space<vmem>>, %arg8: memref<1x128xf32, #tpu.memory_space<vmem>>, %arg9: memref<1x128xf32, #tpu.memory_space<vmem>>, %arg10: memref<128x256xbf16, #tpu.memory_space<vmem>>, %arg11: memref<1x256xf32, #tpu.memory_space<vmem>>, %arg12: memref<256x128xbf16, #tpu.memory_space<vmem>>, %arg13: memref<1x128xf32, #tpu.memory_space<vmem>>, %arg14: memref<4x32x128xf32, #tpu.memory_space<vmem>>) attributes {dimension_semantics = [#tpu.dimension_semantics<parallel>], iteration_bounds = array<i64: 2>, scalar_prefetch = 0 : i64, scratch_operands = 0 : i64, tpu.core_type = #tpu.core_type<tc>, window_params = [{transform_indices = @transform_0, window_bounds = array<i64: 4, 32, 128>}, {pipeline_mode = #tpu.pipeline_mode<synchronous>, transform_indices = @transform_1, window_bounds = array<i64: 1, 128>}, {pipeline_mode = #tpu.pipeline_mode<synchronous>, transform_indices = @transform_2, window_bounds = array<i64: 1, 128>}, {pipeline_mode = #tpu.pipeline_mode<synchronous>, transform_indices = @transform_3, window_bounds = array<i64: 128, 384>}, {pipeline_mode = #tpu.pipeline_mode<synchronous>, transform_indices = @transform_4, window_bounds = array<i64: 1, 384>}, {pipeline_mode = #tpu.pipeline_mode<synchronous>, transform_indices = @transform_5, window_bounds = array<i64: 128, 128>}, {pipeline_mode = #tpu.pipeline_mode<synchronous>, transform_indices = @transform_6, window_bounds = array<i64: 1, 128>}, {pipeline_mode = #tpu.pipeline_mode<synchronous>, transform_indices = @transform_7, window_bounds = array<i64: 1, 128>}, {pipeline_mode = #tpu.pipeline_mode<synchronous>, transform_indices = @transform_8, window_bounds = array<i64: 1, 128>}, {pipeline_mode = #tpu.pipeline_mode<synchronous>, transform_indices = @transform_9, window_bounds = array<i64: 128, 256>}, {pipeline_mode = #tpu.pipeline_mode<synchronous>, transform_indices = @transform_10, window_bounds = array<i64: 1, 256>}, {pipeline_mode = #tpu.pipeline_mode<synchronous>, transform_indices = @transform_11, window_bounds = array<i64: 256, 128>}, {pipeline_mode = #tpu.pipeline_mode<synchronous>, transform_indices = @transform_12, window_bounds = array<i64: 1, 128>}, {transform_indices = @transform_13, window_bounds = array<i64: 4, 32, 128>}]} {
    %c0 = arith.constant 0 : index
    %c0_0 = arith.constant 0 : index
    %c0_1 = arith.constant 0 : index
    %0 = vector.load %arg1[%c0, %c0_0, %c0_1] : memref<4x32x128xf32, #tpu.memory_space<vmem>>, vector<4x32x128xf32>
    %1 = vector.shape_cast %0 : vector<4x32x128xf32> to vector<128x128xf32>
    %c0_2 = arith.constant 0 : index
    %c0_3 = arith.constant 0 : index
    %2 = vector.load %arg2[%c0_2, %c0_3] : memref<1x128xf32, #tpu.memory_space<vmem>>, vector<1x128xf32>
    %c0_4 = arith.constant 0 : index
    %c0_5 = arith.constant 0 : index
    %3 = vector.load %arg3[%c0_4, %c0_5] : memref<1x128xf32, #tpu.memory_space<vmem>>, vector<1x128xf32>
    %cst = arith.constant dense<0.000000e+00> : vector<128xf32>
    %4 = vector.multi_reduction <add>, %1, %cst [1] : vector<128x128xf32> to vector<128xf32>
    %5 = vector.shape_cast %4 : vector<128xf32> to vector<128x1xf32>
    %cst_6 = arith.constant 1.280000e+02 : f32
    %6 = vector.broadcast %cst_6 : f32 to vector<128x1xf32>
    %7 = arith.divf %5, %6 : vector<128x1xf32>
    %8 = arith.mulf %1, %1 : vector<128x128xf32>
    %cst_7 = arith.constant dense<0.000000e+00> : vector<128xf32>
    %9 = vector.multi_reduction <add>, %8, %cst_7 [1] : vector<128x128xf32> to vector<128xf32>
    %10 = vector.shape_cast %9 : vector<128xf32> to vector<128x1xf32>
    %cst_8 = arith.constant 1.280000e+02 : f32
    %11 = vector.broadcast %cst_8 : f32 to vector<128x1xf32>
    %12 = arith.divf %10, %11 : vector<128x1xf32>
    %13 = arith.mulf %7, %7 : vector<128x1xf32>
    %14 = arith.subf %12, %13 : vector<128x1xf32>
    %15 = vector.broadcast %7 : vector<128x1xf32> to vector<128x128xf32>
    %16 = arith.subf %1, %15 : vector<128x128xf32>
    %cst_9 = arith.constant 9.99999974E-6 : f32
    %17 = vector.broadcast %cst_9 : f32 to vector<128x1xf32>
    %18 = arith.addf %14, %17 : vector<128x1xf32>
    %19 = math.rsqrt %18 : vector<128x1xf32>
    %20 = vector.broadcast %19 : vector<128x1xf32> to vector<128x128xf32>
    %21 = arith.mulf %16, %20 : vector<128x128xf32>
    %22 = vector.broadcast %2 : vector<1x128xf32> to vector<128x128xf32>
    %23 = arith.mulf %21, %22 : vector<128x128xf32>
    %24 = vector.broadcast %3 : vector<1x128xf32> to vector<128x128xf32>
    %25 = arith.addf %23, %24 : vector<128x128xf32>
    %26 = arith.truncf %25 : vector<128x128xf32> to vector<128x128xbf16>
    %c0_10 = arith.constant 0 : index
    %c0_11 = arith.constant 0 : index
    %27 = vector.load %arg4[%c0_10, %c0_11] : memref<128x384xbf16, #tpu.memory_space<vmem>>, vector<128x384xbf16>
    %cst_12 = arith.constant dense<0.000000e+00> : vector<128x384xf32>
    %28 = tpu.matmul %26, %27, %cst_12 {dimension_numbers = #tpu.dot_dimension_numbers<[1], [0], [0], [1], [0, 0, 1, 1], [], []>} : vector<128x128xbf16>, vector<128x384xbf16>, vector<128x384xf32> -> vector<128x384xf32>
    %c0_13 = arith.constant 0 : index
    %c0_14 = arith.constant 0 : index
    %29 = vector.load %arg5[%c0_13, %c0_14] : memref<1x384xf32, #tpu.memory_space<vmem>>, vector<1x384xf32>
    %30 = vector.broadcast %29 : vector<1x384xf32> to vector<128x384xf32>
    %31 = arith.addf %28, %30 : vector<128x384xf32>
    %32 = vector.extract_strided_slice %31 {offsets = [0, 0], sizes = [128, 128], strides = [1, 1]} : vector<128x384xf32> to vector<128x128xf32>
    %33 = vector.extract_strided_slice %31 {offsets = [0, 128], sizes = [128, 128], strides = [1, 1]} : vector<128x384xf32> to vector<128x128xf32>
    %34 = vector.extract_strided_slice %31 {offsets = [0, 256], sizes = [128, 128], strides = [1, 1]} : vector<128x384xf32> to vector<128x128xf32>
    %35 = vector.extract_strided_slice %32 {offsets = [0, 0], sizes = [32, 32], strides = [1, 1]} : vector<128x128xf32> to vector<32x32xf32>
    %36 = arith.truncf %35 : vector<32x32xf32> to vector<32x32xbf16>
    %37 = vector.extract_strided_slice %33 {offsets = [0, 0], sizes = [32, 32], strides = [1, 1]} : vector<128x128xf32> to vector<32x32xf32>
    %38 = arith.truncf %37 : vector<32x32xf32> to vector<32x32xbf16>
    %39 = vector.extract_strided_slice %34 {offsets = [0, 0], sizes = [32, 32], strides = [1, 1]} : vector<128x128xf32> to vector<32x32xf32>
    %40 = arith.truncf %39 : vector<32x32xf32> to vector<32x32xbf16>
    %cst_15 = arith.constant dense<0.000000e+00> : vector<32x32xf32>
    %41 = tpu.matmul %36, %38, %cst_15 {dimension_numbers = #tpu.dot_dimension_numbers<[1], [1], [0], [0], [0, 0, 1, 0], [], []>} : vector<32x32xbf16>, vector<32x32xbf16>, vector<32x32xf32> -> vector<32x32xf32>
    %cst_16 = arith.constant dense<0xFF800000> : vector<32xf32>
    %42 = vector.multi_reduction <maximumf>, %41, %cst_16 [1] : vector<32x32xf32> to vector<32xf32>
    %43 = vector.shape_cast %42 : vector<32xf32> to vector<32x1xf32>
    %44 = vector.broadcast %43 : vector<32x1xf32> to vector<32x32xf32>
    %45 = arith.subf %41, %44 : vector<32x32xf32>
    %46 = math.exp %45 : vector<32x32xf32>
    %cst_17 = arith.constant dense<0.000000e+00> : vector<32xf32>
    %47 = vector.multi_reduction <add>, %46, %cst_17 [1] : vector<32x32xf32> to vector<32xf32>
    %48 = vector.shape_cast %47 : vector<32xf32> to vector<32x1xf32>
    %49 = tpu.reciprocal %48 {approx = true} : vector<32x1xf32> -> vector<32x1xf32>
    %50 = vector.broadcast %49 : vector<32x1xf32> to vector<32x32xf32>
    %51 = arith.mulf %46, %50 : vector<32x32xf32>
    %52 = arith.truncf %51 : vector<32x32xf32> to vector<32x32xbf16>
    %cst_18 = arith.constant dense<0.000000e+00> : vector<32x32xf32>
    %53 = tpu.matmul %52, %40, %cst_18 {dimension_numbers = #tpu.dot_dimension_numbers<[1], [0], [0], [1], [0, 0, 1, 1], [], []>} : vector<32x32xbf16>, vector<32x32xbf16>, vector<32x32xf32> -> vector<32x32xf32>
    %54 = vector.extract_strided_slice %32 {offsets = [0, 32], sizes = [32, 32], strides = [1, 1]} : vector<128x128xf32> to vector<32x32xf32>
    %55 = arith.truncf %54 : vector<32x32xf32> to vector<32x32xbf16>
    %56 = vector.extract_strided_slice %33 {offsets = [0, 32], sizes = [32, 32], strides = [1, 1]} : vector<128x128xf32> to vector<32x32xf32>
    %57 = arith.truncf %56 : vector<32x32xf32> to vector<32x32xbf16>
    %58 = vector.extract_strided_slice %34 {offsets = [0, 32], sizes = [32, 32], strides = [1, 1]} : vector<128x128xf32> to vector<32x32xf32>
    %59 = arith.truncf %58 : vector<32x32xf32> to vector<32x32xbf16>
    %cst_19 = arith.constant dense<0.000000e+00> : vector<32x32xf32>
    %60 = tpu.matmul %55, %57, %cst_19 {dimension_numbers = #tpu.dot_dimension_numbers<[1], [1], [0], [0], [0, 0, 1, 0], [], []>} : vector<32x32xbf16>, vector<32x32xbf16>, vector<32x32xf32> -> vector<32x32xf32>
    %cst_20 = arith.constant dense<0xFF800000> : vector<32xf32>
    %61 = vector.multi_reduction <maximumf>, %60, %cst_20 [1] : vector<32x32xf32> to vector<32xf32>
    %62 = vector.shape_cast %61 : vector<32xf32> to vector<32x1xf32>
    %63 = vector.broadcast %62 : vector<32x1xf32> to vector<32x32xf32>
    %64 = arith.subf %60, %63 : vector<32x32xf32>
    %65 = math.exp %64 : vector<32x32xf32>
    %cst_21 = arith.constant dense<0.000000e+00> : vector<32xf32>
    %66 = vector.multi_reduction <add>, %65, %cst_21 [1] : vector<32x32xf32> to vector<32xf32>
    %67 = vector.shape_cast %66 : vector<32xf32> to vector<32x1xf32>
    %68 = tpu.reciprocal %67 {approx = true} : vector<32x1xf32> -> vector<32x1xf32>
    %69 = vector.broadcast %68 : vector<32x1xf32> to vector<32x32xf32>
    %70 = arith.mulf %65, %69 : vector<32x32xf32>
    %71 = arith.truncf %70 : vector<32x32xf32> to vector<32x32xbf16>
    %cst_22 = arith.constant dense<0.000000e+00> : vector<32x32xf32>
    %72 = tpu.matmul %71, %59, %cst_22 {dimension_numbers = #tpu.dot_dimension_numbers<[1], [0], [0], [1], [0, 0, 1, 1], [], []>} : vector<32x32xbf16>, vector<32x32xbf16>, vector<32x32xf32> -> vector<32x32xf32>
    %73 = vector.extract_strided_slice %32 {offsets = [0, 64], sizes = [32, 32], strides = [1, 1]} : vector<128x128xf32> to vector<32x32xf32>
    %74 = arith.truncf %73 : vector<32x32xf32> to vector<32x32xbf16>
    %75 = vector.extract_strided_slice %33 {offsets = [0, 64], sizes = [32, 32], strides = [1, 1]} : vector<128x128xf32> to vector<32x32xf32>
    %76 = arith.truncf %75 : vector<32x32xf32> to vector<32x32xbf16>
    %77 = vector.extract_strided_slice %34 {offsets = [0, 64], sizes = [32, 32], strides = [1, 1]} : vector<128x128xf32> to vector<32x32xf32>
    %78 = arith.truncf %77 : vector<32x32xf32> to vector<32x32xbf16>
    %cst_23 = arith.constant dense<0.000000e+00> : vector<32x32xf32>
    %79 = tpu.matmul %74, %76, %cst_23 {dimension_numbers = #tpu.dot_dimension_numbers<[1], [1], [0], [0], [0, 0, 1, 0], [], []>} : vector<32x32xbf16>, vector<32x32xbf16>, vector<32x32xf32> -> vector<32x32xf32>
    %cst_24 = arith.constant dense<0xFF800000> : vector<32xf32>
    %80 = vector.multi_reduction <maximumf>, %79, %cst_24 [1] : vector<32x32xf32> to vector<32xf32>
    %81 = vector.shape_cast %80 : vector<32xf32> to vector<32x1xf32>
    %82 = vector.broadcast %81 : vector<32x1xf32> to vector<32x32xf32>
    %83 = arith.subf %79, %82 : vector<32x32xf32>
    %84 = math.exp %83 : vector<32x32xf32>
    %cst_25 = arith.constant dense<0.000000e+00> : vector<32xf32>
    %85 = vector.multi_reduction <add>, %84, %cst_25 [1] : vector<32x32xf32> to vector<32xf32>
    %86 = vector.shape_cast %85 : vector<32xf32> to vector<32x1xf32>
    %87 = tpu.reciprocal %86 {approx = true} : vector<32x1xf32> -> vector<32x1xf32>
    %88 = vector.broadcast %87 : vector<32x1xf32> to vector<32x32xf32>
    %89 = arith.mulf %84, %88 : vector<32x32xf32>
    %90 = arith.truncf %89 : vector<32x32xf32> to vector<32x32xbf16>
    %cst_26 = arith.constant dense<0.000000e+00> : vector<32x32xf32>
    %91 = tpu.matmul %90, %78, %cst_26 {dimension_numbers = #tpu.dot_dimension_numbers<[1], [0], [0], [1], [0, 0, 1, 1], [], []>} : vector<32x32xbf16>, vector<32x32xbf16>, vector<32x32xf32> -> vector<32x32xf32>
    %92 = vector.extract_strided_slice %32 {offsets = [0, 96], sizes = [32, 32], strides = [1, 1]} : vector<128x128xf32> to vector<32x32xf32>
    %93 = arith.truncf %92 : vector<32x32xf32> to vector<32x32xbf16>
    %94 = vector.extract_strided_slice %33 {offsets = [0, 96], sizes = [32, 32], strides = [1, 1]} : vector<128x128xf32> to vector<32x32xf32>
    %95 = arith.truncf %94 : vector<32x32xf32> to vector<32x32xbf16>
    %96 = vector.extract_strided_slice %34 {offsets = [0, 96], sizes = [32, 32], strides = [1, 1]} : vector<128x128xf32> to vector<32x32xf32>
    %97 = arith.truncf %96 : vector<32x32xf32> to vector<32x32xbf16>
    %cst_27 = arith.constant dense<0.000000e+00> : vector<32x32xf32>
    %98 = tpu.matmul %93, %95, %cst_27 {dimension_numbers = #tpu.dot_dimension_numbers<[1], [1], [0], [0], [0, 0, 1, 0], [], []>} : vector<32x32xbf16>, vector<32x32xbf16>, vector<32x32xf32> -> vector<32x32xf32>
    %cst_28 = arith.constant dense<0xFF800000> : vector<32xf32>
    %99 = vector.multi_reduction <maximumf>, %98, %cst_28 [1] : vector<32x32xf32> to vector<32xf32>
    %100 = vector.shape_cast %99 : vector<32xf32> to vector<32x1xf32>
    %101 = vector.broadcast %100 : vector<32x1xf32> to vector<32x32xf32>
    %102 = arith.subf %98, %101 : vector<32x32xf32>
    %103 = math.exp %102 : vector<32x32xf32>
    %cst_29 = arith.constant dense<0.000000e+00> : vector<32xf32>
    %104 = vector.multi_reduction <add>, %103, %cst_29 [1] : vector<32x32xf32> to vector<32xf32>
    %105 = vector.shape_cast %104 : vector<32xf32> to vector<32x1xf32>
    %106 = tpu.reciprocal %105 {approx = true} : vector<32x1xf32> -> vector<32x1xf32>
    %107 = vector.broadcast %106 : vector<32x1xf32> to vector<32x32xf32>
    %108 = arith.mulf %103, %107 : vector<32x32xf32>
    %109 = arith.truncf %108 : vector<32x32xf32> to vector<32x32xbf16>
    %cst_30 = arith.constant dense<0.000000e+00> : vector<32x32xf32>
    %110 = tpu.matmul %109, %97, %cst_30 {dimension_numbers = #tpu.dot_dimension_numbers<[1], [0], [0], [1], [0, 0, 1, 1], [], []>} : vector<32x32xbf16>, vector<32x32xbf16>, vector<32x32xf32> -> vector<32x32xf32>
    %111 = tpu.concatenate %53, %72, %91, %110 in 1 : vector<32x32xf32>, vector<32x32xf32>, vector<32x32xf32>, vector<32x32xf32> -> vector<32x128xf32>
    %112 = vector.extract_strided_slice %32 {offsets = [32, 0], sizes = [32, 32], strides = [1, 1]} : vector<128x128xf32> to vector<32x32xf32>
    %113 = arith.truncf %112 : vector<32x32xf32> to vector<32x32xbf16>
    %114 = vector.extract_strided_slice %33 {offsets = [32, 0], sizes = [32, 32], strides = [1, 1]} : vector<128x128xf32> to vector<32x32xf32>
    %115 = arith.truncf %114 : vector<32x32xf32> to vector<32x32xbf16>
    %116 = vector.extract_strided_slice %34 {offsets = [32, 0], sizes = [32, 32], strides = [1, 1]} : vector<128x128xf32> to vector<32x32xf32>
    %117 = arith.truncf %116 : vector<32x32xf32> to vector<32x32xbf16>
    %cst_31 = arith.constant dense<0.000000e+00> : vector<32x32xf32>
    %118 = tpu.matmul %113, %115, %cst_31 {dimension_numbers = #tpu.dot_dimension_numbers<[1], [1], [0], [0], [0, 0, 1, 0], [], []>} : vector<32x32xbf16>, vector<32x32xbf16>, vector<32x32xf32> -> vector<32x32xf32>
    %cst_32 = arith.constant dense<0xFF800000> : vector<32xf32>
    %119 = vector.multi_reduction <maximumf>, %118, %cst_32 [1] : vector<32x32xf32> to vector<32xf32>
    %120 = vector.shape_cast %119 : vector<32xf32> to vector<32x1xf32>
    %121 = vector.broadcast %120 : vector<32x1xf32> to vector<32x32xf32>
    %122 = arith.subf %118, %121 : vector<32x32xf32>
    %123 = math.exp %122 : vector<32x32xf32>
    %cst_33 = arith.constant dense<0.000000e+00> : vector<32xf32>
    %124 = vector.multi_reduction <add>, %123, %cst_33 [1] : vector<32x32xf32> to vector<32xf32>
    %125 = vector.shape_cast %124 : vector<32xf32> to vector<32x1xf32>
    %126 = tpu.reciprocal %125 {approx = true} : vector<32x1xf32> -> vector<32x1xf32>
    %127 = vector.broadcast %126 : vector<32x1xf32> to vector<32x32xf32>
    %128 = arith.mulf %123, %127 : vector<32x32xf32>
    %129 = arith.truncf %128 : vector<32x32xf32> to vector<32x32xbf16>
    %cst_34 = arith.constant dense<0.000000e+00> : vector<32x32xf32>
    %130 = tpu.matmul %129, %117, %cst_34 {dimension_numbers = #tpu.dot_dimension_numbers<[1], [0], [0], [1], [0, 0, 1, 1], [], []>} : vector<32x32xbf16>, vector<32x32xbf16>, vector<32x32xf32> -> vector<32x32xf32>
    %131 = vector.extract_strided_slice %32 {offsets = [32, 32], sizes = [32, 32], strides = [1, 1]} : vector<128x128xf32> to vector<32x32xf32>
    %132 = arith.truncf %131 : vector<32x32xf32> to vector<32x32xbf16>
    %133 = vector.extract_strided_slice %33 {offsets = [32, 32], sizes = [32, 32], strides = [1, 1]} : vector<128x128xf32> to vector<32x32xf32>
    %134 = arith.truncf %133 : vector<32x32xf32> to vector<32x32xbf16>
    %135 = vector.extract_strided_slice %34 {offsets = [32, 32], sizes = [32, 32], strides = [1, 1]} : vector<128x128xf32> to vector<32x32xf32>
    %136 = arith.truncf %135 : vector<32x32xf32> to vector<32x32xbf16>
    %cst_35 = arith.constant dense<0.000000e+00> : vector<32x32xf32>
    %137 = tpu.matmul %132, %134, %cst_35 {dimension_numbers = #tpu.dot_dimension_numbers<[1], [1], [0], [0], [0, 0, 1, 0], [], []>} : vector<32x32xbf16>, vector<32x32xbf16>, vector<32x32xf32> -> vector<32x32xf32>
    %cst_36 = arith.constant dense<0xFF800000> : vector<32xf32>
    %138 = vector.multi_reduction <maximumf>, %137, %cst_36 [1] : vector<32x32xf32> to vector<32xf32>
    %139 = vector.shape_cast %138 : vector<32xf32> to vector<32x1xf32>
    %140 = vector.broadcast %139 : vector<32x1xf32> to vector<32x32xf32>
    %141 = arith.subf %137, %140 : vector<32x32xf32>
    %142 = math.exp %141 : vector<32x32xf32>
    %cst_37 = arith.constant dense<0.000000e+00> : vector<32xf32>
    %143 = vector.multi_reduction <add>, %142, %cst_37 [1] : vector<32x32xf32> to vector<32xf32>
    %144 = vector.shape_cast %143 : vector<32xf32> to vector<32x1xf32>
    %145 = tpu.reciprocal %144 {approx = true} : vector<32x1xf32> -> vector<32x1xf32>
    %146 = vector.broadcast %145 : vector<32x1xf32> to vector<32x32xf32>
    %147 = arith.mulf %142, %146 : vector<32x32xf32>
    %148 = arith.truncf %147 : vector<32x32xf32> to vector<32x32xbf16>
    %cst_38 = arith.constant dense<0.000000e+00> : vector<32x32xf32>
    %149 = tpu.matmul %148, %136, %cst_38 {dimension_numbers = #tpu.dot_dimension_numbers<[1], [0], [0], [1], [0, 0, 1, 1], [], []>} : vector<32x32xbf16>, vector<32x32xbf16>, vector<32x32xf32> -> vector<32x32xf32>
    %150 = vector.extract_strided_slice %32 {offsets = [32, 64], sizes = [32, 32], strides = [1, 1]} : vector<128x128xf32> to vector<32x32xf32>
    %151 = arith.truncf %150 : vector<32x32xf32> to vector<32x32xbf16>
    %152 = vector.extract_strided_slice %33 {offsets = [32, 64], sizes = [32, 32], strides = [1, 1]} : vector<128x128xf32> to vector<32x32xf32>
    %153 = arith.truncf %152 : vector<32x32xf32> to vector<32x32xbf16>
    %154 = vector.extract_strided_slice %34 {offsets = [32, 64], sizes = [32, 32], strides = [1, 1]} : vector<128x128xf32> to vector<32x32xf32>
    %155 = arith.truncf %154 : vector<32x32xf32> to vector<32x32xbf16>
    %cst_39 = arith.constant dense<0.000000e+00> : vector<32x32xf32>
    %156 = tpu.matmul %151, %153, %cst_39 {dimension_numbers = #tpu.dot_dimension_numbers<[1], [1], [0], [0], [0, 0, 1, 0], [], []>} : vector<32x32xbf16>, vector<32x32xbf16>, vector<32x32xf32> -> vector<32x32xf32>
    %cst_40 = arith.constant dense<0xFF800000> : vector<32xf32>
    %157 = vector.multi_reduction <maximumf>, %156, %cst_40 [1] : vector<32x32xf32> to vector<32xf32>
    %158 = vector.shape_cast %157 : vector<32xf32> to vector<32x1xf32>
    %159 = vector.broadcast %158 : vector<32x1xf32> to vector<32x32xf32>
    %160 = arith.subf %156, %159 : vector<32x32xf32>
    %161 = math.exp %160 : vector<32x32xf32>
    %cst_41 = arith.constant dense<0.000000e+00> : vector<32xf32>
    %162 = vector.multi_reduction <add>, %161, %cst_41 [1] : vector<32x32xf32> to vector<32xf32>
    %163 = vector.shape_cast %162 : vector<32xf32> to vector<32x1xf32>
    %164 = tpu.reciprocal %163 {approx = true} : vector<32x1xf32> -> vector<32x1xf32>
    %165 = vector.broadcast %164 : vector<32x1xf32> to vector<32x32xf32>
    %166 = arith.mulf %161, %165 : vector<32x32xf32>
    %167 = arith.truncf %166 : vector<32x32xf32> to vector<32x32xbf16>
    %cst_42 = arith.constant dense<0.000000e+00> : vector<32x32xf32>
    %168 = tpu.matmul %167, %155, %cst_42 {dimension_numbers = #tpu.dot_dimension_numbers<[1], [0], [0], [1], [0, 0, 1, 1], [], []>} : vector<32x32xbf16>, vector<32x32xbf16>, vector<32x32xf32> -> vector<32x32xf32>
    %169 = vector.extract_strided_slice %32 {offsets = [32, 96], sizes = [32, 32], strides = [1, 1]} : vector<128x128xf32> to vector<32x32xf32>
    %170 = arith.truncf %169 : vector<32x32xf32> to vector<32x32xbf16>
    %171 = vector.extract_strided_slice %33 {offsets = [32, 96], sizes = [32, 32], strides = [1, 1]} : vector<128x128xf32> to vector<32x32xf32>
    %172 = arith.truncf %171 : vector<32x32xf32> to vector<32x32xbf16>
    %173 = vector.extract_strided_slice %34 {offsets = [32, 96], sizes = [32, 32], strides = [1, 1]} : vector<128x128xf32> to vector<32x32xf32>
    %174 = arith.truncf %173 : vector<32x32xf32> to vector<32x32xbf16>
    %cst_43 = arith.constant dense<0.000000e+00> : vector<32x32xf32>
    %175 = tpu.matmul %170, %172, %cst_43 {dimension_numbers = #tpu.dot_dimension_numbers<[1], [1], [0], [0], [0, 0, 1, 0], [], []>} : vector<32x32xbf16>, vector<32x32xbf16>, vector<32x32xf32> -> vector<32x32xf32>
    %cst_44 = arith.constant dense<0xFF800000> : vector<32xf32>
    %176 = vector.multi_reduction <maximumf>, %175, %cst_44 [1] : vector<32x32xf32> to vector<32xf32>
    %177 = vector.shape_cast %176 : vector<32xf32> to vector<32x1xf32>
    %178 = vector.broadcast %177 : vector<32x1xf32> to vector<32x32xf32>
    %179 = arith.subf %175, %178 : vector<32x32xf32>
    %180 = math.exp %179 : vector<32x32xf32>
    %cst_45 = arith.constant dense<0.000000e+00> : vector<32xf32>
    %181 = vector.multi_reduction <add>, %180, %cst_45 [1] : vector<32x32xf32> to vector<32xf32>
    %182 = vector.shape_cast %181 : vector<32xf32> to vector<32x1xf32>
    %183 = tpu.reciprocal %182 {approx = true} : vector<32x1xf32> -> vector<32x1xf32>
    %184 = vector.broadcast %183 : vector<32x1xf32> to vector<32x32xf32>
    %185 = arith.mulf %180, %184 : vector<32x32xf32>
    %186 = arith.truncf %185 : vector<32x32xf32> to vector<32x32xbf16>
    %cst_46 = arith.constant dense<0.000000e+00> : vector<32x32xf32>
    %187 = tpu.matmul %186, %174, %cst_46 {dimension_numbers = #tpu.dot_dimension_numbers<[1], [0], [0], [1], [0, 0, 1, 1], [], []>} : vector<32x32xbf16>, vector<32x32xbf16>, vector<32x32xf32> -> vector<32x32xf32>
    %188 = tpu.concatenate %130, %149, %168, %187 in 1 : vector<32x32xf32>, vector<32x32xf32>, vector<32x32xf32>, vector<32x32xf32> -> vector<32x128xf32>
    %189 = vector.extract_strided_slice %32 {offsets = [64, 0], sizes = [32, 32], strides = [1, 1]} : vector<128x128xf32> to vector<32x32xf32>
    %190 = arith.truncf %189 : vector<32x32xf32> to vector<32x32xbf16>
    %191 = vector.extract_strided_slice %33 {offsets = [64, 0], sizes = [32, 32], strides = [1, 1]} : vector<128x128xf32> to vector<32x32xf32>
    %192 = arith.truncf %191 : vector<32x32xf32> to vector<32x32xbf16>
    %193 = vector.extract_strided_slice %34 {offsets = [64, 0], sizes = [32, 32], strides = [1, 1]} : vector<128x128xf32> to vector<32x32xf32>
    %194 = arith.truncf %193 : vector<32x32xf32> to vector<32x32xbf16>
    %cst_47 = arith.constant dense<0.000000e+00> : vector<32x32xf32>
    %195 = tpu.matmul %190, %192, %cst_47 {dimension_numbers = #tpu.dot_dimension_numbers<[1], [1], [0], [0], [0, 0, 1, 0], [], []>} : vector<32x32xbf16>, vector<32x32xbf16>, vector<32x32xf32> -> vector<32x32xf32>
    %cst_48 = arith.constant dense<0xFF800000> : vector<32xf32>
    %196 = vector.multi_reduction <maximumf>, %195, %cst_48 [1] : vector<32x32xf32> to vector<32xf32>
    %197 = vector.shape_cast %196 : vector<32xf32> to vector<32x1xf32>
    %198 = vector.broadcast %197 : vector<32x1xf32> to vector<32x32xf32>
    %199 = arith.subf %195, %198 : vector<32x32xf32>
    %200 = math.exp %199 : vector<32x32xf32>
    %cst_49 = arith.constant dense<0.000000e+00> : vector<32xf32>
    %201 = vector.multi_reduction <add>, %200, %cst_49 [1] : vector<32x32xf32> to vector<32xf32>
    %202 = vector.shape_cast %201 : vector<32xf32> to vector<32x1xf32>
    %203 = tpu.reciprocal %202 {approx = true} : vector<32x1xf32> -> vector<32x1xf32>
    %204 = vector.broadcast %203 : vector<32x1xf32> to vector<32x32xf32>
    %205 = arith.mulf %200, %204 : vector<32x32xf32>
    %206 = arith.truncf %205 : vector<32x32xf32> to vector<32x32xbf16>
    %cst_50 = arith.constant dense<0.000000e+00> : vector<32x32xf32>
    %207 = tpu.matmul %206, %194, %cst_50 {dimension_numbers = #tpu.dot_dimension_numbers<[1], [0], [0], [1], [0, 0, 1, 1], [], []>} : vector<32x32xbf16>, vector<32x32xbf16>, vector<32x32xf32> -> vector<32x32xf32>
    %208 = vector.extract_strided_slice %32 {offsets = [64, 32], sizes = [32, 32], strides = [1, 1]} : vector<128x128xf32> to vector<32x32xf32>
    %209 = arith.truncf %208 : vector<32x32xf32> to vector<32x32xbf16>
    %210 = vector.extract_strided_slice %33 {offsets = [64, 32], sizes = [32, 32], strides = [1, 1]} : vector<128x128xf32> to vector<32x32xf32>
    %211 = arith.truncf %210 : vector<32x32xf32> to vector<32x32xbf16>
    %212 = vector.extract_strided_slice %34 {offsets = [64, 32], sizes = [32, 32], strides = [1, 1]} : vector<128x128xf32> to vector<32x32xf32>
    %213 = arith.truncf %212 : vector<32x32xf32> to vector<32x32xbf16>
    %cst_51 = arith.constant dense<0.000000e+00> : vector<32x32xf32>
    %214 = tpu.matmul %209, %211, %cst_51 {dimension_numbers = #tpu.dot_dimension_numbers<[1], [1], [0], [0], [0, 0, 1, 0], [], []>} : vector<32x32xbf16>, vector<32x32xbf16>, vector<32x32xf32> -> vector<32x32xf32>
    %cst_52 = arith.constant dense<0xFF800000> : vector<32xf32>
    %215 = vector.multi_reduction <maximumf>, %214, %cst_52 [1] : vector<32x32xf32> to vector<32xf32>
    %216 = vector.shape_cast %215 : vector<32xf32> to vector<32x1xf32>
    %217 = vector.broadcast %216 : vector<32x1xf32> to vector<32x32xf32>
    %218 = arith.subf %214, %217 : vector<32x32xf32>
    %219 = math.exp %218 : vector<32x32xf32>
    %cst_53 = arith.constant dense<0.000000e+00> : vector<32xf32>
    %220 = vector.multi_reduction <add>, %219, %cst_53 [1] : vector<32x32xf32> to vector<32xf32>
    %221 = vector.shape_cast %220 : vector<32xf32> to vector<32x1xf32>
    %222 = tpu.reciprocal %221 {approx = true} : vector<32x1xf32> -> vector<32x1xf32>
    %223 = vector.broadcast %222 : vector<32x1xf32> to vector<32x32xf32>
    %224 = arith.mulf %219, %223 : vector<32x32xf32>
    %225 = arith.truncf %224 : vector<32x32xf32> to vector<32x32xbf16>
    %cst_54 = arith.constant dense<0.000000e+00> : vector<32x32xf32>
    %226 = tpu.matmul %225, %213, %cst_54 {dimension_numbers = #tpu.dot_dimension_numbers<[1], [0], [0], [1], [0, 0, 1, 1], [], []>} : vector<32x32xbf16>, vector<32x32xbf16>, vector<32x32xf32> -> vector<32x32xf32>
    %227 = vector.extract_strided_slice %32 {offsets = [64, 64], sizes = [32, 32], strides = [1, 1]} : vector<128x128xf32> to vector<32x32xf32>
    %228 = arith.truncf %227 : vector<32x32xf32> to vector<32x32xbf16>
    %229 = vector.extract_strided_slice %33 {offsets = [64, 64], sizes = [32, 32], strides = [1, 1]} : vector<128x128xf32> to vector<32x32xf32>
    %230 = arith.truncf %229 : vector<32x32xf32> to vector<32x32xbf16>
    %231 = vector.extract_strided_slice %34 {offsets = [64, 64], sizes = [32, 32], strides = [1, 1]} : vector<128x128xf32> to vector<32x32xf32>
    %232 = arith.truncf %231 : vector<32x32xf32> to vector<32x32xbf16>
    %cst_55 = arith.constant dense<0.000000e+00> : vector<32x32xf32>
    %233 = tpu.matmul %228, %230, %cst_55 {dimension_numbers = #tpu.dot_dimension_numbers<[1], [1], [0], [0], [0, 0, 1, 0], [], []>} : vector<32x32xbf16>, vector<32x32xbf16>, vector<32x32xf32> -> vector<32x32xf32>
    %cst_56 = arith.constant dense<0xFF800000> : vector<32xf32>
    %234 = vector.multi_reduction <maximumf>, %233, %cst_56 [1] : vector<32x32xf32> to vector<32xf32>
    %235 = vector.shape_cast %234 : vector<32xf32> to vector<32x1xf32>
    %236 = vector.broadcast %235 : vector<32x1xf32> to vector<32x32xf32>
    %237 = arith.subf %233, %236 : vector<32x32xf32>
    %238 = math.exp %237 : vector<32x32xf32>
    %cst_57 = arith.constant dense<0.000000e+00> : vector<32xf32>
    %239 = vector.multi_reduction <add>, %238, %cst_57 [1] : vector<32x32xf32> to vector<32xf32>
    %240 = vector.shape_cast %239 : vector<32xf32> to vector<32x1xf32>
    %241 = tpu.reciprocal %240 {approx = true} : vector<32x1xf32> -> vector<32x1xf32>
    %242 = vector.broadcast %241 : vector<32x1xf32> to vector<32x32xf32>
    %243 = arith.mulf %238, %242 : vector<32x32xf32>
    %244 = arith.truncf %243 : vector<32x32xf32> to vector<32x32xbf16>
    %cst_58 = arith.constant dense<0.000000e+00> : vector<32x32xf32>
    %245 = tpu.matmul %244, %232, %cst_58 {dimension_numbers = #tpu.dot_dimension_numbers<[1], [0], [0], [1], [0, 0, 1, 1], [], []>} : vector<32x32xbf16>, vector<32x32xbf16>, vector<32x32xf32> -> vector<32x32xf32>
    %246 = vector.extract_strided_slice %32 {offsets = [64, 96], sizes = [32, 32], strides = [1, 1]} : vector<128x128xf32> to vector<32x32xf32>
    %247 = arith.truncf %246 : vector<32x32xf32> to vector<32x32xbf16>
    %248 = vector.extract_strided_slice %33 {offsets = [64, 96], sizes = [32, 32], strides = [1, 1]} : vector<128x128xf32> to vector<32x32xf32>
    %249 = arith.truncf %248 : vector<32x32xf32> to vector<32x32xbf16>
    %250 = vector.extract_strided_slice %34 {offsets = [64, 96], sizes = [32, 32], strides = [1, 1]} : vector<128x128xf32> to vector<32x32xf32>
    %251 = arith.truncf %250 : vector<32x32xf32> to vector<32x32xbf16>
    %cst_59 = arith.constant dense<0.000000e+00> : vector<32x32xf32>
    %252 = tpu.matmul %247, %249, %cst_59 {dimension_numbers = #tpu.dot_dimension_numbers<[1], [1], [0], [0], [0, 0, 1, 0], [], []>} : vector<32x32xbf16>, vector<32x32xbf16>, vector<32x32xf32> -> vector<32x32xf32>
    %cst_60 = arith.constant dense<0xFF800000> : vector<32xf32>
    %253 = vector.multi_reduction <maximumf>, %252, %cst_60 [1] : vector<32x32xf32> to vector<32xf32>
    %254 = vector.shape_cast %253 : vector<32xf32> to vector<32x1xf32>
    %255 = vector.broadcast %254 : vector<32x1xf32> to vector<32x32xf32>
    %256 = arith.subf %252, %255 : vector<32x32xf32>
    %257 = math.exp %256 : vector<32x32xf32>
    %cst_61 = arith.constant dense<0.000000e+00> : vector<32xf32>
    %258 = vector.multi_reduction <add>, %257, %cst_61 [1] : vector<32x32xf32> to vector<32xf32>
    %259 = vector.shape_cast %258 : vector<32xf32> to vector<32x1xf32>
    %260 = tpu.reciprocal %259 {approx = true} : vector<32x1xf32> -> vector<32x1xf32>
    %261 = vector.broadcast %260 : vector<32x1xf32> to vector<32x32xf32>
    %262 = arith.mulf %257, %261 : vector<32x32xf32>
    %263 = arith.truncf %262 : vector<32x32xf32> to vector<32x32xbf16>
    %cst_62 = arith.constant dense<0.000000e+00> : vector<32x32xf32>
    %264 = tpu.matmul %263, %251, %cst_62 {dimension_numbers = #tpu.dot_dimension_numbers<[1], [0], [0], [1], [0, 0, 1, 1], [], []>} : vector<32x32xbf16>, vector<32x32xbf16>, vector<32x32xf32> -> vector<32x32xf32>
    %265 = tpu.concatenate %207, %226, %245, %264 in 1 : vector<32x32xf32>, vector<32x32xf32>, vector<32x32xf32>, vector<32x32xf32> -> vector<32x128xf32>
    %266 = vector.extract_strided_slice %32 {offsets = [96, 0], sizes = [32, 32], strides = [1, 1]} : vector<128x128xf32> to vector<32x32xf32>
    %267 = arith.truncf %266 : vector<32x32xf32> to vector<32x32xbf16>
    %268 = vector.extract_strided_slice %33 {offsets = [96, 0], sizes = [32, 32], strides = [1, 1]} : vector<128x128xf32> to vector<32x32xf32>
    %269 = arith.truncf %268 : vector<32x32xf32> to vector<32x32xbf16>
    %270 = vector.extract_strided_slice %34 {offsets = [96, 0], sizes = [32, 32], strides = [1, 1]} : vector<128x128xf32> to vector<32x32xf32>
    %271 = arith.truncf %270 : vector<32x32xf32> to vector<32x32xbf16>
    %cst_63 = arith.constant dense<0.000000e+00> : vector<32x32xf32>
    %272 = tpu.matmul %267, %269, %cst_63 {dimension_numbers = #tpu.dot_dimension_numbers<[1], [1], [0], [0], [0, 0, 1, 0], [], []>} : vector<32x32xbf16>, vector<32x32xbf16>, vector<32x32xf32> -> vector<32x32xf32>
    %cst_64 = arith.constant dense<0xFF800000> : vector<32xf32>
    %273 = vector.multi_reduction <maximumf>, %272, %cst_64 [1] : vector<32x32xf32> to vector<32xf32>
    %274 = vector.shape_cast %273 : vector<32xf32> to vector<32x1xf32>
    %275 = vector.broadcast %274 : vector<32x1xf32> to vector<32x32xf32>
    %276 = arith.subf %272, %275 : vector<32x32xf32>
    %277 = math.exp %276 : vector<32x32xf32>
    %cst_65 = arith.constant dense<0.000000e+00> : vector<32xf32>
    %278 = vector.multi_reduction <add>, %277, %cst_65 [1] : vector<32x32xf32> to vector<32xf32>
    %279 = vector.shape_cast %278 : vector<32xf32> to vector<32x1xf32>
    %280 = tpu.reciprocal %279 {approx = true} : vector<32x1xf32> -> vector<32x1xf32>
    %281 = vector.broadcast %280 : vector<32x1xf32> to vector<32x32xf32>
    %282 = arith.mulf %277, %281 : vector<32x32xf32>
    %283 = arith.truncf %282 : vector<32x32xf32> to vector<32x32xbf16>
    %cst_66 = arith.constant dense<0.000000e+00> : vector<32x32xf32>
    %284 = tpu.matmul %283, %271, %cst_66 {dimension_numbers = #tpu.dot_dimension_numbers<[1], [0], [0], [1], [0, 0, 1, 1], [], []>} : vector<32x32xbf16>, vector<32x32xbf16>, vector<32x32xf32> -> vector<32x32xf32>
    %285 = vector.extract_strided_slice %32 {offsets = [96, 32], sizes = [32, 32], strides = [1, 1]} : vector<128x128xf32> to vector<32x32xf32>
    %286 = arith.truncf %285 : vector<32x32xf32> to vector<32x32xbf16>
    %287 = vector.extract_strided_slice %33 {offsets = [96, 32], sizes = [32, 32], strides = [1, 1]} : vector<128x128xf32> to vector<32x32xf32>
    %288 = arith.truncf %287 : vector<32x32xf32> to vector<32x32xbf16>
    %289 = vector.extract_strided_slice %34 {offsets = [96, 32], sizes = [32, 32], strides = [1, 1]} : vector<128x128xf32> to vector<32x32xf32>
    %290 = arith.truncf %289 : vector<32x32xf32> to vector<32x32xbf16>
    %cst_67 = arith.constant dense<0.000000e+00> : vector<32x32xf32>
    %291 = tpu.matmul %286, %288, %cst_67 {dimension_numbers = #tpu.dot_dimension_numbers<[1], [1], [0], [0], [0, 0, 1, 0], [], []>} : vector<32x32xbf16>, vector<32x32xbf16>, vector<32x32xf32> -> vector<32x32xf32>
    %cst_68 = arith.constant dense<0xFF800000> : vector<32xf32>
    %292 = vector.multi_reduction <maximumf>, %291, %cst_68 [1] : vector<32x32xf32> to vector<32xf32>
    %293 = vector.shape_cast %292 : vector<32xf32> to vector<32x1xf32>
    %294 = vector.broadcast %293 : vector<32x1xf32> to vector<32x32xf32>
    %295 = arith.subf %291, %294 : vector<32x32xf32>
    %296 = math.exp %295 : vector<32x32xf32>
    %cst_69 = arith.constant dense<0.000000e+00> : vector<32xf32>
    %297 = vector.multi_reduction <add>, %296, %cst_69 [1] : vector<32x32xf32> to vector<32xf32>
    %298 = vector.shape_cast %297 : vector<32xf32> to vector<32x1xf32>
    %299 = tpu.reciprocal %298 {approx = true} : vector<32x1xf32> -> vector<32x1xf32>
    %300 = vector.broadcast %299 : vector<32x1xf32> to vector<32x32xf32>
    %301 = arith.mulf %296, %300 : vector<32x32xf32>
    %302 = arith.truncf %301 : vector<32x32xf32> to vector<32x32xbf16>
    %cst_70 = arith.constant dense<0.000000e+00> : vector<32x32xf32>
    %303 = tpu.matmul %302, %290, %cst_70 {dimension_numbers = #tpu.dot_dimension_numbers<[1], [0], [0], [1], [0, 0, 1, 1], [], []>} : vector<32x32xbf16>, vector<32x32xbf16>, vector<32x32xf32> -> vector<32x32xf32>
    %304 = vector.extract_strided_slice %32 {offsets = [96, 64], sizes = [32, 32], strides = [1, 1]} : vector<128x128xf32> to vector<32x32xf32>
    %305 = arith.truncf %304 : vector<32x32xf32> to vector<32x32xbf16>
    %306 = vector.extract_strided_slice %33 {offsets = [96, 64], sizes = [32, 32], strides = [1, 1]} : vector<128x128xf32> to vector<32x32xf32>
    %307 = arith.truncf %306 : vector<32x32xf32> to vector<32x32xbf16>
    %308 = vector.extract_strided_slice %34 {offsets = [96, 64], sizes = [32, 32], strides = [1, 1]} : vector<128x128xf32> to vector<32x32xf32>
    %309 = arith.truncf %308 : vector<32x32xf32> to vector<32x32xbf16>
    %cst_71 = arith.constant dense<0.000000e+00> : vector<32x32xf32>
    %310 = tpu.matmul %305, %307, %cst_71 {dimension_numbers = #tpu.dot_dimension_numbers<[1], [1], [0], [0], [0, 0, 1, 0], [], []>} : vector<32x32xbf16>, vector<32x32xbf16>, vector<32x32xf32> -> vector<32x32xf32>
    %cst_72 = arith.constant dense<0xFF800000> : vector<32xf32>
    %311 = vector.multi_reduction <maximumf>, %310, %cst_72 [1] : vector<32x32xf32> to vector<32xf32>
    %312 = vector.shape_cast %311 : vector<32xf32> to vector<32x1xf32>
    %313 = vector.broadcast %312 : vector<32x1xf32> to vector<32x32xf32>
    %314 = arith.subf %310, %313 : vector<32x32xf32>
    %315 = math.exp %314 : vector<32x32xf32>
    %cst_73 = arith.constant dense<0.000000e+00> : vector<32xf32>
    %316 = vector.multi_reduction <add>, %315, %cst_73 [1] : vector<32x32xf32> to vector<32xf32>
    %317 = vector.shape_cast %316 : vector<32xf32> to vector<32x1xf32>
    %318 = tpu.reciprocal %317 {approx = true} : vector<32x1xf32> -> vector<32x1xf32>
    %319 = vector.broadcast %318 : vector<32x1xf32> to vector<32x32xf32>
    %320 = arith.mulf %315, %319 : vector<32x32xf32>
    %321 = arith.truncf %320 : vector<32x32xf32> to vector<32x32xbf16>
    %cst_74 = arith.constant dense<0.000000e+00> : vector<32x32xf32>
    %322 = tpu.matmul %321, %309, %cst_74 {dimension_numbers = #tpu.dot_dimension_numbers<[1], [0], [0], [1], [0, 0, 1, 1], [], []>} : vector<32x32xbf16>, vector<32x32xbf16>, vector<32x32xf32> -> vector<32x32xf32>
    %323 = vector.extract_strided_slice %32 {offsets = [96, 96], sizes = [32, 32], strides = [1, 1]} : vector<128x128xf32> to vector<32x32xf32>
    %324 = arith.truncf %323 : vector<32x32xf32> to vector<32x32xbf16>
    %325 = vector.extract_strided_slice %33 {offsets = [96, 96], sizes = [32, 32], strides = [1, 1]} : vector<128x128xf32> to vector<32x32xf32>
    %326 = arith.truncf %325 : vector<32x32xf32> to vector<32x32xbf16>
    %327 = vector.extract_strided_slice %34 {offsets = [96, 96], sizes = [32, 32], strides = [1, 1]} : vector<128x128xf32> to vector<32x32xf32>
    %328 = arith.truncf %327 : vector<32x32xf32> to vector<32x32xbf16>
    %cst_75 = arith.constant dense<0.000000e+00> : vector<32x32xf32>
    %329 = tpu.matmul %324, %326, %cst_75 {dimension_numbers = #tpu.dot_dimension_numbers<[1], [1], [0], [0], [0, 0, 1, 0], [], []>} : vector<32x32xbf16>, vector<32x32xbf16>, vector<32x32xf32> -> vector<32x32xf32>
    %cst_76 = arith.constant dense<0xFF800000> : vector<32xf32>
    %330 = vector.multi_reduction <maximumf>, %329, %cst_76 [1] : vector<32x32xf32> to vector<32xf32>
    %331 = vector.shape_cast %330 : vector<32xf32> to vector<32x1xf32>
    %332 = vector.broadcast %331 : vector<32x1xf32> to vector<32x32xf32>
    %333 = arith.subf %329, %332 : vector<32x32xf32>
    %334 = math.exp %333 : vector<32x32xf32>
    %cst_77 = arith.constant dense<0.000000e+00> : vector<32xf32>
    %335 = vector.multi_reduction <add>, %334, %cst_77 [1] : vector<32x32xf32> to vector<32xf32>
    %336 = vector.shape_cast %335 : vector<32xf32> to vector<32x1xf32>
    %337 = tpu.reciprocal %336 {approx = true} : vector<32x1xf32> -> vector<32x1xf32>
    %338 = vector.broadcast %337 : vector<32x1xf32> to vector<32x32xf32>
    %339 = arith.mulf %334, %338 : vector<32x32xf32>
    %340 = arith.truncf %339 : vector<32x32xf32> to vector<32x32xbf16>
    %cst_78 = arith.constant dense<0.000000e+00> : vector<32x32xf32>
    %341 = tpu.matmul %340, %328, %cst_78 {dimension_numbers = #tpu.dot_dimension_numbers<[1], [0], [0], [1], [0, 0, 1, 1], [], []>} : vector<32x32xbf16>, vector<32x32xbf16>, vector<32x32xf32> -> vector<32x32xf32>
    %342 = tpu.concatenate %284, %303, %322, %341 in 1 : vector<32x32xf32>, vector<32x32xf32>, vector<32x32xf32>, vector<32x32xf32> -> vector<32x128xf32>
    %343 = tpu.concatenate %111, %188, %265, %342 in 0 : vector<32x128xf32>, vector<32x128xf32>, vector<32x128xf32>, vector<32x128xf32> -> vector<128x128xf32>
    %344 = arith.truncf %343 : vector<128x128xf32> to vector<128x128xbf16>
    %c0_79 = arith.constant 0 : index
    %c0_80 = arith.constant 0 : index
    %345 = vector.load %arg6[%c0_79, %c0_80] : memref<128x128xbf16, #tpu.memory_space<vmem>>, vector<128x128xbf16>
    %cst_81 = arith.constant dense<0.000000e+00> : vector<128x128xf32>
    %346 = tpu.matmul %344, %345, %cst_81 {dimension_numbers = #tpu.dot_dimension_numbers<[1], [0], [0], [1], [0, 0, 1, 1], [], []>} : vector<128x128xbf16>, vector<128x128xbf16>, vector<128x128xf32> -> vector<128x128xf32>
    %347 = arith.addf %1, %346 : vector<128x128xf32>
    %c0_82 = arith.constant 0 : index
    %c0_83 = arith.constant 0 : index
    %348 = vector.load %arg7[%c0_82, %c0_83] : memref<1x128xf32, #tpu.memory_space<vmem>>, vector<1x128xf32>
    %349 = vector.broadcast %348 : vector<1x128xf32> to vector<128x128xf32>
    %350 = arith.addf %347, %349 : vector<128x128xf32>
    %c0_84 = arith.constant 0 : index
    %c0_85 = arith.constant 0 : index
    %351 = vector.load %arg8[%c0_84, %c0_85] : memref<1x128xf32, #tpu.memory_space<vmem>>, vector<1x128xf32>
    %c0_86 = arith.constant 0 : index
    %c0_87 = arith.constant 0 : index
    %352 = vector.load %arg9[%c0_86, %c0_87] : memref<1x128xf32, #tpu.memory_space<vmem>>, vector<1x128xf32>
    %cst_88 = arith.constant dense<0.000000e+00> : vector<128xf32>
    %353 = vector.multi_reduction <add>, %350, %cst_88 [1] : vector<128x128xf32> to vector<128xf32>
    %354 = vector.shape_cast %353 : vector<128xf32> to vector<128x1xf32>
    %cst_89 = arith.constant 1.280000e+02 : f32
    %355 = vector.broadcast %cst_89 : f32 to vector<128x1xf32>
    %356 = arith.divf %354, %355 : vector<128x1xf32>
    %357 = arith.mulf %350, %350 : vector<128x128xf32>
    %cst_90 = arith.constant dense<0.000000e+00> : vector<128xf32>
    %358 = vector.multi_reduction <add>, %357, %cst_90 [1] : vector<128x128xf32> to vector<128xf32>
    %359 = vector.shape_cast %358 : vector<128xf32> to vector<128x1xf32>
    %cst_91 = arith.constant 1.280000e+02 : f32
    %360 = vector.broadcast %cst_91 : f32 to vector<128x1xf32>
    %361 = arith.divf %359, %360 : vector<128x1xf32>
    %362 = arith.mulf %356, %356 : vector<128x1xf32>
    %363 = arith.subf %361, %362 : vector<128x1xf32>
    %364 = vector.broadcast %356 : vector<128x1xf32> to vector<128x128xf32>
    %365 = arith.subf %350, %364 : vector<128x128xf32>
    %cst_92 = arith.constant 9.99999974E-6 : f32
    %366 = vector.broadcast %cst_92 : f32 to vector<128x1xf32>
    %367 = arith.addf %363, %366 : vector<128x1xf32>
    %368 = math.rsqrt %367 : vector<128x1xf32>
    %369 = vector.broadcast %368 : vector<128x1xf32> to vector<128x128xf32>
    %370 = arith.mulf %365, %369 : vector<128x128xf32>
    %371 = vector.broadcast %351 : vector<1x128xf32> to vector<128x128xf32>
    %372 = arith.mulf %370, %371 : vector<128x128xf32>
    %373 = vector.broadcast %352 : vector<1x128xf32> to vector<128x128xf32>
    %374 = arith.addf %372, %373 : vector<128x128xf32>
    %375 = arith.truncf %374 : vector<128x128xf32> to vector<128x128xbf16>
    %c0_93 = arith.constant 0 : index
    %c0_94 = arith.constant 0 : index
    %376 = vector.load %arg10[%c0_93, %c0_94] : memref<128x256xbf16, #tpu.memory_space<vmem>>, vector<128x256xbf16>
    %cst_95 = arith.constant dense<0.000000e+00> : vector<128x256xf32>
    %377 = tpu.matmul %375, %376, %cst_95 {dimension_numbers = #tpu.dot_dimension_numbers<[1], [0], [0], [1], [0, 0, 1, 1], [], []>} : vector<128x128xbf16>, vector<128x256xbf16>, vector<128x256xf32> -> vector<128x256xf32>
    %c0_96 = arith.constant 0 : index
    %c0_97 = arith.constant 0 : index
    %378 = vector.load %arg11[%c0_96, %c0_97] : memref<1x256xf32, #tpu.memory_space<vmem>>, vector<1x256xf32>
    %379 = vector.broadcast %378 : vector<1x256xf32> to vector<128x256xf32>
    %380 = arith.addf %377, %379 : vector<128x256xf32>
    %cst_98 = arith.constant 5.000000e-01 : f32
    %381 = vector.broadcast %cst_98 : f32 to vector<128x256xf32>
    %382 = arith.mulf %381, %380 : vector<128x256xf32>
    %cst_99 = arith.constant 0.707106769 : f32
    %383 = vector.broadcast %cst_99 : f32 to vector<128x256xf32>
    %384 = arith.mulf %380, %383 : vector<128x256xf32>
    %cst_100 = arith.constant 0.000000e+00 : f32
    %385 = vector.broadcast %cst_100 : f32 to vector<128x256xf32>
    %386 = arith.cmpf oge, %384, %385 : vector<128x256xf32>
    %cst_101 = arith.constant 1.000000e+00 : f32
    %cst_102 = arith.constant -1.000000e+00 : f32
    %387 = vector.broadcast %cst_101 : f32 to vector<128x256xf32>
    %388 = vector.broadcast %cst_102 : f32 to vector<128x256xf32>
    %389 = arith.select %386, %387, %388 : vector<128x256xi1>, vector<128x256xf32>
    %390 = math.absf %384 : vector<128x256xf32>
    %cst_103 = arith.constant 0.327591091 : f32
    %391 = vector.broadcast %cst_103 : f32 to vector<128x256xf32>
    %392 = arith.mulf %391, %390 : vector<128x256xf32>
    %cst_104 = arith.constant 1.000000e+00 : f32
    %393 = vector.broadcast %cst_104 : f32 to vector<128x256xf32>
    %394 = arith.addf %393, %392 : vector<128x256xf32>
    %395 = tpu.reciprocal %394 {approx = true} : vector<128x256xf32> -> vector<128x256xf32>
    %cst_105 = arith.constant 1.06140542 : f32
    %396 = vector.broadcast %cst_105 : f32 to vector<128x256xf32>
    %397 = arith.mulf %396, %395 : vector<128x256xf32>
    %cst_106 = arith.constant -1.45315206 : f32
    %398 = vector.broadcast %cst_106 : f32 to vector<128x256xf32>
    %399 = arith.addf %397, %398 : vector<128x256xf32>
    %400 = arith.mulf %399, %395 : vector<128x256xf32>
    %cst_107 = arith.constant 1.42141378 : f32
    %401 = vector.broadcast %cst_107 : f32 to vector<128x256xf32>
    %402 = arith.addf %400, %401 : vector<128x256xf32>
    %403 = arith.mulf %402, %395 : vector<128x256xf32>
    %cst_108 = arith.constant -0.284496725 : f32
    %404 = vector.broadcast %cst_108 : f32 to vector<128x256xf32>
    %405 = arith.addf %403, %404 : vector<128x256xf32>
    %406 = arith.mulf %405, %395 : vector<128x256xf32>
    %cst_109 = arith.constant 0.254829586 : f32
    %407 = vector.broadcast %cst_109 : f32 to vector<128x256xf32>
    %408 = arith.addf %406, %407 : vector<128x256xf32>
    %409 = arith.mulf %408, %395 : vector<128x256xf32>
    %cst_110 = arith.constant 0.000000e+00 : f32
    %410 = vector.broadcast %cst_110 : f32 to vector<128x256xf32>
    %411 = arith.subf %410, %390 : vector<128x256xf32>
    %412 = arith.mulf %411, %390 : vector<128x256xf32>
    %413 = math.exp %412 : vector<128x256xf32>
    %414 = arith.mulf %409, %413 : vector<128x256xf32>
    %cst_111 = arith.constant 1.000000e+00 : f32
    %415 = vector.broadcast %cst_111 : f32 to vector<128x256xf32>
    %416 = arith.subf %415, %414 : vector<128x256xf32>
    %417 = arith.mulf %389, %416 : vector<128x256xf32>
    %cst_112 = arith.constant 1.000000e+00 : f32
    %418 = vector.broadcast %cst_112 : f32 to vector<128x256xf32>
    %419 = arith.addf %418, %417 : vector<128x256xf32>
    %420 = arith.mulf %382, %419 : vector<128x256xf32>
    %421 = arith.truncf %420 : vector<128x256xf32> to vector<128x256xbf16>
    %c0_113 = arith.constant 0 : index
    %c0_114 = arith.constant 0 : index
    %422 = vector.load %arg12[%c0_113, %c0_114] : memref<256x128xbf16, #tpu.memory_space<vmem>>, vector<256x128xbf16>
    %cst_115 = arith.constant dense<0.000000e+00> : vector<128x128xf32>
    %423 = tpu.matmul %421, %422, %cst_115 {dimension_numbers = #tpu.dot_dimension_numbers<[1], [0], [0], [1], [0, 0, 1, 1], [], []>} : vector<128x256xbf16>, vector<256x128xbf16>, vector<128x128xf32> -> vector<128x128xf32>
    %c0_116 = arith.constant 0 : index
    %c0_117 = arith.constant 0 : index
    %424 = vector.load %arg13[%c0_116, %c0_117] : memref<1x128xf32, #tpu.memory_space<vmem>>, vector<1x128xf32>
    %425 = vector.broadcast %424 : vector<1x128xf32> to vector<128x128xf32>
    %426 = arith.addf %423, %425 : vector<128x128xf32>
    %427 = arith.addf %350, %426 : vector<128x128xf32>
    %428 = vector.shape_cast %427 : vector<128x128xf32> to vector<4x32x128xf32>
    %c0_118 = arith.constant 0 : index
    %c0_119 = arith.constant 0 : index
    %c0_120 = arith.constant 0 : index
    %429 = vector.load %arg14[%c0_118, %c0_119, %c0_120] : memref<4x32x128xf32, #tpu.memory_space<vmem>>, vector<4x32x128xf32>
    tpu.vector_store %arg14[%c0_118, %c0_119, %c0_120], %428 {strides = array<i32>} : memref<4x32x128xf32, #tpu.memory_space<vmem>>, vector<4x32x128xf32>,
    return
  }
  func.func @transform_0(%arg0: i32) -> (i32, i32, i32) {
    %c0_i32 = arith.constant 0 : i32
    %c0_i32_0 = arith.constant 0 : i32
    %c0_i32_1 = arith.constant 0 : i32
    return %arg0, %c0_i32, %c0_i32_0 : i32, i32, i32
  }
  func.func @transform_1(%arg0: i32) -> (i32, i32) {
    %c0_i32 = arith.constant 0 : i32
    %c0_i32_0 = arith.constant 0 : i32
    %c0_i32_1 = arith.constant 0 : i32
    return %c0_i32, %c0_i32_0 : i32, i32
  }
  func.func @transform_2(%arg0: i32) -> (i32, i32) {
    %c0_i32 = arith.constant 0 : i32
    %c0_i32_0 = arith.constant 0 : i32
    %c0_i32_1 = arith.constant 0 : i32
    return %c0_i32, %c0_i32_0 : i32, i32
  }
  func.func @transform_3(%arg0: i32) -> (i32, i32) {
    %c0_i32 = arith.constant 0 : i32
    %c0_i32_0 = arith.constant 0 : i32
    %c0_i32_1 = arith.constant 0 : i32
    return %c0_i32, %c0_i32_0 : i32, i32
  }
  func.func @transform_4(%arg0: i32) -> (i32, i32) {
    %c0_i32 = arith.constant 0 : i32
    %c0_i32_0 = arith.constant 0 : i32
    %c0_i32_1 = arith.constant 0 : i32
    return %c0_i32, %c0_i32_0 : i32, i32
  }
  func.func @transform_5(%arg0: i32) -> (i32, i32) {
    %c0_i32 = arith.constant 0 : i32
    %c0_i32_0 = arith.constant 0 : i32
    %c0_i32_1 = arith.constant 0 : i32
    return %c0_i32, %c0_i32_0 : i32, i32
  }
  func.func @transform_6(%arg0: i32) -> (i32, i32) {
    %c0_i32 = arith.constant 0 : i32
    %c0_i32_0 = arith.constant 0 : i32
    %c0_i32_1 = arith.constant 0 : i32
    return %c0_i32, %c0_i32_0 : i32, i32
  }
  func.func @transform_7(%arg0: i32) -> (i32, i32) {
    %c0_i32 = arith.constant 0 : i32
    %c0_i32_0 = arith.constant 0 : i32
    %c0_i32_1 = arith.constant 0 : i32
    return %c0_i32, %c0_i32_0 : i32, i32
  }
  func.func @transform_8(%arg0: i32) -> (i32, i32) {
    %c0_i32 = arith.constant 0 : i32
    %c0_i32_0 = arith.constant 0 : i32
    %c0_i32_1 = arith.constant 0 : i32
    return %c0_i32, %c0_i32_0 : i32, i32
  }
  func.func @transform_9(%arg0: i32) -> (i32, i32) {
    %c0_i32 = arith.constant 0 : i32
    %c0_i32_0 = arith.constant 0 : i32
    %c0_i32_1 = arith.constant 0 : i32
    return %c0_i32, %c0_i32_0 : i32, i32
  }
  func.func @transform_10(%arg0: i32) -> (i32, i32) {
    %c0_i32 = arith.constant 0 : i32
    %c0_i32_0 = arith.constant 0 : i32
    %c0_i32_1 = arith.constant 0 : i32
    return %c0_i32, %c0_i32_0 : i32, i32
  }
  func.func @transform_11(%arg0: i32) -> (i32, i32) {
    %c0_i32 = arith.constant 0 : i32
    %c0_i32_0 = arith.constant 0 : i32
    %c0_i32_1 = arith.constant 0 : i32
    return %c0_i32, %c0_i32_0 : i32, i32
  }
  func.func @transform_12(%arg0: i32) -> (i32, i32) {
    %c0_i32 = arith.constant 0 : i32
    %c0_i32_0 = arith.constant 0 : i32
    %c0_i32_1 = arith.constant 0 : i32
    return %c0_i32, %c0_i32_0 : i32, i32
  }
  func.func @transform_13(%arg0: i32) -> (i32, i32, i32) {
    %c0_i32 = arith.constant 0 : i32
    %c0_i32_0 = arith.constant 0 : i32
    %c0_i32_1 = arith.constant 0 : i32
    return %arg0, %c0_i32, %c0_i32_0 : i32, i32, i32
  }
}

</mosaic_0001>

<llo_original>
// kernel: tpu_custom_call.1
$region0: #{tpu_custom_call.1}
  #allocation0 [shape = 'u32[]', space=smem, size = 0x4, offset = 0x4, fixed_abs, tag = 'smem constant byte address 0x4 - core index']
  #allocation1 [shape = 'u32[144,128]{1,0:T(1,128)}', space=vmem, size = 0x12000, scoped, tag = 'internal scratch']
  %s0 = inlined_call_operand.hbm [shape: f32[8,32,128], index: 0, kind: input, shape index: {}]
  %s1 = inlined_call_operand.vmem [shape: f32[1,128], index: 1, kind: input, shape index: {}]
  %s2 = inlined_call_operand.vmem [shape: f32[1,128], index: 2, kind: input, shape index: {}]
  %s3 = inlined_call_operand.hbm [shape: bf16[128,384], index: 3, kind: input, shape index: {}]
  %s4 = inlined_call_operand.vmem [shape: f32[1,384], index: 4, kind: input, shape index: {}]
  %s5 = inlined_call_operand.hbm [shape: bf16[128,128], index: 5, kind: input, shape index: {}]
  %s6 = inlined_call_operand.vmem [shape: f32[1,128], index: 6, kind: input, shape index: {}]
  %s7 = inlined_call_operand.vmem [shape: f32[1,128], index: 7, kind: input, shape index: {}]
  %s8 = inlined_call_operand.vmem [shape: f32[1,128], index: 8, kind: input, shape index: {}]
  %s9 = inlined_call_operand.hbm [shape: bf16[128,256], index: 9, kind: input, shape index: {}]
  %s10 = inlined_call_operand.vmem [shape: f32[1,256], index: 10, kind: input, shape index: {}]
  %s11 = inlined_call_operand.hbm [shape: bf16[256,128], index: 11, kind: input, shape index: {}]
  %s12 = inlined_call_operand.vmem [shape: f32[1,128], index: 12, kind: input, shape index: {}]
  %s13 = inlined_call_operand.hbm [shape: f32[8,32,128], index: 13, kind: output, shape index: {}]
  %s14 = sld [smem:[#allocation0]]
  $region105: #{tpu_custom_call.1} parent=0
    _
  %s16 = ssub.s32 1, %s14
  %s17 = scalar_select 0, %s16, %s14
  $region1: #{tpu_custom_call.1} parent=0
    #allocation2 [shape = 'u8[131072]{0}', space=vmem, size = 0x20000, scoped, tag = 'input window, operand 0']
    #allocation3 [shape = 's32[2]{0}', space=sflag, size = 0x8, scoped, tag = 'scoped memory for tpu_custom_call.1']
    #allocation4 [shape = 's32[2]{0}', space=sflag, size = 0x8, scoped, tag = 'scoped memory for tpu_custom_call.1']
    #allocation5 [shape = 'u8[98304]{0}', space=vmem, size = 0x18000, scoped, tag = 'input window, operand 3, single buffered']
    #allocation6 [shape = 's32[1]{0}', space=sflag, size = 0x4, scoped, tag = 'scoped memory for tpu_custom_call.1']
    #allocation7 [shape = 'u8[32768]{0}', space=vmem, size = 0x8000, scoped, tag = 'input window, operand 5, single buffered']
    #allocation8 [shape = 'u8[65536]{0}', space=vmem, size = 0x10000, scoped, tag = 'input window, operand 9, single buffered']
    #allocation9 [shape = 's32[1]{0}', space=sflag, size = 0x4, scoped, tag = 'scoped memory for tpu_custom_call.1']
    #allocation10 [shape = 'u8[65536]{0}', space=vmem, size = 0x10000, scoped, tag = 'input window, operand 11, single buffered']
    #allocation11 [shape = 'u8[131072]{0}', space=vmem, size = 0x20000, scoped, tag = 'output window, operand 0']
    %18 = vsyncpa [#allocation3], 0
    %s19 = scalar_lea.sflag [#allocation3], 1
    %20 = vsyncpa %s19, 0
    %21 = vsyncpa [#allocation6], 0
    %22 = vsyncpa [#allocation9], 0
    %23 = vsyncpa [#allocation4], 0
    %s24 = scalar_lea.sflag [#allocation4], 1
    %25 = vsyncpa %s24, 0
    loop: start=0, step=1, limit=4
    $region2: #{tpu_custom_call.1} parent=1 // loop_pre_header
      _
    $region3: #{tpu_custom_call.1} parent=1 // loop_header
      %s27 = sphi 0, %s31
      %p28 = scmp.ge.s32.totalorder %s27, 4
      %s37 = sphi 0, %s39
      %s40 = sphi 0, %s37
      %s41 = sphi 0, %s40
      %s57 = sphi 0, %s41
      %s61 = sphi 0, %s61
      %s63 = sphi 0, %s61
      %s64 = sphi 0, %s63
      %s78 = sphi 0, %s64
      %s82 = sphi 0, %s82
      %s84 = sphi 0, %s82
      %s85 = sphi 0, %s84
      %s99 = sphi 0, %s85
      %s103 = sphi 0, %s103
      %s105 = sphi 0, %s103
      %s106 = sphi 0, %s105
      %s120 = sphi 0, %s106
      %s124 = sphi 0, %s124
      %s126 = sphi 0, %s124
      %s127 = sphi 0, %s126
      %s141 = sphi 0, %s127
      %s145 = sphi 0, %s145
      %s147 = sphi 0, %s145
      %s148 = sphi 0, %s147
      %s162 = sphi 0, %s148
      %s166 = sphi 0, %s166
      %s168 = sphi 0, %s166
      %s169 = sphi 0, %s168
      %s183 = sphi 0, %s169
      %s187 = sphi 0, %s187
      %s189 = sphi 0, %s187
      %s190 = sphi 0, %s189
      %s204 = sphi 0, %s190
      %s208 = sphi 0, %s208
      %s210 = sphi 0, %s208
      %s211 = sphi 0, %s210
      %s225 = sphi 0, %s211
      %s229 = sphi 0, %s229
      %s231 = sphi 0, %s229
      %s232 = sphi 0, %s231
      %s246 = sphi 0, %s232
      %s250 = sphi 0, %s250
      %s252 = sphi 0, %s250
      %s253 = sphi 0, %s252
      %s267 = sphi 0, %s253
      %s271 = sphi 0, %s271
      %s273 = sphi 0, %s271
      %s274 = sphi 0, %s273
      %s288 = sphi 0, %s274
      %s292 = sphi 0, %s292
      %s294 = sphi 0, %s292
      %s295 = sphi 0, %s294
      %s309 = sphi 0, %s295
      %s315 = sphi 0, %s317
      %s318 = sphi 0, %s315
      %s319 = sphi 0, %s318
      %s335 = sphi 0, %s319
    $region4: #{tpu_custom_call.1} parent=1 // loop_header_branch
      %30 = sbr.rel (%p28) target = $region8
    $region5: #{tpu_custom_call.1} parent=1 // loop_body
      %s32 = ssub.s32 %s27, 1
      %s33 = ssub.s32 %s27, 2
      %s34 = sadd.s32 %s27, 1
      %s35 = ssub.s32 %s27, %s34
      %p36 = scmp.eq.s32.totalorder %s35, 0
      %s38 = sadd.s32 %s37, 1
      %s39 = scalar_select %p36, %s37, %s38
      %p42 = pneg %p36
      %p43 = scmp.eq.s32.totalorder %s27, 1
      %p44 = por %p42, %p43
      %p45 = scmp.ne.s32.totalorder %s37, %s40
      %p46 = scmp.eq.s32.totalorder %s27, 0
      %p47 = por %p45, %p46
      %p48 = scmp.ne.s32.totalorder %s37, %s40
      %p49 = scmp.eq.s32.totalorder %s32, 1
      %p50 = por %p48, %p49
      %p51 = scmp.ne.s32.totalorder %s40, %s41
      %p52 = scmp.eq.s32.totalorder %s32, 0
      %p53 = por %p51, %p52
      %p54 = scmp.ne.s32.totalorder %s40, %s41
      %p55 = scmp.eq.s32.totalorder %s33, 1
      %p56 = por %p54, %p55
      %p58 = scmp.ne.s32.totalorder %s41, %s57
      %p59 = scmp.eq.s32.totalorder %s33, 0
      %p60 = por %p58, %p59
      %s62 = sadd.s32 %s61, 1
      %p65 = scmp.eq.s32.totalorder %s27, 1
      %p66 = scmp.ne.s32.totalorder %s61, %s63
      %p67 = scmp.eq.s32.totalorder %s27, 0
      %p68 = por %p66, %p67
      %p69 = scmp.ne.s32.totalorder %s61, %s63
      %p70 = scmp.eq.s32.totalorder %s32, 1
      %p71 = por %p69, %p70
      %p72 = scmp.ne.s32.totalorder %s63, %s64
      %p73 = scmp.eq.s32.totalorder %s32, 0
      %p74 = por %p72, %p73
      %p75 = scmp.ne.s32.totalorder %s63, %s64
      %p76 = scmp.eq.s32.totalorder %s33, 1
      %p77 = por %p75, %p76
      %p79 = scmp.ne.s32.totalorder %s64, %s78
      %p80 = scmp.eq.s32.totalorder %s33, 0
      %p81 = por %p79, %p80
      %s83 = sadd.s32 %s82, 1
      %p86 = scmp.eq.s32.totalorder %s27, 1
      %p87 = scmp.ne.s32.totalorder %s82, %s84
      %p88 = scmp.eq.s32.totalorder %s27, 0
      %p89 = por %p87, %p88
      %p90 = scmp.ne.s32.totalorder %s82, %s84
      %p91 = scmp.eq.s32.totalorder %s32, 1
      %p92 = por %p90, %p91
      %p93 = scmp.ne.s32.totalorder %s84, %s85
      %p94 = scmp.eq.s32.totalorder %s32, 0
      %p95 = por %p93, %p94
      %p96 = scmp.ne.s32.totalorder %s84, %s85
      %p97 = scmp.eq.s32.totalorder %s33, 1
      %p98 = por %p96, %p97
      %p100 = scmp.ne.s32.totalorder %s85, %s99
      %p101 = scmp.eq.s32.totalorder %s33, 0
      %p102 = por %p100, %p101
      %s104 = sadd.s32 %s103, 1
      %p107 = scmp.eq.s32.totalorder %s27, 1
      %p108 = scmp.ne.s32.totalorder %s103, %s105
      %p109 = scmp.eq.s32.totalorder %s27, 0
      %p110 = por %p108, %p109
      %p111 = scmp.ne.s32.totalorder %s103, %s105
      %p112 = scmp.eq.s32.totalorder %s32, 1
      %p113 = por %p111, %p112
      %p114 = scmp.ne.s32.totalorder %s105, %s106
      %p115 = scmp.eq.s32.totalorder %s32, 0
      %p116 = por %p114, %p115
      %p117 = scmp.ne.s32.totalorder %s105, %s106
      %p118 = scmp.eq.s32.totalorder %s33, 1
      %p119 = por %p117, %p118
      %p121 = scmp.ne.s32.totalorder %s106, %s120
      %p122 = scmp.eq.s32.totalorder %s33, 0
      %p123 = por %p121, %p122
      %s125 = sadd.s32 %s124, 1
      %p128 = scmp.eq.s32.totalorder %s27, 1
      %p129 = scmp.ne.s32.totalorder %s124, %s126
      %p130 = scmp.eq.s32.totalorder %s27, 0
      %p131 = por %p129, %p130
      %p132 = scmp.ne.s32.totalorder %s124, %s126
      %p133 = scmp.eq.s32.totalorder %s32, 1
      %p134 = por %p132, %p133
      %p135 = scmp.ne.s32.totalorder %s126, %s127
      %p136 = scmp.eq.s32.totalorder %s32, 0
      %p137 = por %p135, %p136
      %p138 = scmp.ne.s32.totalorder %s126, %s127
      %p139 = scmp.eq.s32.totalorder %s33, 1
      %p140 = por %p138, %p139
      %p142 = scmp.ne.s32.totalorder %s127, %s141
      %p143 = scmp.eq.s32.totalorder %s33, 0
      %p144 = por %p142, %p143
      %s146 = sadd.s32 %s145, 1
      %p149 = scmp.eq.s32.totalorder %s27, 1
      %p150 = scmp.ne.s32.totalorder %s145, %s147
      %p151 = scmp.eq.s32.totalorder %s27, 0
      %p152 = por %p150, %p151
      %p153 = scmp.ne.s32.totalorder %s145, %s147
      %p154 = scmp.eq.s32.totalorder %s32, 1
      %p155 = por %p153, %p154
      %p156 = scmp.ne.s32.totalorder %s147, %s148
      %p157 = scmp.eq.s32.totalorder %s32, 0
      %p158 = por %p156, %p157
      %p159 = scmp.ne.s32.totalorder %s147, %s148
      %p160 = scmp.eq.s32.totalorder %s33, 1
      %p161 = por %p159, %p160
      %p163 = scmp.ne.s32.totalorder %s148, %s162
      %p164 = scmp.eq.s32.totalorder %s33, 0
      %p165 = por %p163, %p164
      %s167 = sadd.s32 %s166, 1
      %p170 = scmp.eq.s32.totalorder %s27, 1
      %p171 = scmp.ne.s32.totalorder %s166, %s168
      %p172 = scmp.eq.s32.totalorder %s27, 0
      %p173 = por %p171, %p172
      %p174 = scmp.ne.s32.totalorder %s166, %s168
      %p175 = scmp.eq.s32.totalorder %s32, 1
      %p176 = por %p174, %p175
      %p177 = scmp.ne.s32.totalorder %s168, %s169
      %p178 = scmp.eq.s32.totalorder %s32, 0
      %p179 = por %p177, %p178
      %p180 = scmp.ne.s32.totalorder %s168, %s169
      %p181 = scmp.eq.s32.totalorder %s33, 1
      %p182 = por %p180, %p181
      %p184 = scmp.ne.s32.totalorder %s169, %s183
      %p185 = scmp.eq.s32.totalorder %s33, 0
      %p186 = por %p184, %p185
      %s188 = sadd.s32 %s187, 1
      %p191 = scmp.eq.s32.totalorder %s27, 1
      %p192 = scmp.ne.s32.totalorder %s187, %s189
      %p193 = scmp.eq.s32.totalorder %s27, 0
      %p194 = por %p192, %p193
      %p195 = scmp.ne.s32.totalorder %s187, %s189
      %p196 = scmp.eq.s32.totalorder %s32, 1
      %p197 = por %p195, %p196
      %p198 = scmp.ne.s32.totalorder %s189, %s190
      %p199 = scmp.eq.s32.totalorder %s32, 0
      %p200 = por %p198, %p199
      %p201 = scmp.ne.s32.totalorder %s189, %s190
      %p202 = scmp.eq.s32.totalorder %s33, 1
      %p203 = por %p201, %p202
      %p205 = scmp.ne.s32.totalorder %s190, %s204
      %p206 = scmp.eq.s32.totalorder %s33, 0
      %p207 = por %p205, %p206
      %s209 = sadd.s32 %s208, 1
      %p212 = scmp.eq.s32.totalorder %s27, 1
      %p213 = scmp.ne.s32.totalorder %s208, %s210
      %p214 = scmp.eq.s32.totalorder %s27, 0
      %p215 = por %p213, %p214
      %p216 = scmp.ne.s32.totalorder %s208, %s210
      %p217 = scmp.eq.s32.totalorder %s32, 1
      %p218 = por %p216, %p217
      %p219 = scmp.ne.s32.totalorder %s210, %s211
      %p220 = scmp.eq.s32.totalorder %s32, 0
      %p221 = por %p219, %p220
      %p222 = scmp.ne.s32.totalorder %s210, %s211
      %p223 = scmp.eq.s32.totalorder %s33, 1
      %p224 = por %p222, %p223
      %p226 = scmp.ne.s32.totalorder %s211, %s225
      %p227 = scmp.eq.s32.totalorder %s33, 0
      %p228 = por %p226, %p227
      %s230 = sadd.s32 %s229, 1
      %p233 = scmp.eq.s32.totalorder %s27, 1
      %p234 = scmp.ne.s32.totalorder %s229, %s231
      %p235 = scmp.eq.s32.totalorder %s27, 0
      %p236 = por %p234, %p235
      %p237 = scmp.ne.s32.totalorder %s229, %s231
      %p238 = scmp.eq.s32.totalorder %s32, 1
      %p239 = por %p237, %p238
      %p240 = scmp.ne.s32.totalorder %s231, %s232
      %p241 = scmp.eq.s32.totalorder %s32, 0
      %p242 = por %p240, %p241
      %p243 = scmp.ne.s32.totalorder %s231, %s232
      %p244 = scmp.eq.s32.totalorder %s33, 1
      %p245 = por %p243, %p244
      %p247 = scmp.ne.s32.totalorder %s232, %s246
      %p248 = scmp.eq.s32.totalorder %s33, 0
      %p249 = por %p247, %p248
      %s251 = sadd.s32 %s250, 1
      %p254 = scmp.eq.s32.totalorder %s27, 1
      %p255 = scmp.ne.s32.totalorder %s250, %s252
      %p256 = scmp.eq.s32.totalorder %s27, 0
      %p257 = por %p255, %p256
      %p258 = scmp.ne.s32.totalorder %s250, %s252
      %p259 = scmp.eq.s32.totalorder %s32, 1
      %p260 = por %p258, %p259
      %p261 = scmp.ne.s32.totalorder %s252, %s253
      %p262 = scmp.eq.s32.totalorder %s32, 0
      %p263 = por %p261, %p262
      %p264 = scmp.ne.s32.totalorder %s252, %s253
      %p265 = scmp.eq.s32.totalorder %s33, 1
      %p266 = por %p264, %p265
      %p268 = scmp.ne.s32.totalorder %s253, %s267
      %p269 = scmp.eq.s32.totalorder %s33, 0
      %p270 = por %p268, %p269
      %s272 = sadd.s32 %s271, 1
      %p275 = scmp.eq.s32.totalorder %s27, 1
      %p276 = scmp.ne.s32.totalorder %s271, %s273
      %p277 = scmp.eq.s32.totalorder %s27, 0
      %p278 = por %p276, %p277
      %p279 = scmp.ne.s32.totalorder %s271, %s273
      %p280 = scmp.eq.s32.totalorder %s32, 1
      %p281 = por %p279, %p280
      %p282 = scmp.ne.s32.totalorder %s273, %s274
      %p283 = scmp.eq.s32.totalorder %s32, 0
      %p284 = por %p282, %p283
      %p285 = scmp.ne.s32.totalorder %s273, %s274
      %p286 = scmp.eq.s32.totalorder %s33, 1
      %p287 = por %p285, %p286
      %p289 = scmp.ne.s32.totalorder %s274, %s288
      %p290 = scmp.eq.s32.totalorder %s33, 0
      %p291 = por %p289, %p290
      %s293 = sadd.s32 %s292, 1
      %p296 = scmp.eq.s32.totalorder %s27, 1
      %p297 = scmp.ne.s32.totalorder %s292, %s294
      %p298 = scmp.eq.s32.totalorder %s27, 0
      %p299 = por %p297, %p298
      %p300 = scmp.ne.s32.totalorder %s292, %s294
      %p301 = scmp.eq.s32.totalorder %s32, 1
      %p302 = por %p300, %p301
      %p303 = scmp.ne.s32.totalorder %s294, %s295
      %p304 = scmp.eq.s32.totalorder %s32, 0
      %p305 = por %p303, %p304
      %p306 = scmp.ne.s32.totalorder %s294, %s295
      %p307 = scmp.eq.s32.totalorder %s33, 1
      %p308 = por %p306, %p307
      %p310 = scmp.ne.s32.totalorder %s295, %s309
      %p311 = scmp.eq.s32.totalorder %s33, 0
      %p312 = por %p310, %p311
      %s313 = ssub.s32 %s27, %s34
      %p314 = scmp.eq.s32.totalorder %s313, 0
      %s316 = sadd.s32 %s315, 1
      %s317 = scalar_select %p314, %s315, %s316
      %p320 = pneg %p314
      %p321 = scmp.eq.s32.totalorder %s27, 1
      %p322 = por %p320, %p321
      %p323 = scmp.ne.s32.totalorder %s315, %s318
      %p324 = scmp.eq.s32.totalorder %s27, 0
      %p325 = por %p323, %p324
      %p326 = scmp.ne.s32.totalorder %s315, %s318
      %p327 = scmp.eq.s32.totalorder %s32, 1
      %p328 = por %p326, %p327
      %p329 = scmp.ne.s32.totalorder %s318, %s319
      %p330 = scmp.eq.s32.totalorder %s32, 0
      %p331 = por %p329, %p330
      %p332 = scmp.ne.s32.totalorder %s318, %s319
      %p333 = scmp.eq.s32.totalorder %s33, 1
      %p334 = por %p332, %p333
      %p336 = scmp.ne.s32.totalorder %s319, %s335
      %p337 = scmp.eq.s32.totalorder %s33, 0
      %p338 = por %p336, %p337
      %p339 = scmp.le.s32.totalorder 1, %s27
      %p340 = scmp.lt.s32.totalorder %s27, 3
      %p341 = pnand %p339, %p340
      %p342 = pneg %p341
      // Predicated region
      $region9: #{tpu_custom_call.1} parent=5 // pred_check
        _
      $region10: #{tpu_custom_call.1} parent=5 // pred_check_branch
        %344 = sbr.rel (%p341) target = $region12
      $region11: #{tpu_custom_call.1} parent=5 // pred_region
        %s345 = ssub.s32 %s27, 1
        // Predicated region
        $region13: #{tpu_custom_call.1} parent=11 // pred_check
          %p346 = pneg %p74
        $region14: #{tpu_custom_call.1} parent=11 // pred_check_branch
          %348 = sbr.rel (%p346) target = $region16
        $region15: #{tpu_custom_call.1} parent=11 // pred_region
          _
        $region16: #{tpu_custom_call.1} parent=11 // pred_fallthru
          _
        // Predicated region
        $region17: #{tpu_custom_call.1} parent=11 // pred_check
          %p349 = pneg %p95
        $region18: #{tpu_custom_call.1} parent=11 // pred_check_branch
          %351 = sbr.rel (%p349) target = $region20
        $region19: #{tpu_custom_call.1} parent=11 // pred_region
          _
        $region20: #{tpu_custom_call.1} parent=11 // pred_fallthru
          _
        // Predicated region
        $region21: #{tpu_custom_call.1} parent=11 // pred_check
          %p352 = pneg %p116
        $region22: #{tpu_custom_call.1} parent=11 // pred_check_branch
          %354 = sbr.rel (%p352) target = $region24
        $region23: #{tpu_custom_call.1} parent=11 // pred_region
          %s356 = ssub.s32 3072, 3072
          %357 = vsyncadd [#allocation6], %s356
          %s358 = sshll.u32 [#allocation5], 4
          %s359 = int_to_ptr.vmem [resolvable:$true] %s358
          %364 = dma.hbm_to_vmem [thread:$0]  %s3, 3072, %s359, [#allocation6], 192, 192, 12
        $region24: #{tpu_custom_call.1} parent=11 // pred_fallthru
          _
        // Predicated region
        $region25: #{tpu_custom_call.1} parent=11 // pred_check
          %p365 = pneg %p137
        $region26: #{tpu_custom_call.1} parent=11 // pred_check_branch
          %367 = sbr.rel (%p365) target = $region28
        $region27: #{tpu_custom_call.1} parent=11 // pred_region
          _
        $region28: #{tpu_custom_call.1} parent=11 // pred_fallthru
          _
        // Predicated region
        $region29: #{tpu_custom_call.1} parent=11 // pred_check
          %p368 = pneg %p158
        $region30: #{tpu_custom_call.1} parent=11 // pred_check_branch
          %370 = sbr.rel (%p368) target = $region32
        $region31: #{tpu_custom_call.1} parent=11 // pred_region
          %s372 = ssub.s32 1024, 1024
          %373 = vsyncadd [#allocation6], %s372
          %s374 = sshll.u32 [#allocation7], 4
          %s375 = int_to_ptr.vmem [resolvable:$true] %s374
          %380 = dma.hbm_to_vmem [thread:$0]  %s5, 1024, %s375, [#allocation6], 64, 64, 4
        $region32: #{tpu_custom_call.1} parent=11 // pred_fallthru
          _
        // Predicated region
        $region33: #{tpu_custom_call.1} parent=11 // pred_check
          %p381 = pneg %p179
        $region34: #{tpu_custom_call.1} parent=11 // pred_check_branch
          %383 = sbr.rel (%p381) target = $region36
        $region35: #{tpu_custom_call.1} parent=11 // pred_region
          _
        $region36: #{tpu_custom_call.1} parent=11 // pred_fallthru
          _
        // Predicated region
        $region37: #{tpu_custom_call.1} parent=11 // pred_check
          %p384 = pneg %p200
        $region38: #{tpu_custom_call.1} parent=11 // pred_check_branch
          %386 = sbr.rel (%p384) target = $region40
        $region39: #{tpu_custom_call.1} parent=11 // pred_region
          _
        $region40: #{tpu_custom_call.1} parent=11 // pred_fallthru
          _
        // Predicated region
        $region41: #{tpu_custom_call.1} parent=11 // pred_check
          %p387 = pneg %p221
        $region42: #{tpu_custom_call.1} parent=11 // pred_check_branch
          %389 = sbr.rel (%p387) target = $region44
        $region43: #{tpu_custom_call.1} parent=11 // pred_region
          _
        $region44: #{tpu_custom_call.1} parent=11 // pred_fallthru
          _
        // Predicated region
        $region45: #{tpu_custom_call.1} parent=11 // pred_check
          %p390 = pneg %p242
        $region46: #{tpu_custom_call.1} parent=11 // pred_check_branch
          %392 = sbr.rel (%p390) target = $region48
        $region47: #{tpu_custom_call.1} parent=11 // pred_region
          %s394 = ssub.s32 2048, 2048
          %395 = vsyncadd [#allocation9], %s394
          %s396 = sshll.u32 [#allocation8], 4
          %s397 = int_to_ptr.vmem [resolvable:$true] %s396
          %402 = dma.hbm_to_vmem [thread:$0]  %s9, 2048, %s397, [#allocation9], 128, 128, 8
        $region48: #{tpu_custom_call.1} parent=11 // pred_fallthru
          _
        // Predicated region
        $region49: #{tpu_custom_call.1} parent=11 // pred_check
          %p403 = pneg %p263
        $region50: #{tpu_custom_call.1} parent=11 // pred_check_branch
          %405 = sbr.rel (%p403) target = $region52
        $region51: #{tpu_custom_call.1} parent=11 // pred_region
          _
        $region52: #{tpu_custom_call.1} parent=11 // pred_fallthru
          _
        // Predicated region
        $region53: #{tpu_custom_call.1} parent=11 // pred_check
          %p406 = pneg %p284
        $region54: #{tpu_custom_call.1} parent=11 // pred_check_branch
          %408 = sbr.rel (%p406) target = $region56
        $region55: #{tpu_custom_call.1} parent=11 // pred_region
          %s410 = ssub.s32 2048, 2048
          %411 = vsyncadd [#allocation9], %s410
          %s412 = sshll.u32 [#allocation10], 4
          %s413 = int_to_ptr.vmem [resolvable:$true] %s412
          %418 = dma.hbm_to_vmem [thread:$0]  %s11, 2048, %s413, [#allocation9], 64, 64, 4
        $region56: #{tpu_custom_call.1} parent=11 // pred_fallthru
          _
        // Predicated region
        $region57: #{tpu_custom_call.1} parent=11 // pred_check
          %p419 = pneg %p305
        $region58: #{tpu_custom_call.1} parent=11 // pred_check_branch
          %421 = sbr.rel (%p419) target = $region60
        $region59: #{tpu_custom_call.1} parent=11 // pred_region
          _
        $region60: #{tpu_custom_call.1} parent=11 // pred_fallthru
          _
      $region12: #{tpu_custom_call.1} parent=5 // pred_fallthru
        _
      %p422 = scmp.lt.s32.totalorder %s27, 2
      // Predicated region
      $region61: #{tpu_custom_call.1} parent=5 // pred_check
        %p423 = pneg %p422
      $region62: #{tpu_custom_call.1} parent=5 // pred_check_branch
        %425 = sbr.rel (%p423) target = $region64
      $region63: #{tpu_custom_call.1} parent=5 // pred_region
        // Predicated region
        $region65: #{tpu_custom_call.1} parent=63 // pred_check
          %p426 = pneg %p47
        $region66: #{tpu_custom_call.1} parent=63 // pred_check_branch
          %428 = sbr.rel (%p426) target = $region68
        $region67: #{tpu_custom_call.1} parent=63 // pred_region
          %s429 = sand.u32 %s37, 1
          %s430 = scalar_lea.sflag [#allocation3], %s429
          %s431 = sand.u32 %s37, 1
          %s432 = smul.addr %s431, 128
          %s433 = scalar_lea.vmem [#allocation2], %s432
          %s434 = smul.u32 4, %s27
          %s436 = ssub.s32 2048, 2048
          %437 = vsyncadd %s430, %s436
          %s438 = smul.addr %s434, 4
          %s439 = smul.addr %s438, 128
          %s440 = scalar_lea.hbm %s0, %s439
          %s441 = sshll.u32 %s433, 4
          %s442 = int_to_ptr.vmem [resolvable:$true] %s441
          %447 = dma.hbm_to_vmem [thread:$0]  %s440, 2048, %s442, %s430, 128, 128, 8
        $region68: #{tpu_custom_call.1} parent=63 // pred_fallthru
          _
      $region64: #{tpu_custom_call.1} parent=5 // pred_fallthru
        _
      %p448 = scmp.le.s32.totalorder 1, %s27
      %p449 = scmp.lt.s32.totalorder %s27, 3
      %p450 = pnand %p448, %p449
      %p451 = pneg %p450
      // Predicated region
      $region69: #{tpu_custom_call.1} parent=5 // pred_check
        _
      $region70: #{tpu_custom_call.1} parent=5 // pred_check_branch
        %453 = sbr.rel (%p450) target = $region72
      $region71: #{tpu_custom_call.1} parent=5 // pred_region
        %s454 = ssub.s32 %s27, 1
        %s455 = sand.u32 %s40, 1
        %s456 = scalar_lea.sflag [#allocation3], %s455
        %s457 = sand.u32 %s40, 1
        %s458 = smul.addr %s457, 128
        %s459 = scalar_lea.vmem [#allocation2], %s458
        // Predicated region
        $region73: #{tpu_custom_call.1} parent=71 // pred_check
          %p460 = pneg %p53
        $region74: #{tpu_custom_call.1} parent=71 // pred_check_branch
          %462 = sbr.rel (%p460) target = $region76
        $region75: #{tpu_custom_call.1} parent=71 // pred_region
          %463 = dma.done %s456, 2048
        $region76: #{tpu_custom_call.1} parent=71 // pred_fallthru
          _
        // Predicated region
        $region77: #{tpu_custom_call.1} parent=71 // pred_check
          %p464 = pneg %p116
        $region78: #{tpu_custom_call.1} parent=71 // pred_check_branch
          %466 = sbr.rel (%p464) target = $region80
        $region79: #{tpu_custom_call.1} parent=71 // pred_region
          %467 = dma.done [#allocation6], 3072
        $region80: #{tpu_custom_call.1} parent=71 // pred_fallthru
          _
        // Predicated region
        $region81: #{tpu_custom_call.1} parent=71 // pred_check
          %p468 = pneg %p158
        $region82: #{tpu_custom_call.1} parent=71 // pred_check_branch
          %470 = sbr.rel (%p468) target = $region84
        $region83: #{tpu_custom_call.1} parent=71 // pred_region
          %471 = dma.done [#allocation6], 1024
        $region84: #{tpu_custom_call.1} parent=71 // pred_fallthru
          _
        // Predicated region
        $region85: #{tpu_custom_call.1} parent=71 // pred_check
          %p472 = pneg %p242
        $region86: #{tpu_custom_call.1} parent=71 // pred_check_branch
          %474 = sbr.rel (%p472) target = $region88
        $region87: #{tpu_custom_call.1} parent=71 // pred_region
          %475 = dma.done [#allocation9], 2048
        $region88: #{tpu_custom_call.1} parent=71 // pred_fallthru
          _
        // Predicated region
        $region89: #{tpu_custom_call.1} parent=71 // pred_check
          %p476 = pneg %p284
        $region90: #{tpu_custom_call.1} parent=71 // pred_check_branch
          %478 = sbr.rel (%p476) target = $region92
        $region91: #{tpu_custom_call.1} parent=71 // pred_region
          %479 = dma.done [#allocation9], 2048
        $region92: #{tpu_custom_call.1} parent=71 // pred_fallthru
          _
        %s480 = sand.u32 %s40, 1
        %s481 = scalar_lea.sflag [#allocation3], %s480
        %s482 = sand.u32 %s40, 1
        %s483 = smul.addr %s482, 128
        %s484 = scalar_lea.vmem [#allocation2], %s483
        %p485 = pneg %p53
        %p486 = pneg %p50
        %p487 = pneg %p74
        %p488 = pneg %p71
        %p489 = pneg %p95
        %p490 = pneg %p92
        %p491 = pneg %p116
        %p492 = pneg %p113
        %p493 = pneg %p137
        %p494 = pneg %p134
        %p495 = pneg %p158
        %p496 = pneg %p155
        %p497 = pneg %p179
        %p498 = pneg %p176
        %p499 = pneg %p200
        %p500 = pneg %p197
        %p501 = pneg %p221
        %p502 = pneg %p218
        %p503 = pneg %p242
        %p504 = pneg %p239
        %p505 = pneg %p263
        %p506 = pneg %p260
        %p507 = pneg %p284
        %p508 = pneg %p281
        %p509 = pneg %p305
        %p510 = pneg %p302
        %p511 = pneg %p331
        %p512 = pneg %p328
        %s513 = sand.u32 %s318, 1
        %s514 = scalar_lea.sflag [#allocation4], %s513
        %s515 = sand.u32 %s318, 1
        %s516 = smul.addr %s515, 128
        %s517 = scalar_lea.vmem [#allocation11], %s516
        %s518 = smul.u32 4, %s32
        %s519 = smul.u32 4, %s32
        %v521 = vld [vmem:[%s459] sm:$0xff]
        %v522 = vld [vmem:[%s459 + $0x8] sm:$0xff]
        %v523 = vld [vmem:[%s459 + $0x10] sm:$0xff]
        %v524 = vld [vmem:[%s459 + $0x18] sm:$0xff]
        %v525 = vld [vmem:[%s459 + $0x20] sm:$0xff]
        %v526 = vld [vmem:[%s459 + $0x28] sm:$0xff]
        %v527 = vld [vmem:[%s459 + $0x30] sm:$0xff]
        %v528 = vld [vmem:[%s459 + $0x38] sm:$0xff]
        %v529 = vld [vmem:[%s459 + $0x40] sm:$0xff]
        %v530 = vld [vmem:[%s459 + $0x48] sm:$0xff]
        %v531 = vld [vmem:[%s459 + $0x50] sm:$0xff]
        %v532 = vld [vmem:[%s459 + $0x58] sm:$0xff]
        %v533 = vld [vmem:[%s459 + $0x60] sm:$0xff]
        %v534 = vld [vmem:[%s459 + $0x68] sm:$0xff]
        %v535 = vld [vmem:[%s459 + $0x70] sm:$0xff]
        %v536 = vld [vmem:[%s459 + $0x78] sm:$0xff]
        %v537 = vld [vmem:[%s1] sm:$0x1]
        %v538 = vld [vmem:[%s2] sm:$0x1]
        %539 = vadd.xlane.f32.xlu0 %v521
        %v540 = vpop.xlane.xlu0 %539
        %541 = vadd.xlane.f32.xlu0 %v522
        %v542 = vpop.xlane.xlu0 %541
        %543 = vadd.xlane.f32.xlu0 %v523
        %v544 = vpop.xlane.xlu0 %543
        %545 = vadd.xlane.f32.xlu0 %v524
        %v546 = vpop.xlane.xlu0 %545
        %547 = vadd.xlane.f32.xlu0 %v525
        %v548 = vpop.xlane.xlu0 %547
        %549 = vadd.xlane.f32.xlu0 %v526
        %v550 = vpop.xlane.xlu0 %549
        %551 = vadd.xlane.f32.xlu0 %v527
        %v552 = vpop.xlane.xlu0 %551
        %553 = vadd.xlane.f32.xlu0 %v528
        %v554 = vpop.xlane.xlu0 %553
        %555 = vadd.xlane.f32.xlu0 %v529
        %v556 = vpop.xlane.xlu0 %555
        %557 = vadd.xlane.f32.xlu0 %v530
        %v558 = vpop.xlane.xlu0 %557
        %559 = vadd.xlane.f32.xlu0 %v531
        %v560 = vpop.xlane.xlu0 %559
        %561 = vadd.xlane.f32.xlu0 %v532
        %v562 = vpop.xlane.xlu0 %561
        %563 = vadd.xlane.f32.xlu0 %v533
        %v564 = vpop.xlane.xlu0 %563
        %565 = vadd.xlane.f32.xlu0 %v534
        %v566 = vpop.xlane.xlu0 %565
        %567 = vadd.xlane.f32.xlu0 %v535
        %v568 = vpop.xlane.xlu0 %567
        %569 = vadd.xlane.f32.xlu0 %v536
        %v570 = vpop.xlane.xlu0 %569
        %v571 = vrcp.pop 128.0
        %v572 = vmul.f32 %v540, %v571
        %v573 = vmul.f32 %v542, %v571
        %v574 = vmul.f32 %v544, %v571
        %v575 = vmul.f32 %v546, %v571
        %v576 = vmul.f32 %v548, %v571
        %v577 = vmul.f32 %v550, %v571
        %v578 = vmul.f32 %v552, %v571
        %v579 = vmul.f32 %v554, %v571
        %v580 = vmul.f32 %v556, %v571
        %v581 = vmul.f32 %v558, %v571
        %v582 = vmul.f32 %v560, %v571
        %v583 = vmul.f32 %v562, %v571
        %v584 = vmul.f32 %v564, %v571
        %v585 = vmul.f32 %v566, %v571
        %v586 = vmul.f32 %v568, %v571
        %v587 = vmul.f32 %v570, %v571
        %v588 = vmul.f32 %v521, %v521
        %v589 = vmul.f32 %v522, %v522
        %v590 = vmul.f32 %v523, %v523
        %v591 = vmul.f32 %v524, %v524
        %v592 = vmul.f32 %v525, %v525
        %v593 = vmul.f32 %v526, %v526
        %v594 = vmul.f32 %v527, %v527
        %v595 = vmul.f32 %v528, %v528
        %v596 = vmul.f32 %v529, %v529
        %v597 = vmul.f32 %v530, %v530
        %v598 = vmul.f32 %v531, %v531
        %v599 = vmul.f32 %v532, %v532
        %v600 = vmul.f32 %v533, %v533
        %v601 = vmul.f32 %v534, %v534
        %v602 = vmul.f32 %v535, %v535
        %v603 = vmul.f32 %v536, %v536
        %604 = vadd.xlane.f32.xlu0 %v588
        %v605 = vpop.xlane.xlu0 %604
        %606 = vadd.xlane.f32.xlu0 %v589
        %v607 = vpop.xlane.xlu0 %606
        %608 = vadd.xlane.f32.xlu0 %v590
        %v609 = vpop.xlane.xlu0 %608
        %610 = vadd.xlane.f32.xlu0 %v591
        %v611 = vpop.xlane.xlu0 %610
        %612 = vadd.xlane.f32.xlu0 %v592
        %v613 = vpop.xlane.xlu0 %612
        %614 = vadd.xlane.f32.xlu0 %v593
        %v615 = vpop.xlane.xlu0 %614
        %616 = vadd.xlane.f32.xlu0 %v594
        %v617 = vpop.xlane.xlu0 %616
        %618 = vadd.xlane.f32.xlu0 %v595
        %v619 = vpop.xlane.xlu0 %618
        %620 = vadd.xlane.f32.xlu0 %v596
        %v621 = vpop.xlane.xlu0 %620
        %622 = vadd.xlane.f32.xlu0 %v597
        %v623 = vpop.xlane.xlu0 %622
        %624 = vadd.xlane.f32.xlu0 %v598
        %v625 = vpop.xlane.xlu0 %624
        %626 = vadd.xlane.f32.xlu0 %v599
        %v627 = vpop.xlane.xlu0 %626
        %628 = vadd.xlane.f32.xlu0 %v600
        %v629 = vpop.xlane.xlu0 %628
        %630 = vadd.xlane.f32.xlu0 %v601
        %v631 = vpop.xlane.xlu0 %630
        %632 = vadd.xlane.f32.xlu0 %v602
        %v633 = vpop.xlane.xlu0 %632
        %634 = vadd.xlane.f32.xlu0 %v603
        %v635 = vpop.xlane.xlu0 %634
        %v636 = vmul.f32 %v605, %v571
        %v637 = vmul.f32 %v607, %v571
        %v638 = vmul.f32 %v609, %v571
        %v639 = vmul.f32 %v611, %v571
        %v640 = vmul.f32 %v613, %v571
        %v641 = vmul.f32 %v615, %v571
        %v642 = vmul.f32 %v617, %v571
        %v643 = vmul.f32 %v619, %v571
        %v644 = vmul.f32 %v621, %v571
        %v645 = vmul.f32 %v623, %v571
        %v646 = vmul.f32 %v625, %v571
        %v647 = vmul.f32 %v627, %v571
        %v648 = vmul.f32 %v629, %v571
        %v649 = vmul.f32 %v631, %v571
        %v650 = vmul.f32 %v633, %v571
        %v651 = vmul.f32 %v635, %v571
        %v652 = vmul.f32 %v572, %v572
        %v653 = vmul.f32 %v573, %v573
        %v654 = vmul.f32 %v574, %v574
        %v655 = vmul.f32 %v575, %v575
        %v656 = vmul.f32 %v576, %v576
        %v657 = vmul.f32 %v577, %v577
        %v658 = vmul.f32 %v578, %v578
        %v659 = vmul.f32 %v579, %v579
        %v660 = vmul.f32 %v580, %v580
        %v661 = vmul.f32 %v581, %v581
        %v662 = vmul.f32 %v582, %v582
        %v663 = vmul.f32 %v583, %v583
        %v664 = vmul.f32 %v584, %v584
        %v665 = vmul.f32 %v585, %v585
        %v666 = vmul.f32 %v586, %v586
        %v667 = vmul.f32 %v587, %v587
        %v668 = vsub.f32 %v636, %v652
        %v669 = vsub.f32 %v637, %v653
        %v670 = vsub.f32 %v638, %v654
        %v671 = vsub.f32 %v639, %v655
        %v672 = vsub.f32 %v640, %v656
        %v673 = vsub.f32 %v641, %v657
        %v674 = vsub.f32 %v642, %v658
        %v675 = vsub.f32 %v643, %v659
        %v676 = vsub.f32 %v644, %v660
        %v677 = vsub.f32 %v645, %v661
        %v678 = vsub.f32 %v646, %v662
        %v679 = vsub.f32 %v647, %v663
        %v680 = vsub.f32 %v648, %v664
        %v681 = vsub.f32 %v649, %v665
        %v682 = vsub.f32 %v650, %v666
        %v683 = vsub.f32 %v651, %v667
        %v684 = vsub.f32 %v521, %v572
        %v685 = vsub.f32 %v522, %v573
        %v686 = vsub.f32 %v523, %v574
        %v687 = vsub.f32 %v524, %v575
        %v688 = vsub.f32 %v525, %v576
        %v689 = vsub.f32 %v526, %v577
        %v690 = vsub.f32 %v527, %v578
        %v691 = vsub.f32 %v528, %v579
        %v692 = vsub.f32 %v529, %v580
        %v693 = vsub.f32 %v530, %v581
        %v694 = vsub.f32 %v531, %v582
        %v695 = vsub.f32 %v532, %v583
        %v696 = vsub.f32 %v533, %v584
        %v697 = vsub.f32 %v534, %v585
        %v698 = vsub.f32 %v535, %v586
        %v699 = vsub.f32 %v536, %v587
        %v700 = vadd.f32 %v668, 1e-05
        %v701 = vadd.f32 %v669, 1e-05
        %v702 = vadd.f32 %v670, 1e-05
        %v703 = vadd.f32 %v671, 1e-05
        %v704 = vadd.f32 %v672, 1e-05
        %v705 = vadd.f32 %v673, 1e-05
        %v706 = vadd.f32 %v674, 1e-05
        %v707 = vadd.f32 %v675, 1e-05
        %v708 = vadd.f32 %v676, 1e-05
        %v709 = vadd.f32 %v677, 1e-05
        %v710 = vadd.f32 %v678, 1e-05
        %v711 = vadd.f32 %v679, 1e-05
        %v712 = vadd.f32 %v680, 1e-05
        %v713 = vadd.f32 %v681, 1e-05
        %v714 = vadd.f32 %v682, 1e-05
        %v715 = vadd.f32 %v683, 1e-05
        %v716 = vrsqrt.pop %v700
        %v717 = vrsqrt.pop %v701
        %v718 = vrsqrt.pop %v702
        %v719 = vrsqrt.pop %v703
        %v720 = vrsqrt.pop %v704
        %v721 = vrsqrt.pop %v705
        %v722 = vrsqrt.pop %v706
        %v723 = vrsqrt.pop %v707
        %v724 = vrsqrt.pop %v708
        %v725 = vrsqrt.pop %v709
        %v726 = vrsqrt.pop %v710
        %v727 = vrsqrt.pop %v711
        %v728 = vrsqrt.pop %v712
        %v729 = vrsqrt.pop %v713
        %v730 = vrsqrt.pop %v714
        %v731 = vrsqrt.pop %v715
        %v732 = vmul.f32 %v684, %v716
        %v733 = vmul.f32 %v685, %v717
        %v734 = vmul.f32 %v686, %v718
        %v735 = vmul.f32 %v687, %v719
        %v736 = vmul.f32 %v688, %v720
        %v737 = vmul.f32 %v689, %v721
        %v738 = vmul.f32 %v690, %v722
        %v739 = vmul.f32 %v691, %v723
        %v740 = vmul.f32 %v692, %v724
        %v741 = vmul.f32 %v693, %v725
        %v742 = vmul.f32 %v694, %v726
        %v743 = vmul.f32 %v695, %v727
        %v744 = vmul.f32 %v696, %v728
        %v745 = vmul.f32 %v697, %v729
        %v746 = vmul.f32 %v698, %v730
        %v747 = vmul.f32 %v699, %v731
        %v749 = vlaneseq
        %v750 = vshrl.u32 %v749, 7
        %v751 = vsub.s32 0, %v750
        %v752 = vrot.slane %v537, %v751
        %v754 = vmul.f32 %v732, %v752
        %v755 = vmul.f32 %v733, %v752
        %v756 = vmul.f32 %v734, %v752
        %v757 = vmul.f32 %v735, %v752
        %v758 = vmul.f32 %v736, %v752
        %v759 = vmul.f32 %v737, %v752
        %v760 = vmul.f32 %v738, %v752
        %v761 = vmul.f32 %v739, %v752
        %v762 = vmul.f32 %v740, %v752
        %v763 = vmul.f32 %v741, %v752
        %v764 = vmul.f32 %v742, %v752
        %v765 = vmul.f32 %v743, %v752
        %v766 = vmul.f32 %v744, %v752
        %v767 = vmul.f32 %v745, %v752
        %v768 = vmul.f32 %v746, %v752
        %v769 = vmul.f32 %v747, %v752
        %v771 = vlaneseq
        %v772 = vshrl.u32 %v771, 7
        %v773 = vsub.s32 0, %v772
        %v774 = vrot.slane %v538, %v773
        %v776 = vadd.f32 %v754, %v774
        %v777 = vadd.f32 %v755, %v774
        %v778 = vadd.f32 %v756, %v774
        %v779 = vadd.f32 %v757, %v774
        %v780 = vadd.f32 %v758, %v774
        %v781 = vadd.f32 %v759, %v774
        %v782 = vadd.f32 %v760, %v774
        %v783 = vadd.f32 %v761, %v774
        %v784 = vadd.f32 %v762, %v774
        %v785 = vadd.f32 %v763, %v774
        %v786 = vadd.f32 %v764, %v774
        %v787 = vadd.f32 %v765, %v774
        %v788 = vadd.f32 %v766, %v774
        %v789 = vadd.f32 %v767, %v774
        %v790 = vadd.f32 %v768, %v774
        %v791 = vadd.f32 %v769, %v774
        %v792 = vpack.c.bf16 %v777, %v776
        %v793 = vpack.c.bf16 %v779, %v778
        %v794 = vpack.c.bf16 %v781, %v780
        %v795 = vpack.c.bf16 %v783, %v782
        %v796 = vpack.c.bf16 %v785, %v784
        %v797 = vpack.c.bf16 %v787, %v786
        %v798 = vpack.c.bf16 %v789, %v788
        %v799 = vpack.c.bf16 %v791, %v790
        %v800 = vld [vmem:[#allocation5] sm:$0xff]
        %v801 = vld [vmem:[#allocation5 + $0x8] sm:$0xf]
        %v802 = vld [vmem:[#allocation5 + $0xc] sm:$0xff]
        %v803 = vld [vmem:[#allocation5 + $0x14] sm:$0xf]
        %v804 = vld [vmem:[#allocation5 + $0x18] sm:$0xff]
        %v805 = vld [vmem:[#allocation5 + $0x20] sm:$0xf]
        %v806 = vld [vmem:[#allocation5 + $0x24] sm:$0xff]
        %v807 = vld [vmem:[#allocation5 + $0x2c] sm:$0xf]
        %v808 = vld [vmem:[#allocation5 + $0x30] sm:$0xff]
        %v809 = vld [vmem:[#allocation5 + $0x38] sm:$0xf]
        %v810 = vld [vmem:[#allocation5 + $0x3c] sm:$0xff]
        %v811 = vld [vmem:[#allocation5 + $0x44] sm:$0xf]
        %v812 = vld [vmem:[#allocation5 + $0x48] sm:$0xff]
        %v813 = vld [vmem:[#allocation5 + $0x50] sm:$0xf]
        %v814 = vld [vmem:[#allocation5 + $0x54] sm:$0xff]
        %v815 = vld [vmem:[#allocation5 + $0x5c] sm:$0xf]
        %v816 = vld [vmem:[#allocation5 + $0x60] sm:$0xff]
        %v817 = vld [vmem:[#allocation5 + $0x68] sm:$0xf]
        %v818 = vld [vmem:[#allocation5 + $0x6c] sm:$0xff]
        %v819 = vld [vmem:[#allocation5 + $0x74] sm:$0xf]
        %v820 = vld [vmem:[#allocation5 + $0x78] sm:$0xff]
        %v821 = vld [vmem:[#allocation5 + $0x80] sm:$0xf]
        %v822 = vld [vmem:[#allocation5 + $0x84] sm:$0xff]
        %v823 = vld [vmem:[#allocation5 + $0x8c] sm:$0xf]
        %v824 = vld [vmem:[#allocation5 + $0x90] sm:$0xff]
        %v825 = vld [vmem:[#allocation5 + $0x98] sm:$0xf]
        %v826 = vld [vmem:[#allocation5 + $0x9c] sm:$0xff]
        %v827 = vld [vmem:[#allocation5 + $0xa4] sm:$0xf]
        %v828 = vld [vmem:[#allocation5 + $0xa8] sm:$0xff]
        %v829 = vld [vmem:[#allocation5 + $0xb0] sm:$0xf]
        %v830 = vld [vmem:[#allocation5 + $0xb4] sm:$0xff]
        %v831 = vld [vmem:[#allocation5 + $0xbc] sm:$0xf]
        %v832 = vld [vmem:[%s4] sm:$0x7]
        %v834 = vlaneseq
        %v835 = vshrl.u32 %v834, 7
        %v836 = vsub.s32 0, %v835
        %v837 = vrot.slane %v832, %v836
        %v838 = vlaneseq
        %v839 = vshrl.u32 %v838, 7
        %v840 = vsub.s32 1, %v839
        %v841 = vrot.slane %v832, %v840
        %v842 = vlaneseq
        %v843 = vshrl.u32 %v842, 7
        %v844 = vsub.s32 2, %v843
        %v845 = vrot.slane %v832, %v844
        %v881 = vunpack.c.l.b16 %v800
        %v882 = vunpack.c.h.b16 %v800
        %v883 = vunpack.c.l.b16 %v801
        %v884 = vunpack.c.l.b16 %v802
        %v885 = vunpack.c.h.b16 %v802
        %v886 = vunpack.c.l.b16 %v803
        %v887 = vunpack.c.l.b16 %v804
        %v888 = vunpack.c.h.b16 %v804
        %v889 = vunpack.c.l.b16 %v805
        %v890 = vunpack.c.l.b16 %v806
        %v891 = vunpack.c.h.b16 %v806
        %v892 = vunpack.c.l.b16 %v807
        %v893 = vunpack.c.l.b16 %v808
        %v894 = vunpack.c.h.b16 %v808
        %v895 = vunpack.c.l.b16 %v809
        %v896 = vunpack.c.l.b16 %v810
        %v897 = vunpack.c.h.b16 %v810
        %v898 = vunpack.c.l.b16 %v811
        %v899 = vunpack.c.l.b16 %v812
        %v900 = vunpack.c.h.b16 %v812
        %v901 = vunpack.c.l.b16 %v813
        %v902 = vunpack.c.l.b16 %v814
        %v903 = vunpack.c.h.b16 %v814
        %v904 = vunpack.c.l.b16 %v815
        %v905 = vunpack.c.l.b16 %v816
        %v906 = vunpack.c.h.b16 %v816
        %v907 = vunpack.c.l.b16 %v817
        %v908 = vunpack.c.l.b16 %v818
        %v909 = vunpack.c.h.b16 %v818
        %v910 = vunpack.c.l.b16 %v819
        %v911 = vunpack.c.l.b16 %v820
        %v912 = vunpack.c.h.b16 %v820
        %v913 = vunpack.c.l.b16 %v821
        %v914 = vunpack.c.l.b16 %v822
        %v915 = vunpack.c.h.b16 %v822
        %v916 = vunpack.c.l.b16 %v823
        %v917 = vunpack.c.l.b16 %v824
        %v918 = vunpack.c.h.b16 %v824
        %v919 = vunpack.c.l.b16 %v825
        %v920 = vunpack.c.l.b16 %v826
        %v921 = vunpack.c.h.b16 %v826
        %v922 = vunpack.c.l.b16 %v827
        %v923 = vunpack.c.l.b16 %v828
        %v924 = vunpack.c.h.b16 %v828
        %v925 = vunpack.c.l.b16 %v829
        %v926 = vunpack.c.l.b16 %v830
        %v927 = vunpack.c.h.b16 %v830
        %v928 = vunpack.c.l.b16 %v831
        %v929 = vpack.c.b16 %v884, %v881
        %v930 = vpack.c.b16 %v885, %v882
        %v931 = vpack.c.b16 %v886, %v883
        %v932 = vpack.c.b16 %v890, %v887
        %v933 = vpack.c.b16 %v891, %v888
        %v934 = vpack.c.b16 %v892, %v889
        %v935 = vpack.c.b16 %v896, %v893
        %v936 = vpack.c.b16 %v897, %v894
        %v937 = vpack.c.b16 %v898, %v895
        %v938 = vpack.c.b16 %v902, %v899
        %v939 = vpack.c.b16 %v903, %v900
        %v940 = vpack.c.b16 %v904, %v901
        %v941 = vpack.c.b16 %v908, %v905
        %v942 = vpack.c.b16 %v909, %v906
        %v943 = vpack.c.b16 %v910, %v907
        %v944 = vpack.c.b16 %v914, %v911
        %v945 = vpack.c.b16 %v915, %v912
        %v946 = vpack.c.b16 %v916, %v913
        %v947 = vpack.c.b16 %v920, %v917
        %v948 = vpack.c.b16 %v921, %v918
        %v949 = vpack.c.b16 %v922, %v919
        %v950 = vpack.c.b16 %v926, %v923
        %v951 = vpack.c.b16 %v927, %v924
        %v952 = vpack.c.b16 %v928, %v925
        %977 = vmatprep.subr.bf16.mxu0 %v930
        %978 = vmatpush1.bf16.msra.mxu0 %v929
        %979 = vmatprep.subr.bf16.mxu0 %v933
        %980 = vmatpush1.bf16.msra.mxu0 %v932
        %981 = vmatprep.subr.bf16.mxu0 %v936
        %982 = vmatpush1.bf16.msra.mxu0 %v935
        %983 = vmatprep.subr.bf16.mxu0 %v939
        %984 = vmatpush1.bf16.msra.mxu0 %v938
        %985 = vmatprep.subr.bf16.mxu0 %v942
        %986 = vmatpush1.bf16.msra.mxu0 %v941
        %987 = vmatprep.subr.bf16.mxu0 %v945
        %988 = vmatpush1.bf16.msra.mxu0 %v944
        %989 = vmatprep.subr.bf16.mxu0 %v948
        %990 = vmatpush1.bf16.msra.mxu0 %v947
        %991 = vmatprep.subr.bf16.mxu0 %v951
        %992 = vmatpush1.bf16.msra.mxu0 %v950
        %993 = vmatprep.subr.bf16.mxu0 0
        %994 = vmatpush1.bf16.msra.mxu0 0
        %995 = vmatprep.subr.bf16.mxu0 0
        %996 = vmatpush1.bf16.msra.mxu0 0
        %997 = vmatprep.subr.bf16.mxu0 0
        %998 = vmatpush1.bf16.msra.mxu0 0
        %999 = vmatprep.subr.bf16.mxu0 0
        %1000 = vmatpush1.bf16.msra.mxu0 0
        %1001 = vmatprep.subr.bf16.mxu0 0
        %1002 = vmatpush1.bf16.msra.mxu0 0
        %1003 = vmatprep.subr.bf16.mxu0 0
        %1004 = vmatpush1.bf16.msra.mxu0 0
        %1005 = vmatprep.subr.bf16.mxu0 0
        %1006 = vmatpush1.bf16.msra.mxu0 0
        %1007 = vmatprep.subr.bf16.mxu0 0
        %1008 = vmatpush1.bf16.msra.mxu0 0
        %1009 = vmatprep.mubr.bf16.mxu0 0
        %1010 = vmatmul.mubr.bf16.gmra.mrb[0].mxu0 %v792
        %v1011 = vpop.f32.mrb[0].mxu0
        %v1012 = vadd.f32 %v837, %v1011
        %v1013 = vpop.f32.mrb[0].mxu0
        %v1014 = vadd.f32 %v841, %v1013
        %v1015 = vpop.f32.mrb[0].mxu0
        %v1016 = vadd.f32 %v837, %v1015
        %v1017 = vpop.f32.mrb[0].mxu0
        %v1018 = vadd.f32 %v841, %v1017
        %1019 = vmatprep.mubr.bf16.mxu0 0
        %1020 = vmatmul.mubr.bf16.gmra.mrb[0].mxu0 %v793
        %v1021 = vpop.f32.mrb[0].mxu0
        %v1022 = vadd.f32 %v837, %v1021
        %v1023 = vpop.f32.mrb[0].mxu0
        %v1024 = vadd.f32 %v841, %v1023
        %v1025 = vpop.f32.mrb[0].mxu0
        %v1026 = vadd.f32 %v837, %v1025
        %v1027 = vpop.f32.mrb[0].mxu0
        %v1028 = vadd.f32 %v841, %v1027
        %1029 = vmatprep.mubr.bf16.mxu0 0
        %1030 = vmatmul.mubr.bf16.gmra.mrb[0].mxu0 %v794
        %v1031 = vpop.f32.mrb[0].mxu0
        %v1032 = vadd.f32 %v837, %v1031
        %v1033 = vpop.f32.mrb[0].mxu0
        %v1034 = vadd.f32 %v841, %v1033
        %v1035 = vpop.f32.mrb[0].mxu0
        %v1036 = vadd.f32 %v837, %v1035
        %v1037 = vpop.f32.mrb[0].mxu0
        %v1038 = vadd.f32 %v841, %v1037
        %1039 = vmatprep.mubr.bf16.mxu0 0
        %1040 = vmatmul.mubr.bf16.gmra.mrb[0].mxu0 %v795
        %v1041 = vpop.f32.mrb[0].mxu0
        %v1042 = vadd.f32 %v837, %v1041
        %v1043 = vpop.f32.mrb[0].mxu0
        %v1044 = vadd.f32 %v841, %v1043
        %v1045 = vpop.f32.mrb[0].mxu0
        %v1046 = vadd.f32 %v837, %v1045
        %v1047 = vpop.f32.mrb[0].mxu0
        %v1048 = vadd.f32 %v841, %v1047
        %1049 = vmatprep.mubr.bf16.mxu0 0
        %1050 = vmatmul.mubr.bf16.gmra.mrb[0].mxu0 %v796
        %v1051 = vpop.f32.mrb[0].mxu0
        %v1052 = vadd.f32 %v837, %v1051
        %v1053 = vpop.f32.mrb[0].mxu0
        %v1054 = vadd.f32 %v841, %v1053
        %v1055 = vpop.f32.mrb[0].mxu0
        %v1056 = vadd.f32 %v837, %v1055
        %v1057 = vpop.f32.mrb[0].mxu0
        %v1058 = vadd.f32 %v841, %v1057
        %1059 = vmatprep.mubr.bf16.mxu0 0
        %1060 = vmatmul.mubr.bf16.gmra.mrb[0].mxu0 %v797
        %v1061 = vpop.f32.mrb[0].mxu0
        %v1062 = vadd.f32 %v837, %v1061
        %v1063 = vpop.f32.mrb[0].mxu0
        %v1064 = vadd.f32 %v841, %v1063
        %v1065 = vpop.f32.mrb[0].mxu0
        %v1066 = vadd.f32 %v837, %v1065
        %v1067 = vpop.f32.mrb[0].mxu0
        %v1068 = vadd.f32 %v841, %v1067
        %1069 = vmatprep.mubr.bf16.mxu0 0
        %1070 = vmatmul.mubr.bf16.gmra.mrb[0].mxu0 %v798
        %v1071 = vpop.f32.mrb[0].mxu0
        %v1072 = vadd.f32 %v837, %v1071
        %v1073 = vpop.f32.mrb[0].mxu0
        %v1074 = vadd.f32 %v841, %v1073
        %v1075 = vpop.f32.mrb[0].mxu0
        %v1076 = vadd.f32 %v837, %v1075
        %v1077 = vpop.f32.mrb[0].mxu0
        %v1078 = vadd.f32 %v841, %v1077
        %1079 = vmatprep.mubr.bf16.mxu0 0
        %1080 = vmatmul.mubr.bf16.gmra.mrb[0].mxu0 %v799
        %v1081 = vpop.f32.mrb[0].mxu0
        %v1082 = vadd.f32 %v837, %v1081
        %v1083 = vpop.f32.mrb[0].mxu0
        %v1084 = vadd.f32 %v841, %v1083
        %v1085 = vpop.f32.mrb[0].mxu0
        %v1086 = vadd.f32 %v837, %v1085
        %v1087 = vpop.f32.mrb[0].mxu0
        %v1088 = vadd.f32 %v841, %v1087
        %1089 = vdwg.mxu0
        %1090 = vmatprep.subr.bf16.mxu0 0
        %1091 = vmatpush1.bf16.msra.mxu0 %v931
        %1092 = vmatprep.subr.bf16.mxu0 0
        %1093 = vmatpush1.bf16.msra.mxu0 %v934
        %1094 = vmatprep.subr.bf16.mxu0 0
        %1095 = vmatpush1.bf16.msra.mxu0 %v937
        %1096 = vmatprep.subr.bf16.mxu0 0
        %1097 = vmatpush1.bf16.msra.mxu0 %v940
        %1098 = vmatprep.subr.bf16.mxu0 0
        %1099 = vmatpush1.bf16.msra.mxu0 %v943
        %1100 = vmatprep.subr.bf16.mxu0 0
        %1101 = vmatpush1.bf16.msra.mxu0 %v946
        %1102 = vmatprep.subr.bf16.mxu0 0
        %1103 = vmatpush1.bf16.msra.mxu0 %v949
        %1104 = vmatprep.subr.bf16.mxu0 0
        %1105 = vmatpush1.bf16.msra.mxu0 %v952
        %1106 = vmatprep.subr.bf16.mxu0 0
        %1107 = vmatpush1.bf16.msra.mxu0 0
        %1108 = vmatprep.subr.bf16.mxu0 0
        %1109 = vmatpush1.bf16.msra.mxu0 0
        %1110 = vmatprep.subr.bf16.mxu0 0
        %1111 = vmatpush1.bf16.msra.mxu0 0
        %1112 = vmatprep.subr.bf16.mxu0 0
        %1113 = vmatpush1.bf16.msra.mxu0 0
        %1114 = vmatprep.subr.bf16.mxu0 0
        %1115 = vmatpush1.bf16.msra.mxu0 0
        %1116 = vmatprep.subr.bf16.mxu0 0
        %1117 = vmatpush1.bf16.msra.mxu0 0
        %1118 = vmatprep.subr.bf16.mxu0 0
        %1119 = vmatpush1.bf16.msra.mxu0 0
        %1120 = vmatprep.subr.bf16.mxu0 0
        %1121 = vmatpush1.bf16.msra.mxu0 0
        %1122 = vmatprep.mubr.bf16.mxu0 0
        %1123 = vmatmul.mubr.bf16.gmra.mrb[0].mxu0 %v792
        %v1124 = vpop.f32.mrb[0].mxu0
        %v1125 = vadd.f32 %v845, %v1124
        %v1126 = vpop.f32.mrb[0].mxu0
        %v1127 = vpop.f32.mrb[0].mxu0
        %v1128 = vadd.f32 %v845, %v1127
        %v1129 = vpop.f32.mrb[0].mxu0
        %1130 = vmatprep.mubr.bf16.mxu0 0
        %1131 = vmatmul.mubr.bf16.gmra.mrb[0].mxu0 %v793
        %v1132 = vpop.f32.mrb[0].mxu0
        %v1133 = vadd.f32 %v845, %v1132
        %v1134 = vpop.f32.mrb[0].mxu0
        %v1135 = vpop.f32.mrb[0].mxu0
        %v1136 = vadd.f32 %v845, %v1135
        %v1137 = vpop.f32.mrb[0].mxu0
        %1138 = vmatprep.mubr.bf16.mxu0 0
        %1139 = vmatmul.mubr.bf16.gmra.mrb[0].mxu0 %v794
        %v1140 = vpop.f32.mrb[0].mxu0
        %v1141 = vadd.f32 %v845, %v1140
        %v1142 = vpop.f32.mrb[0].mxu0
        %v1143 = vpop.f32.mrb[0].mxu0
        %v1144 = vadd.f32 %v845, %v1143
        %v1145 = vpop.f32.mrb[0].mxu0
        %1146 = vmatprep.mubr.bf16.mxu0 0
        %1147 = vmatmul.mubr.bf16.gmra.mrb[0].mxu0 %v795
        %v1148 = vpop.f32.mrb[0].mxu0
        %v1149 = vadd.f32 %v845, %v1148
        %v1150 = vpop.f32.mrb[0].mxu0
        %v1151 = vpop.f32.mrb[0].mxu0
        %v1152 = vadd.f32 %v845, %v1151
        %v1153 = vpop.f32.mrb[0].mxu0
        %1154 = vmatprep.mubr.bf16.mxu0 0
        %1155 = vmatmul.mubr.bf16.gmra.mrb[0].mxu0 %v796
        %v1156 = vpop.f32.mrb[0].mxu0
        %v1157 = vadd.f32 %v845, %v1156
        %v1158 = vpop.f32.mrb[0].mxu0
        %v1159 = vpop.f32.mrb[0].mxu0
        %v1160 = vadd.f32 %v845, %v1159
        %v1161 = vpop.f32.mrb[0].mxu0
        %1162 = vmatprep.mubr.bf16.mxu0 0
        %1163 = vmatmul.mubr.bf16.gmra.mrb[0].mxu0 %v797
        %v1164 = vpop.f32.mrb[0].mxu0
        %v1165 = vadd.f32 %v845, %v1164
        %v1166 = vpop.f32.mrb[0].mxu0
        %v1167 = vpop.f32.mrb[0].mxu0
        %v1168 = vadd.f32 %v845, %v1167
        %v1169 = vpop.f32.mrb[0].mxu0
        %1170 = vmatprep.mubr.bf16.mxu0 0
        %1171 = vmatmul.mubr.bf16.gmra.mrb[0].mxu0 %v798
        %v1172 = vpop.f32.mrb[0].mxu0
        %v1173 = vadd.f32 %v845, %v1172
        %v1174 = vpop.f32.mrb[0].mxu0
        %v1175 = vpop.f32.mrb[0].mxu0
        %v1176 = vadd.f32 %v845, %v1175
        %v1177 = vpop.f32.mrb[0].mxu0
        %1178 = vmatprep.mubr.bf16.mxu0 0
        %1179 = vmatmul.mubr.bf16.gmra.mrb[0].mxu0 %v799
        %v1180 = vpop.f32.mrb[0].mxu0
        %v1181 = vadd.f32 %v845, %v1180
        %v1182 = vpop.f32.mrb[0].mxu0
        %v1183 = vpop.f32.mrb[0].mxu0
        %v1184 = vadd.f32 %v845, %v1183
        %v1185 = vpop.f32.mrb[0].mxu0
        %1186 = vdwg.mxu0
        %v1187 = vpack.c.bf16 %v1016, %v1012
        %v1188 = vpack.c.bf16 %v1026, %v1022
        %v1189 = vpack.c.bf16 %v1018, %v1014
        %v1190 = vpack.c.bf16 %v1028, %v1024
        %v1191 = vpack.c.bf16 %v1128, %v1125
        %v1192 = vpack.c.bf16 %v1136, %v1133
        %vm1193 = vcmask 261120
        %v1195 = vsel %vm1193, %v1187, 0
        %v1198 = vsel %vm1193, %v1188, 0
        %v1201 = vsel %vm1193, %v1189, 0
        %v1204 = vsel %vm1193, %v1190, 0
        %1206 = vmatprep.subr.bf16.mxu0 0
        %1207 = vmatpush1.bf16.xpose.msra.mxu0 %v1201
        %1208 = vmatprep.subr.bf16.mxu0 0
        %1209 = vmatpush1.bf16.xpose.msra.mxu0 %v1204
        %1210 = vmatprep.subr.bf16.mxu0 0
        %1211 = vmatpush1.bf16.xpose.msra.mxu0 0
        %1212 = vmatprep.subr.bf16.mxu0 0
        %1213 = vmatpush1.bf16.xpose.msra.mxu0 0
        %1214 = vmatprep.subr.bf16.mxu0 0
        %1215 = vmatpush1.bf16.xpose.msra.mxu0 0
        %1216 = vmatprep.subr.bf16.mxu0 0
        %1217 = vmatpush1.bf16.xpose.msra.mxu0 0
        %1218 = vmatprep.subr.bf16.mxu0 0
        %1219 = vmatpush1.bf16.xpose.msra.mxu0 0
        %1220 = vmatprep.subr.bf16.mxu0 0
        %1221 = vmatpush1.bf16.xpose.msra.mxu0 0
        %1222 = vmatprep.subr.bf16.mxu0 0
        %1223 = vmatpush1.bf16.xpose.msra.mxu0 0
        %1224 = vmatprep.subr.bf16.mxu0 0
        %1225 = vmatpush1.bf16.xpose.msra.mxu0 0
        %1226 = vmatprep.subr.bf16.mxu0 0
        %1227 = vmatpush1.bf16.xpose.msra.mxu0 0
        %1228 = vmatprep.subr.bf16.mxu0 0
        %1229 = vmatpush1.bf16.xpose.msra.mxu0 0
        %1230 = vmatprep.subr.bf16.mxu0 0
        %1231 = vmatpush1.bf16.xpose.msra.mxu0 0
        %1232 = vmatprep.subr.bf16.mxu0 0
        %1233 = vmatpush1.bf16.xpose.msra.mxu0 0
        %1234 = vmatprep.subr.bf16.mxu0 0
        %1235 = vmatpush1.bf16.xpose.msra.mxu0 0
        %1236 = vmatprep.subr.bf16.mxu0 0
        %1237 = vmatpush1.bf16.xpose.msra.mxu0 0
        %1238 = vmatprep.mubr.bf16.mxu0 0
        %1239 = vmatmul.mubr.bf16.gmra.mrb[0].mxu0 %v1195
        %v1240 = vpop.f32.mrb[0].mxu0
        %v1241 = vadd.f32 0.0, %v1240
        %v1242 = vpop.f32.mrb[0].mxu0
        %v1243 = vpop.f32.mrb[0].mxu0
        %v1244 = vadd.f32 0.0, %v1243
        %v1245 = vpop.f32.mrb[0].mxu0
        %1246 = vmatprep.mubr.bf16.mxu0 0
        %1247 = vmatmul.mubr.bf16.gmra.mrb[0].mxu0 %v1198
        %v1248 = vpop.f32.mrb[0].mxu0
        %v1249 = vadd.f32 0.0, %v1248
        %v1250 = vpop.f32.mrb[0].mxu0
        %v1251 = vpop.f32.mrb[0].mxu0
        %v1252 = vadd.f32 0.0, %v1251
        %v1253 = vpop.f32.mrb[0].mxu0
        %1254 = vdwg.mxu0
        %v1255 = vsel %vm1193, %v1241, -inf
        %1256 = vmax.xlane.f32.xlu0 %v1255
        %v1257 = vpop.xlane.xlu0 %1256
        %v1258 = vsel %vm1193, %v1244, -inf
        %1259 = vmax.xlane.f32.xlu0 %v1258
        %v1260 = vpop.xlane.xlu0 %1259
        %v1261 = vsel %vm1193, %v1249, -inf
        %1262 = vmax.xlane.f32.xlu0 %v1261
        %v1263 = vpop.xlane.xlu0 %1262
        %v1264 = vsel %vm1193, %v1252, -inf
        %1265 = vmax.xlane.f32.xlu0 %v1264
        %v1266 = vpop.xlane.xlu0 %1265
        %v1267 = vsub.f32 %v1241, %v1257
        %v1268 = vsub.f32 %v1244, %v1260
        %v1269 = vsub.f32 %v1249, %v1263
        %v1270 = vsub.f32 %v1252, %v1266
        %v1271 = vmul.f32 %v1267, 1.442695
        %v1272 = vpow.pop %v1271
        %v1273 = vmul.f32 %v1268, 1.442695
        %v1274 = vpow.pop %v1273
        %v1275 = vmul.f32 %v1269, 1.442695
        %v1276 = vpow.pop %v1275
        %v1277 = vmul.f32 %v1270, 1.442695
        %v1278 = vpow.pop %v1277
        %v1279 = vsel %vm1193, %v1272, 0.0
        %1280 = vadd.xlane.f32.xlu0 %v1279
        %v1281 = vpop.xlane.xlu0 %1280
        %v1282 = vsel %vm1193, %v1274, 0.0
        %1283 = vadd.xlane.f32.xlu0 %v1282
        %v1284 = vpop.xlane.xlu0 %1283
        %v1285 = vsel %vm1193, %v1276, 0.0
        %1286 = vadd.xlane.f32.xlu0 %v1285
        %v1287 = vpop.xlane.xlu0 %1286
        %v1288 = vsel %vm1193, %v1278, 0.0
        %1289 = vadd.xlane.f32.xlu0 %v1288
        %v1290 = vpop.xlane.xlu0 %1289
        %v1291 = vrcp.pop %v1281
        %v1292 = vrcp.pop %v1284
        %v1293 = vrcp.pop %v1287
        %v1294 = vrcp.pop %v1290
        %v1295 = vmul.f32 %v1272, %v1291
        %v1296 = vmul.f32 %v1274, %v1292
        %v1297 = vmul.f32 %v1276, %v1293
        %v1298 = vmul.f32 %v1278, %v1294
        %v1299 = vpack.c.bf16 %v1296, %v1295
        %v1300 = vpack.c.bf16 %v1298, %v1297
        %v1302 = vsel %vm1193, %v1299, 0
        %v1305 = vsel %vm1193, %v1300, 0
        %1307 = vmatprep.subr.bf16.mxu0 0
        %1308 = vmatpush1.bf16.msra.mxu0 %v1191
        %1309 = vmatprep.subr.bf16.mxu0 0
        %1310 = vmatpush1.bf16.msra.mxu0 %v1192
        %1311 = vmatprep.subr.bf16.mxu0 0
        %1312 = vmatpush1.bf16.msra.mxu0 0
        %1313 = vmatprep.subr.bf16.mxu0 0
        %1314 = vmatpush1.bf16.msra.mxu0 0
        %1315 = vmatprep.subr.bf16.mxu0 0
        %1316 = vmatpush1.bf16.msra.mxu0 0
        %1317 = vmatprep.subr.bf16.mxu0 0
        %1318 = vmatpush1.bf16.msra.mxu0 0
        %1319 = vmatprep.subr.bf16.mxu0 0
        %1320 = vmatpush1.bf16.msra.mxu0 0
        %1321 = vmatprep.subr.bf16.mxu0 0
        %1322 = vmatpush1.bf16.msra.mxu0 0
        %1323 = vmatprep.subr.bf16.mxu0 0
        %1324 = vmatpush1.bf16.msra.mxu0 0
        %1325 = vmatprep.subr.bf16.mxu0 0
        %1326 = vmatpush1.bf16.msra.mxu0 0
        %1327 = vmatprep.subr.bf16.mxu0 0
        %1328 = vmatpush1.bf16.msra.mxu0 0
        %1329 = vmatprep.subr.bf16.mxu0 0
        %1330 = vmatpush1.bf16.msra.mxu0 0
        %1331 = vmatprep.subr.bf16.mxu0 0
        %1332 = vmatpush1.bf16.msra.mxu0 0
        %1333 = vmatprep.subr.bf16.mxu0 0
        %1334 = vmatpush1.bf16.msra.mxu0 0
        %1335 = vmatprep.subr.bf16.mxu0 0
        %1336 = vmatpush1.bf16.msra.mxu0 0
        %1337 = vmatprep.subr.bf16.mxu0 0
        %1338 = vmatpush1.bf16.msra.mxu0 0
        %1339 = vmatprep.mubr.bf16.mxu0 0
        %1340 = vmatmul.mubr.bf16.gmra.mrb[0].mxu0 %v1302
        %v1341 = vpop.f32.mrb[0].mxu0
        %v1342 = vadd.f32 0.0, %v1341
        %v1343 = vpop.f32.mrb[0].mxu0
        %v1344 = vpop.f32.mrb[0].mxu0
        %v1345 = vadd.f32 0.0, %v1344
        %v1346 = vpop.f32.mrb[0].mxu0
        %1347 = vmatprep.mubr.bf16.mxu0 0
        %1348 = vmatmul.mubr.bf16.gmra.mrb[0].mxu0 %v1305
        %v1349 = vpop.f32.mrb[0].mxu0
        %v1350 = vadd.f32 0.0, %v1349
        %v1351 = vpop.f32.mrb[0].mxu0
        %v1352 = vpop.f32.mrb[0].mxu0
        %v1353 = vadd.f32 0.0, %v1352
        %v1354 = vpop.f32.mrb[0].mxu0
        %1355 = vdwg.mxu0
        %1358 = vrot.lane.b32.xlu0 %v1187, 96
        %v1359 = vpop.permute.xlu0 %1358
        %1360 = vrot.lane.b32.xlu0 %v1188, 96
        %v1361 = vpop.permute.xlu0 %1360
        %1364 = vrot.lane.b32.xlu0 %v1189, 96
        %v1365 = vpop.permute.xlu0 %1364
        %1366 = vrot.lane.b32.xlu0 %v1190, 96
        %v1367 = vpop.permute.xlu0 %1366
        %v1369 = vsel %vm1193, %v1359, 0
        %v1372 = vsel %vm1193, %v1361, 0
        %v1375 = vsel %vm1193, %v1365, 0
        %v1378 = vsel %vm1193, %v1367, 0
        %1380 = vmatprep.subr.bf16.mxu0 0
        %1381 = vmatpush1.bf16.xpose.msra.mxu0 %v1375
        %1382 = vmatprep.subr.bf16.mxu0 0
        %1383 = vmatpush1.bf16.xpose.msra.mxu0 %v1378
        %1384 = vmatprep.subr.bf16.mxu0 0
        %1385 = vmatpush1.bf16.xpose.msra.mxu0 0
        %1386 = vmatprep.subr.bf16.mxu0 0
        %1387 = vmatpush1.bf16.xpose.msra.mxu0 0
        %1388 = vmatprep.subr.bf16.mxu0 0
        %1389 = vmatpush1.bf16.xpose.msra.mxu0 0
        %1390 = vmatprep.subr.bf16.mxu0 0
        %1391 = vmatpush1.bf16.xpose.msra.mxu0 0
        %1392 = vmatprep.subr.bf16.mxu0 0
        %1393 = vmatpush1.bf16.xpose.msra.mxu0 0
        %1394 = vmatprep.subr.bf16.mxu0 0
        %1395 = vmatpush1.bf16.xpose.msra.mxu0 0
        %1396 = vmatprep.subr.bf16.mxu0 0
        %1397 = vmatpush1.bf16.xpose.msra.mxu0 0
        %1398 = vmatprep.subr.bf16.mxu0 0
        %1399 = vmatpush1.bf16.xpose.msra.mxu0 0
        %1400 = vmatprep.subr.bf16.mxu0 0
        %1401 = vmatpush1.bf16.xpose.msra.mxu0 0
        %1402 = vmatprep.subr.bf16.mxu0 0
        %1403 = vmatpush1.bf16.xpose.msra.mxu0 0
        %1404 = vmatprep.subr.bf16.mxu0 0
        %1405 = vmatpush1.bf16.xpose.msra.mxu0 0
        %1406 = vmatprep.subr.bf16.mxu0 0
        %1407 = vmatpush1.bf16.xpose.msra.mxu0 0
        %1408 = vmatprep.subr.bf16.mxu0 0
        %1409 = vmatpush1.bf16.xpose.msra.mxu0 0
        %1410 = vmatprep.subr.bf16.mxu0 0
        %1411 = vmatpush1.bf16.xpose.msra.mxu0 0
        %1412 = vmatprep.mubr.bf16.mxu0 0
        %1413 = vmatmul.mubr.bf16.gmra.mrb[0].mxu0 %v1369
        %v1414 = vpop.f32.mrb[0].mxu0
        %v1415 = vadd.f32 0.0, %v1414
        %v1416 = vpop.f32.mrb[0].mxu0
        %v1417 = vpop.f32.mrb[0].mxu0
        %v1418 = vadd.f32 0.0, %v1417
        %v1419 = vpop.f32.mrb[0].mxu0
        %1420 = vmatprep.mubr.bf16.mxu0 0
        %1421 = vmatmul.mubr.bf16.gmra.mrb[0].mxu0 %v1372
        %v1422 = vpop.f32.mrb[0].mxu0
        %v1423 = vadd.f32 0.0, %v1422
        %v1424 = vpop.f32.mrb[0].mxu0
        %v1425 = vpop.f32.mrb[0].mxu0
        %v1426 = vadd.f32 0.0, %v1425
        %v1427 = vpop.f32.mrb[0].mxu0
        %1428 = vdwg.mxu0
        %v1429 = vsel %vm1193, %v1415, -inf
        %1430 = vmax.xlane.f32.xlu0 %v1429
        %v1431 = vpop.xlane.xlu0 %1430
        %v1432 = vsel %vm1193, %v1418, -inf
        %1433 = vmax.xlane.f32.xlu0 %v1432
        %v1434 = vpop.xlane.xlu0 %1433
        %v1435 = vsel %vm1193, %v1423, -inf
        %1436 = vmax.xlane.f32.xlu0 %v1435
        %v1437 = vpop.xlane.xlu0 %1436
        %v1438 = vsel %vm1193, %v1426, -inf
        %1439 = vmax.xlane.f32.xlu0 %v1438
        %v1440 = vpop.xlane.xlu0 %1439
        %v1441 = vsub.f32 %v1415, %v1431
        %v1442 = vsub.f32 %v1418, %v1434
        %v1443 = vsub.f32 %v1423, %v1437
        %v1444 = vsub.f32 %v1426, %v1440
        %v1445 = vmul.f32 %v1441, 1.442695
        %v1446 = vpow.pop %v1445
        %v1447 = vmul.f32 %v1442, 1.442695
        %v1448 = vpow.pop %v1447
        %v1449 = vmul.f32 %v1443, 1.442695
        %v1450 = vpow.pop %v1449
        %v1451 = vmul.f32 %v1444, 1.442695
        %v1452 = vpow.pop %v1451
        %v1453 = vsel %vm1193, %v1446, 0.0
        %1454 = vadd.xlane.f32.xlu0 %v1453
        %v1455 = vpop.xlane.xlu0 %1454
        %v1456 = vsel %vm1193, %v1448, 0.0
        %1457 = vadd.xlane.f32.xlu0 %v1456
        %v1458 = vpop.xlane.xlu0 %1457
        %v1459 = vsel %vm1193, %v1450, 0.0
        %1460 = vadd.xlane.f32.xlu0 %v1459
        %v1461 = vpop.xlane.xlu0 %1460
        %v1462 = vsel %vm1193, %v1452, 0.0
        %1463 = vadd.xlane.f32.xlu0 %v1462
        %v1464 = vpop.xlane.xlu0 %1463
        %v1465 = vrcp.pop %v1455
        %v1466 = vrcp.pop %v1458
        %v1467 = vrcp.pop %v1461
        %v1468 = vrcp.pop %v1464
        %v1469 = vmul.f32 %v1446, %v1465
        %v1470 = vmul.f32 %v1448, %v1466
        %v1471 = vmul.f32 %v1450, %v1467
        %v1472 = vmul.f32 %v1452, %v1468
        %v1473 = vpack.c.bf16 %v1470, %v1469
        %v1474 = vpack.c.bf16 %v1472, %v1471
        %1477 = vrot.lane.b32.xlu0 %v1191, 96
        %v1478 = vpop.permute.xlu0 %1477
        %1479 = vrot.lane.b32.xlu0 %v1192, 96
        %v1480 = vpop.permute.xlu0 %1479
        %v1484 = vsel %vm1193, %v1473, 0
        %v1487 = vsel %vm1193, %v1474, 0
        %1489 = vmatprep.subr.bf16.mxu0 0
        %1490 = vmatpush1.bf16.msra.mxu0 %v1478
        %1491 = vmatprep.subr.bf16.mxu0 0
        %1492 = vmatpush1.bf16.msra.mxu0 %v1480
        %1493 = vmatprep.subr.bf16.mxu0 0
        %1494 = vmatpush1.bf16.msra.mxu0 0
        %1495 = vmatprep.subr.bf16.mxu0 0
        %1496 = vmatpush1.bf16.msra.mxu0 0
        %1497 = vmatprep.subr.bf16.mxu0 0
        %1498 = vmatpush1.bf16.msra.mxu0 0
        %1499 = vmatprep.subr.bf16.mxu0 0
        %1500 = vmatpush1.bf16.msra.mxu0 0
        %1501 = vmatprep.subr.bf16.mxu0 0
        %1502 = vmatpush1.bf16.msra.mxu0 0
        %1503 = vmatprep.subr.bf16.mxu0 0
        %1504 = vmatpush1.bf16.msra.mxu0 0
        %1505 = vmatprep.subr.bf16.mxu0 0
        %1506 = vmatpush1.bf16.msra.mxu0 0
        %1507 = vmatprep.subr.bf16.mxu0 0
        %1508 = vmatpush1.bf16.msra.mxu0 0
        %1509 = vmatprep.subr.bf16.mxu0 0
        %1510 = vmatpush1.bf16.msra.mxu0 0
        %1511 = vmatprep.subr.bf16.mxu0 0
        %1512 = vmatpush1.bf16.msra.mxu0 0
        %1513 = vmatprep.subr.bf16.mxu0 0
        %1514 = vmatpush1.bf16.msra.mxu0 0
        %1515 = vmatprep.subr.bf16.mxu0 0
        %1516 = vmatpush1.bf16.msra.mxu0 0
        %1517 = vmatprep.subr.bf16.mxu0 0
        %1518 = vmatpush1.bf16.msra.mxu0 0
        %1519 = vmatprep.subr.bf16.mxu0 0
        %1520 = vmatpush1.bf16.msra.mxu0 0
        %1521 = vmatprep.mubr.bf16.mxu0 0
        %1522 = vmatmul.mubr.bf16.gmra.mrb[0].mxu0 %v1484
        %v1523 = vpop.f32.mrb[0].mxu0
        %v1524 = vadd.f32 0.0, %v1523
        %v1525 = vpop.f32.mrb[0].mxu0
        %v1526 = vpop.f32.mrb[0].mxu0
        %v1527 = vadd.f32 0.0, %v1526
        %v1528 = vpop.f32.mrb[0].mxu0
        %1529 = vmatprep.mubr.bf16.mxu0 0
        %1530 = vmatmul.mubr.bf16.gmra.mrb[0].mxu0 %v1487
        %v1531 = vpop.f32.mrb[0].mxu0
        %v1532 = vadd.f32 0.0, %v1531
        %v1533 = vpop.f32.mrb[0].mxu0
        %v1534 = vpop.f32.mrb[0].mxu0
        %v1535 = vadd.f32 0.0, %v1534
        %v1536 = vpop.f32.mrb[0].mxu0
        %1537 = vdwg.mxu0
        %1538 = vrot.lane.b32.xlu0 %v1187, 64
        %v1539 = vpop.permute.xlu0 %1538
        %1540 = vrot.lane.b32.xlu0 %v1188, 64
        %v1541 = vpop.permute.xlu0 %1540
        %1542 = vrot.lane.b32.xlu0 %v1189, 64
        %v1543 = vpop.permute.xlu0 %1542
        %1544 = vrot.lane.b32.xlu0 %v1190, 64
        %v1545 = vpop.permute.xlu0 %1544
        %v1547 = vsel %vm1193, %v1539, 0
        %v1550 = vsel %vm1193, %v1541, 0
        %v1553 = vsel %vm1193, %v1543, 0
        %v1556 = vsel %vm1193, %v1545, 0
        %1558 = vmatprep.subr.bf16.mxu0 0
        %1559 = vmatpush1.bf16.xpose.msra.mxu0 %v1553
        %1560 = vmatprep.subr.bf16.mxu0 0
        %1561 = vmatpush1.bf16.xpose.msra.mxu0 %v1556
        %1562 = vmatprep.subr.bf16.mxu0 0
        %1563 = vmatpush1.bf16.xpose.msra.mxu0 0
        %1564 = vmatprep.subr.bf16.mxu0 0
        %1565 = vmatpush1.bf16.xpose.msra.mxu0 0
        %1566 = vmatprep.subr.bf16.mxu0 0
        %1567 = vmatpush1.bf16.xpose.msra.mxu0 0
        %1568 = vmatprep.subr.bf16.mxu0 0
        %1569 = vmatpush1.bf16.xpose.msra.mxu0 0
        %1570 = vmatprep.subr.bf16.mxu0 0
        %1571 = vmatpush1.bf16.xpose.msra.mxu0 0
        %1572 = vmatprep.subr.bf16.mxu0 0
        %1573 = vmatpush1.bf16.xpose.msra.mxu0 0
        %1574 = vmatprep.subr.bf16.mxu0 0
        %1575 = vmatpush1.bf16.xpose.msra.mxu0 0
        %1576 = vmatprep.subr.bf16.mxu0 0
        %1577 = vmatpush1.bf16.xpose.msra.mxu0 0
        %1578 = vmatprep.subr.bf16.mxu0 0
        %1579 = vmatpush1.bf16.xpose.msra.mxu0 0
        %1580 = vmatprep.subr.bf16.mxu0 0
        %1581 = vmatpush1.bf16.xpose.msra.mxu0 0
        %1582 = vmatprep.subr.bf16.mxu0 0
        %1583 = vmatpush1.bf16.xpose.msra.mxu0 0
        %1584 = vmatprep.subr.bf16.mxu0 0
        %1585 = vmatpush1.bf16.xpose.msra.mxu0 0
        %1586 = vmatprep.subr.bf16.mxu0 0
        %1587 = vmatpush1.bf16.xpose.msra.mxu0 0
        %1588 = vmatprep.subr.bf16.mxu0 0
        %1589 = vmatpush1.bf16.xpose.msra.mxu0 0
        %1590 = vmatprep.mubr.bf16.mxu0 0
        %1591 = vmatmul.mubr.bf16.gmra.mrb[0].mxu0 %v1547
        %v1592 = vpop.f32.mrb[0].mxu0
        %v1593 = vadd.f32 0.0, %v1592
        %v1594 = vpop.f32.mrb[0].mxu0
        %v1595 = vpop.f32.mrb[0].mxu0
        %v1596 = vadd.f32 0.0, %v1595
        %v1597 = vpop.f32.mrb[0].mxu0
        %1598 = vmatprep.mubr.bf16.mxu0 0
        %1599 = vmatmul.mubr.bf16.gmra.mrb[0].mxu0 %v1550
        %v1600 = vpop.f32.mrb[0].mxu0
        %v1601 = vadd.f32 0.0, %v1600
        %v1602 = vpop.f32.mrb[0].mxu0
        %v1603 = vpop.f32.mrb[0].mxu0
        %v1604 = vadd.f32 0.0, %v1603
        %v1605 = vpop.f32.mrb[0].mxu0
        %1606 = vdwg.mxu0
        %v1607 = vsel %vm1193, %v1593, -inf
        %1608 = vmax.xlane.f32.xlu0 %v1607
        %v1609 = vpop.xlane.xlu0 %1608
        %v1610 = vsel %vm1193, %v1596, -inf
        %1611 = vmax.xlane.f32.xlu0 %v1610
        %v1612 = vpop.xlane.xlu0 %1611
        %v1613 = vsel %vm1193, %v1601, -inf
        %1614 = vmax.xlane.f32.xlu0 %v1613
        %v1615 = vpop.xlane.xlu0 %1614
        %v1616 = vsel %vm1193, %v1604, -inf
        %1617 = vmax.xlane.f32.xlu0 %v1616
        %v1618 = vpop.xlane.xlu0 %1617
        %v1619 = vsub.f32 %v1593, %v1609
        %v1620 = vsub.f32 %v1596, %v1612
        %v1621 = vsub.f32 %v1601, %v1615
        %v1622 = vsub.f32 %v1604, %v1618
        %v1623 = vmul.f32 %v1619, 1.442695
        %v1624 = vpow.pop %v1623
        %v1625 = vmul.f32 %v1620, 1.442695
        %v1626 = vpow.pop %v1625
        %v1627 = vmul.f32 %v1621, 1.442695
        %v1628 = vpow.pop %v1627
        %v1629 = vmul.f32 %v1622, 1.442695
        %v1630 = vpow.pop %v1629
        %v1631 = vsel %vm1193, %v1624, 0.0
        %1632 = vadd.xlane.f32.xlu0 %v1631
        %v1633 = vpop.xlane.xlu0 %1632
        %v1634 = vsel %vm1193, %v1626, 0.0
        %1635 = vadd.xlane.f32.xlu0 %v1634
        %v1636 = vpop.xlane.xlu0 %1635
        %v1637 = vsel %vm1193, %v1628, 0.0
        %1638 = vadd.xlane.f32.xlu0 %v1637
        %v1639 = vpop.xlane.xlu0 %1638
        %v1640 = vsel %vm1193, %v1630, 0.0
        %1641 = vadd.xlane.f32.xlu0 %v1640
        %v1642 = vpop.xlane.xlu0 %1641
        %v1643 = vrcp.pop %v1633
        %v1644 = vrcp.pop %v1636
        %v1645 = vrcp.pop %v1639
        %v1646 = vrcp.pop %v1642
        %v1647 = vmul.f32 %v1624, %v1643
        %v1648 = vmul.f32 %v1626, %v1644
        %v1649 = vmul.f32 %v1628, %v1645
        %v1650 = vmul.f32 %v1630, %v1646
        %v1651 = vpack.c.bf16 %v1648, %v1647
        %v1652 = vpack.c.bf16 %v1650, %v1649
        %1653 = vrot.lane.b32.xlu0 %v1191, 64
        %v1654 = vpop.permute.xlu0 %1653
        %1655 = vrot.lane.b32.xlu0 %v1192, 64
        %v1656 = vpop.permute.xlu0 %1655
        %v1660 = vsel %vm1193, %v1651, 0
        %v1663 = vsel %vm1193, %v1652, 0
        %1665 = vmatprep.subr.bf16.mxu0 0
        %1666 = vmatpush1.bf16.msra.mxu0 %v1654
        %1667 = vmatprep.subr.bf16.mxu0 0
        %1668 = vmatpush1.bf16.msra.mxu0 %v1656
        %1669 = vmatprep.subr.bf16.mxu0 0
        %1670 = vmatpush1.bf16.msra.mxu0 0
        %1671 = vmatprep.subr.bf16.mxu0 0
        %1672 = vmatpush1.bf16.msra.mxu0 0
        %1673 = vmatprep.subr.bf16.mxu0 0
        %1674 = vmatpush1.bf16.msra.mxu0 0
        %1675 = vmatprep.subr.bf16.mxu0 0
        %1676 = vmatpush1.bf16.msra.mxu0 0
        %1677 = vmatprep.subr.bf16.mxu0 0
        %1678 = vmatpush1.bf16.msra.mxu0 0
        %1679 = vmatprep.subr.bf16.mxu0 0
        %1680 = vmatpush1.bf16.msra.mxu0 0
        %1681 = vmatprep.subr.bf16.mxu0 0
        %1682 = vmatpush1.bf16.msra.mxu0 0
        %1683 = vmatprep.subr.bf16.mxu0 0
        %1684 = vmatpush1.bf16.msra.mxu0 0
        %1685 = vmatprep.subr.bf16.mxu0 0
        %1686 = vmatpush1.bf16.msra.mxu0 0
        %1687 = vmatprep.subr.bf16.mxu0 0
        %1688 = vmatpush1.bf16.msra.mxu0 0
        %1689 = vmatprep.subr.bf16.mxu0 0
        %1690 = vmatpush1.bf16.msra.mxu0 0
        %1691 = vmatprep.subr.bf16.mxu0 0
        %1692 = vmatpush1.bf16.msra.mxu0 0
        %1693 = vmatprep.subr.bf16.mxu0 0
        %1694 = vmatpush1.bf16.msra.mxu0 0
        %1695 = vmatprep.subr.bf16.mxu0 0
        %1696 = vmatpush1.bf16.msra.mxu0 0
        %1697 = vmatprep.mubr.bf16.mxu0 0
        %1698 = vmatmul.mubr.bf16.gmra.mrb[0].mxu0 %v1660
        %v1699 = vpop.f32.mrb[0].mxu0
        %v1700 = vadd.f32 0.0, %v1699
        %v1701 = vpop.f32.mrb[0].mxu0
        %v1702 = vpop.f32.mrb[0].mxu0
        %v1703 = vadd.f32 0.0, %v1702
        %v1704 = vpop.f32.mrb[0].mxu0
        %1705 = vmatprep.mubr.bf16.mxu0 0
        %1706 = vmatmul.mubr.bf16.gmra.mrb[0].mxu0 %v1663
        %v1707 = vpop.f32.mrb[0].mxu0
        %v1708 = vadd.f32 0.0, %v1707
        %v1709 = vpop.f32.mrb[0].mxu0
        %v1710 = vpop.f32.mrb[0].mxu0
        %v1711 = vadd.f32 0.0, %v1710
        %v1712 = vpop.f32.mrb[0].mxu0
        %1713 = vdwg.mxu0
        %1714 = vrot.lane.b32.xlu0 %v1187, 32
        %v1715 = vpop.permute.xlu0 %1714
        %1716 = vrot.lane.b32.xlu0 %v1188, 32
        %v1717 = vpop.permute.xlu0 %1716
        %1718 = vrot.lane.b32.xlu0 %v1189, 32
        %v1719 = vpop.permute.xlu0 %1718
        %1720 = vrot.lane.b32.xlu0 %v1190, 32
        %v1721 = vpop.permute.xlu0 %1720
        %v1723 = vsel %vm1193, %v1715, 0
        %v1726 = vsel %vm1193, %v1717, 0
        %v1729 = vsel %vm1193, %v1719, 0
        %v1732 = vsel %vm1193, %v1721, 0
        %1734 = vmatprep.subr.bf16.mxu0 0
        %1735 = vmatpush1.bf16.xpose.msra.mxu0 %v1729
        %1736 = vmatprep.subr.bf16.mxu0 0
        %1737 = vmatpush1.bf16.xpose.msra.mxu0 %v1732
        %1738 = vmatprep.subr.bf16.mxu0 0
        %1739 = vmatpush1.bf16.xpose.msra.mxu0 0
        %1740 = vmatprep.subr.bf16.mxu0 0
        %1741 = vmatpush1.bf16.xpose.msra.mxu0 0
        %1742 = vmatprep.subr.bf16.mxu0 0
        %1743 = vmatpush1.bf16.xpose.msra.mxu0 0
        %1744 = vmatprep.subr.bf16.mxu0 0
        %1745 = vmatpush1.bf16.xpose.msra.mxu0 0
        %1746 = vmatprep.subr.bf16.mxu0 0
        %1747 = vmatpush1.bf16.xpose.msra.mxu0 0
        %1748 = vmatprep.subr.bf16.mxu0 0
        %1749 = vmatpush1.bf16.xpose.msra.mxu0 0
        %1750 = vmatprep.subr.bf16.mxu0 0
        %1751 = vmatpush1.bf16.xpose.msra.mxu0 0
        %1752 = vmatprep.subr.bf16.mxu0 0
        %1753 = vmatpush1.bf16.xpose.msra.mxu0 0
        %1754 = vmatprep.subr.bf16.mxu0 0
        %1755 = vmatpush1.bf16.xpose.msra.mxu0 0
        %1756 = vmatprep.subr.bf16.mxu0 0
        %1757 = vmatpush1.bf16.xpose.msra.mxu0 0
        %1758 = vmatprep.subr.bf16.mxu0 0
        %1759 = vmatpush1.bf16.xpose.msra.mxu0 0
        %1760 = vmatprep.subr.bf16.mxu0 0
        %1761 = vmatpush1.bf16.xpose.msra.mxu0 0
        %1762 = vmatprep.subr.bf16.mxu0 0
        %1763 = vmatpush1.bf16.xpose.msra.mxu0 0
        %1764 = vmatprep.subr.bf16.mxu0 0
        %1765 = vmatpush1.bf16.xpose.msra.mxu0 0
        %1766 = vmatprep.mubr.bf16.mxu0 0
        %1767 = vmatmul.mubr.bf16.gmra.mrb[0].mxu0 %v1723
        %v1768 = vpop.f32.mrb[0].mxu0
        %v1769 = vadd.f32 0.0, %v1768
        %v1770 = vpop.f32.mrb[0].mxu0
        %v1771 = vpop.f32.mrb[0].mxu0
        %v1772 = vadd.f32 0.0, %v1771
        %v1773 = vpop.f32.mrb[0].mxu0
        %1774 = vmatprep.mubr.bf16.mxu0 0
        %1775 = vmatmul.mubr.bf16.gmra.mrb[0].mxu0 %v1726
        %v1776 = vpop.f32.mrb[0].mxu0
        %v1777 = vadd.f32 0.0, %v1776
        %v1778 = vpop.f32.mrb[0].mxu0
        %v1779 = vpop.f32.mrb[0].mxu0
        %v1780 = vadd.f32 0.0, %v1779
        %v1781 = vpop.f32.mrb[0].mxu0
        %1782 = vdwg.mxu0
        %v1783 = vsel %vm1193, %v1769, -inf
        %1784 = vmax.xlane.f32.xlu0 %v1783
        %v1785 = vpop.xlane.xlu0 %1784
        %v1786 = vsel %vm1193, %v1772, -inf
        %1787 = vmax.xlane.f32.xlu0 %v1786
        %v1788 = vpop.xlane.xlu0 %1787
        %v1789 = vsel %vm1193, %v1777, -inf
        %1790 = vmax.xlane.f32.xlu0 %v1789
        %v1791 = vpop.xlane.xlu0 %1790
        %v1792 = vsel %vm1193, %v1780, -inf
        %1793 = vmax.xlane.f32.xlu0 %v1792
        %v1794 = vpop.xlane.xlu0 %1793
        %v1795 = vsub.f32 %v1769, %v1785
        %v1796 = vsub.f32 %v1772, %v1788
        %v1797 = vsub.f32 %v1777, %v1791
        %v1798 = vsub.f32 %v1780, %v1794
        %v1799 = vmul.f32 %v1795, 1.442695
        %v1800 = vpow.pop %v1799
        %v1801 = vmul.f32 %v1796, 1.442695
        %v1802 = vpow.pop %v1801
        %v1803 = vmul.f32 %v1797, 1.442695
        %v1804 = vpow.pop %v1803
        %v1805 = vmul.f32 %v1798, 1.442695
        %v1806 = vpow.pop %v1805
        %v1807 = vsel %vm1193, %v1800, 0.0
        %1808 = vadd.xlane.f32.xlu0 %v1807
        %v1809 = vpop.xlane.xlu0 %1808
        %v1810 = vsel %vm1193, %v1802, 0.0
        %1811 = vadd.xlane.f32.xlu0 %v1810
        %v1812 = vpop.xlane.xlu0 %1811
        %v1813 = vsel %vm1193, %v1804, 0.0
        %1814 = vadd.xlane.f32.xlu0 %v1813
        %v1815 = vpop.xlane.xlu0 %1814
        %v1816 = vsel %vm1193, %v1806, 0.0
        %1817 = vadd.xlane.f32.xlu0 %v1816
        %v1818 = vpop.xlane.xlu0 %1817
        %v1819 = vrcp.pop %v1809
        %v1820 = vrcp.pop %v1812
        %v1821 = vrcp.pop %v1815
        %v1822 = vrcp.pop %v1818
        %v1823 = vmul.f32 %v1800, %v1819
        %v1824 = vmul.f32 %v1802, %v1820
        %v1825 = vmul.f32 %v1804, %v1821
        %v1826 = vmul.f32 %v1806, %v1822
        %v1827 = vpack.c.bf16 %v1824, %v1823
        %v1828 = vpack.c.bf16 %v1826, %v1825
        %1829 = vrot.lane.b32.xlu0 %v1191, 32
        %v1830 = vpop.permute.xlu0 %1829
        %1831 = vrot.lane.b32.xlu0 %v1192, 32
        %v1832 = vpop.permute.xlu0 %1831
        %v1836 = vsel %vm1193, %v1827, 0
        %v1839 = vsel %vm1193, %v1828, 0
        %1841 = vmatprep.subr.bf16.mxu0 0
        %1842 = vmatpush1.bf16.msra.mxu0 %v1830
        %1843 = vmatprep.subr.bf16.mxu0 0
        %1844 = vmatpush1.bf16.msra.mxu0 %v1832
        %1845 = vmatprep.subr.bf16.mxu0 0
        %1846 = vmatpush1.bf16.msra.mxu0 0
        %1847 = vmatprep.subr.bf16.mxu0 0
        %1848 = vmatpush1.bf16.msra.mxu0 0
        %1849 = vmatprep.subr.bf16.mxu0 0
        %1850 = vmatpush1.bf16.msra.mxu0 0
        %1851 = vmatprep.subr.bf16.mxu0 0
        %1852 = vmatpush1.bf16.msra.mxu0 0
        %1853 = vmatprep.subr.bf16.mxu0 0
        %1854 = vmatpush1.bf16.msra.mxu0 0
        %1855 = vmatprep.subr.bf16.mxu0 0
        %1856 = vmatpush1.bf16.msra.mxu0 0
        %1857 = vmatprep.subr.bf16.mxu0 0
        %1858 = vmatpush1.bf16.msra.mxu0 0
        %1859 = vmatprep.subr.bf16.mxu0 0
        %1860 = vmatpush1.bf16.msra.mxu0 0
        %1861 = vmatprep.subr.bf16.mxu0 0
        %1862 = vmatpush1.bf16.msra.mxu0 0
        %1863 = vmatprep.subr.bf16.mxu0 0
        %1864 = vmatpush1.bf16.msra.mxu0 0
        %1865 = vmatprep.subr.bf16.mxu0 0
        %1866 = vmatpush1.bf16.msra.mxu0 0
        %1867 = vmatprep.subr.bf16.mxu0 0
        %1868 = vmatpush1.bf16.msra.mxu0 0
        %1869 = vmatprep.subr.bf16.mxu0 0
        %1870 = vmatpush1.bf16.msra.mxu0 0
        %1871 = vmatprep.subr.bf16.mxu0 0
        %1872 = vmatpush1.bf16.msra.mxu0 0
        %1873 = vmatprep.mubr.bf16.mxu0 0
        %1874 = vmatmul.mubr.bf16.gmra.mrb[0].mxu0 %v1836
        %v1875 = vpop.f32.mrb[0].mxu0
        %v1876 = vadd.f32 0.0, %v1875
        %v1877 = vpop.f32.mrb[0].mxu0
        %v1878 = vpop.f32.mrb[0].mxu0
        %v1879 = vadd.f32 0.0, %v1878
        %v1880 = vpop.f32.mrb[0].mxu0
        %1881 = vmatprep.mubr.bf16.mxu0 0
        %1882 = vmatmul.mubr.bf16.gmra.mrb[0].mxu0 %v1839
        %v1883 = vpop.f32.mrb[0].mxu0
        %v1884 = vadd.f32 0.0, %v1883
        %v1885 = vpop.f32.mrb[0].mxu0
        %v1886 = vpop.f32.mrb[0].mxu0
        %v1887 = vadd.f32 0.0, %v1886
        %v1888 = vpop.f32.mrb[0].mxu0
        %1889 = vdwg.mxu0
        %1894 = vrot.lane.b32.xlu0 %v1524, 32
        %v1895 = vpop.permute.xlu0 %1894
        %1896 = vrot.lane.b32.xlu0 %v1527, 32
        %v1897 = vpop.permute.xlu0 %1896
        %1898 = vrot.lane.b32.xlu0 %v1532, 32
        %v1899 = vpop.permute.xlu0 %1898
        %1900 = vrot.lane.b32.xlu0 %v1535, 32
        %v1901 = vpop.permute.xlu0 %1900
        %1910 = vrot.lane.b32.xlu0 %v1700, 64
        %v1911 = vpop.permute.xlu0 %1910
        %1912 = vrot.lane.b32.xlu0 %v1703, 64
        %v1913 = vpop.permute.xlu0 %1912
        %1914 = vrot.lane.b32.xlu0 %v1708, 64
        %v1915 = vpop.permute.xlu0 %1914
        %1916 = vrot.lane.b32.xlu0 %v1711, 64
        %v1917 = vpop.permute.xlu0 %1916
        %1926 = vrot.lane.b32.xlu0 %v1876, 96
        %v1927 = vpop.permute.xlu0 %1926
        %1928 = vrot.lane.b32.xlu0 %v1879, 96
        %v1929 = vpop.permute.xlu0 %1928
        %1930 = vrot.lane.b32.xlu0 %v1884, 96
        %v1931 = vpop.permute.xlu0 %1930
        %1932 = vrot.lane.b32.xlu0 %v1887, 96
        %v1933 = vpop.permute.xlu0 %1932
        %v1938 = vsel %vm1193, %v1342, %v1895
        %v1939 = vsel %vm1193, %v1345, %v1897
        %v1940 = vsel %vm1193, %v1350, %v1899
        %v1941 = vsel %vm1193, %v1353, %v1901
        %vm1942 = vcmask 523264
        %v1943 = vsel %vm1942, %v1938, %v1911
        %v1944 = vsel %vm1942, %v1939, %v1913
        %v1945 = vsel %vm1942, %v1940, %v1915
        %v1946 = vsel %vm1942, %v1941, %v1917
        %vm1947 = vcmask 785408
        %v1948 = vsel %vm1947, %v1943, %v1927
        %v1949 = vsel %vm1947, %v1944, %v1929
        %v1950 = vsel %vm1947, %v1945, %v1931
        %v1951 = vsel %vm1947, %v1946, %v1933
        %v1952 = vpack.c.bf16 %v1036, %v1032
        %v1953 = vpack.c.bf16 %v1046, %v1042
        %v1954 = vpack.c.bf16 %v1038, %v1034
        %v1955 = vpack.c.bf16 %v1048, %v1044
        %v1956 = vpack.c.bf16 %v1144, %v1141
        %v1957 = vpack.c.bf16 %v1152, %v1149
        %v1959 = vsel %vm1193, %v1952, 0
        %v1962 = vsel %vm1193, %v1953, 0
        %v1965 = vsel %vm1193, %v1954, 0
        %v1968 = vsel %vm1193, %v1955, 0
        %1970 = vmatprep.subr.bf16.mxu0 0
        %1971 = vmatpush1.bf16.xpose.msra.mxu0 %v1965
        %1972 = vmatprep.subr.bf16.mxu0 0
        %1973 = vmatpush1.bf16.xpose.msra.mxu0 %v1968
        %1974 = vmatprep.subr.bf16.mxu0 0
        %1975 = vmatpush1.bf16.xpose.msra.mxu0 0
        %1976 = vmatprep.subr.bf16.mxu0 0
        %1977 = vmatpush1.bf16.xpose.msra.mxu0 0
        %1978 = vmatprep.subr.bf16.mxu0 0
        %1979 = vmatpush1.bf16.xpose.msra.mxu0 0
        %1980 = vmatprep.subr.bf16.mxu0 0
        %1981 = vmatpush1.bf16.xpose.msra.mxu0 0
        %1982 = vmatprep.subr.bf16.mxu0 0
        %1983 = vmatpush1.bf16.xpose.msra.mxu0 0
        %1984 = vmatprep.subr.bf16.mxu0 0
        %1985 = vmatpush1.bf16.xpose.msra.mxu0 0
        %1986 = vmatprep.subr.bf16.mxu0 0
        %1987 = vmatpush1.bf16.xpose.msra.mxu0 0
        %1988 = vmatprep.subr.bf16.mxu0 0
        %1989 = vmatpush1.bf16.xpose.msra.mxu0 0
        %1990 = vmatprep.subr.bf16.mxu0 0
        %1991 = vmatpush1.bf16.xpose.msra.mxu0 0
        %1992 = vmatprep.subr.bf16.mxu0 0
        %1993 = vmatpush1.bf16.xpose.msra.mxu0 0
        %1994 = vmatprep.subr.bf16.mxu0 0
        %1995 = vmatpush1.bf16.xpose.msra.mxu0 0
        %1996 = vmatprep.subr.bf16.mxu0 0
        %1997 = vmatpush1.bf16.xpose.msra.mxu0 0
        %1998 = vmatprep.subr.bf16.mxu0 0
        %1999 = vmatpush1.bf16.xpose.msra.mxu0 0
        %2000 = vmatprep.subr.bf16.mxu0 0
        %2001 = vmatpush1.bf16.xpose.msra.mxu0 0
        %2002 = vmatprep.mubr.bf16.mxu0 0
        %2003 = vmatmul.mubr.bf16.gmra.mrb[0].mxu0 %v1959
        %v2004 = vpop.f32.mrb[0].mxu0
        %v2005 = vadd.f32 0.0, %v2004
        %v2006 = vpop.f32.mrb[0].mxu0
        %v2007 = vpop.f32.mrb[0].mxu0
        %v2008 = vadd.f32 0.0, %v2007
        %v2009 = vpop.f32.mrb[0].mxu0
        %2010 = vmatprep.mubr.bf16.mxu0 0
        %2011 = vmatmul.mubr.bf16.gmra.mrb[0].mxu0 %v1962
        %v2012 = vpop.f32.mrb[0].mxu0
        %v2013 = vadd.f32 0.0, %v2012
        %v2014 = vpop.f32.mrb[0].mxu0
        %v2015 = vpop.f32.mrb[0].mxu0
        %v2016 = vadd.f32 0.0, %v2015
        %v2017 = vpop.f32.mrb[0].mxu0
        %2018 = vdwg.mxu0
        %v2019 = vsel %vm1193, %v2005, -inf
        %2020 = vmax.xlane.f32.xlu0 %v2019
        %v2021 = vpop.xlane.xlu0 %2020
        %v2022 = vsel %vm1193, %v2008, -inf
        %2023 = vmax.xlane.f32.xlu0 %v2022
        %v2024 = vpop.xlane.xlu0 %2023
        %v2025 = vsel %vm1193, %v2013, -inf
        %2026 = vmax.xlane.f32.xlu0 %v2025
        %v2027 = vpop.xlane.xlu0 %2026
        %v2028 = vsel %vm1193, %v2016, -inf
        %2029 = vmax.xlane.f32.xlu0 %v2028
        %v2030 = vpop.xlane.xlu0 %2029
        %v2031 = vsub.f32 %v2005, %v2021
        %v2032 = vsub.f32 %v2008, %v2024
        %v2033 = vsub.f32 %v2013, %v2027
        %v2034 = vsub.f32 %v2016, %v2030
        %v2035 = vmul.f32 %v2031, 1.442695
        %v2036 = vpow.pop %v2035
        %v2037 = vmul.f32 %v2032, 1.442695
        %v2038 = vpow.pop %v2037
        %v2039 = vmul.f32 %v2033, 1.442695
        %v2040 = vpow.pop %v2039
        %v2041 = vmul.f32 %v2034, 1.442695
        %v2042 = vpow.pop %v2041
        %v2043 = vsel %vm1193, %v2036, 0.0
        %2044 = vadd.xlane.f32.xlu0 %v2043
        %v2045 = vpop.xlane.xlu0 %2044
        %v2046 = vsel %vm1193, %v2038, 0.0
        %2047 = vadd.xlane.f32.xlu0 %v2046
        %v2048 = vpop.xlane.xlu0 %2047
        %v2049 = vsel %vm1193, %v2040, 0.0
        %2050 = vadd.xlane.f32.xlu0 %v2049
        %v2051 = vpop.xlane.xlu0 %2050
        %v2052 = vsel %vm1193, %v2042, 0.0
        %2053 = vadd.xlane.f32.xlu0 %v2052
        %v2054 = vpop.xlane.xlu0 %2053
        %v2055 = vrcp.pop %v2045
        %v2056 = vrcp.pop %v2048
        %v2057 = vrcp.pop %v2051
        %v2058 = vrcp.pop %v2054
        %v2059 = vmul.f32 %v2036, %v2055
        %v2060 = vmul.f32 %v2038, %v2056
        %v2061 = vmul.f32 %v2040, %v2057
        %v2062 = vmul.f32 %v2042, %v2058
        %v2063 = vpack.c.bf16 %v2060, %v2059
        %v2064 = vpack.c.bf16 %v2062, %v2061
        %v2066 = vsel %vm1193, %v2063, 0
        %v2069 = vsel %vm1193, %v2064, 0
        %2071 = vmatprep.subr.bf16.mxu0 0
        %2072 = vmatpush1.bf16.msra.mxu0 %v1956
        %2073 = vmatprep.subr.bf16.mxu0 0
        %2074 = vmatpush1.bf16.msra.mxu0 %v1957
        %2075 = vmatprep.subr.bf16.mxu0 0
        %2076 = vmatpush1.bf16.msra.mxu0 0
        %2077 = vmatprep.subr.bf16.mxu0 0
        %2078 = vmatpush1.bf16.msra.mxu0 0
        %2079 = vmatprep.subr.bf16.mxu0 0
        %2080 = vmatpush1.bf16.msra.mxu0 0
        %2081 = vmatprep.subr.bf16.mxu0 0
        %2082 = vmatpush1.bf16.msra.mxu0 0
        %2083 = vmatprep.subr.bf16.mxu0 0
        %2084 = vmatpush1.bf16.msra.mxu0 0
        %2085 = vmatprep.subr.bf16.mxu0 0
        %2086 = vmatpush1.bf16.msra.mxu0 0
        %2087 = vmatprep.subr.bf16.mxu0 0
        %2088 = vmatpush1.bf16.msra.mxu0 0
        %2089 = vmatprep.subr.bf16.mxu0 0
        %2090 = vmatpush1.bf16.msra.mxu0 0
        %2091 = vmatprep.subr.bf16.mxu0 0
        %2092 = vmatpush1.bf16.msra.mxu0 0
        %2093 = vmatprep.subr.bf16.mxu0 0
        %2094 = vmatpush1.bf16.msra.mxu0 0
        %2095 = vmatprep.subr.bf16.mxu0 0
        %2096 = vmatpush1.bf16.msra.mxu0 0
        %2097 = vmatprep.subr.bf16.mxu0 0
        %2098 = vmatpush1.bf16.msra.mxu0 0
        %2099 = vmatprep.subr.bf16.mxu0 0
        %2100 = vmatpush1.bf16.msra.mxu0 0
        %2101 = vmatprep.subr.bf16.mxu0 0
        %2102 = vmatpush1.bf16.msra.mxu0 0
        %2103 = vmatprep.mubr.bf16.mxu0 0
        %2104 = vmatmul.mubr.bf16.gmra.mrb[0].mxu0 %v2066
        %v2105 = vpop.f32.mrb[0].mxu0
        %v2106 = vadd.f32 0.0, %v2105
        %v2107 = vpop.f32.mrb[0].mxu0
        %v2108 = vpop.f32.mrb[0].mxu0
        %v2109 = vadd.f32 0.0, %v2108
        %v2110 = vpop.f32.mrb[0].mxu0
        %2111 = vmatprep.mubr.bf16.mxu0 0
        %2112 = vmatmul.mubr.bf16.gmra.mrb[0].mxu0 %v2069
        %v2113 = vpop.f32.mrb[0].mxu0
        %v2114 = vadd.f32 0.0, %v2113
        %v2115 = vpop.f32.mrb[0].mxu0
        %v2116 = vpop.f32.mrb[0].mxu0
        %v2117 = vadd.f32 0.0, %v2116
        %v2118 = vpop.f32.mrb[0].mxu0
        %2119 = vdwg.mxu0
        %2122 = vrot.lane.b32.xlu0 %v1952, 96
        %v2123 = vpop.permute.xlu0 %2122
        %2124 = vrot.lane.b32.xlu0 %v1953, 96
        %v2125 = vpop.permute.xlu0 %2124
        %2128 = vrot.lane.b32.xlu0 %v1954, 96
        %v2129 = vpop.permute.xlu0 %2128
        %2130 = vrot.lane.b32.xlu0 %v1955, 96
        %v2131 = vpop.permute.xlu0 %2130
        %v2133 = vsel %vm1193, %v2123, 0
        %v2136 = vsel %vm1193, %v2125, 0
        %v2139 = vsel %vm1193, %v2129, 0
        %v2142 = vsel %vm1193, %v2131, 0
        %2144 = vmatprep.subr.bf16.mxu0 0
        %2145 = vmatpush1.bf16.xpose.msra.mxu0 %v2139
        %2146 = vmatprep.subr.bf16.mxu0 0
        %2147 = vmatpush1.bf16.xpose.msra.mxu0 %v2142
        %2148 = vmatprep.subr.bf16.mxu0 0
        %2149 = vmatpush1.bf16.xpose.msra.mxu0 0
        %2150 = vmatprep.subr.bf16.mxu0 0
        %2151 = vmatpush1.bf16.xpose.msra.mxu0 0
        %2152 = vmatprep.subr.bf16.mxu0 0
        %2153 = vmatpush1.bf16.xpose.msra.mxu0 0
        %2154 = vmatprep.subr.bf16.mxu0 0
        %2155 = vmatpush1.bf16.xpose.msra.mxu0 0
        %2156 = vmatprep.subr.bf16.mxu0 0
        %2157 = vmatpush1.bf16.xpose.msra.mxu0 0
        %2158 = vmatprep.subr.bf16.mxu0 0
        %2159 = vmatpush1.bf16.xpose.msra.mxu0 0
        %2160 = vmatprep.subr.bf16.mxu0 0
        %2161 = vmatpush1.bf16.xpose.msra.mxu0 0
        %2162 = vmatprep.subr.bf16.mxu0 0
        %2163 = vmatpush1.bf16.xpose.msra.mxu0 0
        %2164 = vmatprep.subr.bf16.mxu0 0
        %2165 = vmatpush1.bf16.xpose.msra.mxu0 0
        %2166 = vmatprep.subr.bf16.mxu0 0
        %2167 = vmatpush1.bf16.xpose.msra.mxu0 0
        %2168 = vmatprep.subr.bf16.mxu0 0
        %2169 = vmatpush1.bf16.xpose.msra.mxu0 0
        %2170 = vmatprep.subr.bf16.mxu0 0
        %2171 = vmatpush1.bf16.xpose.msra.mxu0 0
        %2172 = vmatprep.subr.bf16.mxu0 0
        %2173 = vmatpush1.bf16.xpose.msra.mxu0 0
        %2174 = vmatprep.subr.bf16.mxu0 0
        %2175 = vmatpush1.bf16.xpose.msra.mxu0 0
        %2176 = vmatprep.mubr.bf16.mxu0 0
        %2177 = vmatmul.mubr.bf16.gmra.mrb[0].mxu0 %v2133
        %v2178 = vpop.f32.mrb[0].mxu0
        %v2179 = vadd.f32 0.0, %v2178
        %v2180 = vpop.f32.mrb[0].mxu0
        %v2181 = vpop.f32.mrb[0].mxu0
        %v2182 = vadd.f32 0.0, %v2181
        %v2183 = vpop.f32.mrb[0].mxu0
        %2184 = vmatprep.mubr.bf16.mxu0 0
        %2185 = vmatmul.mubr.bf16.gmra.mrb[0].mxu0 %v2136
        %v2186 = vpop.f32.mrb[0].mxu0
        %v2187 = vadd.f32 0.0, %v2186
        %v2188 = vpop.f32.mrb[0].mxu0
        %v2189 = vpop.f32.mrb[0].mxu0
        %v2190 = vadd.f32 0.0, %v2189
        %v2191 = vpop.f32.mrb[0].mxu0
        %2192 = vdwg.mxu0
        %v2193 = vsel %vm1193, %v2179, -inf
        %2194 = vmax.xlane.f32.xlu0 %v2193
        %v2195 = vpop.xlane.xlu0 %2194
        %v2196 = vsel %vm1193, %v2182, -inf
        %2197 = vmax.xlane.f32.xlu0 %v2196
        %v2198 = vpop.xlane.xlu0 %2197
        %v2199 = vsel %vm1193, %v2187, -inf
        %2200 = vmax.xlane.f32.xlu0 %v2199
        %v2201 = vpop.xlane.xlu0 %2200
        %v2202 = vsel %vm1193, %v2190, -inf
        %2203 = vmax.xlane.f32.xlu0 %v2202
        %v2204 = vpop.xlane.xlu0 %2203
        %v2205 = vsub.f32 %v2179, %v2195
        %v2206 = vsub.f32 %v2182, %v2198
        %v2207 = vsub.f32 %v2187, %v2201
        %v2208 = vsub.f32 %v2190, %v2204
        %v2209 = vmul.f32 %v2205, 1.442695
        %v2210 = vpow.pop %v2209
        %v2211 = vmul.f32 %v2206, 1.442695
        %v2212 = vpow.pop %v2211
        %v2213 = vmul.f32 %v2207, 1.442695
        %v2214 = vpow.pop %v2213
        %v2215 = vmul.f32 %v2208, 1.442695
        %v2216 = vpow.pop %v2215
        %v2217 = vsel %vm1193, %v2210, 0.0
        %2218 = vadd.xlane.f32.xlu0 %v2217
        %v2219 = vpop.xlane.xlu0 %2218
        %v2220 = vsel %vm1193, %v2212, 0.0
        %2221 = vadd.xlane.f32.xlu0 %v2220
        %v2222 = vpop.xlane.xlu0 %2221
        %v2223 = vsel %vm1193, %v2214, 0.0
        %2224 = vadd.xlane.f32.xlu0 %v2223
        %v2225 = vpop.xlane.xlu0 %2224
        %v2226 = vsel %vm1193, %v2216, 0.0
        %2227 = vadd.xlane.f32.xlu0 %v2226
        %v2228 = vpop.xlane.xlu0 %2227
        %v2229 = vrcp.pop %v2219
        %v2230 = vrcp.pop %v2222
        %v2231 = vrcp.pop %v2225
        %v2232 = vrcp.pop %v2228
        %v2233 = vmul.f32 %v2210, %v2229
        %v2234 = vmul.f32 %v2212, %v2230
        %v2235 = vmul.f32 %v2214, %v2231
        %v2236 = vmul.f32 %v2216, %v2232
        %v2237 = vpack.c.bf16 %v2234, %v2233
        %v2238 = vpack.c.bf16 %v2236, %v2235
        %2241 = vrot.lane.b32.xlu0 %v1956, 96
        %v2242 = vpop.permute.xlu0 %2241
        %2243 = vrot.lane.b32.xlu0 %v1957, 96
        %v2244 = vpop.permute.xlu0 %2243
        %v2248 = vsel %vm1193, %v2237, 0
        %v2251 = vsel %vm1193, %v2238, 0
        %2253 = vmatprep.subr.bf16.mxu0 0
        %2254 = vmatpush1.bf16.msra.mxu0 %v2242
        %2255 = vmatprep.subr.bf16.mxu0 0
        %2256 = vmatpush1.bf16.msra.mxu0 %v2244
        %2257 = vmatprep.subr.bf16.mxu0 0
        %2258 = vmatpush1.bf16.msra.mxu0 0
        %2259 = vmatprep.subr.bf16.mxu0 0
        %2260 = vmatpush1.bf16.msra.mxu0 0
        %2261 = vmatprep.subr.bf16.mxu0 0
        %2262 = vmatpush1.bf16.msra.mxu0 0
        %2263 = vmatprep.subr.bf16.mxu0 0
        %2264 = vmatpush1.bf16.msra.mxu0 0
        %2265 = vmatprep.subr.bf16.mxu0 0
        %2266 = vmatpush1.bf16.msra.mxu0 0
        %2267 = vmatprep.subr.bf16.mxu0 0
        %2268 = vmatpush1.bf16.msra.mxu0 0
        %2269 = vmatprep.subr.bf16.mxu0 0
        %2270 = vmatpush1.bf16.msra.mxu0 0
        %2271 = vmatprep.subr.bf16.mxu0 0
        %2272 = vmatpush1.bf16.msra.mxu0 0
        %2273 = vmatprep.subr.bf16.mxu0 0
        %2274 = vmatpush1.bf16.msra.mxu0 0
        %2275 = vmatprep.subr.bf16.mxu0 0
        %2276 = vmatpush1.bf16.msra.mxu0 0
        %2277 = vmatprep.subr.bf16.mxu0 0
        %2278 = vmatpush1.bf16.msra.mxu0 0
        %2279 = vmatprep.subr.bf16.mxu0 0
        %2280 = vmatpush1.bf16.msra.mxu0 0
        %2281 = vmatprep.subr.bf16.mxu0 0
        %2282 = vmatpush1.bf16.msra.mxu0 0
        %2283 = vmatprep.subr.bf16.mxu0 0
        %2284 = vmatpush1.bf16.msra.mxu0 0
        %2285 = vmatprep.mubr.bf16.mxu0 0
        %2286 = vmatmul.mubr.bf16.gmra.mrb[0].mxu0 %v2248
        %v2287 = vpop.f32.mrb[0].mxu0
        %v2288 = vadd.f32 0.0, %v2287
        %v2289 = vpop.f32.mrb[0].mxu0
        %v2290 = vpop.f32.mrb[0].mxu0
        %v2291 = vadd.f32 0.0, %v2290
        %v2292 = vpop.f32.mrb[0].mxu0
        %2293 = vmatprep.mubr.bf16.mxu0 0
        %2294 = vmatmul.mubr.bf16.gmra.mrb[0].mxu0 %v2251
        %v2295 = vpop.f32.mrb[0].mxu0
        %v2296 = vadd.f32 0.0, %v2295
        %v2297 = vpop.f32.mrb[0].mxu0
        %v2298 = vpop.f32.mrb[0].mxu0
        %v2299 = vadd.f32 0.0, %v2298
        %v2300 = vpop.f32.mrb[0].mxu0
        %2301 = vdwg.mxu0
        %2302 = vrot.lane.b32.xlu0 %v1952, 64
        %v2303 = vpop.permute.xlu0 %2302
        %2304 = vrot.lane.b32.xlu0 %v1953, 64
        %v2305 = vpop.permute.xlu0 %2304
        %2306 = vrot.lane.b32.xlu0 %v1954, 64
        %v2307 = vpop.permute.xlu0 %2306
        %2308 = vrot.lane.b32.xlu0 %v1955, 64
        %v2309 = vpop.permute.xlu0 %2308
        %v2311 = vsel %vm1193, %v2303, 0
        %v2314 = vsel %vm1193, %v2305, 0
        %v2317 = vsel %vm1193, %v2307, 0
        %v2320 = vsel %vm1193, %v2309, 0
        %2322 = vmatprep.subr.bf16.mxu0 0
        %2323 = vmatpush1.bf16.xpose.msra.mxu0 %v2317
        %2324 = vmatprep.subr.bf16.mxu0 0
        %2325 = vmatpush1.bf16.xpose.msra.mxu0 %v2320
        %2326 = vmatprep.subr.bf16.mxu0 0
        %2327 = vmatpush1.bf16.xpose.msra.mxu0 0
        %2328 = vmatprep.subr.bf16.mxu0 0
        %2329 = vmatpush1.bf16.xpose.msra.mxu0 0
        %2330 = vmatprep.subr.bf16.mxu0 0
        %2331 = vmatpush1.bf16.xpose.msra.mxu0 0
        %2332 = vmatprep.subr.bf16.mxu0 0
        %2333 = vmatpush1.bf16.xpose.msra.mxu0 0
        %2334 = vmatprep.subr.bf16.mxu0 0
        %2335 = vmatpush1.bf16.xpose.msra.mxu0 0
        %2336 = vmatprep.subr.bf16.mxu0 0
        %2337 = vmatpush1.bf16.xpose.msra.mxu0 0
        %2338 = vmatprep.subr.bf16.mxu0 0
        %2339 = vmatpush1.bf16.xpose.msra.mxu0 0
        %2340 = vmatprep.subr.bf16.mxu0 0
        %2341 = vmatpush1.bf16.xpose.msra.mxu0 0
        %2342 = vmatprep.subr.bf16.mxu0 0
        %2343 = vmatpush1.bf16.xpose.msra.mxu0 0
        %2344 = vmatprep.subr.bf16.mxu0 0
        %2345 = vmatpush1.bf16.xpose.msra.mxu0 0
        %2346 = vmatprep.subr.bf16.mxu0 0
        %2347 = vmatpush1.bf16.xpose.msra.mxu0 0
        %2348 = vmatprep.subr.bf16.mxu0 0
        %2349 = vmatpush1.bf16.xpose.msra.mxu0 0
        %2350 = vmatprep.subr.bf16.mxu0 0
        %2351 = vmatpush1.bf16.xpose.msra.mxu0 0
        %2352 = vmatprep.subr.bf16.mxu0 0
        %2353 = vmatpush1.bf16.xpose.msra.mxu0 0
        %2354 = vmatprep.mubr.bf16.mxu0 0
        %2355 = vmatmul.mubr.bf16.gmra.mrb[0].mxu0 %v2311
        %v2356 = vpop.f32.mrb[0].mxu0
        %v2357 = vadd.f32 0.0, %v2356
        %v2358 = vpop.f32.mrb[0].mxu0
        %v2359 = vpop.f32.mrb[0].mxu0
        %v2360 = vadd.f32 0.0, %v2359
        %v2361 = vpop.f32.mrb[0].mxu0
        %2362 = vmatprep.mubr.bf16.mxu0 0
        %2363 = vmatmul.mubr.bf16.gmra.mrb[0].mxu0 %v2314
        %v2364 = vpop.f32.mrb[0].mxu0
        %v2365 = vadd.f32 0.0, %v2364
        %v2366 = vpop.f32.mrb[0].mxu0
        %v2367 = vpop.f32.mrb[0].mxu0
        %v2368 = vadd.f32 0.0, %v2367
        %v2369 = vpop.f32.mrb[0].mxu0
        %2370 = vdwg.mxu0
        %v2371 = vsel %vm1193, %v2357, -inf
        %2372 = vmax.xlane.f32.xlu0 %v2371
        %v2373 = vpop.xlane.xlu0 %2372
        %v2374 = vsel %vm1193, %v2360, -inf
        %2375 = vmax.xlane.f32.xlu0 %v2374
        %v2376 = vpop.xlane.xlu0 %2375
        %v2377 = vsel %vm1193, %v2365, -inf
        %2378 = vmax.xlane.f32.xlu0 %v2377
        %v2379 = vpop.xlane.xlu0 %2378
        %v2380 = vsel %vm1193, %v2368, -inf
        %2381 = vmax.xlane.f32.xlu0 %v2380
        %v2382 = vpop.xlane.xlu0 %2381
        %v2383 = vsub.f32 %v2357, %v2373
        %v2384 = vsub.f32 %v2360, %v2376
        %v2385 = vsub.f32 %v2365, %v2379
        %v2386 = vsub.f32 %v2368, %v2382
        %v2387 = vmul.f32 %v2383, 1.442695
        %v2388 = vpow.pop %v2387
        %v2389 = vmul.f32 %v2384, 1.442695
        %v2390 = vpow.pop %v2389
        %v2391 = vmul.f32 %v2385, 1.442695
        %v2392 = vpow.pop %v2391
        %v2393 = vmul.f32 %v2386, 1.442695
        %v2394 = vpow.pop %v2393
        %v2395 = vsel %vm1193, %v2388, 0.0
        %2396 = vadd.xlane.f32.xlu0 %v2395
        %v2397 = vpop.xlane.xlu0 %2396
        %v2398 = vsel %vm1193, %v2390, 0.0
        %2399 = vadd.xlane.f32.xlu0 %v2398
        %v2400 = vpop.xlane.xlu0 %2399
        %v2401 = vsel %vm1193, %v2392, 0.0
        %2402 = vadd.xlane.f32.xlu0 %v2401
        %v2403 = vpop.xlane.xlu0 %2402
        %v2404 = vsel %vm1193, %v2394, 0.0
        %2405 = vadd.xlane.f32.xlu0 %v2404
        %v2406 = vpop.xlane.xlu0 %2405
        %v2407 = vrcp.pop %v2397
        %v2408 = vrcp.pop %v2400
        %v2409 = vrcp.pop %v2403
        %v2410 = vrcp.pop %v2406
        %v2411 = vmul.f32 %v2388, %v2407
        %v2412 = vmul.f32 %v2390, %v2408
        %v2413 = vmul.f32 %v2392, %v2409
        %v2414 = vmul.f32 %v2394, %v2410
        %v2415 = vpack.c.bf16 %v2412, %v2411
        %v2416 = vpack.c.bf16 %v2414, %v2413
        %2417 = vrot.lane.b32.xlu0 %v1956, 64
        %v2418 = vpop.permute.xlu0 %2417
        %2419 = vrot.lane.b32.xlu0 %v1957, 64
        %v2420 = vpop.permute.xlu0 %2419
        %v2424 = vsel %vm1193, %v2415, 0
        %v2427 = vsel %vm1193, %v2416, 0
        %2429 = vmatprep.subr.bf16.mxu0 0
        %2430 = vmatpush1.bf16.msra.mxu0 %v2418
        %2431 = vmatprep.subr.bf16.mxu0 0
        %2432 = vmatpush1.bf16.msra.mxu0 %v2420
        %2433 = vmatprep.subr.bf16.mxu0 0
        %2434 = vmatpush1.bf16.msra.mxu0 0
        %2435 = vmatprep.subr.bf16.mxu0 0
        %2436 = vmatpush1.bf16.msra.mxu0 0
        %2437 = vmatprep.subr.bf16.mxu0 0
        %2438 = vmatpush1.bf16.msra.mxu0 0
        %2439 = vmatprep.subr.bf16.mxu0 0
        %2440 = vmatpush1.bf16.msra.mxu0 0
        %2441 = vmatprep.subr.bf16.mxu0 0
        %2442 = vmatpush1.bf16.msra.mxu0 0
        %2443 = vmatprep.subr.bf16.mxu0 0
        %2444 = vmatpush1.bf16.msra.mxu0 0
        %2445 = vmatprep.subr.bf16.mxu0 0
        %2446 = vmatpush1.bf16.msra.mxu0 0
        %2447 = vmatprep.subr.bf16.mxu0 0
        %2448 = vmatpush1.bf16.msra.mxu0 0
        %2449 = vmatprep.subr.bf16.mxu0 0
        %2450 = vmatpush1.bf16.msra.mxu0 0
        %2451 = vmatprep.subr.bf16.mxu0 0
        %2452 = vmatpush1.bf16.msra.mxu0 0
        %2453 = vmatprep.subr.bf16.mxu0 0
        %2454 = vmatpush1.bf16.msra.mxu0 0
        %2455 = vmatprep.subr.bf16.mxu0 0
        %2456 = vmatpush1.bf16.msra.mxu0 0
        %2457 = vmatprep.subr.bf16.mxu0 0
        %2458 = vmatpush1.bf16.msra.mxu0 0
        %2459 = vmatprep.subr.bf16.mxu0 0
        %2460 = vmatpush1.bf16.msra.mxu0 0
        %2461 = vmatprep.mubr.bf16.mxu0 0
        %2462 = vmatmul.mubr.bf16.gmra.mrb[0].mxu0 %v2424
        %v2463 = vpop.f32.mrb[0].mxu0
        %v2464 = vadd.f32 0.0, %v2463
        %v2465 = vpop.f32.mrb[0].mxu0
        %v2466 = vpop.f32.mrb[0].mxu0
        %v2467 = vadd.f32 0.0, %v2466
        %v2468 = vpop.f32.mrb[0].mxu0
        %2469 = vmatprep.mubr.bf16.mxu0 0
        %2470 = vmatmul.mubr.bf16.gmra.mrb[0].mxu0 %v2427
        %v2471 = vpop.f32.mrb[0].mxu0
        %v2472 = vadd.f32 0.0, %v2471
        %v2473 = vpop.f32.mrb[0].mxu0
        %v2474 = vpop.f32.mrb[0].mxu0
        %v2475 = vadd.f32 0.0, %v2474
        %v2476 = vpop.f32.mrb[0].mxu0
        %2477 = vdwg.mxu0
        %2478 = vrot.lane.b32.xlu0 %v1952, 32
        %v2479 = vpop.permute.xlu0 %2478
        %2480 = vrot.lane.b32.xlu0 %v1953, 32
        %v2481 = vpop.permute.xlu0 %2480
        %2482 = vrot.lane.b32.xlu0 %v1954, 32
        %v2483 = vpop.permute.xlu0 %2482
        %2484 = vrot.lane.b32.xlu0 %v1955, 32
        %v2485 = vpop.permute.xlu0 %2484
        %v2487 = vsel %vm1193, %v2479, 0
        %v2490 = vsel %vm1193, %v2481, 0
        %v2493 = vsel %vm1193, %v2483, 0
        %v2496 = vsel %vm1193, %v2485, 0
        %2498 = vmatprep.subr.bf16.mxu0 0
        %2499 = vmatpush1.bf16.xpose.msra.mxu0 %v2493
        %2500 = vmatprep.subr.bf16.mxu0 0
        %2501 = vmatpush1.bf16.xpose.msra.mxu0 %v2496
        %2502 = vmatprep.subr.bf16.mxu0 0
        %2503 = vmatpush1.bf16.xpose.msra.mxu0 0
        %2504 = vmatprep.subr.bf16.mxu0 0
        %2505 = vmatpush1.bf16.xpose.msra.mxu0 0
        %2506 = vmatprep.subr.bf16.mxu0 0
        %2507 = vmatpush1.bf16.xpose.msra.mxu0 0
        %2508 = vmatprep.subr.bf16.mxu0 0
        %2509 = vmatpush1.bf16.xpose.msra.mxu0 0
        %2510 = vmatprep.subr.bf16.mxu0 0
        %2511 = vmatpush1.bf16.xpose.msra.mxu0 0
        %2512 = vmatprep.subr.bf16.mxu0 0
        %2513 = vmatpush1.bf16.xpose.msra.mxu0 0
        %2514 = vmatprep.subr.bf16.mxu0 0
        %2515 = vmatpush1.bf16.xpose.msra.mxu0 0
        %2516 = vmatprep.subr.bf16.mxu0 0
        %2517 = vmatpush1.bf16.xpose.msra.mxu0 0
        %2518 = vmatprep.subr.bf16.mxu0 0
        %2519 = vmatpush1.bf16.xpose.msra.mxu0 0
        %2520 = vmatprep.subr.bf16.mxu0 0
        %2521 = vmatpush1.bf16.xpose.msra.mxu0 0
        %2522 = vmatprep.subr.bf16.mxu0 0
        %2523 = vmatpush1.bf16.xpose.msra.mxu0 0
        %2524 = vmatprep.subr.bf16.mxu0 0
        %2525 = vmatpush1.bf16.xpose.msra.mxu0 0
        %2526 = vmatprep.subr.bf16.mxu0 0
        %2527 = vmatpush1.bf16.xpose.msra.mxu0 0
        %2528 = vmatprep.subr.bf16.mxu0 0
        %2529 = vmatpush1.bf16.xpose.msra.mxu0 0
        %2530 = vmatprep.mubr.bf16.mxu0 0
        %2531 = vmatmul.mubr.bf16.gmra.mrb[0].mxu0 %v2487
        %v2532 = vpop.f32.mrb[0].mxu0
        %v2533 = vadd.f32 0.0, %v2532
        %v2534 = vpop.f32.mrb[0].mxu0
        %v2535 = vpop.f32.mrb[0].mxu0
        %v2536 = vadd.f32 0.0, %v2535
        %v2537 = vpop.f32.mrb[0].mxu0
        %2538 = vmatprep.mubr.bf16.mxu0 0
        %2539 = vmatmul.mubr.bf16.gmra.mrb[0].mxu0 %v2490
        %v2540 = vpop.f32.mrb[0].mxu0
        %v2541 = vadd.f32 0.0, %v2540
        %v2542 = vpop.f32.mrb[0].mxu0
        %v2543 = vpop.f32.mrb[0].mxu0
        %v2544 = vadd.f32 0.0, %v2543
        %v2545 = vpop.f32.mrb[0].mxu0
        %2546 = vdwg.mxu0
        %v2547 = vsel %vm1193, %v2533, -inf
        %2548 = vmax.xlane.f32.xlu0 %v2547
        %v2549 = vpop.xlane.xlu0 %2548
        %v2550 = vsel %vm1193, %v2536, -inf
        %2551 = vmax.xlane.f32.xlu0 %v2550
        %v2552 = vpop.xlane.xlu0 %2551
        %v2553 = vsel %vm1193, %v2541, -inf
        %2554 = vmax.xlane.f32.xlu0 %v2553
        %v2555 = vpop.xlane.xlu0 %2554
        %v2556 = vsel %vm1193, %v2544, -inf
        %2557 = vmax.xlane.f32.xlu0 %v2556
        %v2558 = vpop.xlane.xlu0 %2557
        %v2559 = vsub.f32 %v2533, %v2549
        %v2560 = vsub.f32 %v2536, %v2552
        %v2561 = vsub.f32 %v2541, %v2555
        %v2562 = vsub.f32 %v2544, %v2558
        %v2563 = vmul.f32 %v2559, 1.442695
        %v2564 = vpow.pop %v2563
        %v2565 = vmul.f32 %v2560, 1.442695
        %v2566 = vpow.pop %v2565
        %v2567 = vmul.f32 %v2561, 1.442695
        %v2568 = vpow.pop %v2567
        %v2569 = vmul.f32 %v2562, 1.442695
        %v2570 = vpow.pop %v2569
        %v2571 = vsel %vm1193, %v2564, 0.0
        %2572 = vadd.xlane.f32.xlu0 %v2571
        %v2573 = vpop.xlane.xlu0 %2572
        %v2574 = vsel %vm1193, %v2566, 0.0
        %2575 = vadd.xlane.f32.xlu0 %v2574
        %v2576 = vpop.xlane.xlu0 %2575
        %v2577 = vsel %vm1193, %v2568, 0.0
        %2578 = vadd.xlane.f32.xlu0 %v2577
        %v2579 = vpop.xlane.xlu0 %2578
        %v2580 = vsel %vm1193, %v2570, 0.0
        %2581 = vadd.xlane.f32.xlu0 %v2580
        %v2582 = vpop.xlane.xlu0 %2581
        %v2583 = vrcp.pop %v2573
        %v2584 = vrcp.pop %v2576
        %v2585 = vrcp.pop %v2579
        %v2586 = vrcp.pop %v2582
        %v2587 = vmul.f32 %v2564, %v2583
        %v2588 = vmul.f32 %v2566, %v2584
        %v2589 = vmul.f32 %v2568, %v2585
        %v2590 = vmul.f32 %v2570, %v2586
        %v2591 = vpack.c.bf16 %v2588, %v2587
        %v2592 = vpack.c.bf16 %v2590, %v2589
        %2593 = vrot.lane.b32.xlu0 %v1956, 32
        %v2594 = vpop.permute.xlu0 %2593
        %2595 = vrot.lane.b32.xlu0 %v1957, 32
        %v2596 = vpop.permute.xlu0 %2595
        %v2600 = vsel %vm1193, %v2591, 0
        %v2603 = vsel %vm1193, %v2592, 0
        %2605 = vmatprep.subr.bf16.mxu0 0
        %2606 = vmatpush1.bf16.msra.mxu0 %v2594
        %2607 = vmatprep.subr.bf16.mxu0 0
        %2608 = vmatpush1.bf16.msra.mxu0 %v2596
        %2609 = vmatprep.subr.bf16.mxu0 0
        %2610 = vmatpush1.bf16.msra.mxu0 0
        %2611 = vmatprep.subr.bf16.mxu0 0
        %2612 = vmatpush1.bf16.msra.mxu0 0
        %2613 = vmatprep.subr.bf16.mxu0 0
        %2614 = vmatpush1.bf16.msra.mxu0 0
        %2615 = vmatprep.subr.bf16.mxu0 0
        %2616 = vmatpush1.bf16.msra.mxu0 0
        %2617 = vmatprep.subr.bf16.mxu0 0
        %2618 = vmatpush1.bf16.msra.mxu0 0
        %2619 = vmatprep.subr.bf16.mxu0 0
        %2620 = vmatpush1.bf16.msra.mxu0 0
        %2621 = vmatprep.subr.bf16.mxu0 0
        %2622 = vmatpush1.bf16.msra.mxu0 0
        %2623 = vmatprep.subr.bf16.mxu0 0
        %2624 = vmatpush1.bf16.msra.mxu0 0
        %2625 = vmatprep.subr.bf16.mxu0 0
        %2626 = vmatpush1.bf16.msra.mxu0 0
        %2627 = vmatprep.subr.bf16.mxu0 0
        %2628 = vmatpush1.bf16.msra.mxu0 0
        %2629 = vmatprep.subr.bf16.mxu0 0
        %2630 = vmatpush1.bf16.msra.mxu0 0
        %2631 = vmatprep.subr.bf16.mxu0 0
        %2632 = vmatpush1.bf16.msra.mxu0 0
        %2633 = vmatprep.subr.bf16.mxu0 0
        %2634 = vmatpush1.bf16.msra.mxu0 0
        %2635 = vmatprep.subr.bf16.mxu0 0
        %2636 = vmatpush1.bf16.msra.mxu0 0
        %2637 = vmatprep.mubr.bf16.mxu0 0
        %2638 = vmatmul.mubr.bf16.gmra.mrb[0].mxu0 %v2600
        %v2639 = vpop.f32.mrb[0].mxu0
        %v2640 = vadd.f32 0.0, %v2639
        %v2641 = vpop.f32.mrb[0].mxu0
        %v2642 = vpop.f32.mrb[0].mxu0
        %v2643 = vadd.f32 0.0, %v2642
        %v2644 = vpop.f32.mrb[0].mxu0
        %2645 = vmatprep.mubr.bf16.mxu0 0
        %2646 = vmatmul.mubr.bf16.gmra.mrb[0].mxu0 %v2603
        %v2647 = vpop.f32.mrb[0].mxu0
        %v2648 = vadd.f32 0.0, %v2647
        %v2649 = vpop.f32.mrb[0].mxu0
        %v2650 = vpop.f32.mrb[0].mxu0
        %v2651 = vadd.f32 0.0, %v2650
        %v2652 = vpop.f32.mrb[0].mxu0
        %2653 = vdwg.mxu0
        %2658 = vrot.lane.b32.xlu0 %v2288, 32
        %v2659 = vpop.permute.xlu0 %2658
        %2660 = vrot.lane.b32.xlu0 %v2291, 32
        %v2661 = vpop.permute.xlu0 %2660
        %2662 = vrot.lane.b32.xlu0 %v2296, 32
        %v2663 = vpop.permute.xlu0 %2662
        %2664 = vrot.lane.b32.xlu0 %v2299, 32
        %v2665 = vpop.permute.xlu0 %2664
        %2674 = vrot.lane.b32.xlu0 %v2464, 64
        %v2675 = vpop.permute.xlu0 %2674
        %2676 = vrot.lane.b32.xlu0 %v2467, 64
        %v2677 = vpop.permute.xlu0 %2676
        %2678 = vrot.lane.b32.xlu0 %v2472, 64
        %v2679 = vpop.permute.xlu0 %2678
        %2680 = vrot.lane.b32.xlu0 %v2475, 64
        %v2681 = vpop.permute.xlu0 %2680
        %2690 = vrot.lane.b32.xlu0 %v2640, 96
        %v2691 = vpop.permute.xlu0 %2690
        %2692 = vrot.lane.b32.xlu0 %v2643, 96
        %v2693 = vpop.permute.xlu0 %2692
        %2694 = vrot.lane.b32.xlu0 %v2648, 96
        %v2695 = vpop.permute.xlu0 %2694
        %2696 = vrot.lane.b32.xlu0 %v2651, 96
        %v2697 = vpop.permute.xlu0 %2696
        %v2702 = vsel %vm1193, %v2106, %v2659
        %v2703 = vsel %vm1193, %v2109, %v2661
        %v2704 = vsel %vm1193, %v2114, %v2663
        %v2705 = vsel %vm1193, %v2117, %v2665
        %v2706 = vsel %vm1942, %v2702, %v2675
        %v2707 = vsel %vm1942, %v2703, %v2677
        %v2708 = vsel %vm1942, %v2704, %v2679
        %v2709 = vsel %vm1942, %v2705, %v2681
        %v2710 = vsel %vm1947, %v2706, %v2691
        %v2711 = vsel %vm1947, %v2707, %v2693
        %v2712 = vsel %vm1947, %v2708, %v2695
        %v2713 = vsel %vm1947, %v2709, %v2697
        %v2714 = vpack.c.bf16 %v1056, %v1052
        %v2715 = vpack.c.bf16 %v1066, %v1062
        %v2716 = vpack.c.bf16 %v1058, %v1054
        %v2717 = vpack.c.bf16 %v1068, %v1064
        %v2718 = vpack.c.bf16 %v1160, %v1157
        %v2719 = vpack.c.bf16 %v1168, %v1165
        %v2721 = vsel %vm1193, %v2714, 0
        %v2724 = vsel %vm1193, %v2715, 0
        %v2727 = vsel %vm1193, %v2716, 0
        %v2730 = vsel %vm1193, %v2717, 0
        %2732 = vmatprep.subr.bf16.mxu0 0
        %2733 = vmatpush1.bf16.xpose.msra.mxu0 %v2727
        %2734 = vmatprep.subr.bf16.mxu0 0
        %2735 = vmatpush1.bf16.xpose.msra.mxu0 %v2730
        %2736 = vmatprep.subr.bf16.mxu0 0
        %2737 = vmatpush1.bf16.xpose.msra.mxu0 0
        %2738 = vmatprep.subr.bf16.mxu0 0
        %2739 = vmatpush1.bf16.xpose.msra.mxu0 0
        %2740 = vmatprep.subr.bf16.mxu0 0
        %2741 = vmatpush1.bf16.xpose.msra.mxu0 0
        %2742 = vmatprep.subr.bf16.mxu0 0
        %2743 = vmatpush1.bf16.xpose.msra.mxu0 0
        %2744 = vmatprep.subr.bf16.mxu0 0
        %2745 = vmatpush1.bf16.xpose.msra.mxu0 0
        %2746 = vmatprep.subr.bf16.mxu0 0
        %2747 = vmatpush1.bf16.xpose.msra.mxu0 0
        %2748 = vmatprep.subr.bf16.mxu0 0
        %2749 = vmatpush1.bf16.xpose.msra.mxu0 0
        %2750 = vmatprep.subr.bf16.mxu0 0
        %2751 = vmatpush1.bf16.xpose.msra.mxu0 0
        %2752 = vmatprep.subr.bf16.mxu0 0
        %2753 = vmatpush1.bf16.xpose.msra.mxu0 0
        %2754 = vmatprep.subr.bf16.mxu0 0
        %2755 = vmatpush1.bf16.xpose.msra.mxu0 0
        %2756 = vmatprep.subr.bf16.mxu0 0
        %2757 = vmatpush1.bf16.xpose.msra.mxu0 0
        %2758 = vmatprep.subr.bf16.mxu0 0
        %2759 = vmatpush1.bf16.xpose.msra.mxu0 0
        %2760 = vmatprep.subr.bf16.mxu0 0
        %2761 = vmatpush1.bf16.xpose.msra.mxu0 0
        %2762 = vmatprep.subr.bf16.mxu0 0
        %2763 = vmatpush1.bf16.xpose.msra.mxu0 0
        %2764 = vmatprep.mubr.bf16.mxu0 0
        %2765 = vmatmul.mubr.bf16.gmra.mrb[0].mxu0 %v2721
        %v2766 = vpop.f32.mrb[0].mxu0
        %v2767 = vadd.f32 0.0, %v2766
        %v2768 = vpop.f32.mrb[0].mxu0
        %v2769 = vpop.f32.mrb[0].mxu0
        %v2770 = vadd.f32 0.0, %v2769
        %v2771 = vpop.f32.mrb[0].mxu0
        %2772 = vmatprep.mubr.bf16.mxu0 0
        %2773 = vmatmul.mubr.bf16.gmra.mrb[0].mxu0 %v2724
        %v2774 = vpop.f32.mrb[0].mxu0
        %v2775 = vadd.f32 0.0, %v2774
        %v2776 = vpop.f32.mrb[0].mxu0
        %v2777 = vpop.f32.mrb[0].mxu0
        %v2778 = vadd.f32 0.0, %v2777
        %v2779 = vpop.f32.mrb[0].mxu0
        %2780 = vdwg.mxu0
        %v2781 = vsel %vm1193, %v2767, -inf
        %2782 = vmax.xlane.f32.xlu0 %v2781
        %v2783 = vpop.xlane.xlu0 %2782
        %v2784 = vsel %vm1193, %v2770, -inf
        %2785 = vmax.xlane.f32.xlu0 %v2784
        %v2786 = vpop.xlane.xlu0 %2785
        %v2787 = vsel %vm1193, %v2775, -inf
        %2788 = vmax.xlane.f32.xlu0 %v2787
        %v2789 = vpop.xlane.xlu0 %2788
        %v2790 = vsel %vm1193, %v2778, -inf
        %2791 = vmax.xlane.f32.xlu0 %v2790
        %v2792 = vpop.xlane.xlu0 %2791
        %v2793 = vsub.f32 %v2767, %v2783
        %v2794 = vsub.f32 %v2770, %v2786
        %v2795 = vsub.f32 %v2775, %v2789
        %v2796 = vsub.f32 %v2778, %v2792
        %v2797 = vmul.f32 %v2793, 1.442695
        %v2798 = vpow.pop %v2797
        %v2799 = vmul.f32 %v2794, 1.442695
        %v2800 = vpow.pop %v2799
        %v2801 = vmul.f32 %v2795, 1.442695
        %v2802 = vpow.pop %v2801
        %v2803 = vmul.f32 %v2796, 1.442695
        %v2804 = vpow.pop %v2803
        %v2805 = vsel %vm1193, %v2798, 0.0
        %2806 = vadd.xlane.f32.xlu0 %v2805
        %v2807 = vpop.xlane.xlu0 %2806
        %v2808 = vsel %vm1193, %v2800, 0.0
        %2809 = vadd.xlane.f32.xlu0 %v2808
        %v2810 = vpop.xlane.xlu0 %2809
        %v2811 = vsel %vm1193, %v2802, 0.0
        %2812 = vadd.xlane.f32.xlu0 %v2811
        %v2813 = vpop.xlane.xlu0 %2812
        %v2814 = vsel %vm1193, %v2804, 0.0
        %2815 = vadd.xlane.f32.xlu0 %v2814
        %v2816 = vpop.xlane.xlu0 %2815
        %v2817 = vrcp.pop %v2807
        %v2818 = vrcp.pop %v2810
        %v2819 = vrcp.pop %v2813
        %v2820 = vrcp.pop %v2816
        %v2821 = vmul.f32 %v2798, %v2817
        %v2822 = vmul.f32 %v2800, %v2818
        %v2823 = vmul.f32 %v2802, %v2819
        %v2824 = vmul.f32 %v2804, %v2820
        %v2825 = vpack.c.bf16 %v2822, %v2821
        %v2826 = vpack.c.bf16 %v2824, %v2823
        %v2828 = vsel %vm1193, %v2825, 0
        %v2831 = vsel %vm1193, %v2826, 0
        %2833 = vmatprep.subr.bf16.mxu0 0
        %2834 = vmatpush1.bf16.msra.mxu0 %v2718
        %2835 = vmatprep.subr.bf16.mxu0 0
        %2836 = vmatpush1.bf16.msra.mxu0 %v2719
        %2837 = vmatprep.subr.bf16.mxu0 0
        %2838 = vmatpush1.bf16.msra.mxu0 0
        %2839 = vmatprep.subr.bf16.mxu0 0
        %2840 = vmatpush1.bf16.msra.mxu0 0
        %2841 = vmatprep.subr.bf16.mxu0 0
        %2842 = vmatpush1.bf16.msra.mxu0 0
        %2843 = vmatprep.subr.bf16.mxu0 0
        %2844 = vmatpush1.bf16.msra.mxu0 0
        %2845 = vmatprep.subr.bf16.mxu0 0
        %2846 = vmatpush1.bf16.msra.mxu0 0
        %2847 = vmatprep.subr.bf16.mxu0 0
        %2848 = vmatpush1.bf16.msra.mxu0 0
        %2849 = vmatprep.subr.bf16.mxu0 0
        %2850 = vmatpush1.bf16.msra.mxu0 0
        %2851 = vmatprep.subr.bf16.mxu0 0
        %2852 = vmatpush1.bf16.msra.mxu0 0
        %2853 = vmatprep.subr.bf16.mxu0 0
        %2854 = vmatpush1.bf16.msra.mxu0 0
        %2855 = vmatprep.subr.bf16.mxu0 0
        %2856 = vmatpush1.bf16.msra.mxu0 0
        %2857 = vmatprep.subr.bf16.mxu0 0
        %2858 = vmatpush1.bf16.msra.mxu0 0
        %2859 = vmatprep.subr.bf16.mxu0 0
        %2860 = vmatpush1.bf16.msra.mxu0 0
        %2861 = vmatprep.subr.bf16.mxu0 0
        %2862 = vmatpush1.bf16.msra.mxu0 0
        %2863 = vmatprep.subr.bf16.mxu0 0
        %2864 = vmatpush1.bf16.msra.mxu0 0
        %2865 = vmatprep.mubr.bf16.mxu0 0
        %2866 = vmatmul.mubr.bf16.gmra.mrb[0].mxu0 %v2828
        %v2867 = vpop.f32.mrb[0].mxu0
        %v2868 = vadd.f32 0.0, %v2867
        %v2869 = vpop.f32.mrb[0].mxu0
        %v2870 = vpop.f32.mrb[0].mxu0
        %v2871 = vadd.f32 0.0, %v2870
        %v2872 = vpop.f32.mrb[0].mxu0
        %2873 = vmatprep.mubr.bf16.mxu0 0
        %2874 = vmatmul.mubr.bf16.gmra.mrb[0].mxu0 %v2831
        %v2875 = vpop.f32.mrb[0].mxu0
        %v2876 = vadd.f32 0.0, %v2875
        %v2877 = vpop.f32.mrb[0].mxu0
        %v2878 = vpop.f32.mrb[0].mxu0
        %v2879 = vadd.f32 0.0, %v2878
        %v2880 = vpop.f32.mrb[0].mxu0
        %2881 = vdwg.mxu0
        %2884 = vrot.lane.b32.xlu0 %v2714, 96
        %v2885 = vpop.permute.xlu0 %2884
        %2886 = vrot.lane.b32.xlu0 %v2715, 96
        %v2887 = vpop.permute.xlu0 %2886
        %2890 = vrot.lane.b32.xlu0 %v2716, 96
        %v2891 = vpop.permute.xlu0 %2890
        %2892 = vrot.lane.b32.xlu0 %v2717, 96
        %v2893 = vpop.permute.xlu0 %2892
        %v2895 = vsel %vm1193, %v2885, 0
        %v2898 = vsel %vm1193, %v2887, 0
        %v2901 = vsel %vm1193, %v2891, 0
        %v2904 = vsel %vm1193, %v2893, 0
        %2906 = vmatprep.subr.bf16.mxu0 0
        %2907 = vmatpush1.bf16.xpose.msra.mxu0 %v2901
        %2908 = vmatprep.subr.bf16.mxu0 0
        %2909 = vmatpush1.bf16.xpose.msra.mxu0 %v2904
        %2910 = vmatprep.subr.bf16.mxu0 0
        %2911 = vmatpush1.bf16.xpose.msra.mxu0 0
        %2912 = vmatprep.subr.bf16.mxu0 0
        %2913 = vmatpush1.bf16.xpose.msra.mxu0 0
        %2914 = vmatprep.subr.bf16.mxu0 0
        %2915 = vmatpush1.bf16.xpose.msra.mxu0 0
        %2916 = vmatprep.subr.bf16.mxu0 0
        %2917 = vmatpush1.bf16.xpose.msra.mxu0 0
        %2918 = vmatprep.subr.bf16.mxu0 0
        %2919 = vmatpush1.bf16.xpose.msra.mxu0 0
        %2920 = vmatprep.subr.bf16.mxu0 0
        %2921 = vmatpush1.bf16.xpose.msra.mxu0 0
        %2922 = vmatprep.subr.bf16.mxu0 0
        %2923 = vmatpush1.bf16.xpose.msra.mxu0 0
        %2924 = vmatprep.subr.bf16.mxu0 0
        %2925 = vmatpush1.bf16.xpose.msra.mxu0 0
        %2926 = vmatprep.subr.bf16.mxu0 0
        %2927 = vmatpush1.bf16.xpose.msra.mxu0 0
        %2928 = vmatprep.subr.bf16.mxu0 0
        %2929 = vmatpush1.bf16.xpose.msra.mxu0 0
        %2930 = vmatprep.subr.bf16.mxu0 0
        %2931 = vmatpush1.bf16.xpose.msra.mxu0 0
        %2932 = vmatprep.subr.bf16.mxu0 0
        %2933 = vmatpush1.bf16.xpose.msra.mxu0 0
        %2934 = vmatprep.subr.bf16.mxu0 0
        %2935 = vmatpush1.bf16.xpose.msra.mxu0 0
        %2936 = vmatprep.subr.bf16.mxu0 0
        %2937 = vmatpush1.bf16.xpose.msra.mxu0 0
        %2938 = vmatprep.mubr.bf16.mxu0 0
        %2939 = vmatmul.mubr.bf16.gmra.mrb[0].mxu0 %v2895
        %v2940 = vpop.f32.mrb[0].mxu0
        %v2941 = vadd.f32 0.0, %v2940
        %v2942 = vpop.f32.mrb[0].mxu0
        %v2943 = vpop.f32.mrb[0].mxu0
        %v2944 = vadd.f32 0.0, %v2943
        %v2945 = vpop.f32.mrb[0].mxu0
        %2946 = vmatprep.mubr.bf16.mxu0 0
        %2947 = vmatmul.mubr.bf16.gmra.mrb[0].mxu0 %v2898
        %v2948 = vpop.f32.mrb[0].mxu0
        %v2949 = vadd.f32 0.0, %v2948
        %v2950 = vpop.f32.mrb[0].mxu0
        %v2951 = vpop.f32.mrb[0].mxu0
        %v2952 = vadd.f32 0.0, %v2951
        %v2953 = vpop.f32.mrb[0].mxu0
        %2954 = vdwg.mxu0
        %v2955 = vsel %vm1193, %v2941, -inf
        %2956 = vmax.xlane.f32.xlu0 %v2955
        %v2957 = vpop.xlane.xlu0 %2956
        %v2958 = vsel %vm1193, %v2944, -inf
        %2959 = vmax.xlane.f32.xlu0 %v2958
        %v2960 = vpop.xlane.xlu0 %2959
        %v2961 = vsel %vm1193, %v2949, -inf
        %2962 = vmax.xlane.f32.xlu0 %v2961
        %v2963 = vpop.xlane.xlu0 %2962
        %v2964 = vsel %vm1193, %v2952, -inf
        %2965 = vmax.xlane.f32.xlu0 %v2964
        %v2966 = vpop.xlane.xlu0 %2965
        %v2967 = vsub.f32 %v2941, %v2957
        %v2968 = vsub.f32 %v2944, %v2960
        %v2969 = vsub.f32 %v2949, %v2963
        %v2970 = vsub.f32 %v2952, %v2966
        %v2971 = vmul.f32 %v2967, 1.442695
        %v2972 = vpow.pop %v2971
        %v2973 = vmul.f32 %v2968, 1.442695
        %v2974 = vpow.pop %v2973
        %v2975 = vmul.f32 %v2969, 1.442695
        %v2976 = vpow.pop %v2975
        %v2977 = vmul.f32 %v2970, 1.442695
        %v2978 = vpow.pop %v2977
        %v2979 = vsel %vm1193, %v2972, 0.0
        %2980 = vadd.xlane.f32.xlu0 %v2979
        %v2981 = vpop.xlane.xlu0 %2980
        %v2982 = vsel %vm1193, %v2974, 0.0
        %2983 = vadd.xlane.f32.xlu0 %v2982
        %v2984 = vpop.xlane.xlu0 %2983
        %v2985 = vsel %vm1193, %v2976, 0.0
        %2986 = vadd.xlane.f32.xlu0 %v2985
        %v2987 = vpop.xlane.xlu0 %2986
        %v2988 = vsel %vm1193, %v2978, 0.0
        %2989 = vadd.xlane.f32.xlu0 %v2988
        %v2990 = vpop.xlane.xlu0 %2989
        %v2991 = vrcp.pop %v2981
        %v2992 = vrcp.pop %v2984
        %v2993 = vrcp.pop %v2987
        %v2994 = vrcp.pop %v2990
        %v2995 = vmul.f32 %v2972, %v2991
        %v2996 = vmul.f32 %v2974, %v2992
        %v2997 = vmul.f32 %v2976, %v2993
        %v2998 = vmul.f32 %v2978, %v2994
        %v2999 = vpack.c.bf16 %v2996, %v2995
        %v3000 = vpack.c.bf16 %v2998, %v2997
        %3003 = vrot.lane.b32.xlu0 %v2718, 96
        %v3004 = vpop.permute.xlu0 %3003
        %3005 = vrot.lane.b32.xlu0 %v2719, 96
        %v3006 = vpop.permute.xlu0 %3005
        %v3010 = vsel %vm1193, %v2999, 0
        %v3013 = vsel %vm1193, %v3000, 0
        %3015 = vmatprep.subr.bf16.mxu0 0
        %3016 = vmatpush1.bf16.msra.mxu0 %v3004
        %3017 = vmatprep.subr.bf16.mxu0 0
        %3018 = vmatpush1.bf16.msra.mxu0 %v3006
        %3019 = vmatprep.subr.bf16.mxu0 0
        %3020 = vmatpush1.bf16.msra.mxu0 0
        %3021 = vmatprep.subr.bf16.mxu0 0
        %3022 = vmatpush1.bf16.msra.mxu0 0
        %3023 = vmatprep.subr.bf16.mxu0 0
        %3024 = vmatpush1.bf16.msra.mxu0 0
        %3025 = vmatprep.subr.bf16.mxu0 0
        %3026 = vmatpush1.bf16.msra.mxu0 0
        %3027 = vmatprep.subr.bf16.mxu0 0
        %3028 = vmatpush1.bf16.msra.mxu0 0
        %3029 = vmatprep.subr.bf16.mxu0 0
        %3030 = vmatpush1.bf16.msra.mxu0 0
        %3031 = vmatprep.subr.bf16.mxu0 0
        %3032 = vmatpush1.bf16.msra.mxu0 0
        %3033 = vmatprep.subr.bf16.mxu0 0
        %3034 = vmatpush1.bf16.msra.mxu0 0
        %3035 = vmatprep.subr.bf16.mxu0 0
        %3036 = vmatpush1.bf16.msra.mxu0 0
        %3037 = vmatprep.subr.bf16.mxu0 0
        %3038 = vmatpush1.bf16.msra.mxu0 0
        %3039 = vmatprep.subr.bf16.mxu0 0
        %3040 = vmatpush1.bf16.msra.mxu0 0
        %3041 = vmatprep.subr.bf16.mxu0 0
        %3042 = vmatpush1.bf16.msra.mxu0 0
        %3043 = vmatprep.subr.bf16.mxu0 0
        %3044 = vmatpush1.bf16.msra.mxu0 0
        %3045 = vmatprep.subr.bf16.mxu0 0
        %3046 = vmatpush1.bf16.msra.mxu0 0
        %3047 = vmatprep.mubr.bf16.mxu0 0
        %3048 = vmatmul.mubr.bf16.gmra.mrb[0].mxu0 %v3010
        %v3049 = vpop.f32.mrb[0].mxu0
        %v3050 = vadd.f32 0.0, %v3049
        %v3051 = vpop.f32.mrb[0].mxu0
        %v3052 = vpop.f32.mrb[0].mxu0
        %v3053 = vadd.f32 0.0, %v3052
        %v3054 = vpop.f32.mrb[0].mxu0
        %3055 = vmatprep.mubr.bf16.mxu0 0
        %3056 = vmatmul.mubr.bf16.gmra.mrb[0].mxu0 %v3013
        %v3057 = vpop.f32.mrb[0].mxu0
        %v3058 = vadd.f32 0.0, %v3057
        %v3059 = vpop.f32.mrb[0].mxu0
        %v3060 = vpop.f32.mrb[0].mxu0
        %v3061 = vadd.f32 0.0, %v3060
        %v3062 = vpop.f32.mrb[0].mxu0
        %3063 = vdwg.mxu0
        %3064 = vrot.lane.b32.xlu0 %v2714, 64
        %v3065 = vpop.permute.xlu0 %3064
        %3066 = vrot.lane.b32.xlu0 %v2715, 64
        %v3067 = vpop.permute.xlu0 %3066
        %3068 = vrot.lane.b32.xlu0 %v2716, 64
        %v3069 = vpop.permute.xlu0 %3068
        %3070 = vrot.lane.b32.xlu0 %v2717, 64
        %v3071 = vpop.permute.xlu0 %3070
        %v3073 = vsel %vm1193, %v3065, 0
        %v3076 = vsel %vm1193, %v3067, 0
        %v3079 = vsel %vm1193, %v3069, 0
        %v3082 = vsel %vm1193, %v3071, 0
        %3084 = vmatprep.subr.bf16.mxu0 0
        %3085 = vmatpush1.bf16.xpose.msra.mxu0 %v3079
        %3086 = vmatprep.subr.bf16.mxu0 0
        %3087 = vmatpush1.bf16.xpose.msra.mxu0 %v3082
        %3088 = vmatprep.subr.bf16.mxu0 0
        %3089 = vmatpush1.bf16.xpose.msra.mxu0 0
        %3090 = vmatprep.subr.bf16.mxu0 0
        %3091 = vmatpush1.bf16.xpose.msra.mxu0 0
        %3092 = vmatprep.subr.bf16.mxu0 0
        %3093 = vmatpush1.bf16.xpose.msra.mxu0 0
        %3094 = vmatprep.subr.bf16.mxu0 0
        %3095 = vmatpush1.bf16.xpose.msra.mxu0 0
        %3096 = vmatprep.subr.bf16.mxu0 0
        %3097 = vmatpush1.bf16.xpose.msra.mxu0 0
        %3098 = vmatprep.subr.bf16.mxu0 0
        %3099 = vmatpush1.bf16.xpose.msra.mxu0 0
        %3100 = vmatprep.subr.bf16.mxu0 0
        %3101 = vmatpush1.bf16.xpose.msra.mxu0 0
        %3102 = vmatprep.subr.bf16.mxu0 0
        %3103 = vmatpush1.bf16.xpose.msra.mxu0 0
        %3104 = vmatprep.subr.bf16.mxu0 0
        %3105 = vmatpush1.bf16.xpose.msra.mxu0 0
        %3106 = vmatprep.subr.bf16.mxu0 0
        %3107 = vmatpush1.bf16.xpose.msra.mxu0 0
        %3108 = vmatprep.subr.bf16.mxu0 0
        %3109 = vmatpush1.bf16.xpose.msra.mxu0 0
        %3110 = vmatprep.subr.bf16.mxu0 0
        %3111 = vmatpush1.bf16.xpose.msra.mxu0 0
        %3112 = vmatprep.subr.bf16.mxu0 0
        %3113 = vmatpush1.bf16.xpose.msra.mxu0 0
        %3114 = vmatprep.subr.bf16.mxu0 0
        %3115 = vmatpush1.bf16.xpose.msra.mxu0 0
        %3116 = vmatprep.mubr.bf16.mxu0 0
        %3117 = vmatmul.mubr.bf16.gmra.mrb[0].mxu0 %v3073
        %v3118 = vpop.f32.mrb[0].mxu0
        %v3119 = vadd.f32 0.0, %v3118
        %v3120 = vpop.f32.mrb[0].mxu0
        %v3121 = vpop.f32.mrb[0].mxu0
        %v3122 = vadd.f32 0.0, %v3121
        %v3123 = vpop.f32.mrb[0].mxu0
        %3124 = vmatprep.mubr.bf16.mxu0 0
        %3125 = vmatmul.mubr.bf16.gmra.mrb[0].mxu0 %v3076
        %v3126 = vpop.f32.mrb[0].mxu0
        %v3127 = vadd.f32 0.0, %v3126
        %v3128 = vpop.f32.mrb[0].mxu0
        %v3129 = vpop.f32.mrb[0].mxu0
        %v3130 = vadd.f32 0.0, %v3129
        %v3131 = vpop.f32.mrb[0].mxu0
        %3132 = vdwg.mxu0
        %v3133 = vsel %vm1193, %v3119, -inf
        %3134 = vmax.xlane.f32.xlu0 %v3133
        %v3135 = vpop.xlane.xlu0 %3134
        %v3136 = vsel %vm1193, %v3122, -inf
        %3137 = vmax.xlane.f32.xlu0 %v3136
        %v3138 = vpop.xlane.xlu0 %3137
        %v3139 = vsel %vm1193, %v3127, -inf
        %3140 = vmax.xlane.f32.xlu0 %v3139
        %v3141 = vpop.xlane.xlu0 %3140
        %v3142 = vsel %vm1193, %v3130, -inf
        %3143 = vmax.xlane.f32.xlu0 %v3142
        %v3144 = vpop.xlane.xlu0 %3143
        %v3145 = vsub.f32 %v3119, %v3135
        %v3146 = vsub.f32 %v3122, %v3138
        %v3147 = vsub.f32 %v3127, %v3141
        %v3148 = vsub.f32 %v3130, %v3144
        %v3149 = vmul.f32 %v3145, 1.442695
        %v3150 = vpow.pop %v3149
        %v3151 = vmul.f32 %v3146, 1.442695
        %v3152 = vpow.pop %v3151
        %v3153 = vmul.f32 %v3147, 1.442695
        %v3154 = vpow.pop %v3153
        %v3155 = vmul.f32 %v3148, 1.442695
        %v3156 = vpow.pop %v3155
        %v3157 = vsel %vm1193, %v3150, 0.0
        %3158 = vadd.xlane.f32.xlu0 %v3157
        %v3159 = vpop.xlane.xlu0 %3158
        %v3160 = vsel %vm1193, %v3152, 0.0
        %3161 = vadd.xlane.f32.xlu0 %v3160
        %v3162 = vpop.xlane.xlu0 %3161
        %v3163 = vsel %vm1193, %v3154, 0.0
        %3164 = vadd.xlane.f32.xlu0 %v3163
        %v3165 = vpop.xlane.xlu0 %3164
        %v3166 = vsel %vm1193, %v3156, 0.0
        %3167 = vadd.xlane.f32.xlu0 %v3166
        %v3168 = vpop.xlane.xlu0 %3167
        %v3169 = vrcp.pop %v3159
        %v3170 = vrcp.pop %v3162
        %v3171 = vrcp.pop %v3165
        %v3172 = vrcp.pop %v3168
        %v3173 = vmul.f32 %v3150, %v3169
        %v3174 = vmul.f32 %v3152, %v3170
        %v3175 = vmul.f32 %v3154, %v3171
        %v3176 = vmul.f32 %v3156, %v3172
        %v3177 = vpack.c.bf16 %v3174, %v3173
        %v3178 = vpack.c.bf16 %v3176, %v3175
        %3179 = vrot.lane.b32.xlu0 %v2718, 64
        %v3180 = vpop.permute.xlu0 %3179
        %3181 = vrot.lane.b32.xlu0 %v2719, 64
        %v3182 = vpop.permute.xlu0 %3181
        %v3186 = vsel %vm1193, %v3177, 0
        %v3189 = vsel %vm1193, %v3178, 0
        %3191 = vmatprep.subr.bf16.mxu0 0
        %3192 = vmatpush1.bf16.msra.mxu0 %v3180
        %3193 = vmatprep.subr.bf16.mxu0 0
        %3194 = vmatpush1.bf16.msra.mxu0 %v3182
        %3195 = vmatprep.subr.bf16.mxu0 0
        %3196 = vmatpush1.bf16.msra.mxu0 0
        %3197 = vmatprep.subr.bf16.mxu0 0
        %3198 = vmatpush1.bf16.msra.mxu0 0
        %3199 = vmatprep.subr.bf16.mxu0 0
        %3200 = vmatpush1.bf16.msra.mxu0 0
        %3201 = vmatprep.subr.bf16.mxu0 0
        %3202 = vmatpush1.bf16.msra.mxu0 0
        %3203 = vmatprep.subr.bf16.mxu0 0
        %3204 = vmatpush1.bf16.msra.mxu0 0
        %3205 = vmatprep.subr.bf16.mxu0 0
        %3206 = vmatpush1.bf16.msra.mxu0 0
        %3207 = vmatprep.subr.bf16.mxu0 0
        %3208 = vmatpush1.bf16.msra.mxu0 0
        %3209 = vmatprep.subr.bf16.mxu0 0
        %3210 = vmatpush1.bf16.msra.mxu0 0
        %3211 = vmatprep.subr.bf16.mxu0 0
        %3212 = vmatpush1.bf16.msra.mxu0 0
        %3213 = vmatprep.subr.bf16.mxu0 0
        %3214 = vmatpush1.bf16.msra.mxu0 0
        %3215 = vmatprep.subr.bf16.mxu0 0
        %3216 = vmatpush1.bf16.msra.mxu0 0
        %3217 = vmatprep.subr.bf16.mxu0 0
        %3218 = vmatpush1.bf16.msra.mxu0 0
        %3219 = vmatprep.subr.bf16.mxu0 0
        %3220 = vmatpush1.bf16.msra.mxu0 0
        %3221 = vmatprep.subr.bf16.mxu0 0
        %3222 = vmatpush1.bf16.msra.mxu0 0
        %3223 = vmatprep.mubr.bf16.mxu0 0
        %3224 = vmatmul.mubr.bf16.gmra.mrb[0].mxu0 %v3186
        %v3225 = vpop.f32.mrb[0].mxu0
        %v3226 = vadd.f32 0.0, %v3225
        %v3227 = vpop.f32.mrb[0].mxu0
        %v3228 = vpop.f32.mrb[0].mxu0
        %v3229 = vadd.f32 0.0, %v3228
        %v3230 = vpop.f32.mrb[0].mxu0
        %3231 = vmatprep.mubr.bf16.mxu0 0
        %3232 = vmatmul.mubr.bf16.gmra.mrb[0].mxu0 %v3189
        %v3233 = vpop.f32.mrb[0].mxu0
        %v3234 = vadd.f32 0.0, %v3233
        %v3235 = vpop.f32.mrb[0].mxu0
        %v3236 = vpop.f32.mrb[0].mxu0
        %v3237 = vadd.f32 0.0, %v3236
        %v3238 = vpop.f32.mrb[0].mxu0
        %3239 = vdwg.mxu0
        %3240 = vrot.lane.b32.xlu0 %v2714, 32
        %v3241 = vpop.permute.xlu0 %3240
        %3242 = vrot.lane.b32.xlu0 %v2715, 32
        %v3243 = vpop.permute.xlu0 %3242
        %3244 = vrot.lane.b32.xlu0 %v2716, 32
        %v3245 = vpop.permute.xlu0 %3244
        %3246 = vrot.lane.b32.xlu0 %v2717, 32
        %v3247 = vpop.permute.xlu0 %3246
        %v3249 = vsel %vm1193, %v3241, 0
        %v3252 = vsel %vm1193, %v3243, 0
        %v3255 = vsel %vm1193, %v3245, 0
        %v3258 = vsel %vm1193, %v3247, 0
        %3260 = vmatprep.subr.bf16.mxu0 0
        %3261 = vmatpush1.bf16.xpose.msra.mxu0 %v3255
        %3262 = vmatprep.subr.bf16.mxu0 0
        %3263 = vmatpush1.bf16.xpose.msra.mxu0 %v3258
        %3264 = vmatprep.subr.bf16.mxu0 0
        %3265 = vmatpush1.bf16.xpose.msra.mxu0 0
        %3266 = vmatprep.subr.bf16.mxu0 0
        %3267 = vmatpush1.bf16.xpose.msra.mxu0 0
        %3268 = vmatprep.subr.bf16.mxu0 0
        %3269 = vmatpush1.bf16.xpose.msra.mxu0 0
        %3270 = vmatprep.subr.bf16.mxu0 0
        %3271 = vmatpush1.bf16.xpose.msra.mxu0 0
        %3272 = vmatprep.subr.bf16.mxu0 0
        %3273 = vmatpush1.bf16.xpose.msra.mxu0 0
        %3274 = vmatprep.subr.bf16.mxu0 0
        %3275 = vmatpush1.bf16.xpose.msra.mxu0 0
        %3276 = vmatprep.subr.bf16.mxu0 0
        %3277 = vmatpush1.bf16.xpose.msra.mxu0 0
        %3278 = vmatprep.subr.bf16.mxu0 0
        %3279 = vmatpush1.bf16.xpose.msra.mxu0 0
        %3280 = vmatprep.subr.bf16.mxu0 0
        %3281 = vmatpush1.bf16.xpose.msra.mxu0 0
        %3282 = vmatprep.subr.bf16.mxu0 0
        %3283 = vmatpush1.bf16.xpose.msra.mxu0 0
        %3284 = vmatprep.subr.bf16.mxu0 0
        %3285 = vmatpush1.bf16.xpose.msra.mxu0 0
        %3286 = vmatprep.subr.bf16.mxu0 0
        %3287 = vmatpush1.bf16.xpose.msra.mxu0 0
        %3288 = vmatprep.subr.bf16.mxu0 0
        %3289 = vmatpush1.bf16.xpose.msra.mxu0 0
        %3290 = vmatprep.subr.bf16.mxu0 0
        %3291 = vmatpush1.bf16.xpose.msra.mxu0 0
        %3292 = vmatprep.mubr.bf16.mxu0 0
        %3293 = vmatmul.mubr.bf16.gmra.mrb[0].mxu0 %v3249
        %v3294 = vpop.f32.mrb[0].mxu0
        %v3295 = vadd.f32 0.0, %v3294
        %v3296 = vpop.f32.mrb[0].mxu0
        %v3297 = vpop.f32.mrb[0].mxu0
        %v3298 = vadd.f32 0.0, %v3297
        %v3299 = vpop.f32.mrb[0].mxu0
        %3300 = vmatprep.mubr.bf16.mxu0 0
        %3301 = vmatmul.mubr.bf16.gmra.mrb[0].mxu0 %v3252
        %v3302 = vpop.f32.mrb[0].mxu0
        %v3303 = vadd.f32 0.0, %v3302
        %v3304 = vpop.f32.mrb[0].mxu0
        %v3305 = vpop.f32.mrb[0].mxu0
        %v3306 = vadd.f32 0.0, %v3305
        %v3307 = vpop.f32.mrb[0].mxu0
        %3308 = vdwg.mxu0
        %v3309 = vsel %vm1193, %v3295, -inf
        %3310 = vmax.xlane.f32.xlu0 %v3309
        %v3311 = vpop.xlane.xlu0 %3310
        %v3312 = vsel %vm1193, %v3298, -inf
        %3313 = vmax.xlane.f32.xlu0 %v3312
        %v3314 = vpop.xlane.xlu0 %3313
        %v3315 = vsel %vm1193, %v3303, -inf
        %3316 = vmax.xlane.f32.xlu0 %v3315
        %v3317 = vpop.xlane.xlu0 %3316
        %v3318 = vsel %vm1193, %v3306, -inf
        %3319 = vmax.xlane.f32.xlu0 %v3318
        %v3320 = vpop.xlane.xlu0 %3319
        %v3321 = vsub.f32 %v3295, %v3311
        %v3322 = vsub.f32 %v3298, %v3314
        %v3323 = vsub.f32 %v3303, %v3317
        %v3324 = vsub.f32 %v3306, %v3320
        %v3325 = vmul.f32 %v3321, 1.442695
        %v3326 = vpow.pop %v3325
        %v3327 = vmul.f32 %v3322, 1.442695
        %v3328 = vpow.pop %v3327
        %v3329 = vmul.f32 %v3323, 1.442695
        %v3330 = vpow.pop %v3329
        %v3331 = vmul.f32 %v3324, 1.442695
        %v3332 = vpow.pop %v3331
        %v3333 = vsel %vm1193, %v3326, 0.0
        %3334 = vadd.xlane.f32.xlu0 %v3333
        %v3335 = vpop.xlane.xlu0 %3334
        %v3336 = vsel %vm1193, %v3328, 0.0
        %3337 = vadd.xlane.f32.xlu0 %v3336
        %v3338 = vpop.xlane.xlu0 %3337
        %v3339 = vsel %vm1193, %v3330, 0.0
        %3340 = vadd.xlane.f32.xlu0 %v3339
        %v3341 = vpop.xlane.xlu0 %3340
        %v3342 = vsel %vm1193, %v3332, 0.0
        %3343 = vadd.xlane.f32.xlu0 %v3342
        %v3344 = vpop.xlane.xlu0 %3343
        %v3345 = vrcp.pop %v3335
        %v3346 = vrcp.pop %v3338
        %v3347 = vrcp.pop %v3341
        %v3348 = vrcp.pop %v3344
        %v3349 = vmul.f32 %v3326, %v3345
        %v3350 = vmul.f32 %v3328, %v3346
        %v3351 = vmul.f32 %v3330, %v3347
        %v3352 = vmul.f32 %v3332, %v3348
        %v3353 = vpack.c.bf16 %v3350, %v3349
        %v3354 = vpack.c.bf16 %v3352, %v3351
        %3355 = vrot.lane.b32.xlu0 %v2718, 32
        %v3356 = vpop.permute.xlu0 %3355
        %3357 = vrot.lane.b32.xlu0 %v2719, 32
        %v3358 = vpop.permute.xlu0 %3357
        %v3362 = vsel %vm1193, %v3353, 0
        %v3365 = vsel %vm1193, %v3354, 0
        %3367 = vmatprep.subr.bf16.mxu0 0
        %3368 = vmatpush1.bf16.msra.mxu0 %v3356
        %3369 = vmatprep.subr.bf16.mxu0 0
        %3370 = vmatpush1.bf16.msra.mxu0 %v3358
        %3371 = vmatprep.subr.bf16.mxu0 0
        %3372 = vmatpush1.bf16.msra.mxu0 0
        %3373 = vmatprep.subr.bf16.mxu0 0
        %3374 = vmatpush1.bf16.msra.mxu0 0
        %3375 = vmatprep.subr.bf16.mxu0 0
        %3376 = vmatpush1.bf16.msra.mxu0 0
        %3377 = vmatprep.subr.bf16.mxu0 0
        %3378 = vmatpush1.bf16.msra.mxu0 0
        %3379 = vmatprep.subr.bf16.mxu0 0
        %3380 = vmatpush1.bf16.msra.mxu0 0
        %3381 = vmatprep.subr.bf16.mxu0 0
        %3382 = vmatpush1.bf16.msra.mxu0 0
        %3383 = vmatprep.subr.bf16.mxu0 0
        %3384 = vmatpush1.bf16.msra.mxu0 0
        %3385 = vmatprep.subr.bf16.mxu0 0
        %3386 = vmatpush1.bf16.msra.mxu0 0
        %3387 = vmatprep.subr.bf16.mxu0 0
        %3388 = vmatpush1.bf16.msra.mxu0 0
        %3389 = vmatprep.subr.bf16.mxu0 0
        %3390 = vmatpush1.bf16.msra.mxu0 0
        %3391 = vmatprep.subr.bf16.mxu0 0
        %3392 = vmatpush1.bf16.msra.mxu0 0
        %3393 = vmatprep.subr.bf16.mxu0 0
        %3394 = vmatpush1.bf16.msra.mxu0 0
        %3395 = vmatprep.subr.bf16.mxu0 0
        %3396 = vmatpush1.bf16.msra.mxu0 0
        %3397 = vmatprep.subr.bf16.mxu0 0
        %3398 = vmatpush1.bf16.msra.mxu0 0
        %3399 = vmatprep.mubr.bf16.mxu0 0
        %3400 = vmatmul.mubr.bf16.gmra.mrb[0].mxu0 %v3362
        %v3401 = vpop.f32.mrb[0].mxu0
        %v3402 = vadd.f32 0.0, %v3401
        %v3403 = vpop.f32.mrb[0].mxu0
        %v3404 = vpop.f32.mrb[0].mxu0
        %v3405 = vadd.f32 0.0, %v3404
        %v3406 = vpop.f32.mrb[0].mxu0
        %3407 = vmatprep.mubr.bf16.mxu0 0
        %3408 = vmatmul.mubr.bf16.gmra.mrb[0].mxu0 %v3365
        %v3409 = vpop.f32.mrb[0].mxu0
        %v3410 = vadd.f32 0.0, %v3409
        %v3411 = vpop.f32.mrb[0].mxu0
        %v3412 = vpop.f32.mrb[0].mxu0
        %v3413 = vadd.f32 0.0, %v3412
        %v3414 = vpop.f32.mrb[0].mxu0
        %3415 = vdwg.mxu0
        %3420 = vrot.lane.b32.xlu0 %v3050, 32
        %v3421 = vpop.permute.xlu0 %3420
        %3422 = vrot.lane.b32.xlu0 %v3053, 32
        %v3423 = vpop.permute.xlu0 %3422
        %3424 = vrot.lane.b32.xlu0 %v3058, 32
        %v3425 = vpop.permute.xlu0 %3424
        %3426 = vrot.lane.b32.xlu0 %v3061, 32
        %v3427 = vpop.permute.xlu0 %3426
        %3436 = vrot.lane.b32.xlu0 %v3226, 64
        %v3437 = vpop.permute.xlu0 %3436
        %3438 = vrot.lane.b32.xlu0 %v3229, 64
        %v3439 = vpop.permute.xlu0 %3438
        %3440 = vrot.lane.b32.xlu0 %v3234, 64
        %v3441 = vpop.permute.xlu0 %3440
        %3442 = vrot.lane.b32.xlu0 %v3237, 64
        %v3443 = vpop.permute.xlu0 %3442
        %3452 = vrot.lane.b32.xlu0 %v3402, 96
        %v3453 = vpop.permute.xlu0 %3452
        %3454 = vrot.lane.b32.xlu0 %v3405, 96
        %v3455 = vpop.permute.xlu0 %3454
        %3456 = vrot.lane.b32.xlu0 %v3410, 96
        %v3457 = vpop.permute.xlu0 %3456
        %3458 = vrot.lane.b32.xlu0 %v3413, 96
        %v3459 = vpop.permute.xlu0 %3458
        %v3464 = vsel %vm1193, %v2868, %v3421
        %v3465 = vsel %vm1193, %v2871, %v3423
        %v3466 = vsel %vm1193, %v2876, %v3425
        %v3467 = vsel %vm1193, %v2879, %v3427
        %v3468 = vsel %vm1942, %v3464, %v3437
        %v3469 = vsel %vm1942, %v3465, %v3439
        %v3470 = vsel %vm1942, %v3466, %v3441
        %v3471 = vsel %vm1942, %v3467, %v3443
        %v3472 = vsel %vm1947, %v3468, %v3453
        %v3473 = vsel %vm1947, %v3469, %v3455
        %v3474 = vsel %vm1947, %v3470, %v3457
        %v3475 = vsel %vm1947, %v3471, %v3459
        %v3476 = vpack.c.bf16 %v1076, %v1072
        %v3477 = vpack.c.bf16 %v1086, %v1082
        %v3478 = vpack.c.bf16 %v1078, %v1074
        %v3479 = vpack.c.bf16 %v1088, %v1084
        %v3480 = vpack.c.bf16 %v1176, %v1173
        %v3481 = vpack.c.bf16 %v1184, %v1181
        %v3483 = vsel %vm1193, %v3476, 0
        %v3486 = vsel %vm1193, %v3477, 0
        %v3489 = vsel %vm1193, %v3478, 0
        %v3492 = vsel %vm1193, %v3479, 0
        %3494 = vmatprep.subr.bf16.mxu0 0
        %3495 = vmatpush1.bf16.xpose.msra.mxu0 %v3489
        %3496 = vmatprep.subr.bf16.mxu0 0
        %3497 = vmatpush1.bf16.xpose.msra.mxu0 %v3492
        %3498 = vmatprep.subr.bf16.mxu0 0
        %3499 = vmatpush1.bf16.xpose.msra.mxu0 0
        %3500 = vmatprep.subr.bf16.mxu0 0
        %3501 = vmatpush1.bf16.xpose.msra.mxu0 0
        %3502 = vmatprep.subr.bf16.mxu0 0
        %3503 = vmatpush1.bf16.xpose.msra.mxu0 0
        %3504 = vmatprep.subr.bf16.mxu0 0
        %3505 = vmatpush1.bf16.xpose.msra.mxu0 0
        %3506 = vmatprep.subr.bf16.mxu0 0
        %3507 = vmatpush1.bf16.xpose.msra.mxu0 0
        %3508 = vmatprep.subr.bf16.mxu0 0
        %3509 = vmatpush1.bf16.xpose.msra.mxu0 0
        %3510 = vmatprep.subr.bf16.mxu0 0
        %3511 = vmatpush1.bf16.xpose.msra.mxu0 0
        %3512 = vmatprep.subr.bf16.mxu0 0
        %3513 = vmatpush1.bf16.xpose.msra.mxu0 0
        %3514 = vmatprep.subr.bf16.mxu0 0
        %3515 = vmatpush1.bf16.xpose.msra.mxu0 0
        %3516 = vmatprep.subr.bf16.mxu0 0
        %3517 = vmatpush1.bf16.xpose.msra.mxu0 0
        %3518 = vmatprep.subr.bf16.mxu0 0
        %3519 = vmatpush1.bf16.xpose.msra.mxu0 0
        %3520 = vmatprep.subr.bf16.mxu0 0
        %3521 = vmatpush1.bf16.xpose.msra.mxu0 0
        %3522 = vmatprep.subr.bf16.mxu0 0
        %3523 = vmatpush1.bf16.xpose.msra.mxu0 0
        %3524 = vmatprep.subr.bf16.mxu0 0
        %3525 = vmatpush1.bf16.xpose.msra.mxu0 0
        %3526 = vmatprep.mubr.bf16.mxu0 0
        %3527 = vmatmul.mubr.bf16.gmra.mrb[0].mxu0 %v3483
        %v3528 = vpop.f32.mrb[0].mxu0
        %v3529 = vadd.f32 0.0, %v3528
        %v3530 = vpop.f32.mrb[0].mxu0
        %v3531 = vpop.f32.mrb[0].mxu0
        %v3532 = vadd.f32 0.0, %v3531
        %v3533 = vpop.f32.mrb[0].mxu0
        %3534 = vmatprep.mubr.bf16.mxu0 0
        %3535 = vmatmul.mubr.bf16.gmra.mrb[0].mxu0 %v3486
        %v3536 = vpop.f32.mrb[0].mxu0
        %v3537 = vadd.f32 0.0, %v3536
        %v3538 = vpop.f32.mrb[0].mxu0
        %v3539 = vpop.f32.mrb[0].mxu0
        %v3540 = vadd.f32 0.0, %v3539
        %v3541 = vpop.f32.mrb[0].mxu0
        %3542 = vdwg.mxu0
        %v3543 = vsel %vm1193, %v3529, -inf
        %3544 = vmax.xlane.f32.xlu0 %v3543
        %v3545 = vpop.xlane.xlu0 %3544
        %v3546 = vsel %vm1193, %v3532, -inf
        %3547 = vmax.xlane.f32.xlu0 %v3546
        %v3548 = vpop.xlane.xlu0 %3547
        %v3549 = vsel %vm1193, %v3537, -inf
        %3550 = vmax.xlane.f32.xlu0 %v3549
        %v3551 = vpop.xlane.xlu0 %3550
        %v3552 = vsel %vm1193, %v3540, -inf
        %3553 = vmax.xlane.f32.xlu0 %v3552
        %v3554 = vpop.xlane.xlu0 %3553
        %v3555 = vsub.f32 %v3529, %v3545
        %v3556 = vsub.f32 %v3532, %v3548
        %v3557 = vsub.f32 %v3537, %v3551
        %v3558 = vsub.f32 %v3540, %v3554
        %v3559 = vmul.f32 %v3555, 1.442695
        %v3560 = vpow.pop %v3559
        %v3561 = vmul.f32 %v3556, 1.442695
        %v3562 = vpow.pop %v3561
        %v3563 = vmul.f32 %v3557, 1.442695
        %v3564 = vpow.pop %v3563
        %v3565 = vmul.f32 %v3558, 1.442695
        %v3566 = vpow.pop %v3565
        %v3567 = vsel %vm1193, %v3560, 0.0
        %3568 = vadd.xlane.f32.xlu0 %v3567
        %v3569 = vpop.xlane.xlu0 %3568
        %v3570 = vsel %vm1193, %v3562, 0.0
        %3571 = vadd.xlane.f32.xlu0 %v3570
        %v3572 = vpop.xlane.xlu0 %3571
        %v3573 = vsel %vm1193, %v3564, 0.0
        %3574 = vadd.xlane.f32.xlu0 %v3573
        %v3575 = vpop.xlane.xlu0 %3574
        %v3576 = vsel %vm1193, %v3566, 0.0
        %3577 = vadd.xlane.f32.xlu0 %v3576
        %v3578 = vpop.xlane.xlu0 %3577
        %v3579 = vrcp.pop %v3569
        %v3580 = vrcp.pop %v3572
        %v3581 = vrcp.pop %v3575
        %v3582 = vrcp.pop %v3578
        %v3583 = vmul.f32 %v3560, %v3579
        %v3584 = vmul.f32 %v3562, %v3580
        %v3585 = vmul.f32 %v3564, %v3581
        %v3586 = vmul.f32 %v3566, %v3582
        %v3587 = vpack.c.bf16 %v3584, %v3583
        %v3588 = vpack.c.bf16 %v3586, %v3585
        %v3590 = vsel %vm1193, %v3587, 0
        %v3593 = vsel %vm1193, %v3588, 0
        %3595 = vmatprep.subr.bf16.mxu0 0
        %3596 = vmatpush1.bf16.msra.mxu0 %v3480
        %3597 = vmatprep.subr.bf16.mxu0 0
        %3598 = vmatpush1.bf16.msra.mxu0 %v3481
        %3599 = vmatprep.subr.bf16.mxu0 0
        %3600 = vmatpush1.bf16.msra.mxu0 0
        %3601 = vmatprep.subr.bf16.mxu0 0
        %3602 = vmatpush1.bf16.msra.mxu0 0
        %3603 = vmatprep.subr.bf16.mxu0 0
        %3604 = vmatpush1.bf16.msra.mxu0 0
        %3605 = vmatprep.subr.bf16.mxu0 0
        %3606 = vmatpush1.bf16.msra.mxu0 0
        %3607 = vmatprep.subr.bf16.mxu0 0
        %3608 = vmatpush1.bf16.msra.mxu0 0
        %3609 = vmatprep.subr.bf16.mxu0 0
        %3610 = vmatpush1.bf16.msra.mxu0 0
        %3611 = vmatprep.subr.bf16.mxu0 0
        %3612 = vmatpush1.bf16.msra.mxu0 0
        %3613 = vmatprep.subr.bf16.mxu0 0
        %3614 = vmatpush1.bf16.msra.mxu0 0
        %3615 = vmatprep.subr.bf16.mxu0 0
        %3616 = vmatpush1.bf16.msra.mxu0 0
        %3617 = vmatprep.subr.bf16.mxu0 0
        %3618 = vmatpush1.bf16.msra.mxu0 0
        %3619 = vmatprep.subr.bf16.mxu0 0
        %3620 = vmatpush1.bf16.msra.mxu0 0
        %3621 = vmatprep.subr.bf16.mxu0 0
        %3622 = vmatpush1.bf16.msra.mxu0 0
        %3623 = vmatprep.subr.bf16.mxu0 0
        %3624 = vmatpush1.bf16.msra.mxu0 0
        %3625 = vmatprep.subr.bf16.mxu0 0
        %3626 = vmatpush1.bf16.msra.mxu0 0
        %3627 = vmatprep.mubr.bf16.mxu0 0
        %3628 = vmatmul.mubr.bf16.gmra.mrb[0].mxu0 %v3590
        %v3629 = vpop.f32.mrb[0].mxu0
        %v3630 = vadd.f32 0.0, %v3629
        %v3631 = vpop.f32.mrb[0].mxu0
        %v3632 = vpop.f32.mrb[0].mxu0
        %v3633 = vadd.f32 0.0, %v3632
        %v3634 = vpop.f32.mrb[0].mxu0
        %3635 = vmatprep.mubr.bf16.mxu0 0
        %3636 = vmatmul.mubr.bf16.gmra.mrb[0].mxu0 %v3593
        %v3637 = vpop.f32.mrb[0].mxu0
        %v3638 = vadd.f32 0.0, %v3637
        %v3639 = vpop.f32.mrb[0].mxu0
        %v3640 = vpop.f32.mrb[0].mxu0
        %v3641 = vadd.f32 0.0, %v3640
        %v3642 = vpop.f32.mrb[0].mxu0
        %3643 = vdwg.mxu0
        %3646 = vrot.lane.b32.xlu0 %v3476, 96
        %v3647 = vpop.permute.xlu0 %3646
        %3648 = vrot.lane.b32.xlu0 %v3477, 96
        %v3649 = vpop.permute.xlu0 %3648
        %3652 = vrot.lane.b32.xlu0 %v3478, 96
        %v3653 = vpop.permute.xlu0 %3652
        %3654 = vrot.lane.b32.xlu0 %v3479, 96
        %v3655 = vpop.permute.xlu0 %3654
        %v3657 = vsel %vm1193, %v3647, 0
        %v3660 = vsel %vm1193, %v3649, 0
        %v3663 = vsel %vm1193, %v3653, 0
        %v3666 = vsel %vm1193, %v3655, 0
        %3668 = vmatprep.subr.bf16.mxu0 0
        %3669 = vmatpush1.bf16.xpose.msra.mxu0 %v3663
        %3670 = vmatprep.subr.bf16.mxu0 0
        %3671 = vmatpush1.bf16.xpose.msra.mxu0 %v3666
        %3672 = vmatprep.subr.bf16.mxu0 0
        %3673 = vmatpush1.bf16.xpose.msra.mxu0 0
        %3674 = vmatprep.subr.bf16.mxu0 0
        %3675 = vmatpush1.bf16.xpose.msra.mxu0 0
        %3676 = vmatprep.subr.bf16.mxu0 0
        %3677 = vmatpush1.bf16.xpose.msra.mxu0 0
        %3678 = vmatprep.subr.bf16.mxu0 0
        %3679 = vmatpush1.bf16.xpose.msra.mxu0 0
        %3680 = vmatprep.subr.bf16.mxu0 0
        %3681 = vmatpush1.bf16.xpose.msra.mxu0 0
        %3682 = vmatprep.subr.bf16.mxu0 0
        %3683 = vmatpush1.bf16.xpose.msra.mxu0 0
        %3684 = vmatprep.subr.bf16.mxu0 0
        %3685 = vmatpush1.bf16.xpose.msra.mxu0 0
        %3686 = vmatprep.subr.bf16.mxu0 0
        %3687 = vmatpush1.bf16.xpose.msra.mxu0 0
        %3688 = vmatprep.subr.bf16.mxu0 0
        %3689 = vmatpush1.bf16.xpose.msra.mxu0 0
        %3690 = vmatprep.subr.bf16.mxu0 0
        %3691 = vmatpush1.bf16.xpose.msra.mxu0 0
        %3692 = vmatprep.subr.bf16.mxu0 0
        %3693 = vmatpush1.bf16.xpose.msra.mxu0 0
        %3694 = vmatprep.subr.bf16.mxu0 0
        %3695 = vmatpush1.bf16.xpose.msra.mxu0 0
        %3696 = vmatprep.subr.bf16.mxu0 0
        %3697 = vmatpush1.bf16.xpose.msra.mxu0 0
        %3698 = vmatprep.subr.bf16.mxu0 0
        %3699 = vmatpush1.bf16.xpose.msra.mxu0 0
        %3700 = vmatprep.mubr.bf16.mxu0 0
        %3701 = vmatmul.mubr.bf16.gmra.mrb[0].mxu0 %v3657
        %v3702 = vpop.f32.mrb[0].mxu0
        %v3703 = vadd.f32 0.0, %v3702
        %v3704 = vpop.f32.mrb[0].mxu0
        %v3705 = vpop.f32.mrb[0].mxu0
        %v3706 = vadd.f32 0.0, %v3705
        %v3707 = vpop.f32.mrb[0].mxu0
        %3708 = vmatprep.mubr.bf16.mxu0 0
        %3709 = vmatmul.mubr.bf16.gmra.mrb[0].mxu0 %v3660
        %v3710 = vpop.f32.mrb[0].mxu0
        %v3711 = vadd.f32 0.0, %v3710
        %v3712 = vpop.f32.mrb[0].mxu0
        %v3713 = vpop.f32.mrb[0].mxu0
        %v3714 = vadd.f32 0.0, %v3713
        %v3715 = vpop.f32.mrb[0].mxu0
        %3716 = vdwg.mxu0
        %v3717 = vsel %vm1193, %v3703, -inf
        %3718 = vmax.xlane.f32.xlu0 %v3717
        %v3719 = vpop.xlane.xlu0 %3718
        %v3720 = vsel %vm1193, %v3706, -inf
        %3721 = vmax.xlane.f32.xlu0 %v3720
        %v3722 = vpop.xlane.xlu0 %3721
        %v3723 = vsel %vm1193, %v3711, -inf
        %3724 = vmax.xlane.f32.xlu0 %v3723
        %v3725 = vpop.xlane.xlu0 %3724
        %v3726 = vsel %vm1193, %v3714, -inf
        %3727 = vmax.xlane.f32.xlu0 %v3726
        %v3728 = vpop.xlane.xlu0 %3727
        %v3729 = vsub.f32 %v3703, %v3719
        %v3730 = vsub.f32 %v3706, %v3722
        %v3731 = vsub.f32 %v3711, %v3725
        %v3732 = vsub.f32 %v3714, %v3728
        %v3733 = vmul.f32 %v3729, 1.442695
        %v3734 = vpow.pop %v3733
        %v3735 = vmul.f32 %v3730, 1.442695
        %v3736 = vpow.pop %v3735
        %v3737 = vmul.f32 %v3731, 1.442695
        %v3738 = vpow.pop %v3737
        %v3739 = vmul.f32 %v3732, 1.442695
        %v3740 = vpow.pop %v3739
        %v3741 = vsel %vm1193, %v3734, 0.0
        %3742 = vadd.xlane.f32.xlu0 %v3741
        %v3743 = vpop.xlane.xlu0 %3742
        %v3744 = vsel %vm1193, %v3736, 0.0
        %3745 = vadd.xlane.f32.xlu0 %v3744
        %v3746 = vpop.xlane.xlu0 %3745
        %v3747 = vsel %vm1193, %v3738, 0.0
        %3748 = vadd.xlane.f32.xlu0 %v3747
        %v3749 = vpop.xlane.xlu0 %3748
        %v3750 = vsel %vm1193, %v3740, 0.0
        %3751 = vadd.xlane.f32.xlu0 %v3750
        %v3752 = vpop.xlane.xlu0 %3751
        %v3753 = vrcp.pop %v3743
        %v3754 = vrcp.pop %v3746
        %v3755 = vrcp.pop %v3749
        %v3756 = vrcp.pop %v3752
        %v3757 = vmul.f32 %v3734, %v3753
        %v3758 = vmul.f32 %v3736, %v3754
        %v3759 = vmul.f32 %v3738, %v3755
        %v3760 = vmul.f32 %v3740, %v3756
        %v3761 = vpack.c.bf16 %v3758, %v3757
        %v3762 = vpack.c.bf16 %v3760, %v3759
        %3765 = vrot.lane.b32.xlu0 %v3480, 96
        %v3766 = vpop.permute.xlu0 %3765
        %3767 = vrot.lane.b32.xlu0 %v3481, 96
        %v3768 = vpop.permute.xlu0 %3767
        %v3772 = vsel %vm1193, %v3761, 0
        %v3775 = vsel %vm1193, %v3762, 0
        %3777 = vmatprep.subr.bf16.mxu0 0
        %3778 = vmatpush1.bf16.msra.mxu0 %v3766
        %3779 = vmatprep.subr.bf16.mxu0 0
        %3780 = vmatpush1.bf16.msra.mxu0 %v3768
        %3781 = vmatprep.subr.bf16.mxu0 0
        %3782 = vmatpush1.bf16.msra.mxu0 0
        %3783 = vmatprep.subr.bf16.mxu0 0
        %3784 = vmatpush1.bf16.msra.mxu0 0
        %3785 = vmatprep.subr.bf16.mxu0 0
        %3786 = vmatpush1.bf16.msra.mxu0 0
        %3787 = vmatprep.subr.bf16.mxu0 0
        %3788 = vmatpush1.bf16.msra.mxu0 0
        %3789 = vmatprep.subr.bf16.mxu0 0
        %3790 = vmatpush1.bf16.msra.mxu0 0
        %3791 = vmatprep.subr.bf16.mxu0 0
        %3792 = vmatpush1.bf16.msra.mxu0 0
        %3793 = vmatprep.subr.bf16.mxu0 0
        %3794 = vmatpush1.bf16.msra.mxu0 0
        %3795 = vmatprep.subr.bf16.mxu0 0
        %3796 = vmatpush1.bf16.msra.mxu0 0
        %3797 = vmatprep.subr.bf16.mxu0 0
        %3798 = vmatpush1.bf16.msra.mxu0 0
        %3799 = vmatprep.subr.bf16.mxu0 0
        %3800 = vmatpush1.bf16.msra.mxu0 0
        %3801 = vmatprep.subr.bf16.mxu0 0
        %3802 = vmatpush1.bf16.msra.mxu0 0
        %3803 = vmatprep.subr.bf16.mxu0 0
        %3804 = vmatpush1.bf16.msra.mxu0 0
        %3805 = vmatprep.subr.bf16.mxu0 0
        %3806 = vmatpush1.bf16.msra.mxu0 0
        %3807 = vmatprep.subr.bf16.mxu0 0
        %3808 = vmatpush1.bf16.msra.mxu0 0
        %3809 = vmatprep.mubr.bf16.mxu0 0
        %3810 = vmatmul.mubr.bf16.gmra.mrb[0].mxu0 %v3772
        %v3811 = vpop.f32.mrb[0].mxu0
        %v3812 = vadd.f32 0.0, %v3811
        %v3813 = vpop.f32.mrb[0].mxu0
        %v3814 = vpop.f32.mrb[0].mxu0
        %v3815 = vadd.f32 0.0, %v3814
        %v3816 = vpop.f32.mrb[0].mxu0
        %3817 = vmatprep.mubr.bf16.mxu0 0
        %3818 = vmatmul.mubr.bf16.gmra.mrb[0].mxu0 %v3775
        %v3819 = vpop.f32.mrb[0].mxu0
        %v3820 = vadd.f32 0.0, %v3819
        %v3821 = vpop.f32.mrb[0].mxu0
        %v3822 = vpop.f32.mrb[0].mxu0
        %v3823 = vadd.f32 0.0, %v3822
        %v3824 = vpop.f32.mrb[0].mxu0
        %3825 = vdwg.mxu0
        %3826 = vrot.lane.b32.xlu0 %v3476, 64
        %v3827 = vpop.permute.xlu0 %3826
        %3828 = vrot.lane.b32.xlu0 %v3477, 64
        %v3829 = vpop.permute.xlu0 %3828
        %3830 = vrot.lane.b32.xlu0 %v3478, 64
        %v3831 = vpop.permute.xlu0 %3830
        %3832 = vrot.lane.b32.xlu0 %v3479, 64
        %v3833 = vpop.permute.xlu0 %3832
        %v3835 = vsel %vm1193, %v3827, 0
        %v3838 = vsel %vm1193, %v3829, 0
        %v3841 = vsel %vm1193, %v3831, 0
        %v3844 = vsel %vm1193, %v3833, 0
        %3846 = vmatprep.subr.bf16.mxu0 0
        %3847 = vmatpush1.bf16.xpose.msra.mxu0 %v3841
        %3848 = vmatprep.subr.bf16.mxu0 0
        %3849 = vmatpush1.bf16.xpose.msra.mxu0 %v3844
        %3850 = vmatprep.subr.bf16.mxu0 0
        %3851 = vmatpush1.bf16.xpose.msra.mxu0 0
        %3852 = vmatprep.subr.bf16.mxu0 0
        %3853 = vmatpush1.bf16.xpose.msra.mxu0 0
        %3854 = vmatprep.subr.bf16.mxu0 0
        %3855 = vmatpush1.bf16.xpose.msra.mxu0 0
        %3856 = vmatprep.subr.bf16.mxu0 0
        %3857 = vmatpush1.bf16.xpose.msra.mxu0 0
        %3858 = vmatprep.subr.bf16.mxu0 0
        %3859 = vmatpush1.bf16.xpose.msra.mxu0 0
        %3860 = vmatprep.subr.bf16.mxu0 0
        %3861 = vmatpush1.bf16.xpose.msra.mxu0 0
        %3862 = vmatprep.subr.bf16.mxu0 0
        %3863 = vmatpush1.bf16.xpose.msra.mxu0 0
        %3864 = vmatprep.subr.bf16.mxu0 0
        %3865 = vmatpush1.bf16.xpose.msra.mxu0 0
        %3866 = vmatprep.subr.bf16.mxu0 0
        %3867 = vmatpush1.bf16.xpose.msra.mxu0 0
        %3868 = vmatprep.subr.bf16.mxu0 0
        %3869 = vmatpush1.bf16.xpose.msra.mxu0 0
        %3870 = vmatprep.subr.bf16.mxu0 0
        %3871 = vmatpush1.bf16.xpose.msra.mxu0 0
        %3872 = vmatprep.subr.bf16.mxu0 0
        %3873 = vmatpush1.bf16.xpose.msra.mxu0 0
        %3874 = vmatprep.subr.bf16.mxu0 0
        %3875 = vmatpush1.bf16.xpose.msra.mxu0 0
        %3876 = vmatprep.subr.bf16.mxu0 0
        %3877 = vmatpush1.bf16.xpose.msra.mxu0 0
        %3878 = vmatprep.mubr.bf16.mxu0 0
        %3879 = vmatmul.mubr.bf16.gmra.mrb[0].mxu0 %v3835
        %v3880 = vpop.f32.mrb[0].mxu0
        %v3881 = vadd.f32 0.0, %v3880
        %v3882 = vpop.f32.mrb[0].mxu0
        %v3883 = vpop.f32.mrb[0].mxu0
        %v3884 = vadd.f32 0.0, %v3883
        %v3885 = vpop.f32.mrb[0].mxu0
        %3886 = vmatprep.mubr.bf16.mxu0 0
        %3887 = vmatmul.mubr.bf16.gmra.mrb[0].mxu0 %v3838
        %v3888 = vpop.f32.mrb[0].mxu0
        %v3889 = vadd.f32 0.0, %v3888
        %v3890 = vpop.f32.mrb[0].mxu0
        %v3891 = vpop.f32.mrb[0].mxu0
        %v3892 = vadd.f32 0.0, %v3891
        %v3893 = vpop.f32.mrb[0].mxu0
        %3894 = vdwg.mxu0
        %v3895 = vsel %vm1193, %v3881, -inf
        %3896 = vmax.xlane.f32.xlu0 %v3895
        %v3897 = vpop.xlane.xlu0 %3896
        %v3898 = vsel %vm1193, %v3884, -inf
        %3899 = vmax.xlane.f32.xlu0 %v3898
        %v3900 = vpop.xlane.xlu0 %3899
        %v3901 = vsel %vm1193, %v3889, -inf
        %3902 = vmax.xlane.f32.xlu0 %v3901
        %v3903 = vpop.xlane.xlu0 %3902
        %v3904 = vsel %vm1193, %v3892, -inf
        %3905 = vmax.xlane.f32.xlu0 %v3904
        %v3906 = vpop.xlane.xlu0 %3905
        %v3907 = vsub.f32 %v3881, %v3897
        %v3908 = vsub.f32 %v3884, %v3900
        %v3909 = vsub.f32 %v3889, %v3903
        %v3910 = vsub.f32 %v3892, %v3906
        %v3911 = vmul.f32 %v3907, 1.442695
        %v3912 = vpow.pop %v3911
        %v3913 = vmul.f32 %v3908, 1.442695
        %v3914 = vpow.pop %v3913
        %v3915 = vmul.f32 %v3909, 1.442695
        %v3916 = vpow.pop %v3915
        %v3917 = vmul.f32 %v3910, 1.442695
        %v3918 = vpow.pop %v3917
        %v3919 = vsel %vm1193, %v3912, 0.0
        %3920 = vadd.xlane.f32.xlu0 %v3919
        %v3921 = vpop.xlane.xlu0 %3920
        %v3922 = vsel %vm1193, %v3914, 0.0
        %3923 = vadd.xlane.f32.xlu0 %v3922
        %v3924 = vpop.xlane.xlu0 %3923
        %v3925 = vsel %vm1193, %v3916, 0.0
        %3926 = vadd.xlane.f32.xlu0 %v3925
        %v3927 = vpop.xlane.xlu0 %3926
        %v3928 = vsel %vm1193, %v3918, 0.0
        %3929 = vadd.xlane.f32.xlu0 %v3928
        %v3930 = vpop.xlane.xlu0 %3929
        %v3931 = vrcp.pop %v3921
        %v3932 = vrcp.pop %v3924
        %v3933 = vrcp.pop %v3927
        %v3934 = vrcp.pop %v3930
        %v3935 = vmul.f32 %v3912, %v3931
        %v3936 = vmul.f32 %v3914, %v3932
        %v3937 = vmul.f32 %v3916, %v3933
        %v3938 = vmul.f32 %v3918, %v3934
        %v3939 = vpack.c.bf16 %v3936, %v3935
        %v3940 = vpack.c.bf16 %v3938, %v3937
        %3941 = vrot.lane.b32.xlu0 %v3480, 64
        %v3942 = vpop.permute.xlu0 %3941
        %3943 = vrot.lane.b32.xlu0 %v3481, 64
        %v3944 = vpop.permute.xlu0 %3943
        %v3948 = vsel %vm1193, %v3939, 0
        %v3951 = vsel %vm1193, %v3940, 0
        %3953 = vmatprep.subr.bf16.mxu0 0
        %3954 = vmatpush1.bf16.msra.mxu0 %v3942
        %3955 = vmatprep.subr.bf16.mxu0 0
        %3956 = vmatpush1.bf16.msra.mxu0 %v3944
        %3957 = vmatprep.subr.bf16.mxu0 0
        %3958 = vmatpush1.bf16.msra.mxu0 0
        %3959 = vmatprep.subr.bf16.mxu0 0
        %3960 = vmatpush1.bf16.msra.mxu0 0
        %3961 = vmatprep.subr.bf16.mxu0 0
        %3962 = vmatpush1.bf16.msra.mxu0 0
        %3963 = vmatprep.subr.bf16.mxu0 0
        %3964 = vmatpush1.bf16.msra.mxu0 0
        %3965 = vmatprep.subr.bf16.mxu0 0
        %3966 = vmatpush1.bf16.msra.mxu0 0
        %3967 = vmatprep.subr.bf16.mxu0 0
        %3968 = vmatpush1.bf16.msra.mxu0 0
        %3969 = vmatprep.subr.bf16.mxu0 0
        %3970 = vmatpush1.bf16.msra.mxu0 0
        %3971 = vmatprep.subr.bf16.mxu0 0
        %3972 = vmatpush1.bf16.msra.mxu0 0
        %3973 = vmatprep.subr.bf16.mxu0 0
        %3974 = vmatpush1.bf16.msra.mxu0 0
        %3975 = vmatprep.subr.bf16.mxu0 0
        %3976 = vmatpush1.bf16.msra.mxu0 0
        %3977 = vmatprep.subr.bf16.mxu0 0
        %3978 = vmatpush1.bf16.msra.mxu0 0
        %3979 = vmatprep.subr.bf16.mxu0 0
        %3980 = vmatpush1.bf16.msra.mxu0 0
        %3981 = vmatprep.subr.bf16.mxu0 0
        %3982 = vmatpush1.bf16.msra.mxu0 0
        %3983 = vmatprep.subr.bf16.mxu0 0
        %3984 = vmatpush1.bf16.msra.mxu0 0
        %3985 = vmatprep.mubr.bf16.mxu0 0
        %3986 = vmatmul.mubr.bf16.gmra.mrb[0].mxu0 %v3948
        %v3987 = vpop.f32.mrb[0].mxu0
        %v3988 = vadd.f32 0.0, %v3987
        %v3989 = vpop.f32.mrb[0].mxu0
        %v3990 = vpop.f32.mrb[0].mxu0
        %v3991 = vadd.f32 0.0, %v3990
        %v3992 = vpop.f32.mrb[0].mxu0
        %3993 = vmatprep.mubr.bf16.mxu0 0
        %3994 = vmatmul.mubr.bf16.gmra.mrb[0].mxu0 %v3951
        %v3995 = vpop.f32.mrb[0].mxu0
        %v3996 = vadd.f32 0.0, %v3995
        %v3997 = vpop.f32.mrb[0].mxu0
        %v3998 = vpop.f32.mrb[0].mxu0
        %v3999 = vadd.f32 0.0, %v3998
        %v4000 = vpop.f32.mrb[0].mxu0
        %4001 = vdwg.mxu0
        %4002 = vrot.lane.b32.xlu0 %v3476, 32
        %v4003 = vpop.permute.xlu0 %4002
        %4004 = vrot.lane.b32.xlu0 %v3477, 32
        %v4005 = vpop.permute.xlu0 %4004
        %4006 = vrot.lane.b32.xlu0 %v3478, 32
        %v4007 = vpop.permute.xlu0 %4006
        %4008 = vrot.lane.b32.xlu0 %v3479, 32
        %v4009 = vpop.permute.xlu0 %4008
        %v4011 = vsel %vm1193, %v4003, 0
        %v4014 = vsel %vm1193, %v4005, 0
        %v4017 = vsel %vm1193, %v4007, 0
        %v4020 = vsel %vm1193, %v4009, 0
        %4022 = vmatprep.subr.bf16.mxu0 0
        %4023 = vmatpush1.bf16.xpose.msra.mxu0 %v4017
        %4024 = vmatprep.subr.bf16.mxu0 0
        %4025 = vmatpush1.bf16.xpose.msra.mxu0 %v4020
        %4026 = vmatprep.subr.bf16.mxu0 0
        %4027 = vmatpush1.bf16.xpose.msra.mxu0 0
        %4028 = vmatprep.subr.bf16.mxu0 0
        %4029 = vmatpush1.bf16.xpose.msra.mxu0 0
        %4030 = vmatprep.subr.bf16.mxu0 0
        %4031 = vmatpush1.bf16.xpose.msra.mxu0 0
        %4032 = vmatprep.subr.bf16.mxu0 0
        %4033 = vmatpush1.bf16.xpose.msra.mxu0 0
        %4034 = vmatprep.subr.bf16.mxu0 0
        %4035 = vmatpush1.bf16.xpose.msra.mxu0 0
        %4036 = vmatprep.subr.bf16.mxu0 0
        %4037 = vmatpush1.bf16.xpose.msra.mxu0 0
        %4038 = vmatprep.subr.bf16.mxu0 0
        %4039 = vmatpush1.bf16.xpose.msra.mxu0 0
        %4040 = vmatprep.subr.bf16.mxu0 0
        %4041 = vmatpush1.bf16.xpose.msra.mxu0 0
        %4042 = vmatprep.subr.bf16.mxu0 0
        %4043 = vmatpush1.bf16.xpose.msra.mxu0 0
        %4044 = vmatprep.subr.bf16.mxu0 0
        %4045 = vmatpush1.bf16.xpose.msra.mxu0 0
        %4046 = vmatprep.subr.bf16.mxu0 0
        %4047 = vmatpush1.bf16.xpose.msra.mxu0 0
        %4048 = vmatprep.subr.bf16.mxu0 0
        %4049 = vmatpush1.bf16.xpose.msra.mxu0 0
        %4050 = vmatprep.subr.bf16.mxu0 0
        %4051 = vmatpush1.bf16.xpose.msra.mxu0 0
        %4052 = vmatprep.subr.bf16.mxu0 0
        %4053 = vmatpush1.bf16.xpose.msra.mxu0 0
        %4054 = vmatprep.mubr.bf16.mxu0 0
        %4055 = vmatmul.mubr.bf16.gmra.mrb[0].mxu0 %v4011
        %v4056 = vpop.f32.mrb[0].mxu0
        %v4057 = vadd.f32 0.0, %v4056
        %v4058 = vpop.f32.mrb[0].mxu0
        %v4059 = vpop.f32.mrb[0].mxu0
        %v4060 = vadd.f32 0.0, %v4059
        %v4061 = vpop.f32.mrb[0].mxu0
        %4062 = vmatprep.mubr.bf16.mxu0 0
        %4063 = vmatmul.mubr.bf16.gmra.mrb[0].mxu0 %v4014
        %v4064 = vpop.f32.mrb[0].mxu0
        %v4065 = vadd.f32 0.0, %v4064
        %v4066 = vpop.f32.mrb[0].mxu0
        %v4067 = vpop.f32.mrb[0].mxu0
        %v4068 = vadd.f32 0.0, %v4067
        %v4069 = vpop.f32.mrb[0].mxu0
        %4070 = vdwg.mxu0
        %v4071 = vsel %vm1193, %v4057, -inf
        %4072 = vmax.xlane.f32.xlu0 %v4071
        %v4073 = vpop.xlane.xlu0 %4072
        %v4074 = vsel %vm1193, %v4060, -inf
        %4075 = vmax.xlane.f32.xlu0 %v4074
        %v4076 = vpop.xlane.xlu0 %4075
        %v4077 = vsel %vm1193, %v4065, -inf
        %4078 = vmax.xlane.f32.xlu0 %v4077
        %v4079 = vpop.xlane.xlu0 %4078
        %v4080 = vsel %vm1193, %v4068, -inf
        %4081 = vmax.xlane.f32.xlu0 %v4080
        %v4082 = vpop.xlane.xlu0 %4081
        %v4083 = vsub.f32 %v4057, %v4073
        %v4084 = vsub.f32 %v4060, %v4076
        %v4085 = vsub.f32 %v4065, %v4079
        %v4086 = vsub.f32 %v4068, %v4082
        %v4087 = vmul.f32 %v4083, 1.442695
        %v4088 = vpow.pop %v4087
        %v4089 = vmul.f32 %v4084, 1.442695
        %v4090 = vpow.pop %v4089
        %v4091 = vmul.f32 %v4085, 1.442695
        %v4092 = vpow.pop %v4091
        %v4093 = vmul.f32 %v4086, 1.442695
        %v4094 = vpow.pop %v4093
        %v4095 = vsel %vm1193, %v4088, 0.0
        %4096 = vadd.xlane.f32.xlu0 %v4095
        %v4097 = vpop.xlane.xlu0 %4096
        %v4098 = vsel %vm1193, %v4090, 0.0
        %4099 = vadd.xlane.f32.xlu0 %v4098
        %v4100 = vpop.xlane.xlu0 %4099
        %v4101 = vsel %vm1193, %v4092, 0.0
        %4102 = vadd.xlane.f32.xlu0 %v4101
        %v4103 = vpop.xlane.xlu0 %4102
        %v4104 = vsel %vm1193, %v4094, 0.0
        %4105 = vadd.xlane.f32.xlu0 %v4104
        %v4106 = vpop.xlane.xlu0 %4105
        %v4107 = vrcp.pop %v4097
        %v4108 = vrcp.pop %v4100
        %v4109 = vrcp.pop %v4103
        %v4110 = vrcp.pop %v4106
        %v4111 = vmul.f32 %v4088, %v4107
        %v4112 = vmul.f32 %v4090, %v4108
        %v4113 = vmul.f32 %v4092, %v4109
        %v4114 = vmul.f32 %v4094, %v4110
        %v4115 = vpack.c.bf16 %v4112, %v4111
        %v4116 = vpack.c.bf16 %v4114, %v4113
        %4117 = vrot.lane.b32.xlu0 %v3480, 32
        %v4118 = vpop.permute.xlu0 %4117
        %4119 = vrot.lane.b32.xlu0 %v3481, 32
        %v4120 = vpop.permute.xlu0 %4119
        %v4124 = vsel %vm1193, %v4115, 0
        %v4127 = vsel %vm1193, %v4116, 0
        %4129 = vmatprep.subr.bf16.mxu0 0
        %4130 = vmatpush1.bf16.msra.mxu0 %v4118
        %4131 = vmatprep.subr.bf16.mxu0 0
        %4132 = vmatpush1.bf16.msra.mxu0 %v4120
        %4133 = vmatprep.subr.bf16.mxu0 0
        %4134 = vmatpush1.bf16.msra.mxu0 0
        %4135 = vmatprep.subr.bf16.mxu0 0
        %4136 = vmatpush1.bf16.msra.mxu0 0
        %4137 = vmatprep.subr.bf16.mxu0 0
        %4138 = vmatpush1.bf16.msra.mxu0 0
        %4139 = vmatprep.subr.bf16.mxu0 0
        %4140 = vmatpush1.bf16.msra.mxu0 0
        %4141 = vmatprep.subr.bf16.mxu0 0
        %4142 = vmatpush1.bf16.msra.mxu0 0
        %4143 = vmatprep.subr.bf16.mxu0 0
        %4144 = vmatpush1.bf16.msra.mxu0 0
        %4145 = vmatprep.subr.bf16.mxu0 0
        %4146 = vmatpush1.bf16.msra.mxu0 0
        %4147 = vmatprep.subr.bf16.mxu0 0
        %4148 = vmatpush1.bf16.msra.mxu0 0
        %4149 = vmatprep.subr.bf16.mxu0 0
        %4150 = vmatpush1.bf16.msra.mxu0 0
        %4151 = vmatprep.subr.bf16.mxu0 0
        %4152 = vmatpush1.bf16.msra.mxu0 0
        %4153 = vmatprep.subr.bf16.mxu0 0
        %4154 = vmatpush1.bf16.msra.mxu0 0
        %4155 = vmatprep.subr.bf16.mxu0 0
        %4156 = vmatpush1.bf16.msra.mxu0 0
        %4157 = vmatprep.subr.bf16.mxu0 0
        %4158 = vmatpush1.bf16.msra.mxu0 0
        %4159 = vmatprep.subr.bf16.mxu0 0
        %4160 = vmatpush1.bf16.msra.mxu0 0
        %4161 = vmatprep.mubr.bf16.mxu0 0
        %4162 = vmatmul.mubr.bf16.gmra.mrb[0].mxu0 %v4124
        %v4163 = vpop.f32.mrb[0].mxu0
        %v4164 = vadd.f32 0.0, %v4163
        %v4165 = vpop.f32.mrb[0].mxu0
        %v4166 = vpop.f32.mrb[0].mxu0
        %v4167 = vadd.f32 0.0, %v4166
        %v4168 = vpop.f32.mrb[0].mxu0
        %4169 = vmatprep.mubr.bf16.mxu0 0
        %4170 = vmatmul.mubr.bf16.gmra.mrb[0].mxu0 %v4127
        %v4171 = vpop.f32.mrb[0].mxu0
        %v4172 = vadd.f32 0.0, %v4171
        %v4173 = vpop.f32.mrb[0].mxu0
        %v4174 = vpop.f32.mrb[0].mxu0
        %v4175 = vadd.f32 0.0, %v4174
        %v4176 = vpop.f32.mrb[0].mxu0
        %4177 = vdwg.mxu0
        %4182 = vrot.lane.b32.xlu0 %v3812, 32
        %v4183 = vpop.permute.xlu0 %4182
        %4184 = vrot.lane.b32.xlu0 %v3815, 32
        %v4185 = vpop.permute.xlu0 %4184
        %4186 = vrot.lane.b32.xlu0 %v3820, 32
        %v4187 = vpop.permute.xlu0 %4186
        %4188 = vrot.lane.b32.xlu0 %v3823, 32
        %v4189 = vpop.permute.xlu0 %4188
        %4198 = vrot.lane.b32.xlu0 %v3988, 64
        %v4199 = vpop.permute.xlu0 %4198
        %4200 = vrot.lane.b32.xlu0 %v3991, 64
        %v4201 = vpop.permute.xlu0 %4200
        %4202 = vrot.lane.b32.xlu0 %v3996, 64
        %v4203 = vpop.permute.xlu0 %4202
        %4204 = vrot.lane.b32.xlu0 %v3999, 64
        %v4205 = vpop.permute.xlu0 %4204
        %4214 = vrot.lane.b32.xlu0 %v4164, 96
        %v4215 = vpop.permute.xlu0 %4214
        %4216 = vrot.lane.b32.xlu0 %v4167, 96
        %v4217 = vpop.permute.xlu0 %4216
        %4218 = vrot.lane.b32.xlu0 %v4172, 96
        %v4219 = vpop.permute.xlu0 %4218
        %4220 = vrot.lane.b32.xlu0 %v4175, 96
        %v4221 = vpop.permute.xlu0 %4220
        %v4226 = vsel %vm1193, %v3630, %v4183
        %v4227 = vsel %vm1193, %v3633, %v4185
        %v4228 = vsel %vm1193, %v3638, %v4187
        %v4229 = vsel %vm1193, %v3641, %v4189
        %v4230 = vsel %vm1942, %v4226, %v4199
        %v4231 = vsel %vm1942, %v4227, %v4201
        %v4232 = vsel %vm1942, %v4228, %v4203
        %v4233 = vsel %vm1942, %v4229, %v4205
        %v4234 = vsel %vm1947, %v4230, %v4215
        %v4235 = vsel %vm1947, %v4231, %v4217
        %v4236 = vsel %vm1947, %v4232, %v4219
        %v4237 = vsel %vm1947, %v4233, %v4221
        %v4238 = vpack.c.bf16 %v1949, %v1948
        %v4239 = vpack.c.bf16 %v1951, %v1950
        %v4240 = vpack.c.bf16 %v2711, %v2710
        %v4241 = vpack.c.bf16 %v2713, %v2712
        %v4242 = vpack.c.bf16 %v3473, %v3472
        %v4243 = vpack.c.bf16 %v3475, %v3474
        %v4244 = vpack.c.bf16 %v4235, %v4234
        %v4245 = vpack.c.bf16 %v4237, %v4236
        %v4246 = vld [vmem:[#allocation7] sm:$0xf]
        %v4247 = vld [vmem:[#allocation7 + $0x4] sm:$0xf]
        %v4248 = vld [vmem:[#allocation7 + $0x8] sm:$0xf]
        %v4249 = vld [vmem:[#allocation7 + $0xc] sm:$0xf]
        %v4250 = vld [vmem:[#allocation7 + $0x10] sm:$0xf]
        %v4251 = vld [vmem:[#allocation7 + $0x14] sm:$0xf]
        %v4252 = vld [vmem:[#allocation7 + $0x18] sm:$0xf]
        %v4253 = vld [vmem:[#allocation7 + $0x1c] sm:$0xf]
        %v4254 = vld [vmem:[#allocation7 + $0x20] sm:$0xf]
        %v4255 = vld [vmem:[#allocation7 + $0x24] sm:$0xf]
        %v4256 = vld [vmem:[#allocation7 + $0x28] sm:$0xf]
        %v4257 = vld [vmem:[#allocation7 + $0x2c] sm:$0xf]
        %v4258 = vld [vmem:[#allocation7 + $0x30] sm:$0xf]
        %v4259 = vld [vmem:[#allocation7 + $0x34] sm:$0xf]
        %v4260 = vld [vmem:[#allocation7 + $0x38] sm:$0xf]
        %v4261 = vld [vmem:[#allocation7 + $0x3c] sm:$0xf]
        %v4278 = vunpack.c.l.b16 %v4246
        %v4279 = vunpack.c.l.b16 %v4247
        %v4280 = vunpack.c.l.b16 %v4248
        %v4281 = vunpack.c.l.b16 %v4249
        %v4282 = vunpack.c.l.b16 %v4250
        %v4283 = vunpack.c.l.b16 %v4251
        %v4284 = vunpack.c.l.b16 %v4252
        %v4285 = vunpack.c.l.b16 %v4253
        %v4286 = vunpack.c.l.b16 %v4254
        %v4287 = vunpack.c.l.b16 %v4255
        %v4288 = vunpack.c.l.b16 %v4256
        %v4289 = vunpack.c.l.b16 %v4257
        %v4290 = vunpack.c.l.b16 %v4258
        %v4291 = vunpack.c.l.b16 %v4259
        %v4292 = vunpack.c.l.b16 %v4260
        %v4293 = vunpack.c.l.b16 %v4261
        %v4294 = vpack.c.b16 %v4279, %v4278
        %v4295 = vpack.c.b16 %v4281, %v4280
        %v4296 = vpack.c.b16 %v4283, %v4282
        %v4297 = vpack.c.b16 %v4285, %v4284
        %v4298 = vpack.c.b16 %v4287, %v4286
        %v4299 = vpack.c.b16 %v4289, %v4288
        %v4300 = vpack.c.b16 %v4291, %v4290
        %v4301 = vpack.c.b16 %v4293, %v4292
        %4310 = vmatprep.subr.bf16.mxu0 0
        %4311 = vmatpush1.bf16.msra.mxu0 %v4294
        %4312 = vmatprep.subr.bf16.mxu0 0
        %4313 = vmatpush1.bf16.msra.mxu0 %v4295
        %4314 = vmatprep.subr.bf16.mxu0 0
        %4315 = vmatpush1.bf16.msra.mxu0 %v4296
        %4316 = vmatprep.subr.bf16.mxu0 0
        %4317 = vmatpush1.bf16.msra.mxu0 %v4297
        %4318 = vmatprep.subr.bf16.mxu0 0
        %4319 = vmatpush1.bf16.msra.mxu0 %v4298
        %4320 = vmatprep.subr.bf16.mxu0 0
        %4321 = vmatpush1.bf16.msra.mxu0 %v4299
        %4322 = vmatprep.subr.bf16.mxu0 0
        %4323 = vmatpush1.bf16.msra.mxu0 %v4300
        %4324 = vmatprep.subr.bf16.mxu0 0
        %4325 = vmatpush1.bf16.msra.mxu0 %v4301
        %4326 = vmatprep.subr.bf16.mxu0 0
        %4327 = vmatpush1.bf16.msra.mxu0 0
        %4328 = vmatprep.subr.bf16.mxu0 0
        %4329 = vmatpush1.bf16.msra.mxu0 0
        %4330 = vmatprep.subr.bf16.mxu0 0
        %4331 = vmatpush1.bf16.msra.mxu0 0
        %4332 = vmatprep.subr.bf16.mxu0 0
        %4333 = vmatpush1.bf16.msra.mxu0 0
        %4334 = vmatprep.subr.bf16.mxu0 0
        %4335 = vmatpush1.bf16.msra.mxu0 0
        %4336 = vmatprep.subr.bf16.mxu0 0
        %4337 = vmatpush1.bf16.msra.mxu0 0
        %4338 = vmatprep.subr.bf16.mxu0 0
        %4339 = vmatpush1.bf16.msra.mxu0 0
        %4340 = vmatprep.subr.bf16.mxu0 0
        %4341 = vmatpush1.bf16.msra.mxu0 0
        %4342 = vmatprep.mubr.bf16.mxu0 0
        %4343 = vmatmul.mubr.bf16.gmra.mrb[0].mxu0 %v4238
        %v4344 = vpop.f32.mrb[0].mxu0
        %v4345 = vadd.f32 0.0, %v4344
        %v4346 = vpop.f32.mrb[0].mxu0
        %v4347 = vpop.f32.mrb[0].mxu0
        %v4348 = vadd.f32 0.0, %v4347
        %v4349 = vpop.f32.mrb[0].mxu0
        %4350 = vmatprep.mubr.bf16.mxu0 0
        %4351 = vmatmul.mubr.bf16.gmra.mrb[0].mxu0 %v4239
        %v4352 = vpop.f32.mrb[0].mxu0
        %v4353 = vadd.f32 0.0, %v4352
        %v4354 = vpop.f32.mrb[0].mxu0
        %v4355 = vpop.f32.mrb[0].mxu0
        %v4356 = vadd.f32 0.0, %v4355
        %v4357 = vpop.f32.mrb[0].mxu0
        %4358 = vmatprep.mubr.bf16.mxu0 0
        %4359 = vmatmul.mubr.bf16.gmra.mrb[0].mxu0 %v4240
        %v4360 = vpop.f32.mrb[0].mxu0
        %v4361 = vadd.f32 0.0, %v4360
        %v4362 = vpop.f32.mrb[0].mxu0
        %v4363 = vpop.f32.mrb[0].mxu0
        %v4364 = vadd.f32 0.0, %v4363
        %v4365 = vpop.f32.mrb[0].mxu0
        %4366 = vmatprep.mubr.bf16.mxu0 0
        %4367 = vmatmul.mubr.bf16.gmra.mrb[0].mxu0 %v4241
        %v4368 = vpop.f32.mrb[0].mxu0
        %v4369 = vadd.f32 0.0, %v4368
        %v4370 = vpop.f32.mrb[0].mxu0
        %v4371 = vpop.f32.mrb[0].mxu0
        %v4372 = vadd.f32 0.0, %v4371
        %v4373 = vpop.f32.mrb[0].mxu0
        %4374 = vmatprep.mubr.bf16.mxu0 0
        %4375 = vmatmul.mubr.bf16.gmra.mrb[0].mxu0 %v4242
        %v4376 = vpop.f32.mrb[0].mxu0
        %v4377 = vadd.f32 0.0, %v4376
        %v4378 = vpop.f32.mrb[0].mxu0
        %v4379 = vpop.f32.mrb[0].mxu0
        %v4380 = vadd.f32 0.0, %v4379
        %v4381 = vpop.f32.mrb[0].mxu0
        %4382 = vmatprep.mubr.bf16.mxu0 0
        %4383 = vmatmul.mubr.bf16.gmra.mrb[0].mxu0 %v4243
        %v4384 = vpop.f32.mrb[0].mxu0
        %v4385 = vadd.f32 0.0, %v4384
        %v4386 = vpop.f32.mrb[0].mxu0
        %v4387 = vpop.f32.mrb[0].mxu0
        %v4388 = vadd.f32 0.0, %v4387
        %v4389 = vpop.f32.mrb[0].mxu0
        %4390 = vmatprep.mubr.bf16.mxu0 0
        %4391 = vmatmul.mubr.bf16.gmra.mrb[0].mxu0 %v4244
        %v4392 = vpop.f32.mrb[0].mxu0
        %v4393 = vadd.f32 0.0, %v4392
        %v4394 = vpop.f32.mrb[0].mxu0
        %v4395 = vpop.f32.mrb[0].mxu0
        %v4396 = vadd.f32 0.0, %v4395
        %v4397 = vpop.f32.mrb[0].mxu0
        %4398 = vmatprep.mubr.bf16.mxu0 0
        %4399 = vmatmul.mubr.bf16.gmra.mrb[0].mxu0 %v4245
        %v4400 = vpop.f32.mrb[0].mxu0
        %v4401 = vadd.f32 0.0, %v4400
        %v4402 = vpop.f32.mrb[0].mxu0
        %v4403 = vpop.f32.mrb[0].mxu0
        %v4404 = vadd.f32 0.0, %v4403
        %v4405 = vpop.f32.mrb[0].mxu0
        %4406 = vdwg.mxu0
        %v4407 = vadd.f32 %v521, %v4345
        %v4408 = vadd.f32 %v522, %v4348
        %v4409 = vadd.f32 %v523, %v4353
        %v4410 = vadd.f32 %v524, %v4356
        %v4411 = vadd.f32 %v525, %v4361
        %v4412 = vadd.f32 %v526, %v4364
        %v4413 = vadd.f32 %v527, %v4369
        %v4414 = vadd.f32 %v528, %v4372
        %v4415 = vadd.f32 %v529, %v4377
        %v4416 = vadd.f32 %v530, %v4380
        %v4417 = vadd.f32 %v531, %v4385
        %v4418 = vadd.f32 %v532, %v4388
        %v4419 = vadd.f32 %v533, %v4393
        %v4420 = vadd.f32 %v534, %v4396
        %v4421 = vadd.f32 %v535, %v4401
        %v4422 = vadd.f32 %v536, %v4404
        %v4423 = vld [vmem:[%s6] sm:$0x1]
        %v4425 = vlaneseq
        %v4426 = vshrl.u32 %v4425, 7
        %v4427 = vsub.s32 0, %v4426
        %v4428 = vrot.slane %v4423, %v4427
        %v4430 = vadd.f32 %v4407, %v4428
        %v4431 = vadd.f32 %v4408, %v4428
        %v4432 = vadd.f32 %v4409, %v4428
        %v4433 = vadd.f32 %v4410, %v4428
        %v4434 = vadd.f32 %v4411, %v4428
        %v4435 = vadd.f32 %v4412, %v4428
        %v4436 = vadd.f32 %v4413, %v4428
        %v4437 = vadd.f32 %v4414, %v4428
        %v4438 = vadd.f32 %v4415, %v4428
        %v4439 = vadd.f32 %v4416, %v4428
        %v4440 = vadd.f32 %v4417, %v4428
        %v4441 = vadd.f32 %v4418, %v4428
        %v4442 = vadd.f32 %v4419, %v4428
        %v4443 = vadd.f32 %v4420, %v4428
        %v4444 = vadd.f32 %v4421, %v4428
        %v4445 = vadd.f32 %v4422, %v4428
        %v4446 = vld [vmem:[%s7] sm:$0x1]
        %v4447 = vld [vmem:[%s8] sm:$0x1]
        %4448 = vadd.xlane.f32.xlu0 %v4430
        %v4449 = vpop.xlane.xlu0 %4448
        %4450 = vadd.xlane.f32.xlu0 %v4431
        %v4451 = vpop.xlane.xlu0 %4450
        %4452 = vadd.xlane.f32.xlu0 %v4432
        %v4453 = vpop.xlane.xlu0 %4452
        %4454 = vadd.xlane.f32.xlu0 %v4433
        %v4455 = vpop.xlane.xlu0 %4454
        %4456 = vadd.xlane.f32.xlu0 %v4434
        %v4457 = vpop.xlane.xlu0 %4456
        %4458 = vadd.xlane.f32.xlu0 %v4435
        %v4459 = vpop.xlane.xlu0 %4458
        %4460 = vadd.xlane.f32.xlu0 %v4436
        %v4461 = vpop.xlane.xlu0 %4460
        %4462 = vadd.xlane.f32.xlu0 %v4437
        %v4463 = vpop.xlane.xlu0 %4462
        %4464 = vadd.xlane.f32.xlu0 %v4438
        %v4465 = vpop.xlane.xlu0 %4464
        %4466 = vadd.xlane.f32.xlu0 %v4439
        %v4467 = vpop.xlane.xlu0 %4466
        %4468 = vadd.xlane.f32.xlu0 %v4440
        %v4469 = vpop.xlane.xlu0 %4468
        %4470 = vadd.xlane.f32.xlu0 %v4441
        %v4471 = vpop.xlane.xlu0 %4470
        %4472 = vadd.xlane.f32.xlu0 %v4442
        %v4473 = vpop.xlane.xlu0 %4472
        %4474 = vadd.xlane.f32.xlu0 %v4443
        %v4475 = vpop.xlane.xlu0 %4474
        %4476 = vadd.xlane.f32.xlu0 %v4444
        %v4477 = vpop.xlane.xlu0 %4476
        %4478 = vadd.xlane.f32.xlu0 %v4445
        %v4479 = vpop.xlane.xlu0 %4478
        %v4480 = vmul.f32 %v4449, %v571
        %v4481 = vmul.f32 %v4451, %v571
        %v4482 = vmul.f32 %v4453, %v571
        %v4483 = vmul.f32 %v4455, %v571
        %v4484 = vmul.f32 %v4457, %v571
        %v4485 = vmul.f32 %v4459, %v571
        %v4486 = vmul.f32 %v4461, %v571
        %v4487 = vmul.f32 %v4463, %v571
        %v4488 = vmul.f32 %v4465, %v571
        %v4489 = vmul.f32 %v4467, %v571
        %v4490 = vmul.f32 %v4469, %v571
        %v4491 = vmul.f32 %v4471, %v571
        %v4492 = vmul.f32 %v4473, %v571
        %v4493 = vmul.f32 %v4475, %v571
        %v4494 = vmul.f32 %v4477, %v571
        %v4495 = vmul.f32 %v4479, %v571
        %v4496 = vmul.f32 %v4430, %v4430
        %v4497 = vmul.f32 %v4431, %v4431
        %v4498 = vmul.f32 %v4432, %v4432
        %v4499 = vmul.f32 %v4433, %v4433
        %v4500 = vmul.f32 %v4434, %v4434
        %v4501 = vmul.f32 %v4435, %v4435
        %v4502 = vmul.f32 %v4436, %v4436
        %v4503 = vmul.f32 %v4437, %v4437
        %v4504 = vmul.f32 %v4438, %v4438
        %v4505 = vmul.f32 %v4439, %v4439
        %v4506 = vmul.f32 %v4440, %v4440
        %v4507 = vmul.f32 %v4441, %v4441
        %v4508 = vmul.f32 %v4442, %v4442
        %v4509 = vmul.f32 %v4443, %v4443
        %v4510 = vmul.f32 %v4444, %v4444
        %v4511 = vmul.f32 %v4445, %v4445
        %4512 = vadd.xlane.f32.xlu0 %v4496
        %v4513 = vpop.xlane.xlu0 %4512
        %4514 = vadd.xlane.f32.xlu0 %v4497
        %v4515 = vpop.xlane.xlu0 %4514
        %4516 = vadd.xlane.f32.xlu0 %v4498
        %v4517 = vpop.xlane.xlu0 %4516
        %4518 = vadd.xlane.f32.xlu0 %v4499
        %v4519 = vpop.xlane.xlu0 %4518
        %4520 = vadd.xlane.f32.xlu0 %v4500
        %v4521 = vpop.xlane.xlu0 %4520
        %4522 = vadd.xlane.f32.xlu0 %v4501
        %v4523 = vpop.xlane.xlu0 %4522
        %4524 = vadd.xlane.f32.xlu0 %v4502
        %v4525 = vpop.xlane.xlu0 %4524
        %4526 = vadd.xlane.f32.xlu0 %v4503
        %v4527 = vpop.xlane.xlu0 %4526
        %4528 = vadd.xlane.f32.xlu0 %v4504
        %v4529 = vpop.xlane.xlu0 %4528
        %4530 = vadd.xlane.f32.xlu0 %v4505
        %v4531 = vpop.xlane.xlu0 %4530
        %4532 = vadd.xlane.f32.xlu0 %v4506
        %v4533 = vpop.xlane.xlu0 %4532
        %4534 = vadd.xlane.f32.xlu0 %v4507
        %v4535 = vpop.xlane.xlu0 %4534
        %4536 = vadd.xlane.f32.xlu0 %v4508
        %v4537 = vpop.xlane.xlu0 %4536
        %4538 = vadd.xlane.f32.xlu0 %v4509
        %v4539 = vpop.xlane.xlu0 %4538
        %4540 = vadd.xlane.f32.xlu0 %v4510
        %v4541 = vpop.xlane.xlu0 %4540
        %4542 = vadd.xlane.f32.xlu0 %v4511
        %v4543 = vpop.xlane.xlu0 %4542
        %v4544 = vmul.f32 %v4513, %v571
        %v4545 = vmul.f32 %v4515, %v571
        %v4546 = vmul.f32 %v4517, %v571
        %v4547 = vmul.f32 %v4519, %v571
        %v4548 = vmul.f32 %v4521, %v571
        %v4549 = vmul.f32 %v4523, %v571
        %v4550 = vmul.f32 %v4525, %v571
        %v4551 = vmul.f32 %v4527, %v571
        %v4552 = vmul.f32 %v4529, %v571
        %v4553 = vmul.f32 %v4531, %v571
        %v4554 = vmul.f32 %v4533, %v571
        %v4555 = vmul.f32 %v4535, %v571
        %v4556 = vmul.f32 %v4537, %v571
        %v4557 = vmul.f32 %v4539, %v571
        %v4558 = vmul.f32 %v4541, %v571
        %v4559 = vmul.f32 %v4543, %v571
        %v4560 = vmul.f32 %v4480, %v4480
        %v4561 = vmul.f32 %v4481, %v4481
        %v4562 = vmul.f32 %v4482, %v4482
        %v4563 = vmul.f32 %v4483, %v4483
        %v4564 = vmul.f32 %v4484, %v4484
        %v4565 = vmul.f32 %v4485, %v4485
        %v4566 = vmul.f32 %v4486, %v4486
        %v4567 = vmul.f32 %v4487, %v4487
        %v4568 = vmul.f32 %v4488, %v4488
        %v4569 = vmul.f32 %v4489, %v4489
        %v4570 = vmul.f32 %v4490, %v4490
        %v4571 = vmul.f32 %v4491, %v4491
        %v4572 = vmul.f32 %v4492, %v4492
        %v4573 = vmul.f32 %v4493, %v4493
        %v4574 = vmul.f32 %v4494, %v4494
        %v4575 = vmul.f32 %v4495, %v4495
        %v4576 = vsub.f32 %v4544, %v4560
        %v4577 = vsub.f32 %v4545, %v4561
        %v4578 = vsub.f32 %v4546, %v4562
        %v4579 = vsub.f32 %v4547, %v4563
        %v4580 = vsub.f32 %v4548, %v4564
        %v4581 = vsub.f32 %v4549, %v4565
        %v4582 = vsub.f32 %v4550, %v4566
        %v4583 = vsub.f32 %v4551, %v4567
        %v4584 = vsub.f32 %v4552, %v4568
        %v4585 = vsub.f32 %v4553, %v4569
        %v4586 = vsub.f32 %v4554, %v4570
        %v4587 = vsub.f32 %v4555, %v4571
        %v4588 = vsub.f32 %v4556, %v4572
        %v4589 = vsub.f32 %v4557, %v4573
        %v4590 = vsub.f32 %v4558, %v4574
        %v4591 = vsub.f32 %v4559, %v4575
        %v4592 = vsub.f32 %v4430, %v4480
        %v4593 = vsub.f32 %v4431, %v4481
        %v4594 = vsub.f32 %v4432, %v4482
        %v4595 = vsub.f32 %v4433, %v4483
        %v4596 = vsub.f32 %v4434, %v4484
        %v4597 = vsub.f32 %v4435, %v4485
        %v4598 = vsub.f32 %v4436, %v4486
        %v4599 = vsub.f32 %v4437, %v4487
        %v4600 = vsub.f32 %v4438, %v4488
        %v4601 = vsub.f32 %v4439, %v4489
        %v4602 = vsub.f32 %v4440, %v4490
        %v4603 = vsub.f32 %v4441, %v4491
        %v4604 = vsub.f32 %v4442, %v4492
        %v4605 = vsub.f32 %v4443, %v4493
        %v4606 = vsub.f32 %v4444, %v4494
        %v4607 = vsub.f32 %v4445, %v4495
        %v4608 = vadd.f32 %v4576, 1e-05
        %v4609 = vadd.f32 %v4577, 1e-05
        %v4610 = vadd.f32 %v4578, 1e-05
        %v4611 = vadd.f32 %v4579, 1e-05
        %v4612 = vadd.f32 %v4580, 1e-05
        %v4613 = vadd.f32 %v4581, 1e-05
        %v4614 = vadd.f32 %v4582, 1e-05
        %v4615 = vadd.f32 %v4583, 1e-05
        %v4616 = vadd.f32 %v4584, 1e-05
        %v4617 = vadd.f32 %v4585, 1e-05
        %v4618 = vadd.f32 %v4586, 1e-05
        %v4619 = vadd.f32 %v4587, 1e-05
        %v4620 = vadd.f32 %v4588, 1e-05
        %v4621 = vadd.f32 %v4589, 1e-05
        %v4622 = vadd.f32 %v4590, 1e-05
        %v4623 = vadd.f32 %v4591, 1e-05
        %v4624 = vrsqrt.pop %v4608
        %v4625 = vrsqrt.pop %v4609
        %v4626 = vrsqrt.pop %v4610
        %v4627 = vrsqrt.pop %v4611
        %v4628 = vrsqrt.pop %v4612
        %v4629 = vrsqrt.pop %v4613
        %v4630 = vrsqrt.pop %v4614
        %v4631 = vrsqrt.pop %v4615
        %v4632 = vrsqrt.pop %v4616
        %v4633 = vrsqrt.pop %v4617
        %v4634 = vrsqrt.pop %v4618
        %v4635 = vrsqrt.pop %v4619
        %v4636 = vrsqrt.pop %v4620
        %v4637 = vrsqrt.pop %v4621
        %v4638 = vrsqrt.pop %v4622
        %v4639 = vrsqrt.pop %v4623
        %v4640 = vmul.f32 %v4592, %v4624
        %v4641 = vmul.f32 %v4593, %v4625
        %v4642 = vmul.f32 %v4594, %v4626
        %v4643 = vmul.f32 %v4595, %v4627
        %v4644 = vmul.f32 %v4596, %v4628
        %v4645 = vmul.f32 %v4597, %v4629
        %v4646 = vmul.f32 %v4598, %v4630
        %v4647 = vmul.f32 %v4599, %v4631
        %v4648 = vmul.f32 %v4600, %v4632
        %v4649 = vmul.f32 %v4601, %v4633
        %v4650 = vmul.f32 %v4602, %v4634
        %v4651 = vmul.f32 %v4603, %v4635
        %v4652 = vmul.f32 %v4604, %v4636
        %v4653 = vmul.f32 %v4605, %v4637
        %v4654 = vmul.f32 %v4606, %v4638
        %v4655 = vmul.f32 %v4607, %v4639
        %v4657 = vlaneseq
        %v4658 = vshrl.u32 %v4657, 7
        %v4659 = vsub.s32 0, %v4658
        %v4660 = vrot.slane %v4446, %v4659
        %v4662 = vmul.f32 %v4640, %v4660
        %v4663 = vmul.f32 %v4641, %v4660
        %v4664 = vmul.f32 %v4642, %v4660
        %v4665 = vmul.f32 %v4643, %v4660
        %v4666 = vmul.f32 %v4644, %v4660
        %v4667 = vmul.f32 %v4645, %v4660
        %v4668 = vmul.f32 %v4646, %v4660
        %v4669 = vmul.f32 %v4647, %v4660
        %v4670 = vmul.f32 %v4648, %v4660
        %v4671 = vmul.f32 %v4649, %v4660
        %v4672 = vmul.f32 %v4650, %v4660
        %v4673 = vmul.f32 %v4651, %v4660
        %v4674 = vmul.f32 %v4652, %v4660
        %v4675 = vmul.f32 %v4653, %v4660
        %v4676 = vmul.f32 %v4654, %v4660
        %v4677 = vmul.f32 %v4655, %v4660
        %v4679 = vlaneseq
        %v4680 = vshrl.u32 %v4679, 7
        %v4681 = vsub.s32 0, %v4680
        %v4682 = vrot.slane %v4447, %v4681
        %v4684 = vadd.f32 %v4662, %v4682
        %v4685 = vadd.f32 %v4663, %v4682
        %v4686 = vadd.f32 %v4664, %v4682
        %v4687 = vadd.f32 %v4665, %v4682
        %v4688 = vadd.f32 %v4666, %v4682
        %v4689 = vadd.f32 %v4667, %v4682
        %v4690 = vadd.f32 %v4668, %v4682
        %v4691 = vadd.f32 %v4669, %v4682
        %v4692 = vadd.f32 %v4670, %v4682
        %v4693 = vadd.f32 %v4671, %v4682
        %v4694 = vadd.f32 %v4672, %v4682
        %v4695 = vadd.f32 %v4673, %v4682
        %v4696 = vadd.f32 %v4674, %v4682
        %v4697 = vadd.f32 %v4675, %v4682
        %v4698 = vadd.f32 %v4676, %v4682
        %v4699 = vadd.f32 %v4677, %v4682
        %v4700 = vpack.c.bf16 %v4685, %v4684
        %v4701 = vpack.c.bf16 %v4687, %v4686
        %v4702 = vpack.c.bf16 %v4689, %v4688
        %v4703 = vpack.c.bf16 %v4691, %v4690
        %v4704 = vpack.c.bf16 %v4693, %v4692
        %v4705 = vpack.c.bf16 %v4695, %v4694
        %v4706 = vpack.c.bf16 %v4697, %v4696
        %v4707 = vpack.c.bf16 %v4699, %v4698
        %v4708 = vld [vmem:[#allocation8] sm:$0xff]
        %v4709 = vld [vmem:[#allocation8 + $0x8] sm:$0xff]
        %v4710 = vld [vmem:[#allocation8 + $0x10] sm:$0xff]
        %v4711 = vld [vmem:[#allocation8 + $0x18] sm:$0xff]
        %v4712 = vld [vmem:[#allocation8 + $0x20] sm:$0xff]
        %v4713 = vld [vmem:[#allocation8 + $0x28] sm:$0xff]
        %v4714 = vld [vmem:[#allocation8 + $0x30] sm:$0xff]
        %v4715 = vld [vmem:[#allocation8 + $0x38] sm:$0xff]
        %v4716 = vld [vmem:[#allocation8 + $0x40] sm:$0xff]
        %v4717 = vld [vmem:[#allocation8 + $0x48] sm:$0xff]
        %v4718 = vld [vmem:[#allocation8 + $0x50] sm:$0xff]
        %v4719 = vld [vmem:[#allocation8 + $0x58] sm:$0xff]
        %v4720 = vld [vmem:[#allocation8 + $0x60] sm:$0xff]
        %v4721 = vld [vmem:[#allocation8 + $0x68] sm:$0xff]
        %v4722 = vld [vmem:[#allocation8 + $0x70] sm:$0xff]
        %v4723 = vld [vmem:[#allocation8 + $0x78] sm:$0xff]
        %v4724 = vld [vmem:[%s10] sm:$0x3]
        %v4726 = vlaneseq
        %v4727 = vshrl.u32 %v4726, 7
        %v4728 = vsub.s32 0, %v4727
        %v4729 = vrot.slane %v4724, %v4728
        %v4730 = vlaneseq
        %v4731 = vshrl.u32 %v4730, 7
        %v4732 = vsub.s32 1, %v4731
        %v4733 = vrot.slane %v4724, %v4732
        %v4752 = vunpack.c.l.b16 %v4708
        %v4753 = vunpack.c.h.b16 %v4708
        %v4754 = vunpack.c.l.b16 %v4709
        %v4755 = vunpack.c.h.b16 %v4709
        %v4756 = vunpack.c.l.b16 %v4710
        %v4757 = vunpack.c.h.b16 %v4710
        %v4758 = vunpack.c.l.b16 %v4711
        %v4759 = vunpack.c.h.b16 %v4711
        %v4760 = vunpack.c.l.b16 %v4712
        %v4761 = vunpack.c.h.b16 %v4712
        %v4762 = vunpack.c.l.b16 %v4713
        %v4763 = vunpack.c.h.b16 %v4713
        %v4764 = vunpack.c.l.b16 %v4714
        %v4765 = vunpack.c.h.b16 %v4714
        %v4766 = vunpack.c.l.b16 %v4715
        %v4767 = vunpack.c.h.b16 %v4715
        %v4768 = vunpack.c.l.b16 %v4716
        %v4769 = vunpack.c.h.b16 %v4716
        %v4770 = vunpack.c.l.b16 %v4717
        %v4771 = vunpack.c.h.b16 %v4717
        %v4772 = vunpack.c.l.b16 %v4718
        %v4773 = vunpack.c.h.b16 %v4718
        %v4774 = vunpack.c.l.b16 %v4719
        %v4775 = vunpack.c.h.b16 %v4719
        %v4776 = vunpack.c.l.b16 %v4720
        %v4777 = vunpack.c.h.b16 %v4720
        %v4778 = vunpack.c.l.b16 %v4721
        %v4779 = vunpack.c.h.b16 %v4721
        %v4780 = vunpack.c.l.b16 %v4722
        %v4781 = vunpack.c.h.b16 %v4722
        %v4782 = vunpack.c.l.b16 %v4723
        %v4783 = vunpack.c.h.b16 %v4723
        %v4784 = vpack.c.b16 %v4754, %v4752
        %v4785 = vpack.c.b16 %v4755, %v4753
        %v4786 = vpack.c.b16 %v4758, %v4756
        %v4787 = vpack.c.b16 %v4759, %v4757
        %v4788 = vpack.c.b16 %v4762, %v4760
        %v4789 = vpack.c.b16 %v4763, %v4761
        %v4790 = vpack.c.b16 %v4766, %v4764
        %v4791 = vpack.c.b16 %v4767, %v4765
        %v4792 = vpack.c.b16 %v4770, %v4768
        %v4793 = vpack.c.b16 %v4771, %v4769
        %v4794 = vpack.c.b16 %v4774, %v4772
        %v4795 = vpack.c.b16 %v4775, %v4773
        %v4796 = vpack.c.b16 %v4778, %v4776
        %v4797 = vpack.c.b16 %v4779, %v4777
        %v4798 = vpack.c.b16 %v4782, %v4780
        %v4799 = vpack.c.b16 %v4783, %v4781
        %4816 = vmatprep.subr.bf16.mxu0 %v4785
        %4817 = vmatpush1.bf16.msra.mxu0 %v4784
        %4818 = vmatprep.subr.bf16.mxu0 %v4787
        %4819 = vmatpush1.bf16.msra.mxu0 %v4786
        %4820 = vmatprep.subr.bf16.mxu0 %v4789
        %4821 = vmatpush1.bf16.msra.mxu0 %v4788
        %4822 = vmatprep.subr.bf16.mxu0 %v4791
        %4823 = vmatpush1.bf16.msra.mxu0 %v4790
        %4824 = vmatprep.subr.bf16.mxu0 %v4793
        %4825 = vmatpush1.bf16.msra.mxu0 %v4792
        %4826 = vmatprep.subr.bf16.mxu0 %v4795
        %4827 = vmatpush1.bf16.msra.mxu0 %v4794
        %4828 = vmatprep.subr.bf16.mxu0 %v4797
        %4829 = vmatpush1.bf16.msra.mxu0 %v4796
        %4830 = vmatprep.subr.bf16.mxu0 %v4799
        %4831 = vmatpush1.bf16.msra.mxu0 %v4798
        %4832 = vmatprep.subr.bf16.mxu0 0
        %4833 = vmatpush1.bf16.msra.mxu0 0
        %4834 = vmatprep.subr.bf16.mxu0 0
        %4835 = vmatpush1.bf16.msra.mxu0 0
        %4836 = vmatprep.subr.bf16.mxu0 0
        %4837 = vmatpush1.bf16.msra.mxu0 0
        %4838 = vmatprep.subr.bf16.mxu0 0
        %4839 = vmatpush1.bf16.msra.mxu0 0
        %4840 = vmatprep.subr.bf16.mxu0 0
        %4841 = vmatpush1.bf16.msra.mxu0 0
        %4842 = vmatprep.subr.bf16.mxu0 0
        %4843 = vmatpush1.bf16.msra.mxu0 0
        %4844 = vmatprep.subr.bf16.mxu0 0
        %4845 = vmatpush1.bf16.msra.mxu0 0
        %4846 = vmatprep.subr.bf16.mxu0 0
        %4847 = vmatpush1.bf16.msra.mxu0 0
        %4848 = vmatprep.mubr.bf16.mxu0 0
        %4849 = vmatmul.mubr.bf16.gmra.mrb[0].mxu0 %v4700
        %v4850 = vpop.f32.mrb[0].mxu0
        %v4851 = vadd.f32 %v4729, %v4850
        %v4852 = vpop.f32.mrb[0].mxu0
        %v4853 = vadd.f32 %v4733, %v4852
        %v4854 = vpop.f32.mrb[0].mxu0
        %v4855 = vadd.f32 %v4729, %v4854
        %v4856 = vpop.f32.mrb[0].mxu0
        %v4857 = vadd.f32 %v4733, %v4856
        %4858 = vmatprep.mubr.bf16.mxu0 0
        %4859 = vmatmul.mubr.bf16.gmra.mrb[0].mxu0 %v4701
        %v4860 = vpop.f32.mrb[0].mxu0
        %v4861 = vadd.f32 %v4729, %v4860
        %v4862 = vpop.f32.mrb[0].mxu0
        %v4863 = vadd.f32 %v4733, %v4862
        %v4864 = vpop.f32.mrb[0].mxu0
        %v4865 = vadd.f32 %v4729, %v4864
        %v4866 = vpop.f32.mrb[0].mxu0
        %v4867 = vadd.f32 %v4733, %v4866
        %4868 = vmatprep.mubr.bf16.mxu0 0
        %4869 = vmatmul.mubr.bf16.gmra.mrb[0].mxu0 %v4702
        %v4870 = vpop.f32.mrb[0].mxu0
        %v4871 = vadd.f32 %v4729, %v4870
        %v4872 = vpop.f32.mrb[0].mxu0
        %v4873 = vadd.f32 %v4733, %v4872
        %v4874 = vpop.f32.mrb[0].mxu0
        %v4875 = vadd.f32 %v4729, %v4874
        %v4876 = vpop.f32.mrb[0].mxu0
        %v4877 = vadd.f32 %v4733, %v4876
        %4878 = vmatprep.mubr.bf16.mxu0 0
        %4879 = vmatmul.mubr.bf16.gmra.mrb[0].mxu0 %v4703
        %v4880 = vpop.f32.mrb[0].mxu0
        %v4881 = vadd.f32 %v4729, %v4880
        %v4882 = vpop.f32.mrb[0].mxu0
        %v4883 = vadd.f32 %v4733, %v4882
        %v4884 = vpop.f32.mrb[0].mxu0
        %v4885 = vadd.f32 %v4729, %v4884
        %v4886 = vpop.f32.mrb[0].mxu0
        %v4887 = vadd.f32 %v4733, %v4886
        %4888 = vmatprep.mubr.bf16.mxu0 0
        %4889 = vmatmul.mubr.bf16.gmra.mrb[0].mxu0 %v4704
        %v4890 = vpop.f32.mrb[0].mxu0
        %v4891 = vadd.f32 %v4729, %v4890
        %v4892 = vpop.f32.mrb[0].mxu0
        %v4893 = vadd.f32 %v4733, %v4892
        %v4894 = vpop.f32.mrb[0].mxu0
        %v4895 = vadd.f32 %v4729, %v4894
        %v4896 = vpop.f32.mrb[0].mxu0
        %v4897 = vadd.f32 %v4733, %v4896
        %4898 = vmatprep.mubr.bf16.mxu0 0
        %4899 = vmatmul.mubr.bf16.gmra.mrb[0].mxu0 %v4705
        %v4900 = vpop.f32.mrb[0].mxu0
        %v4901 = vadd.f32 %v4729, %v4900
        %v4902 = vpop.f32.mrb[0].mxu0
        %v4903 = vadd.f32 %v4733, %v4902
        %v4904 = vpop.f32.mrb[0].mxu0
        %v4905 = vadd.f32 %v4729, %v4904
        %v4906 = vpop.f32.mrb[0].mxu0
        %v4907 = vadd.f32 %v4733, %v4906
        %4908 = vmatprep.mubr.bf16.mxu0 0
        %4909 = vmatmul.mubr.bf16.gmra.mrb[0].mxu0 %v4706
        %v4910 = vpop.f32.mrb[0].mxu0
        %v4911 = vadd.f32 %v4729, %v4910
        %v4912 = vpop.f32.mrb[0].mxu0
        %v4913 = vadd.f32 %v4733, %v4912
        %v4914 = vpop.f32.mrb[0].mxu0
        %v4915 = vadd.f32 %v4729, %v4914
        %v4916 = vpop.f32.mrb[0].mxu0
        %v4917 = vadd.f32 %v4733, %v4916
        %4918 = vmatprep.mubr.bf16.mxu0 0
        %4919 = vmatmul.mubr.bf16.gmra.mrb[0].mxu0 %v4707
        %v4920 = vpop.f32.mrb[0].mxu0
        %v4921 = vadd.f32 %v4729, %v4920
        %v4922 = vpop.f32.mrb[0].mxu0
        %v4923 = vadd.f32 %v4733, %v4922
        %v4924 = vpop.f32.mrb[0].mxu0
        %v4925 = vadd.f32 %v4729, %v4924
        %v4926 = vpop.f32.mrb[0].mxu0
        %v4927 = vadd.f32 %v4733, %v4926
        %4928 = vdwg.mxu0
        %v4929 = vmul.f32 %v4851, 0.5
        %v4930 = vmul.f32 %v4853, 0.5
        %v4931 = vmul.f32 %v4855, 0.5
        %v4932 = vmul.f32 %v4857, 0.5
        %v4933 = vmul.f32 %v4861, 0.5
        %v4934 = vmul.f32 %v4863, 0.5
        %v4935 = vmul.f32 %v4865, 0.5
        %v4936 = vmul.f32 %v4867, 0.5
        %v4937 = vmul.f32 %v4871, 0.5
        %v4938 = vmul.f32 %v4873, 0.5
        %v4939 = vmul.f32 %v4875, 0.5
        %v4940 = vmul.f32 %v4877, 0.5
        %v4941 = vmul.f32 %v4881, 0.5
        %v4942 = vmul.f32 %v4883, 0.5
        %v4943 = vmul.f32 %v4885, 0.5
        %v4944 = vmul.f32 %v4887, 0.5
        %v4945 = vmul.f32 %v4891, 0.5
        %v4946 = vmul.f32 %v4893, 0.5
        %v4947 = vmul.f32 %v4895, 0.5
        %v4948 = vmul.f32 %v4897, 0.5
        %v4949 = vmul.f32 %v4901, 0.5
        %v4950 = vmul.f32 %v4903, 0.5
        %v4951 = vmul.f32 %v4905, 0.5
        %v4952 = vmul.f32 %v4907, 0.5
        %v4953 = vmul.f32 %v4911, 0.5
        %v4954 = vmul.f32 %v4913, 0.5
        %v4955 = vmul.f32 %v4915, 0.5
        %v4956 = vmul.f32 %v4917, 0.5
        %v4957 = vmul.f32 %v4921, 0.5
        %v4958 = vmul.f32 %v4923, 0.5
        %v4959 = vmul.f32 %v4925, 0.5
        %v4960 = vmul.f32 %v4927, 0.5
        %v4961 = vmul.f32 %v4851, 0.70710677
        %v4962 = vmul.f32 %v4853, 0.70710677
        %v4963 = vmul.f32 %v4855, 0.70710677
        %v4964 = vmul.f32 %v4857, 0.70710677
        %v4965 = vmul.f32 %v4861, 0.70710677
        %v4966 = vmul.f32 %v4863, 0.70710677
        %v4967 = vmul.f32 %v4865, 0.70710677
        %v4968 = vmul.f32 %v4867, 0.70710677
        %v4969 = vmul.f32 %v4871, 0.70710677
        %v4970 = vmul.f32 %v4873, 0.70710677
        %v4971 = vmul.f32 %v4875, 0.70710677
        %v4972 = vmul.f32 %v4877, 0.70710677
        %v4973 = vmul.f32 %v4881, 0.70710677
        %v4974 = vmul.f32 %v4883, 0.70710677
        %v4975 = vmul.f32 %v4885, 0.70710677
        %v4976 = vmul.f32 %v4887, 0.70710677
        %v4977 = vmul.f32 %v4891, 0.70710677
        %v4978 = vmul.f32 %v4893, 0.70710677
        %v4979 = vmul.f32 %v4895, 0.70710677
        %v4980 = vmul.f32 %v4897, 0.70710677
        %v4981 = vmul.f32 %v4901, 0.70710677
        %v4982 = vmul.f32 %v4903, 0.70710677
        %v4983 = vmul.f32 %v4905, 0.70710677
        %v4984 = vmul.f32 %v4907, 0.70710677
        %v4985 = vmul.f32 %v4911, 0.70710677
        %v4986 = vmul.f32 %v4913, 0.70710677
        %v4987 = vmul.f32 %v4915, 0.70710677
        %v4988 = vmul.f32 %v4917, 0.70710677
        %v4989 = vmul.f32 %v4921, 0.70710677
        %v4990 = vmul.f32 %v4923, 0.70710677
        %v4991 = vmul.f32 %v4925, 0.70710677
        %v4992 = vmul.f32 %v4927, 0.70710677
        %vm4993 = vcmp.ge.f32.partialorder %v4961, 0.0
        %vm4994 = vcmp.ge.f32.partialorder %v4962, 0.0
        %vm4995 = vcmp.ge.f32.partialorder %v4963, 0.0
        %vm4996 = vcmp.ge.f32.partialorder %v4964, 0.0
        %vm4997 = vcmp.ge.f32.partialorder %v4965, 0.0
        %vm4998 = vcmp.ge.f32.partialorder %v4966, 0.0
        %vm4999 = vcmp.ge.f32.partialorder %v4967, 0.0
        %vm5000 = vcmp.ge.f32.partialorder %v4968, 0.0
        %vm5001 = vcmp.ge.f32.partialorder %v4969, 0.0
        %vm5002 = vcmp.ge.f32.partialorder %v4970, 0.0
        %vm5003 = vcmp.ge.f32.partialorder %v4971, 0.0
        %vm5004 = vcmp.ge.f32.partialorder %v4972, 0.0
        %vm5005 = vcmp.ge.f32.partialorder %v4973, 0.0
        %vm5006 = vcmp.ge.f32.partialorder %v4974, 0.0
        %vm5007 = vcmp.ge.f32.partialorder %v4975, 0.0
        %vm5008 = vcmp.ge.f32.partialorder %v4976, 0.0
        %vm5009 = vcmp.ge.f32.partialorder %v4977, 0.0
        %vm5010 = vcmp.ge.f32.partialorder %v4978, 0.0
        %vm5011 = vcmp.ge.f32.partialorder %v4979, 0.0
        %vm5012 = vcmp.ge.f32.partialorder %v4980, 0.0
        %vm5013 = vcmp.ge.f32.partialorder %v4981, 0.0
        %vm5014 = vcmp.ge.f32.partialorder %v4982, 0.0
        %vm5015 = vcmp.ge.f32.partialorder %v4983, 0.0
        %vm5016 = vcmp.ge.f32.partialorder %v4984, 0.0
        %vm5017 = vcmp.ge.f32.partialorder %v4985, 0.0
        %vm5018 = vcmp.ge.f32.partialorder %v4986, 0.0
        %vm5019 = vcmp.ge.f32.partialorder %v4987, 0.0
        %vm5020 = vcmp.ge.f32.partialorder %v4988, 0.0
        %vm5021 = vcmp.ge.f32.partialorder %v4989, 0.0
        %vm5022 = vcmp.ge.f32.partialorder %v4990, 0.0
        %vm5023 = vcmp.ge.f32.partialorder %v4991, 0.0
        %vm5024 = vcmp.ge.f32.partialorder %v4992, 0.0
        %v5025 = vsel %vm4993, 1.0, -1.0
        %v5026 = vsel %vm4994, 1.0, -1.0
        %v5027 = vsel %vm4995, 1.0, -1.0
        %v5028 = vsel %vm4996, 1.0, -1.0
        %v5029 = vsel %vm4997, 1.0, -1.0
        %v5030 = vsel %vm4998, 1.0, -1.0
        %v5031 = vsel %vm4999, 1.0, -1.0
        %v5032 = vsel %vm5000, 1.0, -1.0
        %v5033 = vsel %vm5001, 1.0, -1.0
        %v5034 = vsel %vm5002, 1.0, -1.0
        %v5035 = vsel %vm5003, 1.0, -1.0
        %v5036 = vsel %vm5004, 1.0, -1.0
        %v5037 = vsel %vm5005, 1.0, -1.0
        %v5038 = vsel %vm5006, 1.0, -1.0
        %v5039 = vsel %vm5007, 1.0, -1.0
        %v5040 = vsel %vm5008, 1.0, -1.0
        %v5041 = vsel %vm5009, 1.0, -1.0
        %v5042 = vsel %vm5010, 1.0, -1.0
        %v5043 = vsel %vm5011, 1.0, -1.0
        %v5044 = vsel %vm5012, 1.0, -1.0
        %v5045 = vsel %vm5013, 1.0, -1.0
        %v5046 = vsel %vm5014, 1.0, -1.0
        %v5047 = vsel %vm5015, 1.0, -1.0
        %v5048 = vsel %vm5016, 1.0, -1.0
        %v5049 = vsel %vm5017, 1.0, -1.0
        %v5050 = vsel %vm5018, 1.0, -1.0
        %v5051 = vsel %vm5019, 1.0, -1.0
        %v5052 = vsel %vm5020, 1.0, -1.0
        %v5053 = vsel %vm5021, 1.0, -1.0
        %v5054 = vsel %vm5022, 1.0, -1.0
        %v5055 = vsel %vm5023, 1.0, -1.0
        %v5056 = vsel %vm5024, 1.0, -1.0
        %v5057 = vand.u32 2147483647, %v4961
        %v5058 = vand.u32 2147483647, %v4962
        %v5059 = vand.u32 2147483647, %v4963
        %v5060 = vand.u32 2147483647, %v4964
        %v5061 = vand.u32 2147483647, %v4965
        %v5062 = vand.u32 2147483647, %v4966
        %v5063 = vand.u32 2147483647, %v4967
        %v5064 = vand.u32 2147483647, %v4968
        %v5065 = vand.u32 2147483647, %v4969
        %v5066 = vand.u32 2147483647, %v4970
        %v5067 = vand.u32 2147483647, %v4971
        %v5068 = vand.u32 2147483647, %v4972
        %v5069 = vand.u32 2147483647, %v4973
        %v5070 = vand.u32 2147483647, %v4974
        %v5071 = vand.u32 2147483647, %v4975
        %v5072 = vand.u32 2147483647, %v4976
        %v5073 = vand.u32 2147483647, %v4977
        %v5074 = vand.u32 2147483647, %v4978
        %v5075 = vand.u32 2147483647, %v4979
        %v5076 = vand.u32 2147483647, %v4980
        %v5077 = vand.u32 2147483647, %v4981
        %v5078 = vand.u32 2147483647, %v4982
        %v5079 = vand.u32 2147483647, %v4983
        %v5080 = vand.u32 2147483647, %v4984
        %v5081 = vand.u32 2147483647, %v4985
        %v5082 = vand.u32 2147483647, %v4986
        %v5083 = vand.u32 2147483647, %v4987
        %v5084 = vand.u32 2147483647, %v4988
        %v5085 = vand.u32 2147483647, %v4989
        %v5086 = vand.u32 2147483647, %v4990
        %v5087 = vand.u32 2147483647, %v4991
        %v5088 = vand.u32 2147483647, %v4992
        %v5089 = vmul.f32 %v5057, 0.3275911
        %v5090 = vmul.f32 %v5058, 0.3275911
        %v5091 = vmul.f32 %v5059, 0.3275911
        %v5092 = vmul.f32 %v5060, 0.3275911
        %v5093 = vmul.f32 %v5061, 0.3275911
        %v5094 = vmul.f32 %v5062, 0.3275911
        %v5095 = vmul.f32 %v5063, 0.3275911
        %v5096 = vmul.f32 %v5064, 0.3275911
        %v5097 = vmul.f32 %v5065, 0.3275911
        %v5098 = vmul.f32 %v5066, 0.3275911
        %v5099 = vmul.f32 %v5067, 0.3275911
        %v5100 = vmul.f32 %v5068, 0.3275911
        %v5101 = vmul.f32 %v5069, 0.3275911
        %v5102 = vmul.f32 %v5070, 0.3275911
        %v5103 = vmul.f32 %v5071, 0.3275911
        %v5104 = vmul.f32 %v5072, 0.3275911
        %v5105 = vmul.f32 %v5073, 0.3275911
        %v5106 = vmul.f32 %v5074, 0.3275911
        %v5107 = vmul.f32 %v5075, 0.3275911
        %v5108 = vmul.f32 %v5076, 0.3275911
        %v5109 = vmul.f32 %v5077, 0.3275911
        %v5110 = vmul.f32 %v5078, 0.3275911
        %v5111 = vmul.f32 %v5079, 0.3275911
        %v5112 = vmul.f32 %v5080, 0.3275911
        %v5113 = vmul.f32 %v5081, 0.3275911
        %v5114 = vmul.f32 %v5082, 0.3275911
        %v5115 = vmul.f32 %v5083, 0.3275911
        %v5116 = vmul.f32 %v5084, 0.3275911
        %v5117 = vmul.f32 %v5085, 0.3275911
        %v5118 = vmul.f32 %v5086, 0.3275911
        %v5119 = vmul.f32 %v5087, 0.3275911
        %v5120 = vmul.f32 %v5088, 0.3275911
        %v5121 = vadd.f32 %v5089, 1.0
        %v5122 = vadd.f32 %v5090, 1.0
        %v5123 = vadd.f32 %v5091, 1.0
        %v5124 = vadd.f32 %v5092, 1.0
        %v5125 = vadd.f32 %v5093, 1.0
        %v5126 = vadd.f32 %v5094, 1.0
        %v5127 = vadd.f32 %v5095, 1.0
        %v5128 = vadd.f32 %v5096, 1.0
        %v5129 = vadd.f32 %v5097, 1.0
        %v5130 = vadd.f32 %v5098, 1.0
        %v5131 = vadd.f32 %v5099, 1.0
        %v5132 = vadd.f32 %v5100, 1.0
        %v5133 = vadd.f32 %v5101, 1.0
        %v5134 = vadd.f32 %v5102, 1.0
        %v5135 = vadd.f32 %v5103, 1.0
        %v5136 = vadd.f32 %v5104, 1.0
        %v5137 = vadd.f32 %v5105, 1.0
        %v5138 = vadd.f32 %v5106, 1.0
        %v5139 = vadd.f32 %v5107, 1.0
        %v5140 = vadd.f32 %v5108, 1.0
        %v5141 = vadd.f32 %v5109, 1.0
        %v5142 = vadd.f32 %v5110, 1.0
        %v5143 = vadd.f32 %v5111, 1.0
        %v5144 = vadd.f32 %v5112, 1.0
        %v5145 = vadd.f32 %v5113, 1.0
        %v5146 = vadd.f32 %v5114, 1.0
        %v5147 = vadd.f32 %v5115, 1.0
        %v5148 = vadd.f32 %v5116, 1.0
        %v5149 = vadd.f32 %v5117, 1.0
        %v5150 = vadd.f32 %v5118, 1.0
        %v5151 = vadd.f32 %v5119, 1.0
        %v5152 = vadd.f32 %v5120, 1.0
        %v5153 = vrcp.pop %v5121
        %v5154 = vrcp.pop %v5122
        %v5155 = vrcp.pop %v5123
        %v5156 = vrcp.pop %v5124
        %v5157 = vrcp.pop %v5125
        %v5158 = vrcp.pop %v5126
        %v5159 = vrcp.pop %v5127
        %v5160 = vrcp.pop %v5128
        %v5161 = vrcp.pop %v5129
        %v5162 = vrcp.pop %v5130
        %v5163 = vrcp.pop %v5131
        %v5164 = vrcp.pop %v5132
        %v5165 = vrcp.pop %v5133
        %v5166 = vrcp.pop %v5134
        %v5167 = vrcp.pop %v5135
        %v5168 = vrcp.pop %v5136
        %v5169 = vrcp.pop %v5137
        %v5170 = vrcp.pop %v5138
        %v5171 = vrcp.pop %v5139
        %v5172 = vrcp.pop %v5140
        %v5173 = vrcp.pop %v5141
        %v5174 = vrcp.pop %v5142
        %v5175 = vrcp.pop %v5143
        %v5176 = vrcp.pop %v5144
        %v5177 = vrcp.pop %v5145
        %v5178 = vrcp.pop %v5146
        %v5179 = vrcp.pop %v5147
        %v5180 = vrcp.pop %v5148
        %v5181 = vrcp.pop %v5149
        %v5182 = vrcp.pop %v5150
        %v5183 = vrcp.pop %v5151
        %v5184 = vrcp.pop %v5152
        %v5185 = vmul.f32 %v5153, 1.0614054
        %v5186 = vmul.f32 %v5154, 1.0614054
        %v5187 = vmul.f32 %v5155, 1.0614054
        %v5188 = vmul.f32 %v5156, 1.0614054
        %v5189 = vmul.f32 %v5157, 1.0614054
        %v5190 = vmul.f32 %v5158, 1.0614054
        %v5191 = vmul.f32 %v5159, 1.0614054
        %v5192 = vmul.f32 %v5160, 1.0614054
        %v5193 = vmul.f32 %v5161, 1.0614054
        %v5194 = vmul.f32 %v5162, 1.0614054
        %v5195 = vmul.f32 %v5163, 1.0614054
        %v5196 = vmul.f32 %v5164, 1.0614054
        %v5197 = vmul.f32 %v5165, 1.0614054
        %v5198 = vmul.f32 %v5166, 1.0614054
        %v5199 = vmul.f32 %v5167, 1.0614054
        %v5200 = vmul.f32 %v5168, 1.0614054
        %v5201 = vmul.f32 %v5169, 1.0614054
        %v5202 = vmul.f32 %v5170, 1.0614054
        %v5203 = vmul.f32 %v5171, 1.0614054
        %v5204 = vmul.f32 %v5172, 1.0614054
        %v5205 = vmul.f32 %v5173, 1.0614054
        %v5206 = vmul.f32 %v5174, 1.0614054
        %v5207 = vmul.f32 %v5175, 1.0614054
        %v5208 = vmul.f32 %v5176, 1.0614054
        %v5209 = vmul.f32 %v5177, 1.0614054
        %v5210 = vmul.f32 %v5178, 1.0614054
        %v5211 = vmul.f32 %v5179, 1.0614054
        %v5212 = vmul.f32 %v5180, 1.0614054
        %v5213 = vmul.f32 %v5181, 1.0614054
        %v5214 = vmul.f32 %v5182, 1.0614054
        %v5215 = vmul.f32 %v5183, 1.0614054
        %v5216 = vmul.f32 %v5184, 1.0614054
        %v5217 = vadd.f32 %v5185, -1.4531521
        %v5218 = vadd.f32 %v5186, -1.4531521
        %v5219 = vadd.f32 %v5187, -1.4531521
        %v5220 = vadd.f32 %v5188, -1.4531521
        %v5221 = vadd.f32 %v5189, -1.4531521
        %v5222 = vadd.f32 %v5190, -1.4531521
        %v5223 = vadd.f32 %v5191, -1.4531521
        %v5224 = vadd.f32 %v5192, -1.4531521
        %v5225 = vadd.f32 %v5193, -1.4531521
        %v5226 = vadd.f32 %v5194, -1.4531521
        %v5227 = vadd.f32 %v5195, -1.4531521
        %v5228 = vadd.f32 %v5196, -1.4531521
        %v5229 = vadd.f32 %v5197, -1.4531521
        %v5230 = vadd.f32 %v5198, -1.4531521
        %v5231 = vadd.f32 %v5199, -1.4531521
        %v5232 = vadd.f32 %v5200, -1.4531521
        %v5233 = vadd.f32 %v5201, -1.4531521
        %v5234 = vadd.f32 %v5202, -1.4531521
        %v5235 = vadd.f32 %v5203, -1.4531521
        %v5236 = vadd.f32 %v5204, -1.4531521
        %v5237 = vadd.f32 %v5205, -1.4531521
        %v5238 = vadd.f32 %v5206, -1.4531521
        %v5239 = vadd.f32 %v5207, -1.4531521
        %v5240 = vadd.f32 %v5208, -1.4531521
        %v5241 = vadd.f32 %v5209, -1.4531521
        %v5242 = vadd.f32 %v5210, -1.4531521
        %v5243 = vadd.f32 %v5211, -1.4531521
        %v5244 = vadd.f32 %v5212, -1.4531521
        %v5245 = vadd.f32 %v5213, -1.4531521
        %v5246 = vadd.f32 %v5214, -1.4531521
        %v5247 = vadd.f32 %v5215, -1.4531521
        %v5248 = vadd.f32 %v5216, -1.4531521
        %v5249 = vmul.f32 %v5217, %v5153
        %v5250 = vmul.f32 %v5218, %v5154
        %v5251 = vmul.f32 %v5219, %v5155
        %v5252 = vmul.f32 %v5220, %v5156
        %v5253 = vmul.f32 %v5221, %v5157
        %v5254 = vmul.f32 %v5222, %v5158
        %v5255 = vmul.f32 %v5223, %v5159
        %v5256 = vmul.f32 %v5224, %v5160
        %v5257 = vmul.f32 %v5225, %v5161
        %v5258 = vmul.f32 %v5226, %v5162
        %v5259 = vmul.f32 %v5227, %v5163
        %v5260 = vmul.f32 %v5228, %v5164
        %v5261 = vmul.f32 %v5229, %v5165
        %v5262 = vmul.f32 %v5230, %v5166
        %v5263 = vmul.f32 %v5231, %v5167
        %v5264 = vmul.f32 %v5232, %v5168
        %v5265 = vmul.f32 %v5233, %v5169
        %v5266 = vmul.f32 %v5234, %v5170
        %v5267 = vmul.f32 %v5235, %v5171
        %v5268 = vmul.f32 %v5236, %v5172
        %v5269 = vmul.f32 %v5237, %v5173
        %v5270 = vmul.f32 %v5238, %v5174
        %v5271 = vmul.f32 %v5239, %v5175
        %v5272 = vmul.f32 %v5240, %v5176
        %v5273 = vmul.f32 %v5241, %v5177
        %v5274 = vmul.f32 %v5242, %v5178
        %v5275 = vmul.f32 %v5243, %v5179
        %v5276 = vmul.f32 %v5244, %v5180
        %v5277 = vmul.f32 %v5245, %v5181
        %v5278 = vmul.f32 %v5246, %v5182
        %v5279 = vmul.f32 %v5247, %v5183
        %v5280 = vmul.f32 %v5248, %v5184
        %v5281 = vadd.f32 %v5249, 1.4214138
        %v5282 = vadd.f32 %v5250, 1.4214138
        %v5283 = vadd.f32 %v5251, 1.4214138
        %v5284 = vadd.f32 %v5252, 1.4214138
        %v5285 = vadd.f32 %v5253, 1.4214138
        %v5286 = vadd.f32 %v5254, 1.4214138
        %v5287 = vadd.f32 %v5255, 1.4214138
        %v5288 = vadd.f32 %v5256, 1.4214138
        %v5289 = vadd.f32 %v5257, 1.4214138
        %v5290 = vadd.f32 %v5258, 1.4214138
        %v5291 = vadd.f32 %v5259, 1.4214138
        %v5292 = vadd.f32 %v5260, 1.4214138
        %v5293 = vadd.f32 %v5261, 1.4214138
        %v5294 = vadd.f32 %v5262, 1.4214138
        %v5295 = vadd.f32 %v5263, 1.4214138
        %v5296 = vadd.f32 %v5264, 1.4214138
        %v5297 = vadd.f32 %v5265, 1.4214138
        %v5298 = vadd.f32 %v5266, 1.4214138
        %v5299 = vadd.f32 %v5267, 1.4214138
        %v5300 = vadd.f32 %v5268, 1.4214138
        %v5301 = vadd.f32 %v5269, 1.4214138
        %v5302 = vadd.f32 %v5270, 1.4214138
        %v5303 = vadd.f32 %v5271, 1.4214138
        %v5304 = vadd.f32 %v5272, 1.4214138
        %v5305 = vadd.f32 %v5273, 1.4214138
        %v5306 = vadd.f32 %v5274, 1.4214138
        %v5307 = vadd.f32 %v5275, 1.4214138
        %v5308 = vadd.f32 %v5276, 1.4214138
        %v5309 = vadd.f32 %v5277, 1.4214138
        %v5310 = vadd.f32 %v5278, 1.4214138
        %v5311 = vadd.f32 %v5279, 1.4214138
        %v5312 = vadd.f32 %v5280, 1.4214138
        %v5313 = vmul.f32 %v5281, %v5153
        %v5314 = vmul.f32 %v5282, %v5154
        %v5315 = vmul.f32 %v5283, %v5155
        %v5316 = vmul.f32 %v5284, %v5156
        %v5317 = vmul.f32 %v5285, %v5157
        %v5318 = vmul.f32 %v5286, %v5158
        %v5319 = vmul.f32 %v5287, %v5159
        %v5320 = vmul.f32 %v5288, %v5160
        %v5321 = vmul.f32 %v5289, %v5161
        %v5322 = vmul.f32 %v5290, %v5162
        %v5323 = vmul.f32 %v5291, %v5163
        %v5324 = vmul.f32 %v5292, %v5164
        %v5325 = vmul.f32 %v5293, %v5165
        %v5326 = vmul.f32 %v5294, %v5166
        %v5327 = vmul.f32 %v5295, %v5167
        %v5328 = vmul.f32 %v5296, %v5168
        %v5329 = vmul.f32 %v5297, %v5169
        %v5330 = vmul.f32 %v5298, %v5170
        %v5331 = vmul.f32 %v5299, %v5171
        %v5332 = vmul.f32 %v5300, %v5172
        %v5333 = vmul.f32 %v5301, %v5173
        %v5334 = vmul.f32 %v5302, %v5174
        %v5335 = vmul.f32 %v5303, %v5175
        %v5336 = vmul.f32 %v5304, %v5176
        %v5337 = vmul.f32 %v5305, %v5177
        %v5338 = vmul.f32 %v5306, %v5178
        %v5339 = vmul.f32 %v5307, %v5179
        %v5340 = vmul.f32 %v5308, %v5180
        %v5341 = vmul.f32 %v5309, %v5181
        %v5342 = vmul.f32 %v5310, %v5182
        %v5343 = vmul.f32 %v5311, %v5183
        %v5344 = vmul.f32 %v5312, %v5184
        %v5345 = vadd.f32 %v5313, -0.28449672
        %v5346 = vadd.f32 %v5314, -0.28449672
        %v5347 = vadd.f32 %v5315, -0.28449672
        %v5348 = vadd.f32 %v5316, -0.28449672
        %v5349 = vadd.f32 %v5317, -0.28449672
        %v5350 = vadd.f32 %v5318, -0.28449672
        %v5351 = vadd.f32 %v5319, -0.28449672
        %v5352 = vadd.f32 %v5320, -0.28449672
        %v5353 = vadd.f32 %v5321, -0.28449672
        %v5354 = vadd.f32 %v5322, -0.28449672
        %v5355 = vadd.f32 %v5323, -0.28449672
        %v5356 = vadd.f32 %v5324, -0.28449672
        %v5357 = vadd.f32 %v5325, -0.28449672
        %v5358 = vadd.f32 %v5326, -0.28449672
        %v5359 = vadd.f32 %v5327, -0.28449672
        %v5360 = vadd.f32 %v5328, -0.28449672
        %v5361 = vadd.f32 %v5329, -0.28449672
        %v5362 = vadd.f32 %v5330, -0.28449672
        %v5363 = vadd.f32 %v5331, -0.28449672
        %v5364 = vadd.f32 %v5332, -0.28449672
        %v5365 = vadd.f32 %v5333, -0.28449672
        %v5366 = vadd.f32 %v5334, -0.28449672
        %v5367 = vadd.f32 %v5335, -0.28449672
        %v5368 = vadd.f32 %v5336, -0.28449672
        %v5369 = vadd.f32 %v5337, -0.28449672
        %v5370 = vadd.f32 %v5338, -0.28449672
        %v5371 = vadd.f32 %v5339, -0.28449672
        %v5372 = vadd.f32 %v5340, -0.28449672
        %v5373 = vadd.f32 %v5341, -0.28449672
        %v5374 = vadd.f32 %v5342, -0.28449672
        %v5375 = vadd.f32 %v5343, -0.28449672
        %v5376 = vadd.f32 %v5344, -0.28449672
        %v5377 = vmul.f32 %v5345, %v5153
        %v5378 = vmul.f32 %v5346, %v5154
        %v5379 = vmul.f32 %v5347, %v5155
        %v5380 = vmul.f32 %v5348, %v5156
        %v5381 = vmul.f32 %v5349, %v5157
        %v5382 = vmul.f32 %v5350, %v5158
        %v5383 = vmul.f32 %v5351, %v5159
        %v5384 = vmul.f32 %v5352, %v5160
        %v5385 = vmul.f32 %v5353, %v5161
        %v5386 = vmul.f32 %v5354, %v5162
        %v5387 = vmul.f32 %v5355, %v5163
        %v5388 = vmul.f32 %v5356, %v5164
        %v5389 = vmul.f32 %v5357, %v5165
        %v5390 = vmul.f32 %v5358, %v5166
        %v5391 = vmul.f32 %v5359, %v5167
        %v5392 = vmul.f32 %v5360, %v5168
        %v5393 = vmul.f32 %v5361, %v5169
        %v5394 = vmul.f32 %v5362, %v5170
        %v5395 = vmul.f32 %v5363, %v5171
        %v5396 = vmul.f32 %v5364, %v5172
        %v5397 = vmul.f32 %v5365, %v5173
        %v5398 = vmul.f32 %v5366, %v5174
        %v5399 = vmul.f32 %v5367, %v5175
        %v5400 = vmul.f32 %v5368, %v5176
        %v5401 = vmul.f32 %v5369, %v5177
        %v5402 = vmul.f32 %v5370, %v5178
        %v5403 = vmul.f32 %v5371, %v5179
        %v5404 = vmul.f32 %v5372, %v5180
        %v5405 = vmul.f32 %v5373, %v5181
        %v5406 = vmul.f32 %v5374, %v5182
        %v5407 = vmul.f32 %v5375, %v5183
        %v5408 = vmul.f32 %v5376, %v5184
        %v5409 = vadd.f32 %v5377, 0.2548296
        %v5410 = vadd.f32 %v5378, 0.2548296
        %v5411 = vadd.f32 %v5379, 0.2548296
        %v5412 = vadd.f32 %v5380, 0.2548296
        %v5413 = vadd.f32 %v5381, 0.2548296
        %v5414 = vadd.f32 %v5382, 0.2548296
        %v5415 = vadd.f32 %v5383, 0.2548296
        %v5416 = vadd.f32 %v5384, 0.2548296
        %v5417 = vadd.f32 %v5385, 0.2548296
        %v5418 = vadd.f32 %v5386, 0.2548296
        %v5419 = vadd.f32 %v5387, 0.2548296
        %v5420 = vadd.f32 %v5388, 0.2548296
        %v5421 = vadd.f32 %v5389, 0.2548296
        %v5422 = vadd.f32 %v5390, 0.2548296
        %v5423 = vadd.f32 %v5391, 0.2548296
        %v5424 = vadd.f32 %v5392, 0.2548296
        %v5425 = vadd.f32 %v5393, 0.2548296
        %v5426 = vadd.f32 %v5394, 0.2548296
        %v5427 = vadd.f32 %v5395, 0.2548296
        %v5428 = vadd.f32 %v5396, 0.2548296
        %v5429 = vadd.f32 %v5397, 0.2548296
        %v5430 = vadd.f32 %v5398, 0.2548296
        %v5431 = vadd.f32 %v5399, 0.2548296
        %v5432 = vadd.f32 %v5400, 0.2548296
        %v5433 = vadd.f32 %v5401, 0.2548296
        %v5434 = vadd.f32 %v5402, 0.2548296
        %v5435 = vadd.f32 %v5403, 0.2548296
        %v5436 = vadd.f32 %v5404, 0.2548296
        %v5437 = vadd.f32 %v5405, 0.2548296
        %v5438 = vadd.f32 %v5406, 0.2548296
        %v5439 = vadd.f32 %v5407, 0.2548296
        %v5440 = vadd.f32 %v5408, 0.2548296
        %v5441 = vmul.f32 %v5409, %v5153
        %v5442 = vmul.f32 %v5410, %v5154
        %v5443 = vmul.f32 %v5411, %v5155
        %v5444 = vmul.f32 %v5412, %v5156
        %v5445 = vmul.f32 %v5413, %v5157
        %v5446 = vmul.f32 %v5414, %v5158
        %v5447 = vmul.f32 %v5415, %v5159
        %v5448 = vmul.f32 %v5416, %v5160
        %v5449 = vmul.f32 %v5417, %v5161
        %v5450 = vmul.f32 %v5418, %v5162
        %v5451 = vmul.f32 %v5419, %v5163
        %v5452 = vmul.f32 %v5420, %v5164
        %v5453 = vmul.f32 %v5421, %v5165
        %v5454 = vmul.f32 %v5422, %v5166
        %v5455 = vmul.f32 %v5423, %v5167
        %v5456 = vmul.f32 %v5424, %v5168
        %v5457 = vmul.f32 %v5425, %v5169
        %v5458 = vmul.f32 %v5426, %v5170
        %v5459 = vmul.f32 %v5427, %v5171
        %v5460 = vmul.f32 %v5428, %v5172
        %v5461 = vmul.f32 %v5429, %v5173
        %v5462 = vmul.f32 %v5430, %v5174
        %v5463 = vmul.f32 %v5431, %v5175
        %v5464 = vmul.f32 %v5432, %v5176
        %v5465 = vmul.f32 %v5433, %v5177
        %v5466 = vmul.f32 %v5434, %v5178
        %v5467 = vmul.f32 %v5435, %v5179
        %v5468 = vmul.f32 %v5436, %v5180
        %v5469 = vmul.f32 %v5437, %v5181
        %v5470 = vmul.f32 %v5438, %v5182
        %v5471 = vmul.f32 %v5439, %v5183
        %v5472 = vmul.f32 %v5440, %v5184
        %v5473 = vsub.f32 0.0, %v5057
        %v5474 = vsub.f32 0.0, %v5058
        %v5475 = vsub.f32 0.0, %v5059
        %v5476 = vsub.f32 0.0, %v5060
        %v5477 = vsub.f32 0.0, %v5061
        %v5478 = vsub.f32 0.0, %v5062
        %v5479 = vsub.f32 0.0, %v5063
        %v5480 = vsub.f32 0.0, %v5064
        %v5481 = vsub.f32 0.0, %v5065
        %v5482 = vsub.f32 0.0, %v5066
        %v5483 = vsub.f32 0.0, %v5067
        %v5484 = vsub.f32 0.0, %v5068
        %v5485 = vsub.f32 0.0, %v5069
        %v5486 = vsub.f32 0.0, %v5070
        %v5487 = vsub.f32 0.0, %v5071
        %v5488 = vsub.f32 0.0, %v5072
        %v5489 = vsub.f32 0.0, %v5073
        %v5490 = vsub.f32 0.0, %v5074
        %v5491 = vsub.f32 0.0, %v5075
        %v5492 = vsub.f32 0.0, %v5076
        %v5493 = vsub.f32 0.0, %v5077
        %v5494 = vsub.f32 0.0, %v5078
        %v5495 = vsub.f32 0.0, %v5079
        %v5496 = vsub.f32 0.0, %v5080
        %v5497 = vsub.f32 0.0, %v5081
        %v5498 = vsub.f32 0.0, %v5082
        %v5499 = vsub.f32 0.0, %v5083
        %v5500 = vsub.f32 0.0, %v5084
        %v5501 = vsub.f32 0.0, %v5085
        %v5502 = vsub.f32 0.0, %v5086
        %v5503 = vsub.f32 0.0, %v5087
        %v5504 = vsub.f32 0.0, %v5088
        %v5505 = vmul.f32 %v5473, %v5057
        %v5506 = vmul.f32 %v5474, %v5058
        %v5507 = vmul.f32 %v5475, %v5059
        %v5508 = vmul.f32 %v5476, %v5060
        %v5509 = vmul.f32 %v5477, %v5061
        %v5510 = vmul.f32 %v5478, %v5062
        %v5511 = vmul.f32 %v5479, %v5063
        %v5512 = vmul.f32 %v5480, %v5064
        %v5513 = vmul.f32 %v5481, %v5065
        %v5514 = vmul.f32 %v5482, %v5066
        %v5515 = vmul.f32 %v5483, %v5067
        %v5516 = vmul.f32 %v5484, %v5068
        %v5517 = vmul.f32 %v5485, %v5069
        %v5518 = vmul.f32 %v5486, %v5070
        %v5519 = vmul.f32 %v5487, %v5071
        %v5520 = vmul.f32 %v5488, %v5072
        %v5521 = vmul.f32 %v5489, %v5073
        %v5522 = vmul.f32 %v5490, %v5074
        %v5523 = vmul.f32 %v5491, %v5075
        %v5524 = vmul.f32 %v5492, %v5076
        %v5525 = vmul.f32 %v5493, %v5077
        %v5526 = vmul.f32 %v5494, %v5078
        %v5527 = vmul.f32 %v5495, %v5079
        %v5528 = vmul.f32 %v5496, %v5080
        %v5529 = vmul.f32 %v5497, %v5081
        %v5530 = vmul.f32 %v5498, %v5082
        %v5531 = vmul.f32 %v5499, %v5083
        %v5532 = vmul.f32 %v5500, %v5084
        %v5533 = vmul.f32 %v5501, %v5085
        %v5534 = vmul.f32 %v5502, %v5086
        %v5535 = vmul.f32 %v5503, %v5087
        %v5536 = vmul.f32 %v5504, %v5088
        %v5537 = vmul.f32 %v5505, 1.442695
        %v5538 = vpow.pop %v5537
        %v5539 = vmul.f32 %v5506, 1.442695
        %v5540 = vpow.pop %v5539
        %v5541 = vmul.f32 %v5507, 1.442695
        %v5542 = vpow.pop %v5541
        %v5543 = vmul.f32 %v5508, 1.442695
        %v5544 = vpow.pop %v5543
        %v5545 = vmul.f32 %v5509, 1.442695
        %v5546 = vpow.pop %v5545
        %v5547 = vmul.f32 %v5510, 1.442695
        %v5548 = vpow.pop %v5547
        %v5549 = vmul.f32 %v5511, 1.442695
        %v5550 = vpow.pop %v5549
        %v5551 = vmul.f32 %v5512, 1.442695
        %v5552 = vpow.pop %v5551
        %v5553 = vmul.f32 %v5513, 1.442695
        %v5554 = vpow.pop %v5553
        %v5555 = vmul.f32 %v5514, 1.442695
        %v5556 = vpow.pop %v5555
        %v5557 = vmul.f32 %v5515, 1.442695
        %v5558 = vpow.pop %v5557
        %v5559 = vmul.f32 %v5516, 1.442695
        %v5560 = vpow.pop %v5559
        %v5561 = vmul.f32 %v5517, 1.442695
        %v5562 = vpow.pop %v5561
        %v5563 = vmul.f32 %v5518, 1.442695
        %v5564 = vpow.pop %v5563
        %v5565 = vmul.f32 %v5519, 1.442695
        %v5566 = vpow.pop %v5565
        %v5567 = vmul.f32 %v5520, 1.442695
        %v5568 = vpow.pop %v5567
        %v5569 = vmul.f32 %v5521, 1.442695
        %v5570 = vpow.pop %v5569
        %v5571 = vmul.f32 %v5522, 1.442695
        %v5572 = vpow.pop %v5571
        %v5573 = vmul.f32 %v5523, 1.442695
        %v5574 = vpow.pop %v5573
        %v5575 = vmul.f32 %v5524, 1.442695
        %v5576 = vpow.pop %v5575
        %v5577 = vmul.f32 %v5525, 1.442695
        %v5578 = vpow.pop %v5577
        %v5579 = vmul.f32 %v5526, 1.442695
        %v5580 = vpow.pop %v5579
        %v5581 = vmul.f32 %v5527, 1.442695
        %v5582 = vpow.pop %v5581
        %v5583 = vmul.f32 %v5528, 1.442695
        %v5584 = vpow.pop %v5583
        %v5585 = vmul.f32 %v5529, 1.442695
        %v5586 = vpow.pop %v5585
        %v5587 = vmul.f32 %v5530, 1.442695
        %v5588 = vpow.pop %v5587
        %v5589 = vmul.f32 %v5531, 1.442695
        %v5590 = vpow.pop %v5589
        %v5591 = vmul.f32 %v5532, 1.442695
        %v5592 = vpow.pop %v5591
        %v5593 = vmul.f32 %v5533, 1.442695
        %v5594 = vpow.pop %v5593
        %v5595 = vmul.f32 %v5534, 1.442695
        %v5596 = vpow.pop %v5595
        %v5597 = vmul.f32 %v5535, 1.442695
        %v5598 = vpow.pop %v5597
        %v5599 = vmul.f32 %v5536, 1.442695
        %v5600 = vpow.pop %v5599
        %v5601 = vmul.f32 %v5441, %v5538
        %v5602 = vmul.f32 %v5442, %v5540
        %v5603 = vmul.f32 %v5443, %v5542
        %v5604 = vmul.f32 %v5444, %v5544
        %v5605 = vmul.f32 %v5445, %v5546
        %v5606 = vmul.f32 %v5446, %v5548
        %v5607 = vmul.f32 %v5447, %v5550
        %v5608 = vmul.f32 %v5448, %v5552
        %v5609 = vmul.f32 %v5449, %v5554
        %v5610 = vmul.f32 %v5450, %v5556
        %v5611 = vmul.f32 %v5451, %v5558
        %v5612 = vmul.f32 %v5452, %v5560
        %v5613 = vmul.f32 %v5453, %v5562
        %v5614 = vmul.f32 %v5454, %v5564
        %v5615 = vmul.f32 %v5455, %v5566
        %v5616 = vmul.f32 %v5456, %v5568
        %v5617 = vmul.f32 %v5457, %v5570
        %v5618 = vmul.f32 %v5458, %v5572
        %v5619 = vmul.f32 %v5459, %v5574
        %v5620 = vmul.f32 %v5460, %v5576
        %v5621 = vmul.f32 %v5461, %v5578
        %v5622 = vmul.f32 %v5462, %v5580
        %v5623 = vmul.f32 %v5463, %v5582
        %v5624 = vmul.f32 %v5464, %v5584
        %v5625 = vmul.f32 %v5465, %v5586
        %v5626 = vmul.f32 %v5466, %v5588
        %v5627 = vmul.f32 %v5467, %v5590
        %v5628 = vmul.f32 %v5468, %v5592
        %v5629 = vmul.f32 %v5469, %v5594
        %v5630 = vmul.f32 %v5470, %v5596
        %v5631 = vmul.f32 %v5471, %v5598
        %v5632 = vmul.f32 %v5472, %v5600
        %v5633 = vsub.f32 1.0, %v5601
        %v5634 = vsub.f32 1.0, %v5602
        %v5635 = vsub.f32 1.0, %v5603
        %v5636 = vsub.f32 1.0, %v5604
        %v5637 = vsub.f32 1.0, %v5605
        %v5638 = vsub.f32 1.0, %v5606
        %v5639 = vsub.f32 1.0, %v5607
        %v5640 = vsub.f32 1.0, %v5608
        %v5641 = vsub.f32 1.0, %v5609
        %v5642 = vsub.f32 1.0, %v5610
        %v5643 = vsub.f32 1.0, %v5611
        %v5644 = vsub.f32 1.0, %v5612
        %v5645 = vsub.f32 1.0, %v5613
        %v5646 = vsub.f32 1.0, %v5614
        %v5647 = vsub.f32 1.0, %v5615
        %v5648 = vsub.f32 1.0, %v5616
        %v5649 = vsub.f32 1.0, %v5617
        %v5650 = vsub.f32 1.0, %v5618
        %v5651 = vsub.f32 1.0, %v5619
        %v5652 = vsub.f32 1.0, %v5620
        %v5653 = vsub.f32 1.0, %v5621
        %v5654 = vsub.f32 1.0, %v5622
        %v5655 = vsub.f32 1.0, %v5623
        %v5656 = vsub.f32 1.0, %v5624
        %v5657 = vsub.f32 1.0, %v5625
        %v5658 = vsub.f32 1.0, %v5626
        %v5659 = vsub.f32 1.0, %v5627
        %v5660 = vsub.f32 1.0, %v5628
        %v5661 = vsub.f32 1.0, %v5629
        %v5662 = vsub.f32 1.0, %v5630
        %v5663 = vsub.f32 1.0, %v5631
        %v5664 = vsub.f32 1.0, %v5632
        %v5665 = vmul.f32 %v5025, %v5633
        %v5666 = vmul.f32 %v5026, %v5634
        %v5667 = vmul.f32 %v5027, %v5635
        %v5668 = vmul.f32 %v5028, %v5636
        %v5669 = vmul.f32 %v5029, %v5637
        %v5670 = vmul.f32 %v5030, %v5638
        %v5671 = vmul.f32 %v5031, %v5639
        %v5672 = vmul.f32 %v5032, %v5640
        %v5673 = vmul.f32 %v5033, %v5641
        %v5674 = vmul.f32 %v5034, %v5642
        %v5675 = vmul.f32 %v5035, %v5643
        %v5676 = vmul.f32 %v5036, %v5644
        %v5677 = vmul.f32 %v5037, %v5645
        %v5678 = vmul.f32 %v5038, %v5646
        %v5679 = vmul.f32 %v5039, %v5647
        %v5680 = vmul.f32 %v5040, %v5648
        %v5681 = vmul.f32 %v5041, %v5649
        %v5682 = vmul.f32 %v5042, %v5650
        %v5683 = vmul.f32 %v5043, %v5651
        %v5684 = vmul.f32 %v5044, %v5652
        %v5685 = vmul.f32 %v5045, %v5653
        %v5686 = vmul.f32 %v5046, %v5654
        %v5687 = vmul.f32 %v5047, %v5655
        %v5688 = vmul.f32 %v5048, %v5656
        %v5689 = vmul.f32 %v5049, %v5657
        %v5690 = vmul.f32 %v5050, %v5658
        %v5691 = vmul.f32 %v5051, %v5659
        %v5692 = vmul.f32 %v5052, %v5660
        %v5693 = vmul.f32 %v5053, %v5661
        %v5694 = vmul.f32 %v5054, %v5662
        %v5695 = vmul.f32 %v5055, %v5663
        %v5696 = vmul.f32 %v5056, %v5664
        %v5697 = vadd.f32 %v5665, 1.0
        %v5698 = vadd.f32 %v5666, 1.0
        %v5699 = vadd.f32 %v5667, 1.0
        %v5700 = vadd.f32 %v5668, 1.0
        %v5701 = vadd.f32 %v5669, 1.0
        %v5702 = vadd.f32 %v5670, 1.0
        %v5703 = vadd.f32 %v5671, 1.0
        %v5704 = vadd.f32 %v5672, 1.0
        %v5705 = vadd.f32 %v5673, 1.0
        %v5706 = vadd.f32 %v5674, 1.0
        %v5707 = vadd.f32 %v5675, 1.0
        %v5708 = vadd.f32 %v5676, 1.0
        %v5709 = vadd.f32 %v5677, 1.0
        %v5710 = vadd.f32 %v5678, 1.0
        %v5711 = vadd.f32 %v5679, 1.0
        %v5712 = vadd.f32 %v5680, 1.0
        %v5713 = vadd.f32 %v5681, 1.0
        %v5714 = vadd.f32 %v5682, 1.0
        %v5715 = vadd.f32 %v5683, 1.0
        %v5716 = vadd.f32 %v5684, 1.0
        %v5717 = vadd.f32 %v5685, 1.0
        %v5718 = vadd.f32 %v5686, 1.0
        %v5719 = vadd.f32 %v5687, 1.0
        %v5720 = vadd.f32 %v5688, 1.0
        %v5721 = vadd.f32 %v5689, 1.0
        %v5722 = vadd.f32 %v5690, 1.0
        %v5723 = vadd.f32 %v5691, 1.0
        %v5724 = vadd.f32 %v5692, 1.0
        %v5725 = vadd.f32 %v5693, 1.0
        %v5726 = vadd.f32 %v5694, 1.0
        %v5727 = vadd.f32 %v5695, 1.0
        %v5728 = vadd.f32 %v5696, 1.0
        %v5729 = vmul.f32 %v4929, %v5697
        %v5730 = vmul.f32 %v4930, %v5698
        %v5731 = vmul.f32 %v4931, %v5699
        %v5732 = vmul.f32 %v4932, %v5700
        %v5733 = vmul.f32 %v4933, %v5701
        %v5734 = vmul.f32 %v4934, %v5702
        %v5735 = vmul.f32 %v4935, %v5703
        %v5736 = vmul.f32 %v4936, %v5704
        %v5737 = vmul.f32 %v4937, %v5705
        %v5738 = vmul.f32 %v4938, %v5706
        %v5739 = vmul.f32 %v4939, %v5707
        %v5740 = vmul.f32 %v4940, %v5708
        %v5741 = vmul.f32 %v4941, %v5709
        %v5742 = vmul.f32 %v4942, %v5710
        %v5743 = vmul.f32 %v4943, %v5711
        %v5744 = vmul.f32 %v4944, %v5712
        %v5745 = vmul.f32 %v4945, %v5713
        %v5746 = vmul.f32 %v4946, %v5714
        %v5747 = vmul.f32 %v4947, %v5715
        %v5748 = vmul.f32 %v4948, %v5716
        %v5749 = vmul.f32 %v4949, %v5717
        %v5750 = vmul.f32 %v4950, %v5718
        %v5751 = vmul.f32 %v4951, %v5719
        %v5752 = vmul.f32 %v4952, %v5720
        %v5753 = vmul.f32 %v4953, %v5721
        %v5754 = vmul.f32 %v4954, %v5722
        %v5755 = vmul.f32 %v4955, %v5723
        %v5756 = vmul.f32 %v4956, %v5724
        %v5757 = vmul.f32 %v4957, %v5725
        %v5758 = vmul.f32 %v4958, %v5726
        %v5759 = vmul.f32 %v4959, %v5727
        %v5760 = vmul.f32 %v4960, %v5728
        %v5761 = vpack.c.bf16 %v5731, %v5729
        %v5762 = vpack.c.bf16 %v5732, %v5730
        %v5763 = vpack.c.bf16 %v5735, %v5733
        %v5764 = vpack.c.bf16 %v5736, %v5734
        %v5765 = vpack.c.bf16 %v5739, %v5737
        %v5766 = vpack.c.bf16 %v5740, %v5738
        %v5767 = vpack.c.bf16 %v5743, %v5741
        %v5768 = vpack.c.bf16 %v5744, %v5742
        %v5769 = vpack.c.bf16 %v5747, %v5745
        %v5770 = vpack.c.bf16 %v5748, %v5746
        %v5771 = vpack.c.bf16 %v5751, %v5749
        %v5772 = vpack.c.bf16 %v5752, %v5750
        %v5773 = vpack.c.bf16 %v5755, %v5753
        %v5774 = vpack.c.bf16 %v5756, %v5754
        %v5775 = vpack.c.bf16 %v5759, %v5757
        %v5776 = vpack.c.bf16 %v5760, %v5758
        %v5777 = vld [vmem:[#allocation10] sm:$0xf]
        %v5778 = vld [vmem:[#allocation10 + $0x4] sm:$0xf]
        %v5779 = vld [vmem:[#allocation10 + $0x8] sm:$0xf]
        %v5780 = vld [vmem:[#allocation10 + $0xc] sm:$0xf]
        %v5781 = vld [vmem:[#allocation10 + $0x10] sm:$0xf]
        %v5782 = vld [vmem:[#allocation10 + $0x14] sm:$0xf]
        %v5783 = vld [vmem:[#allocation10 + $0x18] sm:$0xf]
        %v5784 = vld [vmem:[#allocation10 + $0x1c] sm:$0xf]
        %v5785 = vld [vmem:[#allocation10 + $0x20] sm:$0xf]
        %v5786 = vld [vmem:[#allocation10 + $0x24] sm:$0xf]
        %v5787 = vld [vmem:[#allocation10 + $0x28] sm:$0xf]
        %v5788 = vld [vmem:[#allocation10 + $0x2c] sm:$0xf]
        %v5789 = vld [vmem:[#allocation10 + $0x30] sm:$0xf]
        %v5790 = vld [vmem:[#allocation10 + $0x34] sm:$0xf]
        %v5791 = vld [vmem:[#allocation10 + $0x38] sm:$0xf]
        %v5792 = vld [vmem:[#allocation10 + $0x3c] sm:$0xf]
        %v5793 = vld [vmem:[#allocation10 + $0x40] sm:$0xf]
        %v5794 = vld [vmem:[#allocation10 + $0x44] sm:$0xf]
        %v5795 = vld [vmem:[#allocation10 + $0x48] sm:$0xf]
        %v5796 = vld [vmem:[#allocation10 + $0x4c] sm:$0xf]
        %v5797 = vld [vmem:[#allocation10 + $0x50] sm:$0xf]
        %v5798 = vld [vmem:[#allocation10 + $0x54] sm:$0xf]
        %v5799 = vld [vmem:[#allocation10 + $0x58] sm:$0xf]
        %v5800 = vld [vmem:[#allocation10 + $0x5c] sm:$0xf]
        %v5801 = vld [vmem:[#allocation10 + $0x60] sm:$0xf]
        %v5802 = vld [vmem:[#allocation10 + $0x64] sm:$0xf]
        %v5803 = vld [vmem:[#allocation10 + $0x68] sm:$0xf]
        %v5804 = vld [vmem:[#allocation10 + $0x6c] sm:$0xf]
        %v5805 = vld [vmem:[#allocation10 + $0x70] sm:$0xf]
        %v5806 = vld [vmem:[#allocation10 + $0x74] sm:$0xf]
        %v5807 = vld [vmem:[#allocation10 + $0x78] sm:$0xf]
        %v5808 = vld [vmem:[#allocation10 + $0x7c] sm:$0xf]
        %v5809 = vld [vmem:[%s12] sm:$0x1]
        %v5811 = vlaneseq
        %v5812 = vshrl.u32 %v5811, 7
        %v5813 = vsub.s32 0, %v5812
        %v5814 = vrot.slane %v5809, %v5813
        %v5848 = vunpack.c.l.b16 %v5777
        %v5849 = vunpack.c.l.b16 %v5778
        %v5850 = vunpack.c.l.b16 %v5779
        %v5851 = vunpack.c.l.b16 %v5780
        %v5852 = vunpack.c.l.b16 %v5781
        %v5853 = vunpack.c.l.b16 %v5782
        %v5854 = vunpack.c.l.b16 %v5783
        %v5855 = vunpack.c.l.b16 %v5784
        %v5856 = vunpack.c.l.b16 %v5785
        %v5857 = vunpack.c.l.b16 %v5786
        %v5858 = vunpack.c.l.b16 %v5787
        %v5859 = vunpack.c.l.b16 %v5788
        %v5860 = vunpack.c.l.b16 %v5789
        %v5861 = vunpack.c.l.b16 %v5790
        %v5862 = vunpack.c.l.b16 %v5791
        %v5863 = vunpack.c.l.b16 %v5792
        %v5864 = vunpack.c.l.b16 %v5793
        %v5865 = vunpack.c.l.b16 %v5794
        %v5866 = vunpack.c.l.b16 %v5795
        %v5867 = vunpack.c.l.b16 %v5796
        %v5868 = vunpack.c.l.b16 %v5797
        %v5869 = vunpack.c.l.b16 %v5798
        %v5870 = vunpack.c.l.b16 %v5799
        %v5871 = vunpack.c.l.b16 %v5800
        %v5872 = vunpack.c.l.b16 %v5801
        %v5873 = vunpack.c.l.b16 %v5802
        %v5874 = vunpack.c.l.b16 %v5803
        %v5875 = vunpack.c.l.b16 %v5804
        %v5876 = vunpack.c.l.b16 %v5805
        %v5877 = vunpack.c.l.b16 %v5806
        %v5878 = vunpack.c.l.b16 %v5807
        %v5879 = vunpack.c.l.b16 %v5808
        %v5880 = vpack.c.b16 %v5849, %v5848
        %v5881 = vpack.c.b16 %v5851, %v5850
        %v5882 = vpack.c.b16 %v5853, %v5852
        %v5883 = vpack.c.b16 %v5855, %v5854
        %v5884 = vpack.c.b16 %v5857, %v5856
        %v5885 = vpack.c.b16 %v5859, %v5858
        %v5886 = vpack.c.b16 %v5861, %v5860
        %v5887 = vpack.c.b16 %v5863, %v5862
        %v5888 = vpack.c.b16 %v5865, %v5864
        %v5889 = vpack.c.b16 %v5867, %v5866
        %v5890 = vpack.c.b16 %v5869, %v5868
        %v5891 = vpack.c.b16 %v5871, %v5870
        %v5892 = vpack.c.b16 %v5873, %v5872
        %v5893 = vpack.c.b16 %v5875, %v5874
        %v5894 = vpack.c.b16 %v5877, %v5876
        %v5895 = vpack.c.b16 %v5879, %v5878
        %5912 = vmatprep.subr.bf16.mxu0 0
        %5913 = vmatpush1.bf16.msra.mxu0 %v5880
        %5914 = vmatprep.subr.bf16.mxu0 0
        %5915 = vmatpush1.bf16.msra.mxu0 %v5881
        %5916 = vmatprep.subr.bf16.mxu0 0
        %5917 = vmatpush1.bf16.msra.mxu0 %v5882
        %5918 = vmatprep.subr.bf16.mxu0 0
        %5919 = vmatpush1.bf16.msra.mxu0 %v5883
        %5920 = vmatprep.subr.bf16.mxu0 0
        %5921 = vmatpush1.bf16.msra.mxu0 %v5884
        %5922 = vmatprep.subr.bf16.mxu0 0
        %5923 = vmatpush1.bf16.msra.mxu0 %v5885
        %5924 = vmatprep.subr.bf16.mxu0 0
        %5925 = vmatpush1.bf16.msra.mxu0 %v5886
        %5926 = vmatprep.subr.bf16.mxu0 0
        %5927 = vmatpush1.bf16.msra.mxu0 %v5887
        %5928 = vmatprep.subr.bf16.mxu0 0
        %5929 = vmatpush1.bf16.msra.mxu0 %v5888
        %5930 = vmatprep.subr.bf16.mxu0 0
        %5931 = vmatpush1.bf16.msra.mxu0 %v5889
        %5932 = vmatprep.subr.bf16.mxu0 0
        %5933 = vmatpush1.bf16.msra.mxu0 %v5890
        %5934 = vmatprep.subr.bf16.mxu0 0
        %5935 = vmatpush1.bf16.msra.mxu0 %v5891
        %5936 = vmatprep.subr.bf16.mxu0 0
        %5937 = vmatpush1.bf16.msra.mxu0 %v5892
        %5938 = vmatprep.subr.bf16.mxu0 0
        %5939 = vmatpush1.bf16.msra.mxu0 %v5893
        %5940 = vmatprep.subr.bf16.mxu0 0
        %5941 = vmatpush1.bf16.msra.mxu0 %v5894
        %5942 = vmatprep.subr.bf16.mxu0 0
        %5943 = vmatpush1.bf16.msra.mxu0 %v5895
        %5944 = vmatprep.mubr.bf16.mxu0 %v5762
        %5945 = vmatmul.mubr.bf16.gmra.mrb[0].mxu0 %v5761
        %v5946 = vpop.f32.mrb[0].mxu0
        %v5947 = vadd.f32 %v5814, %v5946
        %v5948 = vpop.f32.mrb[0].mxu0
        %v5949 = vpop.f32.mrb[0].mxu0
        %v5950 = vadd.f32 %v5814, %v5949
        %v5951 = vpop.f32.mrb[0].mxu0
        %5952 = vmatprep.mubr.bf16.mxu0 %v5764
        %5953 = vmatmul.mubr.bf16.gmra.mrb[0].mxu0 %v5763
        %v5954 = vpop.f32.mrb[0].mxu0
        %v5955 = vadd.f32 %v5814, %v5954
        %v5956 = vpop.f32.mrb[0].mxu0
        %v5957 = vpop.f32.mrb[0].mxu0
        %v5958 = vadd.f32 %v5814, %v5957
        %v5959 = vpop.f32.mrb[0].mxu0
        %5960 = vmatprep.mubr.bf16.mxu0 %v5766
        %5961 = vmatmul.mubr.bf16.gmra.mrb[0].mxu0 %v5765
        %v5962 = vpop.f32.mrb[0].mxu0
        %v5963 = vadd.f32 %v5814, %v5962
        %v5964 = vpop.f32.mrb[0].mxu0
        %v5965 = vpop.f32.mrb[0].mxu0
        %v5966 = vadd.f32 %v5814, %v5965
        %v5967 = vpop.f32.mrb[0].mxu0
        %5968 = vmatprep.mubr.bf16.mxu0 %v5768
        %5969 = vmatmul.mubr.bf16.gmra.mrb[0].mxu0 %v5767
        %v5970 = vpop.f32.mrb[0].mxu0
        %v5971 = vadd.f32 %v5814, %v5970
        %v5972 = vpop.f32.mrb[0].mxu0
        %v5973 = vpop.f32.mrb[0].mxu0
        %v5974 = vadd.f32 %v5814, %v5973
        %v5975 = vpop.f32.mrb[0].mxu0
        %5976 = vmatprep.mubr.bf16.mxu0 %v5770
        %5977 = vmatmul.mubr.bf16.gmra.mrb[0].mxu0 %v5769
        %v5978 = vpop.f32.mrb[0].mxu0
        %v5979 = vadd.f32 %v5814, %v5978
        %v5980 = vpop.f32.mrb[0].mxu0
        %v5981 = vpop.f32.mrb[0].mxu0
        %v5982 = vadd.f32 %v5814, %v5981
        %v5983 = vpop.f32.mrb[0].mxu0
        %5984 = vmatprep.mubr.bf16.mxu0 %v5772
        %5985 = vmatmul.mubr.bf16.gmra.mrb[0].mxu0 %v5771
        %v5986 = vpop.f32.mrb[0].mxu0
        %v5987 = vadd.f32 %v5814, %v5986
        %v5988 = vpop.f32.mrb[0].mxu0
        %v5989 = vpop.f32.mrb[0].mxu0
        %v5990 = vadd.f32 %v5814, %v5989
        %v5991 = vpop.f32.mrb[0].mxu0
        %5992 = vmatprep.mubr.bf16.mxu0 %v5774
        %5993 = vmatmul.mubr.bf16.gmra.mrb[0].mxu0 %v5773
        %v5994 = vpop.f32.mrb[0].mxu0
        %v5995 = vadd.f32 %v5814, %v5994
        %v5996 = vpop.f32.mrb[0].mxu0
        %v5997 = vpop.f32.mrb[0].mxu0
        %v5998 = vadd.f32 %v5814, %v5997
        %v5999 = vpop.f32.mrb[0].mxu0
        %6000 = vmatprep.mubr.bf16.mxu0 %v5776
        %6001 = vmatmul.mubr.bf16.gmra.mrb[0].mxu0 %v5775
        %v6002 = vpop.f32.mrb[0].mxu0
        %v6003 = vadd.f32 %v5814, %v6002
        %v6004 = vpop.f32.mrb[0].mxu0
        %v6005 = vpop.f32.mrb[0].mxu0
        %v6006 = vadd.f32 %v5814, %v6005
        %v6007 = vpop.f32.mrb[0].mxu0
        %6008 = vdwg.mxu0
        %v6009 = vadd.f32 %v4430, %v5947
        %v6010 = vadd.f32 %v4431, %v5950
        %v6011 = vadd.f32 %v4432, %v5955
        %v6012 = vadd.f32 %v4433, %v5958
        %v6013 = vadd.f32 %v4434, %v5963
        %v6014 = vadd.f32 %v4435, %v5966
        %v6015 = vadd.f32 %v4436, %v5971
        %v6016 = vadd.f32 %v4437, %v5974
        %v6017 = vadd.f32 %v4438, %v5979
        %v6018 = vadd.f32 %v4439, %v5982
        %v6019 = vadd.f32 %v4440, %v5987
        %v6020 = vadd.f32 %v4441, %v5990
        %v6021 = vadd.f32 %v4442, %v5995
        %v6022 = vadd.f32 %v4443, %v5998
        %v6023 = vadd.f32 %v4444, %v6003
        %v6024 = vadd.f32 %v4445, %v6006
        %6025 = vst [vmem:[%s517] sm:$0xff] %v6009
        %6026 = vst [vmem:[%s517 + $0x8] sm:$0xff] %v6010
        %6027 = vst [vmem:[%s517 + $0x10] sm:$0xff] %v6011
        %6028 = vst [vmem:[%s517 + $0x18] sm:$0xff] %v6012
        %6029 = vst [vmem:[%s517 + $0x20] sm:$0xff] %v6013
        %6030 = vst [vmem:[%s517 + $0x28] sm:$0xff] %v6014
        %6031 = vst [vmem:[%s517 + $0x30] sm:$0xff] %v6015
        %6032 = vst [vmem:[%s517 + $0x38] sm:$0xff] %v6016
        %6033 = vst [vmem:[%s517 + $0x40] sm:$0xff] %v6017
        %6034 = vst [vmem:[%s517 + $0x48] sm:$0xff] %v6018
        %6035 = vst [vmem:[%s517 + $0x50] sm:$0xff] %v6019
        %6036 = vst [vmem:[%s517 + $0x58] sm:$0xff] %v6020
        %6037 = vst [vmem:[%s517 + $0x60] sm:$0xff] %v6021
        %6038 = vst [vmem:[%s517 + $0x68] sm:$0xff] %v6022
        %6039 = vst [vmem:[%s517 + $0x70] sm:$0xff] %v6023
        %6040 = vst [vmem:[%s517 + $0x78] sm:$0xff] %v6024
        %s6041 = sand.u32 %s318, 1
        %s6042 = scalar_lea.sflag [#allocation4], %s6041
        %s6043 = sand.u32 %s318, 1
        %s6044 = smul.addr %s6043, 128
        %s6045 = scalar_lea.vmem [#allocation11], %s6044
        // Predicated region
        $region93: #{tpu_custom_call.1} parent=71 // pred_check
          %p6046 = pneg %p328
        $region94: #{tpu_custom_call.1} parent=71 // pred_check_branch
          %6048 = sbr.rel (%p6046) target = $region96
        $region95: #{tpu_custom_call.1} parent=71 // pred_region
          %s6049 = smul.u32 4, %s32
          %s6051 = ssub.s32 2048, 2048
          %6052 = vsyncadd %s6042, %s6051
          %s6053 = smul.addr %s6049, 4
          %s6054 = smul.addr %s6053, 128
          %s6055 = scalar_lea.hbm %s13, %s6054
          %s6056 = sshll.u32 %s6045, 4
          %s6057 = int_to_ptr.vmem [resolvable:$true] %s6056
          %6062 = dma.vmem_to_hbm [thread:$0]  %s6057, 2048, %s6055, %s6042, 128, 128, 8
        $region96: #{tpu_custom_call.1} parent=71 // pred_fallthru
          _
      $region72: #{tpu_custom_call.1} parent=5 // pred_fallthru
        _
      %p6063 = scmp.le.s32.totalorder 2, %s27
      // Predicated region
      $region97: #{tpu_custom_call.1} parent=5 // pred_check
        %p6064 = pneg %p6063
      $region98: #{tpu_custom_call.1} parent=5 // pred_check_branch
        %6066 = sbr.rel (%p6064) target = $region100
      $region99: #{tpu_custom_call.1} parent=5 // pred_region
        %s6067 = ssub.s32 %s27, 2
        // Predicated region
        $region101: #{tpu_custom_call.1} parent=99 // pred_check
          %p6068 = pneg %p334
        $region102: #{tpu_custom_call.1} parent=99 // pred_check_branch
          %6070 = sbr.rel (%p6068) target = $region104
        $region103: #{tpu_custom_call.1} parent=99 // pred_region
          %s6071 = sand.u32 %s319, 1
          %s6072 = scalar_lea.sflag [#allocation4], %s6071
          %s6073 = sand.u32 %s319, 1
          %s6074 = smul.addr %s6073, 128
          %s6075 = scalar_lea.vmem [#allocation11], %s6074
          %6076 = dma.done %s6072, 2048
        $region104: #{tpu_custom_call.1} parent=99 // pred_fallthru
          _
      $region100: #{tpu_custom_call.1} parent=5 // pred_fallthru
        _
    $region6: #{tpu_custom_call.1} parent=1 // loop_footer
      %s31 = sadd.s32 1, %s27
    $region7: #{tpu_custom_call.1} parent=1 // loop_footer_branch
      %26 = sbr.rel target = $region3
    $region8: #{tpu_custom_call.1} parent=1 // loop_exit
      _
    %6077 = vsyncpa [#allocation3], 1
    %s6078 = scalar_lea.sflag [#allocation3], 1
    %6079 = vsyncpa %s6078, 1
    %6080 = vsyncpa [#allocation6], 1
    %6081 = vsyncpa [#allocation9], 1
    %6082 = vsyncpa [#allocation4], 1
    %s6083 = scalar_lea.sflag [#allocation4], 1
    %6084 = vsyncpa %s6083, 1

</llo_original>
